<compile_context>
chip_gen: v5e
topology: v5e:2x2
jax: 0.10.0
libtpu: 0.0.40
codegen_flags: <defaults>
</compile_context>

<pallas_src>
import functools

import numpy as np
import jax
import jax.numpy as jnp
from jax.experimental import pallas as pl
from jax.experimental.pallas import tpu as pltpu


IMG_CIN_PAD = 16    # RGB (3) zero-padded to 16 input channels (bf16 sublane packing)
IMG_COUT_PAD = 8    # 3-channel output conv computed with Cout=8, sliced back to 3


def _halo(img_w):
    """Left/right halo widths for the flat zero-padded input scratch."""
    pad_r = img_w + 1
    pad_l = ((img_w + 1 + 127) // 128) * 128     # 128-aligned interior copy / centre tap
    return pad_l, pad_r


# ---------------------------------------------------------------------------
# Pallas kernel: fused 3x3 same-padding conv on a flattened (Cin, S=H*W) map
# ---------------------------------------------------------------------------
def _conv3x3_kernel(x_ref, w_ref, b_ref, o_ref, xpad_ref, stack_ref, *, img_w, s, act):
    """x_ref:     (1, Cin, S)            bf16 input block (spatial axis on lanes)
       w_ref:     (Cout, 9*Cin)          bf16 fused weights (tap-major columns)
       b_ref:     (Cout, 1)              f32  bias
       o_ref:     (1, Cout, S)           output block (bf16 hidden / f32 final)
       xpad_ref:  (Cin, pad_l+S+pad_r)   bf16 VMEM scratch, zero-haloed input
       stack_ref: (9*Cin, S)             bf16 VMEM scratch, stacked matmul operand"""
    cin = x_ref.shape[1]
    pad_l, pad_r = _halo(img_w)

    # Zero-haloed input built in VMEM (replaces the per-layer jnp.pad HBM round-trip).
    xpad_ref[:, pl.ds(0, pad_l)] = jnp.zeros((cin, pad_l), jnp.bfloat16)
    xpad_ref[:, pl.ds(pad_l + s, pad_r)] = jnp.zeros((cin, pad_r), jnp.bfloat16)
    xpad_ref[:, pl.ds(pad_l, s)] = x_ref[0, :, :]

    # Per-tap validity masks from a lane iota (computed in-kernel, never touches HBM).
    lane = jax.lax.broadcasted_iota(jnp.int32, (1, s), 1)
    if img_w & (img_w - 1) == 0:                 # power-of-two width: bitwise "mod"
        col = jnp.bitwise_and(lane, img_w - 1)
    else:
        col = jax.lax.rem(lane, img_w)

    # Stack the 9 shifted + masked slices into one (9*Cin, S) bf16 operand.
    for tap in range(9):                         # static, unrolled
        oy = tap // 3 - 1
        ox = tap % 3 - 1
        off = oy * img_w + ox
        xs = xpad_ref[:, pl.ds(pad_l + off, s)]  # bf16; no f32 cast round-trip
        conds = []
        if oy == -1:
            conds.append(lane >= img_w)          # row - 1 >= 0
        elif oy == 1:
            conds.append(lane < s - img_w)       # row + 1 <= H-1
        if ox == -1:
            conds.append(col >= 1)               # col - 1 >= 0
        elif ox == 1:
            conds.append(col <= img_w - 2)       # col + 1 <= W-1
        if conds:
            m = conds[0]
            for c in conds[1:]:
                m = jnp.logical_and(m, c)
            xs = jnp.where(m, xs, 0.0)           # zero row-wrap / border reads (bf16)
        stack_ref[pl.ds(tap * cin, cin), :] = xs

    # Single MXU contraction with K = 9*Cin, f32 accumulate + f32 epilogue (v5e-safe).
    acc = jnp.dot(w_ref[...], stack_ref[...], preferred_element_type=jnp.float32)
    acc = acc + b_ref[...]
    if act == "relu":
        acc = jnp.maximum(acc, 0.0)
    elif act == "sigmoid":
        acc = jax.nn.sigmoid(acc)
    o_ref[0] = acc.astype(o_ref.dtype)


def _conv_vmem_bytes(cin, cout, s, img_w, out_itemsize):
    pad_l, pad_r = _halo(img_w)
    bf = 2
    need = (2 * cin * s * bf                     # double-buffered input blocks
            + 2 * cout * s * out_itemsize        # double-buffered output blocks
            + cout * 9 * cin * bf + cout * 4     # weights + bias
            + cin * (pad_l + s + pad_r) * bf     # zero-haloed input scratch
            + 9 * cin * s * bf                   # stacked matmul operand scratch
            + cout * s * 4)                      # f32 accumulator
    return int(need * 1.25) + (1 << 20)


def _vmem_limit(need_bytes):
    """Raise the scoped VMEM limit only when the 16/32 MiB defaults are too small."""
    if need_bytes <= (12 << 20):
        return None
    try:
        cap = pltpu.get_tpu_info().vmem_capacity_bytes
    except Exception:                            # pragma: no cover - defensive fallback
        cap = 64 << 20                           # v7x per-TensorCore floor
    # TODO(synk): when need exceeds ~3/4 of VMEM switch to halo'd spatial tiles instead
    #             of whole-image blocks (see module TODO).
    return int(min(need_bytes, (cap * 3) // 4))


def conv3x3(x_flat, h, w, weight, bias, act="relu", out_dtype=jnp.bfloat16):
    """3x3 same-padding conv on (B, Cin, S=h*w) bf16 maps via the fused Pallas kernel."""
    b_, cin, s = x_flat.shape
    assert s == h * w
    cout, k9 = weight.shape
    assert k9 == 9 * cin
    pad_l, pad_r = _halo(w)
    kernel = functools.partial(_conv3x3_kernel, img_w=w, s=s, act=act)
    return pl.pallas_call(
        kernel,
        out_shape=jax.ShapeDtypeStruct((b_, cout, s), out_dtype),
        grid=(b_,),
        in_specs=[
            pl.BlockSpec((1, cin, s), lambda i: (i, 0, 0)),
            pl.BlockSpec((cout, 9 * cin), lambda i: (0, 0)),
            pl.BlockSpec((cout, 1), lambda i: (0, 0)),
        ],
        out_specs=pl.BlockSpec((1, cout, s), lambda i: (i, 0, 0)),
        scratch_shapes=[
            pltpu.VMEM((cin, pad_l + s + pad_r), jnp.bfloat16),
            pltpu.VMEM((9 * cin, s), jnp.bfloat16),
        ],
        compiler_params=pltpu.CompilerParams(
            dimension_semantics=("parallel",),
            vmem_limit_bytes=_vmem_limit(
                _conv_vmem_bytes(cin, cout, s, w, jnp.dtype(out_dtype).itemsize))),
    )(x_flat, weight, bias.reshape(cout, 1).astype(jnp.float32))


# ---------------------------------------------------------------------------
# XLA glue: exact stride-2 subsample and nearest 2x upsample on the flat layout
# ---------------------------------------------------------------------------
def downsample2x(x_flat, h, w):
    b_, c, _ = x_flat.shape
    x = x_flat.reshape(b_, c, h, w)[:, :, ::2, ::2]
    return x.reshape(b_, c, (h // 2) * (w // 2))


def upsample2x(x_flat, h, w):
    b_, c, _ = x_flat.shape
    x = x_flat.reshape(b_, c, h, w)
    x = jnp.repeat(jnp.repeat(x, 2, axis=2), 2, axis=3)
    return x.reshape(b_, c, (2 * h) * (2 * w))


# ---------------------------------------------------------------------------
# Parameters
# ---------------------------------------------------------------------------
def init_params(key, light_size, base_c=16):
    c1, c2, c4 = base_c, 2 * base_c, 4 * base_c
    conv_shapes = {
        "enc1": (IMG_CIN_PAD, c1), "enc2": (c1, c2), "enc3": (c2, c4),
        "dec1": (c4, c2), "dec2": (c2, c1), "out": (c1, IMG_COUT_PAD),
    }
    params = {}
    keys = jax.random.split(key, len(conv_shapes) + 2)
    for k_, (name, (cin, cout)) in zip(keys[:len(conv_shapes)],
                                       sorted(conv_shapes.items())):
        wgt = (jax.random.normal(k_, (cout, 9, cin), jnp.float32)
               * np.sqrt(2.0 / (9 * cin)))
        # Fused layout: columns ordered tap-major (tap*Cin + cin), matching the stacked
        # (9*Cin, S) operand the kernel builds -> a single K=9*Cin MXU contraction.
        params[name + "_w"] = wgt.reshape(cout, 9 * cin).astype(jnp.bfloat16)
        params[name + "_b"] = jnp.zeros((cout,), jnp.float32)
    params["light_out_w"] = (jax.random.normal(keys[-2], (c4, light_size), jnp.float32)
                             * np.sqrt(2.0 / c4))
    params["light_out_b"] = jnp.zeros((light_size,), jnp.float32)
    params["light_in_w"] = (jax.random.normal(keys[-1], (light_size, c4), jnp.float32)
                            * np.sqrt(2.0 / light_size))
    params["light_in_b"] = jnp.zeros((c4,), jnp.float32)
    return params


# ---------------------------------------------------------------------------
# PortraitRelightingNet forward  /  SIPR.forward
# ---------------------------------------------------------------------------
def sipr_forward(params, source_image_nchw, target_light):
    """source_image: (N,3,H,W) f32, target_light: (N, light_size) f32."""
    b_, cimg, h, w = source_image_nchw.shape
    assert h % 4 == 0 and w % 4 == 0, "two 2x downsamples need H, W divisible by 4"
    x = source_image_nchw.reshape(b_, cimg, h * w).astype(jnp.bfloat16)
    # One-time zero-pad of RGB -> IMG_CIN_PAD channels (clean sublane packing / MXU K).
    x = jnp.pad(x, ((0, 0), (0, IMG_CIN_PAD - cimg), (0, 0)))

    # Encoder (Pallas convs; stride-2 == stride-1 conv + exact subsample).
    # TODO(synk): fold the stride-2 subsample into the kernel's tap index math.
    e1 = conv3x3(x, h, w, params["enc1_w"], params["enc1_b"], act="relu")
    e2 = downsample2x(
        conv3x3(e1, h, w, params["enc2_w"], params["enc2_b"], act="relu"), h, w)
    h2, w2 = h // 2, w // 2
    e3 = downsample2x(
        conv3x3(e2, h2, w2, params["enc3_w"], params["enc3_b"], act="relu"), h2, w2)
    h4, w4 = h2 // 2, w2 // 2

    # Light head: tiny (<=64 channels) -> plain XLA; f32 pooling.
    pooled = jnp.mean(e3.astype(jnp.float32), axis=-1)                     # (N, 4C)
    source_light_pred = pooled @ params["light_out_w"] + params["light_out_b"]
    light_feat = jax.nn.relu(target_light @ params["light_in_w"]
                             + params["light_in_b"])
    bottleneck = e3 + light_feat[:, :, None].astype(e3.dtype)

    # Decoder (nearest 2x upsample + Pallas convs).
    # TODO(synk): fold the nearest upsample into the following conv's input indexing.
    d1 = conv3x3(upsample2x(bottleneck, h4, w4), h2, w2,
                 params["dec1_w"], params["dec1_b"], act="relu")
    d2 = conv3x3(upsample2x(d1, h2, w2), h, w,
                 params["dec2_w"], params["dec2_b"], act="relu")
    img = conv3x3(d2, h, w, params["out_w"], params["out_b"], act="sigmoid",
                  out_dtype=jnp.float32)
    img = img[:, :3]                                 # drop the padded output channels

    # NOTE: bf16 activations/weights with f32 accumulation -> compare against an f32
    #       PyTorch reference with a loose (~1e-2) tolerance.
    target_image_pred = img.reshape(b_, 3, h, w)     # flat (C, S) layout is already NCHW
    return target_image_pred, source_light_pred


# ---------------------------------------------------------------------------
# Main
# ---------------------------------------------------------------------------
if __name__ == "__main__":
    LIGHT_SIZE = 16
    B, H, W = 2, 16, 16       # B=2 -> two "parallel" grid steps (both v7x TensorCores)

    key = jax.random.PRNGKey(0)
    k_img, k_light, k_params = jax.random.split(key, 3)

    # Mirrors SIPR.render: source_image -> (N,3,H,W), target_light -> (N, light_size)
    source_image = jax.random.uniform(k_img, (B, 3, H, W), jnp.float32)
    target_light = jax.random.uniform(k_light, (B, LIGHT_SIZE), jnp.float32)
    params = init_params(k_params, LIGHT_SIZE, base_c=16)

    fwd = jax.jit(sipr_forward)
    rgb, light_pred = fwd(params, source_image, target_light)
    jax.block_until_ready((rgb, light_pred))

    assert rgb.shape == (B, 3, H, W), rgb.shape
    assert rgb.dtype == jnp.float32, rgb.dtype
    assert light_pred.shape == (B, LIGHT_SIZE), light_pred.shape
    print("KERNEL_OK")
</pallas_src>

<mosaic_0001>
module attributes {stable_mosaic.version = 11 : i64} {
  func.func @_conv3x3_kernel(%arg0: i32, %arg1: memref<1x16x256xbf16, #tpu.memory_space<vmem>>, %arg2: memref<16x144xbf16, #tpu.memory_space<vmem>>, %arg3: memref<16x1xf32, #tpu.memory_space<vmem>>, %arg4: memref<1x16x256xbf16, #tpu.memory_space<vmem>>, %arg5: memref<16x401xbf16, #tpu.memory_space<vmem>>, %arg6: memref<144x256xbf16, #tpu.memory_space<vmem>>) attributes {dimension_semantics = [#tpu.dimension_semantics<parallel>], iteration_bounds = array<i64: 2>, scalar_prefetch = 0 : i64, scratch_operands = 2 : i64, tpu.core_type = #tpu.core_type<tc>, window_params = [{transform_indices = @transform_0, window_bounds = array<i64: 1, 16, 256>}, {pipeline_mode = #tpu.pipeline_mode<synchronous>, transform_indices = @transform_1, window_bounds = array<i64: 16, 144>}, {pipeline_mode = #tpu.pipeline_mode<synchronous>, transform_indices = @transform_2, window_bounds = array<i64: 16, 1>}, {transform_indices = @transform_3, window_bounds = array<i64: 1, 16, 256>}]} {
    %cst = arith.constant 0.000000e+00 : bf16
    %0 = vector.broadcast %cst : bf16 to vector<16x128xbf16>
    %c0 = arith.constant 0 : index
    %c0_0 = arith.constant 0 : index
    %1 = vector.load %arg5[%c0, %c0_0] : memref<16x401xbf16, #tpu.memory_space<vmem>>, vector<16x128xbf16>
    tpu.vector_store %arg5[%c0, %c0_0], %0 {strides = array<i32>} : memref<16x401xbf16, #tpu.memory_space<vmem>>, vector<16x128xbf16>,
    %cst_1 = arith.constant 0.000000e+00 : bf16
    %2 = vector.broadcast %cst_1 : bf16 to vector<16x17xbf16>
    %c0_2 = arith.constant 0 : index
    %c384 = arith.constant 384 : index
    %3 = vector.load %arg5[%c0_2, %c384] : memref<16x401xbf16, #tpu.memory_space<vmem>>, vector<16x17xbf16>
    tpu.vector_store %arg5[%c0_2, %c384], %2 {strides = array<i32>} : memref<16x401xbf16, #tpu.memory_space<vmem>>, vector<16x17xbf16>,
    %c0_3 = arith.constant 0 : index
    %c0_4 = arith.constant 0 : index
    %c0_5 = arith.constant 0 : index
    %4 = vector.load %arg1[%c0_3, %c0_4, %c0_5] : memref<1x16x256xbf16, #tpu.memory_space<vmem>>, vector<1x16x256xbf16>
    %5 = vector.shape_cast %4 : vector<1x16x256xbf16> to vector<16x256xbf16>
    %c0_6 = arith.constant 0 : index
    %c128 = arith.constant 128 : index
    %6 = vector.load %arg5[%c0_6, %c128] : memref<16x401xbf16, #tpu.memory_space<vmem>>, vector<16x256xbf16>
    tpu.vector_store %arg5[%c0_6, %c128], %5 {strides = array<i32>} : memref<16x401xbf16, #tpu.memory_space<vmem>>, vector<16x256xbf16>,
    %7 = tpu.iota {dimensions = array<i32: 1>} : vector<1x256xi32>
    %c15_i32 = arith.constant 15 : i32
    %8 = vector.broadcast %c15_i32 : i32 to vector<1x256xi32>
    %9 = arith.andi %7, %8 : vector<1x256xi32>
    %c0_7 = arith.constant 0 : index
    %c111 = arith.constant 111 : index
    %10 = vector.load %arg5[%c0_7, %c111] : memref<16x401xbf16, #tpu.memory_space<vmem>>, vector<16x256xbf16>
    %c16_i32 = arith.constant 16 : i32
    %11 = vector.broadcast %c16_i32 : i32 to vector<1x256xi32>
    %12 = arith.cmpi sge, %7, %11 : vector<1x256xi32>
    %c1_i32 = arith.constant 1 : i32
    %13 = vector.broadcast %c1_i32 : i32 to vector<1x256xi32>
    %14 = arith.cmpi sge, %9, %13 : vector<1x256xi32>
    %15 = arith.andi %12, %14 : vector<1x256xi1>
    %cst_8 = arith.constant 0.000000e+00 : f32
    %16 = arith.truncf %cst_8 : f32 to bf16
    %17 = vector.shape_cast %15 : vector<1x256xi1> to vector<1x256xi1>
    %18 = vector.broadcast %17 : vector<1x256xi1> to vector<16x256xi1>
    %19 = vector.broadcast %16 : bf16 to vector<16x256xbf16>
    %20 = arith.select %18, %10, %19 : vector<16x256xi1>, vector<16x256xbf16>
    %c0_9 = arith.constant 0 : index
    %c0_10 = arith.constant 0 : index
    %21 = vector.load %arg6[%c0_9, %c0_10] : memref<144x256xbf16, #tpu.memory_space<vmem>>, vector<16x256xbf16>
    tpu.vector_store %arg6[%c0_9, %c0_10], %20 {strides = array<i32>} : memref<144x256xbf16, #tpu.memory_space<vmem>>, vector<16x256xbf16>,
    %c0_11 = arith.constant 0 : index
    %c112 = arith.constant 112 : index
    %22 = vector.load %arg5[%c0_11, %c112] : memref<16x401xbf16, #tpu.memory_space<vmem>>, vector<16x256xbf16>
    %c16_i32_12 = arith.constant 16 : i32
    %23 = vector.broadcast %c16_i32_12 : i32 to vector<1x256xi32>
    %24 = arith.cmpi sge, %7, %23 : vector<1x256xi32>
    %cst_13 = arith.constant 0.000000e+00 : f32
    %25 = arith.truncf %cst_13 : f32 to bf16
    %26 = vector.shape_cast %24 : vector<1x256xi1> to vector<1x256xi1>
    %27 = vector.broadcast %26 : vector<1x256xi1> to vector<16x256xi1>
    %28 = vector.broadcast %25 : bf16 to vector<16x256xbf16>
    %29 = arith.select %27, %22, %28 : vector<16x256xi1>, vector<16x256xbf16>
    %c16 = arith.constant 16 : index
    %c0_14 = arith.constant 0 : index
    %30 = vector.load %arg6[%c16, %c0_14] : memref<144x256xbf16, #tpu.memory_space<vmem>>, vector<16x256xbf16>
    tpu.vector_store %arg6[%c16, %c0_14], %29 {strides = array<i32>} : memref<144x256xbf16, #tpu.memory_space<vmem>>, vector<16x256xbf16>,
    %c0_15 = arith.constant 0 : index
    %c113 = arith.constant 113 : index
    %31 = vector.load %arg5[%c0_15, %c113] : memref<16x401xbf16, #tpu.memory_space<vmem>>, vector<16x256xbf16>
    %c16_i32_16 = arith.constant 16 : i32
    %32 = vector.broadcast %c16_i32_16 : i32 to vector<1x256xi32>
    %33 = arith.cmpi sge, %7, %32 : vector<1x256xi32>
    %c14_i32 = arith.constant 14 : i32
    %34 = vector.broadcast %c14_i32 : i32 to vector<1x256xi32>
    %35 = arith.cmpi sle, %9, %34 : vector<1x256xi32>
    %36 = arith.andi %33, %35 : vector<1x256xi1>
    %cst_17 = arith.constant 0.000000e+00 : f32
    %37 = arith.truncf %cst_17 : f32 to bf16
    %38 = vector.shape_cast %36 : vector<1x256xi1> to vector<1x256xi1>
    %39 = vector.broadcast %38 : vector<1x256xi1> to vector<16x256xi1>
    %40 = vector.broadcast %37 : bf16 to vector<16x256xbf16>
    %41 = arith.select %39, %31, %40 : vector<16x256xi1>, vector<16x256xbf16>
    %c32 = arith.constant 32 : index
    %c0_18 = arith.constant 0 : index
    %42 = vector.load %arg6[%c32, %c0_18] : memref<144x256xbf16, #tpu.memory_space<vmem>>, vector<16x256xbf16>
    tpu.vector_store %arg6[%c32, %c0_18], %41 {strides = array<i32>} : memref<144x256xbf16, #tpu.memory_space<vmem>>, vector<16x256xbf16>,
    %c0_19 = arith.constant 0 : index
    %c127 = arith.constant 127 : index
    %43 = vector.load %arg5[%c0_19, %c127] : memref<16x401xbf16, #tpu.memory_space<vmem>>, vector<16x256xbf16>
    %c1_i32_20 = arith.constant 1 : i32
    %44 = vector.broadcast %c1_i32_20 : i32 to vector<1x256xi32>
    %45 = arith.cmpi sge, %9, %44 : vector<1x256xi32>
    %cst_21 = arith.constant 0.000000e+00 : f32
    %46 = arith.truncf %cst_21 : f32 to bf16
    %47 = vector.shape_cast %45 : vector<1x256xi1> to vector<1x256xi1>
    %48 = vector.broadcast %47 : vector<1x256xi1> to vector<16x256xi1>
    %49 = vector.broadcast %46 : bf16 to vector<16x256xbf16>
    %50 = arith.select %48, %43, %49 : vector<16x256xi1>, vector<16x256xbf16>
    %c48 = arith.constant 48 : index
    %c0_22 = arith.constant 0 : index
    %51 = vector.load %arg6[%c48, %c0_22] : memref<144x256xbf16, #tpu.memory_space<vmem>>, vector<16x256xbf16>
    tpu.vector_store %arg6[%c48, %c0_22], %50 {strides = array<i32>} : memref<144x256xbf16, #tpu.memory_space<vmem>>, vector<16x256xbf16>,
    %c0_23 = arith.constant 0 : index
    %c128_24 = arith.constant 128 : index
    %52 = vector.load %arg5[%c0_23, %c128_24] : memref<16x401xbf16, #tpu.memory_space<vmem>>, vector<16x256xbf16>
    %c64 = arith.constant 64 : index
    %c0_25 = arith.constant 0 : index
    %53 = vector.load %arg6[%c64, %c0_25] : memref<144x256xbf16, #tpu.memory_space<vmem>>, vector<16x256xbf16>
    tpu.vector_store %arg6[%c64, %c0_25], %52 {strides = array<i32>} : memref<144x256xbf16, #tpu.memory_space<vmem>>, vector<16x256xbf16>,
    %c0_26 = arith.constant 0 : index
    %c129 = arith.constant 129 : index
    %54 = vector.load %arg5[%c0_26, %c129] : memref<16x401xbf16, #tpu.memory_space<vmem>>, vector<16x256xbf16>
    %c14_i32_27 = arith.constant 14 : i32
    %55 = vector.broadcast %c14_i32_27 : i32 to vector<1x256xi32>
    %56 = arith.cmpi sle, %9, %55 : vector<1x256xi32>
    %cst_28 = arith.constant 0.000000e+00 : f32
    %57 = arith.truncf %cst_28 : f32 to bf16
    %58 = vector.shape_cast %56 : vector<1x256xi1> to vector<1x256xi1>
    %59 = vector.broadcast %58 : vector<1x256xi1> to vector<16x256xi1>
    %60 = vector.broadcast %57 : bf16 to vector<16x256xbf16>
    %61 = arith.select %59, %54, %60 : vector<16x256xi1>, vector<16x256xbf16>
    %c80 = arith.constant 80 : index
    %c0_29 = arith.constant 0 : index
    %62 = vector.load %arg6[%c80, %c0_29] : memref<144x256xbf16, #tpu.memory_space<vmem>>, vector<16x256xbf16>
    tpu.vector_store %arg6[%c80, %c0_29], %61 {strides = array<i32>} : memref<144x256xbf16, #tpu.memory_space<vmem>>, vector<16x256xbf16>,
    %c0_30 = arith.constant 0 : index
    %c143 = arith.constant 143 : index
    %63 = vector.load %arg5[%c0_30, %c143] : memref<16x401xbf16, #tpu.memory_space<vmem>>, vector<16x256xbf16>
    %c240_i32 = arith.constant 240 : i32
    %64 = vector.broadcast %c240_i32 : i32 to vector<1x256xi32>
    %65 = arith.cmpi slt, %7, %64 : vector<1x256xi32>
    %c1_i32_31 = arith.constant 1 : i32
    %66 = vector.broadcast %c1_i32_31 : i32 to vector<1x256xi32>
    %67 = arith.cmpi sge, %9, %66 : vector<1x256xi32>
    %68 = arith.andi %65, %67 : vector<1x256xi1>
    %cst_32 = arith.constant 0.000000e+00 : f32
    %69 = arith.truncf %cst_32 : f32 to bf16
    %70 = vector.shape_cast %68 : vector<1x256xi1> to vector<1x256xi1>
    %71 = vector.broadcast %70 : vector<1x256xi1> to vector<16x256xi1>
    %72 = vector.broadcast %69 : bf16 to vector<16x256xbf16>
    %73 = arith.select %71, %63, %72 : vector<16x256xi1>, vector<16x256xbf16>
    %c96 = arith.constant 96 : index
    %c0_33 = arith.constant 0 : index
    %74 = vector.load %arg6[%c96, %c0_33] : memref<144x256xbf16, #tpu.memory_space<vmem>>, vector<16x256xbf16>
    tpu.vector_store %arg6[%c96, %c0_33], %73 {strides = array<i32>} : memref<144x256xbf16, #tpu.memory_space<vmem>>, vector<16x256xbf16>,
    %c0_34 = arith.constant 0 : index
    %c144 = arith.constant 144 : index
    %75 = vector.load %arg5[%c0_34, %c144] : memref<16x401xbf16, #tpu.memory_space<vmem>>, vector<16x256xbf16>
    %c240_i32_35 = arith.constant 240 : i32
    %76 = vector.broadcast %c240_i32_35 : i32 to vector<1x256xi32>
    %77 = arith.cmpi slt, %7, %76 : vector<1x256xi32>
    %cst_36 = arith.constant 0.000000e+00 : f32
    %78 = arith.truncf %cst_36 : f32 to bf16
    %79 = vector.shape_cast %77 : vector<1x256xi1> to vector<1x256xi1>
    %80 = vector.broadcast %79 : vector<1x256xi1> to vector<16x256xi1>
    %81 = vector.broadcast %78 : bf16 to vector<16x256xbf16>
    %82 = arith.select %80, %75, %81 : vector<16x256xi1>, vector<16x256xbf16>
    %c112_37 = arith.constant 112 : index
    %c0_38 = arith.constant 0 : index
    %83 = vector.load %arg6[%c112_37, %c0_38] : memref<144x256xbf16, #tpu.memory_space<vmem>>, vector<16x256xbf16>
    tpu.vector_store %arg6[%c112_37, %c0_38], %82 {strides = array<i32>} : memref<144x256xbf16, #tpu.memory_space<vmem>>, vector<16x256xbf16>,
    %c0_39 = arith.constant 0 : index
    %c145 = arith.constant 145 : index
    %84 = vector.load %arg5[%c0_39, %c145] : memref<16x401xbf16, #tpu.memory_space<vmem>>, vector<16x256xbf16>
    %c240_i32_40 = arith.constant 240 : i32
    %85 = vector.broadcast %c240_i32_40 : i32 to vector<1x256xi32>
    %86 = arith.cmpi slt, %7, %85 : vector<1x256xi32>
    %c14_i32_41 = arith.constant 14 : i32
    %87 = vector.broadcast %c14_i32_41 : i32 to vector<1x256xi32>
    %88 = arith.cmpi sle, %9, %87 : vector<1x256xi32>
    %89 = arith.andi %86, %88 : vector<1x256xi1>
    %cst_42 = arith.constant 0.000000e+00 : f32
    %90 = arith.truncf %cst_42 : f32 to bf16
    %91 = vector.shape_cast %89 : vector<1x256xi1> to vector<1x256xi1>
    %92 = vector.broadcast %91 : vector<1x256xi1> to vector<16x256xi1>
    %93 = vector.broadcast %90 : bf16 to vector<16x256xbf16>
    %94 = arith.select %92, %84, %93 : vector<16x256xi1>, vector<16x256xbf16>
    %c128_43 = arith.constant 128 : index
    %c0_44 = arith.constant 0 : index
    %95 = vector.load %arg6[%c128_43, %c0_44] : memref<144x256xbf16, #tpu.memory_space<vmem>>, vector<16x256xbf16>
    tpu.vector_store %arg6[%c128_43, %c0_44], %94 {strides = array<i32>} : memref<144x256xbf16, #tpu.memory_space<vmem>>, vector<16x256xbf16>,
    %c0_45 = arith.constant 0 : index
    %c0_46 = arith.constant 0 : index
    %96 = vector.load %arg2[%c0_45, %c0_46] : memref<16x144xbf16, #tpu.memory_space<vmem>>, vector<16x144xbf16>
    %c0_47 = arith.constant 0 : index
    %c0_48 = arith.constant 0 : index
    %97 = vector.load %arg6[%c0_47, %c0_48] : memref<144x256xbf16, #tpu.memory_space<vmem>>, vector<144x256xbf16>
    %cst_49 = arith.constant dense<0.000000e+00> : vector<16x256xf32>
    %98 = tpu.matmul %96, %97, %cst_49 {dimension_numbers = #tpu.dot_dimension_numbers<[1], [0], [0], [1], [0, 0, 1, 1], [], []>} : vector<16x144xbf16>, vector<144x256xbf16>, vector<16x256xf32> -> vector<16x256xf32>
    %c0_50 = arith.constant 0 : index
    %c0_51 = arith.constant 0 : index
    %99 = vector.load %arg3[%c0_50, %c0_51] : memref<16x1xf32, #tpu.memory_space<vmem>>, vector<16x1xf32>
    %100 = vector.broadcast %99 : vector<16x1xf32> to vector<16x256xf32>
    %101 = arith.addf %98, %100 : vector<16x256xf32>
    %cst_52 = arith.constant 0.000000e+00 : f32
    %102 = vector.broadcast %cst_52 : f32 to vector<16x256xf32>
    %103 = arith.maximumf %101, %102 : vector<16x256xf32>
    %104 = arith.truncf %103 : vector<16x256xf32> to vector<16x256xbf16>
    %c0_53 = arith.constant 0 : index
    %c0_54 = arith.constant 0 : index
    %c0_55 = arith.constant 0 : index
    %105 = vector.load %arg4[%c0_53, %c0_54, %c0_55] : memref<1x16x256xbf16, #tpu.memory_space<vmem>>, vector<1x16x256xbf16>
    %106 = vector.shape_cast %105 : vector<1x16x256xbf16> to vector<16x256xbf16>
    %107 = vector.shape_cast %104 : vector<16x256xbf16> to vector<1x16x256xbf16>
    tpu.vector_store %arg4[%c0_53, %c0_54, %c0_55], %107 {strides = array<i32>} : memref<1x16x256xbf16, #tpu.memory_space<vmem>>, vector<1x16x256xbf16>,
    return
  }
  func.func @transform_0(%arg0: i32) -> (i32, i32, i32) {
    %c0_i32 = arith.constant 0 : i32
    %c0_i32_0 = arith.constant 0 : i32
    %c0_i32_1 = arith.constant 0 : i32
    return %arg0, %c0_i32, %c0_i32_0 : i32, i32, i32
  }
  func.func @transform_1(%arg0: i32) -> (i32, i32) {
    %c0_i32 = arith.constant 0 : i32
    %c0_i32_0 = arith.constant 0 : i32
    %c0_i32_1 = arith.constant 0 : i32
    return %c0_i32, %c0_i32_0 : i32, i32
  }
  func.func @transform_2(%arg0: i32) -> (i32, i32) {
    %c0_i32 = arith.constant 0 : i32
    %c0_i32_0 = arith.constant 0 : i32
    %c0_i32_1 = arith.constant 0 : i32
    return %c0_i32, %c0_i32_0 : i32, i32
  }
  func.func @transform_3(%arg0: i32) -> (i32, i32, i32) {
    %c0_i32 = arith.constant 0 : i32
    %c0_i32_0 = arith.constant 0 : i32
    %c0_i32_1 = arith.constant 0 : i32
    return %arg0, %c0_i32, %c0_i32_0 : i32, i32, i32
  }
}

module attributes {stable_mosaic.version = 11 : i64} {
  func.func @_conv3x3_kernel(%arg0: i32, %arg1: memref<1x16x256xbf16, #tpu.memory_space<vmem>>, %arg2: memref<32x144xbf16, #tpu.memory_space<vmem>>, %arg3: memref<32x1xf32, #tpu.memory_space<vmem>>, %arg4: memref<1x32x256xbf16, #tpu.memory_space<vmem>>, %arg5: memref<16x401xbf16, #tpu.memory_space<vmem>>, %arg6: memref<144x256xbf16, #tpu.memory_space<vmem>>) attributes {dimension_semantics = [#tpu.dimension_semantics<parallel>], iteration_bounds = array<i64: 2>, scalar_prefetch = 0 : i64, scratch_operands = 2 : i64, tpu.core_type = #tpu.core_type<tc>, window_params = [{transform_indices = @transform_0, window_bounds = array<i64: 1, 16, 256>}, {pipeline_mode = #tpu.pipeline_mode<synchronous>, transform_indices = @transform_1, window_bounds = array<i64: 32, 144>}, {pipeline_mode = #tpu.pipeline_mode<synchronous>, transform_indices = @transform_2, window_bounds = array<i64: 32, 1>}, {transform_indices = @transform_3, window_bounds = array<i64: 1, 32, 256>}]} {
    %cst = arith.constant 0.000000e+00 : bf16
    %0 = vector.broadcast %cst : bf16 to vector<16x128xbf16>
    %c0 = arith.constant 0 : index
    %c0_0 = arith.constant 0 : index
    %1 = vector.load %arg5[%c0, %c0_0] : memref<16x401xbf16, #tpu.memory_space<vmem>>, vector<16x128xbf16>
    tpu.vector_store %arg5[%c0, %c0_0], %0 {strides = array<i32>} : memref<16x401xbf16, #tpu.memory_space<vmem>>, vector<16x128xbf16>,
    %cst_1 = arith.constant 0.000000e+00 : bf16
    %2 = vector.broadcast %cst_1 : bf16 to vector<16x17xbf16>
    %c0_2 = arith.constant 0 : index
    %c384 = arith.constant 384 : index
    %3 = vector.load %arg5[%c0_2, %c384] : memref<16x401xbf16, #tpu.memory_space<vmem>>, vector<16x17xbf16>
    tpu.vector_store %arg5[%c0_2, %c384], %2 {strides = array<i32>} : memref<16x401xbf16, #tpu.memory_space<vmem>>, vector<16x17xbf16>,
    %c0_3 = arith.constant 0 : index
    %c0_4 = arith.constant 0 : index
    %c0_5 = arith.constant 0 : index
    %4 = vector.load %arg1[%c0_3, %c0_4, %c0_5] : memref<1x16x256xbf16, #tpu.memory_space<vmem>>, vector<1x16x256xbf16>
    %5 = vector.shape_cast %4 : vector<1x16x256xbf16> to vector<16x256xbf16>
    %c0_6 = arith.constant 0 : index
    %c128 = arith.constant 128 : index
    %6 = vector.load %arg5[%c0_6, %c128] : memref<16x401xbf16, #tpu.memory_space<vmem>>, vector<16x256xbf16>
    tpu.vector_store %arg5[%c0_6, %c128], %5 {strides = array<i32>} : memref<16x401xbf16, #tpu.memory_space<vmem>>, vector<16x256xbf16>,
    %7 = tpu.iota {dimensions = array<i32: 1>} : vector<1x256xi32>
    %c15_i32 = arith.constant 15 : i32
    %8 = vector.broadcast %c15_i32 : i32 to vector<1x256xi32>
    %9 = arith.andi %7, %8 : vector<1x256xi32>
    %c0_7 = arith.constant 0 : index
    %c111 = arith.constant 111 : index
    %10 = vector.load %arg5[%c0_7, %c111] : memref<16x401xbf16, #tpu.memory_space<vmem>>, vector<16x256xbf16>
    %c16_i32 = arith.constant 16 : i32
    %11 = vector.broadcast %c16_i32 : i32 to vector<1x256xi32>
    %12 = arith.cmpi sge, %7, %11 : vector<1x256xi32>
    %c1_i32 = arith.constant 1 : i32
    %13 = vector.broadcast %c1_i32 : i32 to vector<1x256xi32>
    %14 = arith.cmpi sge, %9, %13 : vector<1x256xi32>
    %15 = arith.andi %12, %14 : vector<1x256xi1>
    %cst_8 = arith.constant 0.000000e+00 : f32
    %16 = arith.truncf %cst_8 : f32 to bf16
    %17 = vector.shape_cast %15 : vector<1x256xi1> to vector<1x256xi1>
    %18 = vector.broadcast %17 : vector<1x256xi1> to vector<16x256xi1>
    %19 = vector.broadcast %16 : bf16 to vector<16x256xbf16>
    %20 = arith.select %18, %10, %19 : vector<16x256xi1>, vector<16x256xbf16>
    %c0_9 = arith.constant 0 : index
    %c0_10 = arith.constant 0 : index
    %21 = vector.load %arg6[%c0_9, %c0_10] : memref<144x256xbf16, #tpu.memory_space<vmem>>, vector<16x256xbf16>
    tpu.vector_store %arg6[%c0_9, %c0_10], %20 {strides = array<i32>} : memref<144x256xbf16, #tpu.memory_space<vmem>>, vector<16x256xbf16>,
    %c0_11 = arith.constant 0 : index
    %c112 = arith.constant 112 : index
    %22 = vector.load %arg5[%c0_11, %c112] : memref<16x401xbf16, #tpu.memory_space<vmem>>, vector<16x256xbf16>
    %c16_i32_12 = arith.constant 16 : i32
    %23 = vector.broadcast %c16_i32_12 : i32 to vector<1x256xi32>
    %24 = arith.cmpi sge, %7, %23 : vector<1x256xi32>
    %cst_13 = arith.constant 0.000000e+00 : f32
    %25 = arith.truncf %cst_13 : f32 to bf16
    %26 = vector.shape_cast %24 : vector<1x256xi1> to vector<1x256xi1>
    %27 = vector.broadcast %26 : vector<1x256xi1> to vector<16x256xi1>
    %28 = vector.broadcast %25 : bf16 to vector<16x256xbf16>
    %29 = arith.select %27, %22, %28 : vector<16x256xi1>, vector<16x256xbf16>
    %c16 = arith.constant 16 : index
    %c0_14 = arith.constant 0 : index
    %30 = vector.load %arg6[%c16, %c0_14] : memref<144x256xbf16, #tpu.memory_space<vmem>>, vector<16x256xbf16>
    tpu.vector_store %arg6[%c16, %c0_14], %29 {strides = array<i32>} : memref<144x256xbf16, #tpu.memory_space<vmem>>, vector<16x256xbf16>,
    %c0_15 = arith.constant 0 : index
    %c113 = arith.constant 113 : index
    %31 = vector.load %arg5[%c0_15, %c113] : memref<16x401xbf16, #tpu.memory_space<vmem>>, vector<16x256xbf16>
    %c16_i32_16 = arith.constant 16 : i32
    %32 = vector.broadcast %c16_i32_16 : i32 to vector<1x256xi32>
    %33 = arith.cmpi sge, %7, %32 : vector<1x256xi32>
    %c14_i32 = arith.constant 14 : i32
    %34 = vector.broadcast %c14_i32 : i32 to vector<1x256xi32>
    %35 = arith.cmpi sle, %9, %34 : vector<1x256xi32>
    %36 = arith.andi %33, %35 : vector<1x256xi1>
    %cst_17 = arith.constant 0.000000e+00 : f32
    %37 = arith.truncf %cst_17 : f32 to bf16
    %38 = vector.shape_cast %36 : vector<1x256xi1> to vector<1x256xi1>
    %39 = vector.broadcast %38 : vector<1x256xi1> to vector<16x256xi1>
    %40 = vector.broadcast %37 : bf16 to vector<16x256xbf16>
    %41 = arith.select %39, %31, %40 : vector<16x256xi1>, vector<16x256xbf16>
    %c32 = arith.constant 32 : index
    %c0_18 = arith.constant 0 : index
    %42 = vector.load %arg6[%c32, %c0_18] : memref<144x256xbf16, #tpu.memory_space<vmem>>, vector<16x256xbf16>
    tpu.vector_store %arg6[%c32, %c0_18], %41 {strides = array<i32>} : memref<144x256xbf16, #tpu.memory_space<vmem>>, vector<16x256xbf16>,
    %c0_19 = arith.constant 0 : index
    %c127 = arith.constant 127 : index
    %43 = vector.load %arg5[%c0_19, %c127] : memref<16x401xbf16, #tpu.memory_space<vmem>>, vector<16x256xbf16>
    %c1_i32_20 = arith.constant 1 : i32
    %44 = vector.broadcast %c1_i32_20 : i32 to vector<1x256xi32>
    %45 = arith.cmpi sge, %9, %44 : vector<1x256xi32>
    %cst_21 = arith.constant 0.000000e+00 : f32
    %46 = arith.truncf %cst_21 : f32 to bf16
    %47 = vector.shape_cast %45 : vector<1x256xi1> to vector<1x256xi1>
    %48 = vector.broadcast %47 : vector<1x256xi1> to vector<16x256xi1>
    %49 = vector.broadcast %46 : bf16 to vector<16x256xbf16>
    %50 = arith.select %48, %43, %49 : vector<16x256xi1>, vector<16x256xbf16>
    %c48 = arith.constant 48 : index
    %c0_22 = arith.constant 0 : index
    %51 = vector.load %arg6[%c48, %c0_22] : memref<144x256xbf16, #tpu.memory_space<vmem>>, vector<16x256xbf16>
    tpu.vector_store %arg6[%c48, %c0_22], %50 {strides = array<i32>} : memref<144x256xbf16, #tpu.memory_space<vmem>>, vector<16x256xbf16>,
    %c0_23 = arith.constant 0 : index
    %c128_24 = arith.constant 128 : index
    %52 = vector.load %arg5[%c0_23, %c128_24] : memref<16x401xbf16, #tpu.memory_space<vmem>>, vector<16x256xbf16>
    %c64 = arith.constant 64 : index
    %c0_25 = arith.constant 0 : index
    %53 = vector.load %arg6[%c64, %c0_25] : memref<144x256xbf16, #tpu.memory_space<vmem>>, vector<16x256xbf16>
    tpu.vector_store %arg6[%c64, %c0_25], %52 {strides = array<i32>} : memref<144x256xbf16, #tpu.memory_space<vmem>>, vector<16x256xbf16>,
    %c0_26 = arith.constant 0 : index
    %c129 = arith.constant 129 : index
    %54 = vector.load %arg5[%c0_26, %c129] : memref<16x401xbf16, #tpu.memory_space<vmem>>, vector<16x256xbf16>
    %c14_i32_27 = arith.constant 14 : i32
    %55 = vector.broadcast %c14_i32_27 : i32 to vector<1x256xi32>
    %56 = arith.cmpi sle, %9, %55 : vector<1x256xi32>
    %cst_28 = arith.constant 0.000000e+00 : f32
    %57 = arith.truncf %cst_28 : f32 to bf16
    %58 = vector.shape_cast %56 : vector<1x256xi1> to vector<1x256xi1>
    %59 = vector.broadcast %58 : vector<1x256xi1> to vector<16x256xi1>
    %60 = vector.broadcast %57 : bf16 to vector<16x256xbf16>
    %61 = arith.select %59, %54, %60 : vector<16x256xi1>, vector<16x256xbf16>
    %c80 = arith.constant 80 : index
    %c0_29 = arith.constant 0 : index
    %62 = vector.load %arg6[%c80, %c0_29] : memref<144x256xbf16, #tpu.memory_space<vmem>>, vector<16x256xbf16>
    tpu.vector_store %arg6[%c80, %c0_29], %61 {strides = array<i32>} : memref<144x256xbf16, #tpu.memory_space<vmem>>, vector<16x256xbf16>,
    %c0_30 = arith.constant 0 : index
    %c143 = arith.constant 143 : index
    %63 = vector.load %arg5[%c0_30, %c143] : memref<16x401xbf16, #tpu.memory_space<vmem>>, vector<16x256xbf16>
    %c240_i32 = arith.constant 240 : i32
    %64 = vector.broadcast %c240_i32 : i32 to vector<1x256xi32>
    %65 = arith.cmpi slt, %7, %64 : vector<1x256xi32>
    %c1_i32_31 = arith.constant 1 : i32
    %66 = vector.broadcast %c1_i32_31 : i32 to vector<1x256xi32>
    %67 = arith.cmpi sge, %9, %66 : vector<1x256xi32>
    %68 = arith.andi %65, %67 : vector<1x256xi1>
    %cst_32 = arith.constant 0.000000e+00 : f32
    %69 = arith.truncf %cst_32 : f32 to bf16
    %70 = vector.shape_cast %68 : vector<1x256xi1> to vector<1x256xi1>
    %71 = vector.broadcast %70 : vector<1x256xi1> to vector<16x256xi1>
    %72 = vector.broadcast %69 : bf16 to vector<16x256xbf16>
    %73 = arith.select %71, %63, %72 : vector<16x256xi1>, vector<16x256xbf16>
    %c96 = arith.constant 96 : index
    %c0_33 = arith.constant 0 : index
    %74 = vector.load %arg6[%c96, %c0_33] : memref<144x256xbf16, #tpu.memory_space<vmem>>, vector<16x256xbf16>
    tpu.vector_store %arg6[%c96, %c0_33], %73 {strides = array<i32>} : memref<144x256xbf16, #tpu.memory_space<vmem>>, vector<16x256xbf16>,
    %c0_34 = arith.constant 0 : index
    %c144 = arith.constant 144 : index
    %75 = vector.load %arg5[%c0_34, %c144] : memref<16x401xbf16, #tpu.memory_space<vmem>>, vector<16x256xbf16>
    %c240_i32_35 = arith.constant 240 : i32
    %76 = vector.broadcast %c240_i32_35 : i32 to vector<1x256xi32>
    %77 = arith.cmpi slt, %7, %76 : vector<1x256xi32>
    %cst_36 = arith.constant 0.000000e+00 : f32
    %78 = arith.truncf %cst_36 : f32 to bf16
    %79 = vector.shape_cast %77 : vector<1x256xi1> to vector<1x256xi1>
    %80 = vector.broadcast %79 : vector<1x256xi1> to vector<16x256xi1>
    %81 = vector.broadcast %78 : bf16 to vector<16x256xbf16>
    %82 = arith.select %80, %75, %81 : vector<16x256xi1>, vector<16x256xbf16>
    %c112_37 = arith.constant 112 : index
    %c0_38 = arith.constant 0 : index
    %83 = vector.load %arg6[%c112_37, %c0_38] : memref<144x256xbf16, #tpu.memory_space<vmem>>, vector<16x256xbf16>
    tpu.vector_store %arg6[%c112_37, %c0_38], %82 {strides = array<i32>} : memref<144x256xbf16, #tpu.memory_space<vmem>>, vector<16x256xbf16>,
    %c0_39 = arith.constant 0 : index
    %c145 = arith.constant 145 : index
    %84 = vector.load %arg5[%c0_39, %c145] : memref<16x401xbf16, #tpu.memory_space<vmem>>, vector<16x256xbf16>
    %c240_i32_40 = arith.constant 240 : i32
    %85 = vector.broadcast %c240_i32_40 : i32 to vector<1x256xi32>
    %86 = arith.cmpi slt, %7, %85 : vector<1x256xi32>
    %c14_i32_41 = arith.constant 14 : i32
    %87 = vector.broadcast %c14_i32_41 : i32 to vector<1x256xi32>
    %88 = arith.cmpi sle, %9, %87 : vector<1x256xi32>
    %89 = arith.andi %86, %88 : vector<1x256xi1>
    %cst_42 = arith.constant 0.000000e+00 : f32
    %90 = arith.truncf %cst_42 : f32 to bf16
    %91 = vector.shape_cast %89 : vector<1x256xi1> to vector<1x256xi1>
    %92 = vector.broadcast %91 : vector<1x256xi1> to vector<16x256xi1>
    %93 = vector.broadcast %90 : bf16 to vector<16x256xbf16>
    %94 = arith.select %92, %84, %93 : vector<16x256xi1>, vector<16x256xbf16>
    %c128_43 = arith.constant 128 : index
    %c0_44 = arith.constant 0 : index
    %95 = vector.load %arg6[%c128_43, %c0_44] : memref<144x256xbf16, #tpu.memory_space<vmem>>, vector<16x256xbf16>
    tpu.vector_store %arg6[%c128_43, %c0_44], %94 {strides = array<i32>} : memref<144x256xbf16, #tpu.memory_space<vmem>>, vector<16x256xbf16>,
    %c0_45 = arith.constant 0 : index
    %c0_46 = arith.constant 0 : index
    %96 = vector.load %arg2[%c0_45, %c0_46] : memref<32x144xbf16, #tpu.memory_space<vmem>>, vector<32x144xbf16>
    %c0_47 = arith.constant 0 : index
    %c0_48 = arith.constant 0 : index
    %97 = vector.load %arg6[%c0_47, %c0_48] : memref<144x256xbf16, #tpu.memory_space<vmem>>, vector<144x256xbf16>
    %cst_49 = arith.constant dense<0.000000e+00> : vector<32x256xf32>
    %98 = tpu.matmul %96, %97, %cst_49 {dimension_numbers = #tpu.dot_dimension_numbers<[1], [0], [0], [1], [0, 0, 1, 1], [], []>} : vector<32x144xbf16>, vector<144x256xbf16>, vector<32x256xf32> -> vector<32x256xf32>
    %c0_50 = arith.constant 0 : index
    %c0_51 = arith.constant 0 : index
    %99 = vector.load %arg3[%c0_50, %c0_51] : memref<32x1xf32, #tpu.memory_space<vmem>>, vector<32x1xf32>
    %100 = vector.broadcast %99 : vector<32x1xf32> to vector<32x256xf32>
    %101 = arith.addf %98, %100 : vector<32x256xf32>
    %cst_52 = arith.constant 0.000000e+00 : f32
    %102 = vector.broadcast %cst_52 : f32 to vector<32x256xf32>
    %103 = arith.maximumf %101, %102 : vector<32x256xf32>
    %104 = arith.truncf %103 : vector<32x256xf32> to vector<32x256xbf16>
    %c0_53 = arith.constant 0 : index
    %c0_54 = arith.constant 0 : index
    %c0_55 = arith.constant 0 : index
    %105 = vector.load %arg4[%c0_53, %c0_54, %c0_55] : memref<1x32x256xbf16, #tpu.memory_space<vmem>>, vector<1x32x256xbf16>
    %106 = vector.shape_cast %105 : vector<1x32x256xbf16> to vector<32x256xbf16>
    %107 = vector.shape_cast %104 : vector<32x256xbf16> to vector<1x32x256xbf16>
    tpu.vector_store %arg4[%c0_53, %c0_54, %c0_55], %107 {strides = array<i32>} : memref<1x32x256xbf16, #tpu.memory_space<vmem>>, vector<1x32x256xbf16>,
    return
  }
  func.func @transform_0(%arg0: i32) -> (i32, i32, i32) {
    %c0_i32 = arith.constant 0 : i32
    %c0_i32_0 = arith.constant 0 : i32
    %c0_i32_1 = arith.constant 0 : i32
    return %arg0, %c0_i32, %c0_i32_0 : i32, i32, i32
  }
  func.func @transform_1(%arg0: i32) -> (i32, i32) {
    %c0_i32 = arith.constant 0 : i32
    %c0_i32_0 = arith.constant 0 : i32
    %c0_i32_1 = arith.constant 0 : i32
    return %c0_i32, %c0_i32_0 : i32, i32
  }
  func.func @transform_2(%arg0: i32) -> (i32, i32) {
    %c0_i32 = arith.constant 0 : i32
    %c0_i32_0 = arith.constant 0 : i32
    %c0_i32_1 = arith.constant 0 : i32
    return %c0_i32, %c0_i32_0 : i32, i32
  }
  func.func @transform_3(%arg0: i32) -> (i32, i32, i32) {
    %c0_i32 = arith.constant 0 : i32
    %c0_i32_0 = arith.constant 0 : i32
    %c0_i32_1 = arith.constant 0 : i32
    return %arg0, %c0_i32, %c0_i32_0 : i32, i32, i32
  }
}

module attributes {stable_mosaic.version = 11 : i64} {
  func.func @_conv3x3_kernel(%arg0: i32, %arg1: memref<1x32x64xbf16, #tpu.memory_space<vmem>>, %arg2: memref<64x288xbf16, #tpu.memory_space<vmem>>, %arg3: memref<64x1xf32, #tpu.memory_space<vmem>>, %arg4: memref<1x64x64xbf16, #tpu.memory_space<vmem>>, %arg5: memref<32x201xbf16, #tpu.memory_space<vmem>>, %arg6: memref<288x64xbf16, #tpu.memory_space<vmem>>) attributes {dimension_semantics = [#tpu.dimension_semantics<parallel>], iteration_bounds = array<i64: 2>, scalar_prefetch = 0 : i64, scratch_operands = 2 : i64, tpu.core_type = #tpu.core_type<tc>, window_params = [{transform_indices = @transform_0, window_bounds = array<i64: 1, 32, 64>}, {pipeline_mode = #tpu.pipeline_mode<synchronous>, transform_indices = @transform_1, window_bounds = array<i64: 64, 288>}, {pipeline_mode = #tpu.pipeline_mode<synchronous>, transform_indices = @transform_2, window_bounds = array<i64: 64, 1>}, {transform_indices = @transform_3, window_bounds = array<i64: 1, 64, 64>}]} {
    %cst = arith.constant 0.000000e+00 : bf16
    %0 = vector.broadcast %cst : bf16 to vector<32x128xbf16>
    %c0 = arith.constant 0 : index
    %c0_0 = arith.constant 0 : index
    %1 = vector.load %arg5[%c0, %c0_0] : memref<32x201xbf16, #tpu.memory_space<vmem>>, vector<32x128xbf16>
    tpu.vector_store %arg5[%c0, %c0_0], %0 {strides = array<i32>} : memref<32x201xbf16, #tpu.memory_space<vmem>>, vector<32x128xbf16>,
    %cst_1 = arith.constant 0.000000e+00 : bf16
    %2 = vector.broadcast %cst_1 : bf16 to vector<32x9xbf16>
    %c0_2 = arith.constant 0 : index
    %c192 = arith.constant 192 : index
    %3 = vector.load %arg5[%c0_2, %c192] : memref<32x201xbf16, #tpu.memory_space<vmem>>, vector<32x9xbf16>
    tpu.vector_store %arg5[%c0_2, %c192], %2 {strides = array<i32>} : memref<32x201xbf16, #tpu.memory_space<vmem>>, vector<32x9xbf16>,
    %c0_3 = arith.constant 0 : index
    %c0_4 = arith.constant 0 : index
    %c0_5 = arith.constant 0 : index
    %4 = vector.load %arg1[%c0_3, %c0_4, %c0_5] : memref<1x32x64xbf16, #tpu.memory_space<vmem>>, vector<1x32x64xbf16>
    %5 = vector.shape_cast %4 : vector<1x32x64xbf16> to vector<32x64xbf16>
    %c0_6 = arith.constant 0 : index
    %c128 = arith.constant 128 : index
    %6 = vector.load %arg5[%c0_6, %c128] : memref<32x201xbf16, #tpu.memory_space<vmem>>, vector<32x64xbf16>
    tpu.vector_store %arg5[%c0_6, %c128], %5 {strides = array<i32>} : memref<32x201xbf16, #tpu.memory_space<vmem>>, vector<32x64xbf16>,
    %7 = tpu.iota {dimensions = array<i32: 1>} : vector<1x64xi32>
    %c7_i32 = arith.constant 7 : i32
    %8 = vector.broadcast %c7_i32 : i32 to vector<1x64xi32>
    %9 = arith.andi %7, %8 : vector<1x64xi32>
    %c0_7 = arith.constant 0 : index
    %c119 = arith.constant 119 : index
    %10 = vector.load %arg5[%c0_7, %c119] : memref<32x201xbf16, #tpu.memory_space<vmem>>, vector<32x64xbf16>
    %c8_i32 = arith.constant 8 : i32
    %11 = vector.broadcast %c8_i32 : i32 to vector<1x64xi32>
    %12 = arith.cmpi sge, %7, %11 : vector<1x64xi32>
    %c1_i32 = arith.constant 1 : i32
    %13 = vector.broadcast %c1_i32 : i32 to vector<1x64xi32>
    %14 = arith.cmpi sge, %9, %13 : vector<1x64xi32>
    %15 = arith.andi %12, %14 : vector<1x64xi1>
    %cst_8 = arith.constant 0.000000e+00 : f32
    %16 = arith.truncf %cst_8 : f32 to bf16
    %17 = vector.shape_cast %15 : vector<1x64xi1> to vector<1x64xi1>
    %18 = vector.broadcast %17 : vector<1x64xi1> to vector<32x64xi1>
    %19 = vector.broadcast %16 : bf16 to vector<32x64xbf16>
    %20 = arith.select %18, %10, %19 : vector<32x64xi1>, vector<32x64xbf16>
    %c0_9 = arith.constant 0 : index
    %c0_10 = arith.constant 0 : index
    %21 = vector.load %arg6[%c0_9, %c0_10] : memref<288x64xbf16, #tpu.memory_space<vmem>>, vector<32x64xbf16>
    tpu.vector_store %arg6[%c0_9, %c0_10], %20 {strides = array<i32>} : memref<288x64xbf16, #tpu.memory_space<vmem>>, vector<32x64xbf16>,
    %c0_11 = arith.constant 0 : index
    %c120 = arith.constant 120 : index
    %22 = vector.load %arg5[%c0_11, %c120] : memref<32x201xbf16, #tpu.memory_space<vmem>>, vector<32x64xbf16>
    %c8_i32_12 = arith.constant 8 : i32
    %23 = vector.broadcast %c8_i32_12 : i32 to vector<1x64xi32>
    %24 = arith.cmpi sge, %7, %23 : vector<1x64xi32>
    %cst_13 = arith.constant 0.000000e+00 : f32
    %25 = arith.truncf %cst_13 : f32 to bf16
    %26 = vector.shape_cast %24 : vector<1x64xi1> to vector<1x64xi1>
    %27 = vector.broadcast %26 : vector<1x64xi1> to vector<32x64xi1>
    %28 = vector.broadcast %25 : bf16 to vector<32x64xbf16>
    %29 = arith.select %27, %22, %28 : vector<32x64xi1>, vector<32x64xbf16>
    %c32 = arith.constant 32 : index
    %c0_14 = arith.constant 0 : index
    %30 = vector.load %arg6[%c32, %c0_14] : memref<288x64xbf16, #tpu.memory_space<vmem>>, vector<32x64xbf16>
    tpu.vector_store %arg6[%c32, %c0_14], %29 {strides = array<i32>} : memref<288x64xbf16, #tpu.memory_space<vmem>>, vector<32x64xbf16>,
    %c0_15 = arith.constant 0 : index
    %c121 = arith.constant 121 : index
    %31 = vector.load %arg5[%c0_15, %c121] : memref<32x201xbf16, #tpu.memory_space<vmem>>, vector<32x64xbf16>
    %c8_i32_16 = arith.constant 8 : i32
    %32 = vector.broadcast %c8_i32_16 : i32 to vector<1x64xi32>
    %33 = arith.cmpi sge, %7, %32 : vector<1x64xi32>
    %c6_i32 = arith.constant 6 : i32
    %34 = vector.broadcast %c6_i32 : i32 to vector<1x64xi32>
    %35 = arith.cmpi sle, %9, %34 : vector<1x64xi32>
    %36 = arith.andi %33, %35 : vector<1x64xi1>
    %cst_17 = arith.constant 0.000000e+00 : f32
    %37 = arith.truncf %cst_17 : f32 to bf16
    %38 = vector.shape_cast %36 : vector<1x64xi1> to vector<1x64xi1>
    %39 = vector.broadcast %38 : vector<1x64xi1> to vector<32x64xi1>
    %40 = vector.broadcast %37 : bf16 to vector<32x64xbf16>
    %41 = arith.select %39, %31, %40 : vector<32x64xi1>, vector<32x64xbf16>
    %c64 = arith.constant 64 : index
    %c0_18 = arith.constant 0 : index
    %42 = vector.load %arg6[%c64, %c0_18] : memref<288x64xbf16, #tpu.memory_space<vmem>>, vector<32x64xbf16>
    tpu.vector_store %arg6[%c64, %c0_18], %41 {strides = array<i32>} : memref<288x64xbf16, #tpu.memory_space<vmem>>, vector<32x64xbf16>,
    %c0_19 = arith.constant 0 : index
    %c127 = arith.constant 127 : index
    %43 = vector.load %arg5[%c0_19, %c127] : memref<32x201xbf16, #tpu.memory_space<vmem>>, vector<32x64xbf16>
    %c1_i32_20 = arith.constant 1 : i32
    %44 = vector.broadcast %c1_i32_20 : i32 to vector<1x64xi32>
    %45 = arith.cmpi sge, %9, %44 : vector<1x64xi32>
    %cst_21 = arith.constant 0.000000e+00 : f32
    %46 = arith.truncf %cst_21 : f32 to bf16
    %47 = vector.shape_cast %45 : vector<1x64xi1> to vector<1x64xi1>
    %48 = vector.broadcast %47 : vector<1x64xi1> to vector<32x64xi1>
    %49 = vector.broadcast %46 : bf16 to vector<32x64xbf16>
    %50 = arith.select %48, %43, %49 : vector<32x64xi1>, vector<32x64xbf16>
    %c96 = arith.constant 96 : index
    %c0_22 = arith.constant 0 : index
    %51 = vector.load %arg6[%c96, %c0_22] : memref<288x64xbf16, #tpu.memory_space<vmem>>, vector<32x64xbf16>
    tpu.vector_store %arg6[%c96, %c0_22], %50 {strides = array<i32>} : memref<288x64xbf16, #tpu.memory_space<vmem>>, vector<32x64xbf16>,
    %c0_23 = arith.constant 0 : index
    %c128_24 = arith.constant 128 : index
    %52 = vector.load %arg5[%c0_23, %c128_24] : memref<32x201xbf16, #tpu.memory_space<vmem>>, vector<32x64xbf16>
    %c128_25 = arith.constant 128 : index
    %c0_26 = arith.constant 0 : index
    %53 = vector.load %arg6[%c128_25, %c0_26] : memref<288x64xbf16, #tpu.memory_space<vmem>>, vector<32x64xbf16>
    tpu.vector_store %arg6[%c128_25, %c0_26], %52 {strides = array<i32>} : memref<288x64xbf16, #tpu.memory_space<vmem>>, vector<32x64xbf16>,
    %c0_27 = arith.constant 0 : index
    %c129 = arith.constant 129 : index
    %54 = vector.load %arg5[%c0_27, %c129] : memref<32x201xbf16, #tpu.memory_space<vmem>>, vector<32x64xbf16>
    %c6_i32_28 = arith.constant 6 : i32
    %55 = vector.broadcast %c6_i32_28 : i32 to vector<1x64xi32>
    %56 = arith.cmpi sle, %9, %55 : vector<1x64xi32>
    %cst_29 = arith.constant 0.000000e+00 : f32
    %57 = arith.truncf %cst_29 : f32 to bf16
    %58 = vector.shape_cast %56 : vector<1x64xi1> to vector<1x64xi1>
    %59 = vector.broadcast %58 : vector<1x64xi1> to vector<32x64xi1>
    %60 = vector.broadcast %57 : bf16 to vector<32x64xbf16>
    %61 = arith.select %59, %54, %60 : vector<32x64xi1>, vector<32x64xbf16>
    %c160 = arith.constant 160 : index
    %c0_30 = arith.constant 0 : index
    %62 = vector.load %arg6[%c160, %c0_30] : memref<288x64xbf16, #tpu.memory_space<vmem>>, vector<32x64xbf16>
    tpu.vector_store %arg6[%c160, %c0_30], %61 {strides = array<i32>} : memref<288x64xbf16, #tpu.memory_space<vmem>>, vector<32x64xbf16>,
    %c0_31 = arith.constant 0 : index
    %c135 = arith.constant 135 : index
    %63 = vector.load %arg5[%c0_31, %c135] : memref<32x201xbf16, #tpu.memory_space<vmem>>, vector<32x64xbf16>
    %c56_i32 = arith.constant 56 : i32
    %64 = vector.broadcast %c56_i32 : i32 to vector<1x64xi32>
    %65 = arith.cmpi slt, %7, %64 : vector<1x64xi32>
    %c1_i32_32 = arith.constant 1 : i32
    %66 = vector.broadcast %c1_i32_32 : i32 to vector<1x64xi32>
    %67 = arith.cmpi sge, %9, %66 : vector<1x64xi32>
    %68 = arith.andi %65, %67 : vector<1x64xi1>
    %cst_33 = arith.constant 0.000000e+00 : f32
    %69 = arith.truncf %cst_33 : f32 to bf16
    %70 = vector.shape_cast %68 : vector<1x64xi1> to vector<1x64xi1>
    %71 = vector.broadcast %70 : vector<1x64xi1> to vector<32x64xi1>
    %72 = vector.broadcast %69 : bf16 to vector<32x64xbf16>
    %73 = arith.select %71, %63, %72 : vector<32x64xi1>, vector<32x64xbf16>
    %c192_34 = arith.constant 192 : index
    %c0_35 = arith.constant 0 : index
    %74 = vector.load %arg6[%c192_34, %c0_35] : memref<288x64xbf16, #tpu.memory_space<vmem>>, vector<32x64xbf16>
    tpu.vector_store %arg6[%c192_34, %c0_35], %73 {strides = array<i32>} : memref<288x64xbf16, #tpu.memory_space<vmem>>, vector<32x64xbf16>,
    %c0_36 = arith.constant 0 : index
    %c136 = arith.constant 136 : index
    %75 = vector.load %arg5[%c0_36, %c136] : memref<32x201xbf16, #tpu.memory_space<vmem>>, vector<32x64xbf16>
    %c56_i32_37 = arith.constant 56 : i32
    %76 = vector.broadcast %c56_i32_37 : i32 to vector<1x64xi32>
    %77 = arith.cmpi slt, %7, %76 : vector<1x64xi32>
    %cst_38 = arith.constant 0.000000e+00 : f32
    %78 = arith.truncf %cst_38 : f32 to bf16
    %79 = vector.shape_cast %77 : vector<1x64xi1> to vector<1x64xi1>
    %80 = vector.broadcast %79 : vector<1x64xi1> to vector<32x64xi1>
    %81 = vector.broadcast %78 : bf16 to vector<32x64xbf16>
    %82 = arith.select %80, %75, %81 : vector<32x64xi1>, vector<32x64xbf16>
    %c224 = arith.constant 224 : index
    %c0_39 = arith.constant 0 : index
    %83 = vector.load %arg6[%c224, %c0_39] : memref<288x64xbf16, #tpu.memory_space<vmem>>, vector<32x64xbf16>
    tpu.vector_store %arg6[%c224, %c0_39], %82 {strides = array<i32>} : memref<288x64xbf16, #tpu.memory_space<vmem>>, vector<32x64xbf16>,
    %c0_40 = arith.constant 0 : index
    %c137 = arith.constant 137 : index
    %84 = vector.load %arg5[%c0_40, %c137] : memref<32x201xbf16, #tpu.memory_space<vmem>>, vector<32x64xbf16>
    %c56_i32_41 = arith.constant 56 : i32
    %85 = vector.broadcast %c56_i32_41 : i32 to vector<1x64xi32>
    %86 = arith.cmpi slt, %7, %85 : vector<1x64xi32>
    %c6_i32_42 = arith.constant 6 : i32
    %87 = vector.broadcast %c6_i32_42 : i32 to vector<1x64xi32>
    %88 = arith.cmpi sle, %9, %87 : vector<1x64xi32>
    %89 = arith.andi %86, %88 : vector<1x64xi1>
    %cst_43 = arith.constant 0.000000e+00 : f32
    %90 = arith.truncf %cst_43 : f32 to bf16
    %91 = vector.shape_cast %89 : vector<1x64xi1> to vector<1x64xi1>
    %92 = vector.broadcast %91 : vector<1x64xi1> to vector<32x64xi1>
    %93 = vector.broadcast %90 : bf16 to vector<32x64xbf16>
    %94 = arith.select %92, %84, %93 : vector<32x64xi1>, vector<32x64xbf16>
    %c256 = arith.constant 256 : index
    %c0_44 = arith.constant 0 : index
    %95 = vector.load %arg6[%c256, %c0_44] : memref<288x64xbf16, #tpu.memory_space<vmem>>, vector<32x64xbf16>
    tpu.vector_store %arg6[%c256, %c0_44], %94 {strides = array<i32>} : memref<288x64xbf16, #tpu.memory_space<vmem>>, vector<32x64xbf16>,
    %c0_45 = arith.constant 0 : index
    %c0_46 = arith.constant 0 : index
    %96 = vector.load %arg2[%c0_45, %c0_46] : memref<64x288xbf16, #tpu.memory_space<vmem>>, vector<64x288xbf16>
    %c0_47 = arith.constant 0 : index
    %c0_48 = arith.constant 0 : index
    %97 = vector.load %arg6[%c0_47, %c0_48] : memref<288x64xbf16, #tpu.memory_space<vmem>>, vector<288x64xbf16>
    %cst_49 = arith.constant dense<0.000000e+00> : vector<64x64xf32>
    %98 = tpu.matmul %96, %97, %cst_49 {dimension_numbers = #tpu.dot_dimension_numbers<[1], [0], [0], [1], [0, 0, 1, 1], [], []>} : vector<64x288xbf16>, vector<288x64xbf16>, vector<64x64xf32> -> vector<64x64xf32>
    %c0_50 = arith.constant 0 : index
    %c0_51 = arith.constant 0 : index
    %99 = vector.load %arg3[%c0_50, %c0_51] : memref<64x1xf32, #tpu.memory_space<vmem>>, vector<64x1xf32>
    %100 = vector.broadcast %99 : vector<64x1xf32> to vector<64x64xf32>
    %101 = arith.addf %98, %100 : vector<64x64xf32>
    %cst_52 = arith.constant 0.000000e+00 : f32
    %102 = vector.broadcast %cst_52 : f32 to vector<64x64xf32>
    %103 = arith.maximumf %101, %102 : vector<64x64xf32>
    %104 = arith.truncf %103 : vector<64x64xf32> to vector<64x64xbf16>
    %c0_53 = arith.constant 0 : index
    %c0_54 = arith.constant 0 : index
    %c0_55 = arith.constant 0 : index
    %105 = vector.load %arg4[%c0_53, %c0_54, %c0_55] : memref<1x64x64xbf16, #tpu.memory_space<vmem>>, vector<1x64x64xbf16>
    %106 = vector.shape_cast %105 : vector<1x64x64xbf16> to vector<64x64xbf16>
    %107 = vector.shape_cast %104 : vector<64x64xbf16> to vector<1x64x64xbf16>
    tpu.vector_store %arg4[%c0_53, %c0_54, %c0_55], %107 {strides = array<i32>} : memref<1x64x64xbf16, #tpu.memory_space<vmem>>, vector<1x64x64xbf16>,
    return
  }
  func.func @transform_0(%arg0: i32) -> (i32, i32, i32) {
    %c0_i32 = arith.constant 0 : i32
    %c0_i32_0 = arith.constant 0 : i32
    %c0_i32_1 = arith.constant 0 : i32
    return %arg0, %c0_i32, %c0_i32_0 : i32, i32, i32
  }
  func.func @transform_1(%arg0: i32) -> (i32, i32) {
    %c0_i32 = arith.constant 0 : i32
    %c0_i32_0 = arith.constant 0 : i32
    %c0_i32_1 = arith.constant 0 : i32
    return %c0_i32, %c0_i32_0 : i32, i32
  }
  func.func @transform_2(%arg0: i32) -> (i32, i32) {
    %c0_i32 = arith.constant 0 : i32
    %c0_i32_0 = arith.constant 0 : i32
    %c0_i32_1 = arith.constant 0 : i32
    return %c0_i32, %c0_i32_0 : i32, i32
  }
  func.func @transform_3(%arg0: i32) -> (i32, i32, i32) {
    %c0_i32 = arith.constant 0 : i32
    %c0_i32_0 = arith.constant 0 : i32
    %c0_i32_1 = arith.constant 0 : i32
    return %arg0, %c0_i32, %c0_i32_0 : i32, i32, i32
  }
}

module attributes {stable_mosaic.version = 11 : i64} {
  func.func @_conv3x3_kernel(%arg0: i32, %arg1: memref<1x64x64xbf16, #tpu.memory_space<vmem>>, %arg2: memref<32x576xbf16, #tpu.memory_space<vmem>>, %arg3: memref<32x1xf32, #tpu.memory_space<vmem>>, %arg4: memref<1x32x64xbf16, #tpu.memory_space<vmem>>, %arg5: memref<64x201xbf16, #tpu.memory_space<vmem>>, %arg6: memref<576x64xbf16, #tpu.memory_space<vmem>>) attributes {dimension_semantics = [#tpu.dimension_semantics<parallel>], iteration_bounds = array<i64: 2>, scalar_prefetch = 0 : i64, scratch_operands = 2 : i64, tpu.core_type = #tpu.core_type<tc>, window_params = [{transform_indices = @transform_0, window_bounds = array<i64: 1, 64, 64>}, {pipeline_mode = #tpu.pipeline_mode<synchronous>, transform_indices = @transform_1, window_bounds = array<i64: 32, 576>}, {pipeline_mode = #tpu.pipeline_mode<synchronous>, transform_indices = @transform_2, window_bounds = array<i64: 32, 1>}, {transform_indices = @transform_3, window_bounds = array<i64: 1, 32, 64>}]} {
    %cst = arith.constant 0.000000e+00 : bf16
    %0 = vector.broadcast %cst : bf16 to vector<64x128xbf16>
    %c0 = arith.constant 0 : index
    %c0_0 = arith.constant 0 : index
    %1 = vector.load %arg5[%c0, %c0_0] : memref<64x201xbf16, #tpu.memory_space<vmem>>, vector<64x128xbf16>
    tpu.vector_store %arg5[%c0, %c0_0], %0 {strides = array<i32>} : memref<64x201xbf16, #tpu.memory_space<vmem>>, vector<64x128xbf16>,
    %cst_1 = arith.constant 0.000000e+00 : bf16
    %2 = vector.broadcast %cst_1 : bf16 to vector<64x9xbf16>
    %c0_2 = arith.constant 0 : index
    %c192 = arith.constant 192 : index
    %3 = vector.load %arg5[%c0_2, %c192] : memref<64x201xbf16, #tpu.memory_space<vmem>>, vector<64x9xbf16>
    tpu.vector_store %arg5[%c0_2, %c192], %2 {strides = array<i32>} : memref<64x201xbf16, #tpu.memory_space<vmem>>, vector<64x9xbf16>,
    %c0_3 = arith.constant 0 : index
    %c0_4 = arith.constant 0 : index
    %c0_5 = arith.constant 0 : index
    %4 = vector.load %arg1[%c0_3, %c0_4, %c0_5] : memref<1x64x64xbf16, #tpu.memory_space<vmem>>, vector<1x64x64xbf16>
    %5 = vector.shape_cast %4 : vector<1x64x64xbf16> to vector<64x64xbf16>
    %c0_6 = arith.constant 0 : index
    %c128 = arith.constant 128 : index
    %6 = vector.load %arg5[%c0_6, %c128] : memref<64x201xbf16, #tpu.memory_space<vmem>>, vector<64x64xbf16>
    tpu.vector_store %arg5[%c0_6, %c128], %5 {strides = array<i32>} : memref<64x201xbf16, #tpu.memory_space<vmem>>, vector<64x64xbf16>,
    %7 = tpu.iota {dimensions = array<i32: 1>} : vector<1x64xi32>
    %c7_i32 = arith.constant 7 : i32
    %8 = vector.broadcast %c7_i32 : i32 to vector<1x64xi32>
    %9 = arith.andi %7, %8 : vector<1x64xi32>
    %c0_7 = arith.constant 0 : index
    %c119 = arith.constant 119 : index
    %10 = vector.load %arg5[%c0_7, %c119] : memref<64x201xbf16, #tpu.memory_space<vmem>>, vector<64x64xbf16>
    %c8_i32 = arith.constant 8 : i32
    %11 = vector.broadcast %c8_i32 : i32 to vector<1x64xi32>
    %12 = arith.cmpi sge, %7, %11 : vector<1x64xi32>
    %c1_i32 = arith.constant 1 : i32
    %13 = vector.broadcast %c1_i32 : i32 to vector<1x64xi32>
    %14 = arith.cmpi sge, %9, %13 : vector<1x64xi32>
    %15 = arith.andi %12, %14 : vector<1x64xi1>
    %cst_8 = arith.constant 0.000000e+00 : f32
    %16 = arith.truncf %cst_8 : f32 to bf16
    %17 = vector.shape_cast %15 : vector<1x64xi1> to vector<1x64xi1>
    %18 = vector.broadcast %17 : vector<1x64xi1> to vector<64x64xi1>
    %19 = vector.broadcast %16 : bf16 to vector<64x64xbf16>
    %20 = arith.select %18, %10, %19 : vector<64x64xi1>, vector<64x64xbf16>
    %c0_9 = arith.constant 0 : index
    %c0_10 = arith.constant 0 : index
    %21 = vector.load %arg6[%c0_9, %c0_10] : memref<576x64xbf16, #tpu.memory_space<vmem>>, vector<64x64xbf16>
    tpu.vector_store %arg6[%c0_9, %c0_10], %20 {strides = array<i32>} : memref<576x64xbf16, #tpu.memory_space<vmem>>, vector<64x64xbf16>,
    %c0_11 = arith.constant 0 : index
    %c120 = arith.constant 120 : index
    %22 = vector.load %arg5[%c0_11, %c120] : memref<64x201xbf16, #tpu.memory_space<vmem>>, vector<64x64xbf16>
    %c8_i32_12 = arith.constant 8 : i32
    %23 = vector.broadcast %c8_i32_12 : i32 to vector<1x64xi32>
    %24 = arith.cmpi sge, %7, %23 : vector<1x64xi32>
    %cst_13 = arith.constant 0.000000e+00 : f32
    %25 = arith.truncf %cst_13 : f32 to bf16
    %26 = vector.shape_cast %24 : vector<1x64xi1> to vector<1x64xi1>
    %27 = vector.broadcast %26 : vector<1x64xi1> to vector<64x64xi1>
    %28 = vector.broadcast %25 : bf16 to vector<64x64xbf16>
    %29 = arith.select %27, %22, %28 : vector<64x64xi1>, vector<64x64xbf16>
    %c64 = arith.constant 64 : index
    %c0_14 = arith.constant 0 : index
    %30 = vector.load %arg6[%c64, %c0_14] : memref<576x64xbf16, #tpu.memory_space<vmem>>, vector<64x64xbf16>
    tpu.vector_store %arg6[%c64, %c0_14], %29 {strides = array<i32>} : memref<576x64xbf16, #tpu.memory_space<vmem>>, vector<64x64xbf16>,
    %c0_15 = arith.constant 0 : index
    %c121 = arith.constant 121 : index
    %31 = vector.load %arg5[%c0_15, %c121] : memref<64x201xbf16, #tpu.memory_space<vmem>>, vector<64x64xbf16>
    %c8_i32_16 = arith.constant 8 : i32
    %32 = vector.broadcast %c8_i32_16 : i32 to vector<1x64xi32>
    %33 = arith.cmpi sge, %7, %32 : vector<1x64xi32>
    %c6_i32 = arith.constant 6 : i32
    %34 = vector.broadcast %c6_i32 : i32 to vector<1x64xi32>
    %35 = arith.cmpi sle, %9, %34 : vector<1x64xi32>
    %36 = arith.andi %33, %35 : vector<1x64xi1>
    %cst_17 = arith.constant 0.000000e+00 : f32
    %37 = arith.truncf %cst_17 : f32 to bf16
    %38 = vector.shape_cast %36 : vector<1x64xi1> to vector<1x64xi1>
    %39 = vector.broadcast %38 : vector<1x64xi1> to vector<64x64xi1>
    %40 = vector.broadcast %37 : bf16 to vector<64x64xbf16>
    %41 = arith.select %39, %31, %40 : vector<64x64xi1>, vector<64x64xbf16>
    %c128_18 = arith.constant 128 : index
    %c0_19 = arith.constant 0 : index
    %42 = vector.load %arg6[%c128_18, %c0_19] : memref<576x64xbf16, #tpu.memory_space<vmem>>, vector<64x64xbf16>
    tpu.vector_store %arg6[%c128_18, %c0_19], %41 {strides = array<i32>} : memref<576x64xbf16, #tpu.memory_space<vmem>>, vector<64x64xbf16>,
    %c0_20 = arith.constant 0 : index
    %c127 = arith.constant 127 : index
    %43 = vector.load %arg5[%c0_20, %c127] : memref<64x201xbf16, #tpu.memory_space<vmem>>, vector<64x64xbf16>
    %c1_i32_21 = arith.constant 1 : i32
    %44 = vector.broadcast %c1_i32_21 : i32 to vector<1x64xi32>
    %45 = arith.cmpi sge, %9, %44 : vector<1x64xi32>
    %cst_22 = arith.constant 0.000000e+00 : f32
    %46 = arith.truncf %cst_22 : f32 to bf16
    %47 = vector.shape_cast %45 : vector<1x64xi1> to vector<1x64xi1>
    %48 = vector.broadcast %47 : vector<1x64xi1> to vector<64x64xi1>
    %49 = vector.broadcast %46 : bf16 to vector<64x64xbf16>
    %50 = arith.select %48, %43, %49 : vector<64x64xi1>, vector<64x64xbf16>
    %c192_23 = arith.constant 192 : index
    %c0_24 = arith.constant 0 : index
    %51 = vector.load %arg6[%c192_23, %c0_24] : memref<576x64xbf16, #tpu.memory_space<vmem>>, vector<64x64xbf16>
    tpu.vector_store %arg6[%c192_23, %c0_24], %50 {strides = array<i32>} : memref<576x64xbf16, #tpu.memory_space<vmem>>, vector<64x64xbf16>,
    %c0_25 = arith.constant 0 : index
    %c128_26 = arith.constant 128 : index
    %52 = vector.load %arg5[%c0_25, %c128_26] : memref<64x201xbf16, #tpu.memory_space<vmem>>, vector<64x64xbf16>
    %c256 = arith.constant 256 : index
    %c0_27 = arith.constant 0 : index
    %53 = vector.load %arg6[%c256, %c0_27] : memref<576x64xbf16, #tpu.memory_space<vmem>>, vector<64x64xbf16>
    tpu.vector_store %arg6[%c256, %c0_27], %52 {strides = array<i32>} : memref<576x64xbf16, #tpu.memory_space<vmem>>, vector<64x64xbf16>,
    %c0_28 = arith.constant 0 : index
    %c129 = arith.constant 129 : index
    %54 = vector.load %arg5[%c0_28, %c129] : memref<64x201xbf16, #tpu.memory_space<vmem>>, vector<64x64xbf16>
    %c6_i32_29 = arith.constant 6 : i32
    %55 = vector.broadcast %c6_i32_29 : i32 to vector<1x64xi32>
    %56 = arith.cmpi sle, %9, %55 : vector<1x64xi32>
    %cst_30 = arith.constant 0.000000e+00 : f32
    %57 = arith.truncf %cst_30 : f32 to bf16
    %58 = vector.shape_cast %56 : vector<1x64xi1> to vector<1x64xi1>
    %59 = vector.broadcast %58 : vector<1x64xi1> to vector<64x64xi1>
    %60 = vector.broadcast %57 : bf16 to vector<64x64xbf16>
    %61 = arith.select %59, %54, %60 : vector<64x64xi1>, vector<64x64xbf16>
    %c320 = arith.constant 320 : index
    %c0_31 = arith.constant 0 : index
    %62 = vector.load %arg6[%c320, %c0_31] : memref<576x64xbf16, #tpu.memory_space<vmem>>, vector<64x64xbf16>
    tpu.vector_store %arg6[%c320, %c0_31], %61 {strides = array<i32>} : memref<576x64xbf16, #tpu.memory_space<vmem>>, vector<64x64xbf16>,
    %c0_32 = arith.constant 0 : index
    %c135 = arith.constant 135 : index
    %63 = vector.load %arg5[%c0_32, %c135] : memref<64x201xbf16, #tpu.memory_space<vmem>>, vector<64x64xbf16>
    %c56_i32 = arith.constant 56 : i32
    %64 = vector.broadcast %c56_i32 : i32 to vector<1x64xi32>
    %65 = arith.cmpi slt, %7, %64 : vector<1x64xi32>
    %c1_i32_33 = arith.constant 1 : i32
    %66 = vector.broadcast %c1_i32_33 : i32 to vector<1x64xi32>
    %67 = arith.cmpi sge, %9, %66 : vector<1x64xi32>
    %68 = arith.andi %65, %67 : vector<1x64xi1>
    %cst_34 = arith.constant 0.000000e+00 : f32
    %69 = arith.truncf %cst_34 : f32 to bf16
    %70 = vector.shape_cast %68 : vector<1x64xi1> to vector<1x64xi1>
    %71 = vector.broadcast %70 : vector<1x64xi1> to vector<64x64xi1>
    %72 = vector.broadcast %69 : bf16 to vector<64x64xbf16>
    %73 = arith.select %71, %63, %72 : vector<64x64xi1>, vector<64x64xbf16>
    %c384 = arith.constant 384 : index
    %c0_35 = arith.constant 0 : index
    %74 = vector.load %arg6[%c384, %c0_35] : memref<576x64xbf16, #tpu.memory_space<vmem>>, vector<64x64xbf16>
    tpu.vector_store %arg6[%c384, %c0_35], %73 {strides = array<i32>} : memref<576x64xbf16, #tpu.memory_space<vmem>>, vector<64x64xbf16>,
    %c0_36 = arith.constant 0 : index
    %c136 = arith.constant 136 : index
    %75 = vector.load %arg5[%c0_36, %c136] : memref<64x201xbf16, #tpu.memory_space<vmem>>, vector<64x64xbf16>
    %c56_i32_37 = arith.constant 56 : i32
    %76 = vector.broadcast %c56_i32_37 : i32 to vector<1x64xi32>
    %77 = arith.cmpi slt, %7, %76 : vector<1x64xi32>
    %cst_38 = arith.constant 0.000000e+00 : f32
    %78 = arith.truncf %cst_38 : f32 to bf16
    %79 = vector.shape_cast %77 : vector<1x64xi1> to vector<1x64xi1>
    %80 = vector.broadcast %79 : vector<1x64xi1> to vector<64x64xi1>
    %81 = vector.broadcast %78 : bf16 to vector<64x64xbf16>
    %82 = arith.select %80, %75, %81 : vector<64x64xi1>, vector<64x64xbf16>
    %c448 = arith.constant 448 : index
    %c0_39 = arith.constant 0 : index
    %83 = vector.load %arg6[%c448, %c0_39] : memref<576x64xbf16, #tpu.memory_space<vmem>>, vector<64x64xbf16>
    tpu.vector_store %arg6[%c448, %c0_39], %82 {strides = array<i32>} : memref<576x64xbf16, #tpu.memory_space<vmem>>, vector<64x64xbf16>,
    %c0_40 = arith.constant 0 : index
    %c137 = arith.constant 137 : index
    %84 = vector.load %arg5[%c0_40, %c137] : memref<64x201xbf16, #tpu.memory_space<vmem>>, vector<64x64xbf16>
    %c56_i32_41 = arith.constant 56 : i32
    %85 = vector.broadcast %c56_i32_41 : i32 to vector<1x64xi32>
    %86 = arith.cmpi slt, %7, %85 : vector<1x64xi32>
    %c6_i32_42 = arith.constant 6 : i32
    %87 = vector.broadcast %c6_i32_42 : i32 to vector<1x64xi32>
    %88 = arith.cmpi sle, %9, %87 : vector<1x64xi32>
    %89 = arith.andi %86, %88 : vector<1x64xi1>
    %cst_43 = arith.constant 0.000000e+00 : f32
    %90 = arith.truncf %cst_43 : f32 to bf16
    %91 = vector.shape_cast %89 : vector<1x64xi1> to vector<1x64xi1>
    %92 = vector.broadcast %91 : vector<1x64xi1> to vector<64x64xi1>
    %93 = vector.broadcast %90 : bf16 to vector<64x64xbf16>
    %94 = arith.select %92, %84, %93 : vector<64x64xi1>, vector<64x64xbf16>
    %c512 = arith.constant 512 : index
    %c0_44 = arith.constant 0 : index
    %95 = vector.load %arg6[%c512, %c0_44] : memref<576x64xbf16, #tpu.memory_space<vmem>>, vector<64x64xbf16>
    tpu.vector_store %arg6[%c512, %c0_44], %94 {strides = array<i32>} : memref<576x64xbf16, #tpu.memory_space<vmem>>, vector<64x64xbf16>,
    %c0_45 = arith.constant 0 : index
    %c0_46 = arith.constant 0 : index
    %96 = vector.load %arg2[%c0_45, %c0_46] : memref<32x576xbf16, #tpu.memory_space<vmem>>, vector<32x576xbf16>
    %c0_47 = arith.constant 0 : index
    %c0_48 = arith.constant 0 : index
    %97 = vector.load %arg6[%c0_47, %c0_48] : memref<576x64xbf16, #tpu.memory_space<vmem>>, vector<576x64xbf16>
    %cst_49 = arith.constant dense<0.000000e+00> : vector<32x64xf32>
    %98 = tpu.matmul %96, %97, %cst_49 {dimension_numbers = #tpu.dot_dimension_numbers<[1], [0], [0], [1], [0, 0, 1, 1], [], []>} : vector<32x576xbf16>, vector<576x64xbf16>, vector<32x64xf32> -> vector<32x64xf32>
    %c0_50 = arith.constant 0 : index
    %c0_51 = arith.constant 0 : index
    %99 = vector.load %arg3[%c0_50, %c0_51] : memref<32x1xf32, #tpu.memory_space<vmem>>, vector<32x1xf32>
    %100 = vector.broadcast %99 : vector<32x1xf32> to vector<32x64xf32>
    %101 = arith.addf %98, %100 : vector<32x64xf32>
    %cst_52 = arith.constant 0.000000e+00 : f32
    %102 = vector.broadcast %cst_52 : f32 to vector<32x64xf32>
    %103 = arith.maximumf %101, %102 : vector<32x64xf32>
    %104 = arith.truncf %103 : vector<32x64xf32> to vector<32x64xbf16>
    %c0_53 = arith.constant 0 : index
    %c0_54 = arith.constant 0 : index
    %c0_55 = arith.constant 0 : index
    %105 = vector.load %arg4[%c0_53, %c0_54, %c0_55] : memref<1x32x64xbf16, #tpu.memory_space<vmem>>, vector<1x32x64xbf16>
    %106 = vector.shape_cast %105 : vector<1x32x64xbf16> to vector<32x64xbf16>
    %107 = vector.shape_cast %104 : vector<32x64xbf16> to vector<1x32x64xbf16>
    tpu.vector_store %arg4[%c0_53, %c0_54, %c0_55], %107 {strides = array<i32>} : memref<1x32x64xbf16, #tpu.memory_space<vmem>>, vector<1x32x64xbf16>,
    return
  }
  func.func @transform_0(%arg0: i32) -> (i32, i32, i32) {
    %c0_i32 = arith.constant 0 : i32
    %c0_i32_0 = arith.constant 0 : i32
    %c0_i32_1 = arith.constant 0 : i32
    return %arg0, %c0_i32, %c0_i32_0 : i32, i32, i32
  }
  func.func @transform_1(%arg0: i32) -> (i32, i32) {
    %c0_i32 = arith.constant 0 : i32
    %c0_i32_0 = arith.constant 0 : i32
    %c0_i32_1 = arith.constant 0 : i32
    return %c0_i32, %c0_i32_0 : i32, i32
  }
  func.func @transform_2(%arg0: i32) -> (i32, i32) {
    %c0_i32 = arith.constant 0 : i32
    %c0_i32_0 = arith.constant 0 : i32
    %c0_i32_1 = arith.constant 0 : i32
    return %c0_i32, %c0_i32_0 : i32, i32
  }
  func.func @transform_3(%arg0: i32) -> (i32, i32, i32) {
    %c0_i32 = arith.constant 0 : i32
    %c0_i32_0 = arith.constant 0 : i32
    %c0_i32_1 = arith.constant 0 : i32
    return %arg0, %c0_i32, %c0_i32_0 : i32, i32, i32
  }
}

module attributes {stable_mosaic.version = 11 : i64} {
  func.func @_conv3x3_kernel(%arg0: i32, %arg1: memref<1x32x256xbf16, #tpu.memory_space<vmem>>, %arg2: memref<16x288xbf16, #tpu.memory_space<vmem>>, %arg3: memref<16x1xf32, #tpu.memory_space<vmem>>, %arg4: memref<1x16x256xbf16, #tpu.memory_space<vmem>>, %arg5: memref<32x401xbf16, #tpu.memory_space<vmem>>, %arg6: memref<288x256xbf16, #tpu.memory_space<vmem>>) attributes {dimension_semantics = [#tpu.dimension_semantics<parallel>], iteration_bounds = array<i64: 2>, scalar_prefetch = 0 : i64, scratch_operands = 2 : i64, tpu.core_type = #tpu.core_type<tc>, window_params = [{transform_indices = @transform_0, window_bounds = array<i64: 1, 32, 256>}, {pipeline_mode = #tpu.pipeline_mode<synchronous>, transform_indices = @transform_1, window_bounds = array<i64: 16, 288>}, {pipeline_mode = #tpu.pipeline_mode<synchronous>, transform_indices = @transform_2, window_bounds = array<i64: 16, 1>}, {transform_indices = @transform_3, window_bounds = array<i64: 1, 16, 256>}]} {
    %cst = arith.constant 0.000000e+00 : bf16
    %0 = vector.broadcast %cst : bf16 to vector<32x128xbf16>
    %c0 = arith.constant 0 : index
    %c0_0 = arith.constant 0 : index
    %1 = vector.load %arg5[%c0, %c0_0] : memref<32x401xbf16, #tpu.memory_space<vmem>>, vector<32x128xbf16>
    tpu.vector_store %arg5[%c0, %c0_0], %0 {strides = array<i32>} : memref<32x401xbf16, #tpu.memory_space<vmem>>, vector<32x128xbf16>,
    %cst_1 = arith.constant 0.000000e+00 : bf16
    %2 = vector.broadcast %cst_1 : bf16 to vector<32x17xbf16>
    %c0_2 = arith.constant 0 : index
    %c384 = arith.constant 384 : index
    %3 = vector.load %arg5[%c0_2, %c384] : memref<32x401xbf16, #tpu.memory_space<vmem>>, vector<32x17xbf16>
    tpu.vector_store %arg5[%c0_2, %c384], %2 {strides = array<i32>} : memref<32x401xbf16, #tpu.memory_space<vmem>>, vector<32x17xbf16>,
    %c0_3 = arith.constant 0 : index
    %c0_4 = arith.constant 0 : index
    %c0_5 = arith.constant 0 : index
    %4 = vector.load %arg1[%c0_3, %c0_4, %c0_5] : memref<1x32x256xbf16, #tpu.memory_space<vmem>>, vector<1x32x256xbf16>
    %5 = vector.shape_cast %4 : vector<1x32x256xbf16> to vector<32x256xbf16>
    %c0_6 = arith.constant 0 : index
    %c128 = arith.constant 128 : index
    %6 = vector.load %arg5[%c0_6, %c128] : memref<32x401xbf16, #tpu.memory_space<vmem>>, vector<32x256xbf16>
    tpu.vector_store %arg5[%c0_6, %c128], %5 {strides = array<i32>} : memref<32x401xbf16, #tpu.memory_space<vmem>>, vector<32x256xbf16>,
    %7 = tpu.iota {dimensions = array<i32: 1>} : vector<1x256xi32>
    %c15_i32 = arith.constant 15 : i32
    %8 = vector.broadcast %c15_i32 : i32 to vector<1x256xi32>
    %9 = arith.andi %7, %8 : vector<1x256xi32>
    %c0_7 = arith.constant 0 : index
    %c111 = arith.constant 111 : index
    %10 = vector.load %arg5[%c0_7, %c111] : memref<32x401xbf16, #tpu.memory_space<vmem>>, vector<32x256xbf16>
    %c16_i32 = arith.constant 16 : i32
    %11 = vector.broadcast %c16_i32 : i32 to vector<1x256xi32>
    %12 = arith.cmpi sge, %7, %11 : vector<1x256xi32>
    %c1_i32 = arith.constant 1 : i32
    %13 = vector.broadcast %c1_i32 : i32 to vector<1x256xi32>
    %14 = arith.cmpi sge, %9, %13 : vector<1x256xi32>
    %15 = arith.andi %12, %14 : vector<1x256xi1>
    %cst_8 = arith.constant 0.000000e+00 : f32
    %16 = arith.truncf %cst_8 : f32 to bf16
    %17 = vector.shape_cast %15 : vector<1x256xi1> to vector<1x256xi1>
    %18 = vector.broadcast %17 : vector<1x256xi1> to vector<32x256xi1>
    %19 = vector.broadcast %16 : bf16 to vector<32x256xbf16>
    %20 = arith.select %18, %10, %19 : vector<32x256xi1>, vector<32x256xbf16>
    %c0_9 = arith.constant 0 : index
    %c0_10 = arith.constant 0 : index
    %21 = vector.load %arg6[%c0_9, %c0_10] : memref<288x256xbf16, #tpu.memory_space<vmem>>, vector<32x256xbf16>
    tpu.vector_store %arg6[%c0_9, %c0_10], %20 {strides = array<i32>} : memref<288x256xbf16, #tpu.memory_space<vmem>>, vector<32x256xbf16>,
    %c0_11 = arith.constant 0 : index
    %c112 = arith.constant 112 : index
    %22 = vector.load %arg5[%c0_11, %c112] : memref<32x401xbf16, #tpu.memory_space<vmem>>, vector<32x256xbf16>
    %c16_i32_12 = arith.constant 16 : i32
    %23 = vector.broadcast %c16_i32_12 : i32 to vector<1x256xi32>
    %24 = arith.cmpi sge, %7, %23 : vector<1x256xi32>
    %cst_13 = arith.constant 0.000000e+00 : f32
    %25 = arith.truncf %cst_13 : f32 to bf16
    %26 = vector.shape_cast %24 : vector<1x256xi1> to vector<1x256xi1>
    %27 = vector.broadcast %26 : vector<1x256xi1> to vector<32x256xi1>
    %28 = vector.broadcast %25 : bf16 to vector<32x256xbf16>
    %29 = arith.select %27, %22, %28 : vector<32x256xi1>, vector<32x256xbf16>
    %c32 = arith.constant 32 : index
    %c0_14 = arith.constant 0 : index
    %30 = vector.load %arg6[%c32, %c0_14] : memref<288x256xbf16, #tpu.memory_space<vmem>>, vector<32x256xbf16>
    tpu.vector_store %arg6[%c32, %c0_14], %29 {strides = array<i32>} : memref<288x256xbf16, #tpu.memory_space<vmem>>, vector<32x256xbf16>,
    %c0_15 = arith.constant 0 : index
    %c113 = arith.constant 113 : index
    %31 = vector.load %arg5[%c0_15, %c113] : memref<32x401xbf16, #tpu.memory_space<vmem>>, vector<32x256xbf16>
    %c16_i32_16 = arith.constant 16 : i32
    %32 = vector.broadcast %c16_i32_16 : i32 to vector<1x256xi32>
    %33 = arith.cmpi sge, %7, %32 : vector<1x256xi32>
    %c14_i32 = arith.constant 14 : i32
    %34 = vector.broadcast %c14_i32 : i32 to vector<1x256xi32>
    %35 = arith.cmpi sle, %9, %34 : vector<1x256xi32>
    %36 = arith.andi %33, %35 : vector<1x256xi1>
    %cst_17 = arith.constant 0.000000e+00 : f32
    %37 = arith.truncf %cst_17 : f32 to bf16
    %38 = vector.shape_cast %36 : vector<1x256xi1> to vector<1x256xi1>
    %39 = vector.broadcast %38 : vector<1x256xi1> to vector<32x256xi1>
    %40 = vector.broadcast %37 : bf16 to vector<32x256xbf16>
    %41 = arith.select %39, %31, %40 : vector<32x256xi1>, vector<32x256xbf16>
    %c64 = arith.constant 64 : index
    %c0_18 = arith.constant 0 : index
    %42 = vector.load %arg6[%c64, %c0_18] : memref<288x256xbf16, #tpu.memory_space<vmem>>, vector<32x256xbf16>
    tpu.vector_store %arg6[%c64, %c0_18], %41 {strides = array<i32>} : memref<288x256xbf16, #tpu.memory_space<vmem>>, vector<32x256xbf16>,
    %c0_19 = arith.constant 0 : index
    %c127 = arith.constant 127 : index
    %43 = vector.load %arg5[%c0_19, %c127] : memref<32x401xbf16, #tpu.memory_space<vmem>>, vector<32x256xbf16>
    %c1_i32_20 = arith.constant 1 : i32
    %44 = vector.broadcast %c1_i32_20 : i32 to vector<1x256xi32>
    %45 = arith.cmpi sge, %9, %44 : vector<1x256xi32>
    %cst_21 = arith.constant 0.000000e+00 : f32
    %46 = arith.truncf %cst_21 : f32 to bf16
    %47 = vector.shape_cast %45 : vector<1x256xi1> to vector<1x256xi1>
    %48 = vector.broadcast %47 : vector<1x256xi1> to vector<32x256xi1>
    %49 = vector.broadcast %46 : bf16 to vector<32x256xbf16>
    %50 = arith.select %48, %43, %49 : vector<32x256xi1>, vector<32x256xbf16>
    %c96 = arith.constant 96 : index
    %c0_22 = arith.constant 0 : index
    %51 = vector.load %arg6[%c96, %c0_22] : memref<288x256xbf16, #tpu.memory_space<vmem>>, vector<32x256xbf16>
    tpu.vector_store %arg6[%c96, %c0_22], %50 {strides = array<i32>} : memref<288x256xbf16, #tpu.memory_space<vmem>>, vector<32x256xbf16>,
    %c0_23 = arith.constant 0 : index
    %c128_24 = arith.constant 128 : index
    %52 = vector.load %arg5[%c0_23, %c128_24] : memref<32x401xbf16, #tpu.memory_space<vmem>>, vector<32x256xbf16>
    %c128_25 = arith.constant 128 : index
    %c0_26 = arith.constant 0 : index
    %53 = vector.load %arg6[%c128_25, %c0_26] : memref<288x256xbf16, #tpu.memory_space<vmem>>, vector<32x256xbf16>
    tpu.vector_store %arg6[%c128_25, %c0_26], %52 {strides = array<i32>} : memref<288x256xbf16, #tpu.memory_space<vmem>>, vector<32x256xbf16>,
    %c0_27 = arith.constant 0 : index
    %c129 = arith.constant 129 : index
    %54 = vector.load %arg5[%c0_27, %c129] : memref<32x401xbf16, #tpu.memory_space<vmem>>, vector<32x256xbf16>
    %c14_i32_28 = arith.constant 14 : i32
    %55 = vector.broadcast %c14_i32_28 : i32 to vector<1x256xi32>
    %56 = arith.cmpi sle, %9, %55 : vector<1x256xi32>
    %cst_29 = arith.constant 0.000000e+00 : f32
    %57 = arith.truncf %cst_29 : f32 to bf16
    %58 = vector.shape_cast %56 : vector<1x256xi1> to vector<1x256xi1>
    %59 = vector.broadcast %58 : vector<1x256xi1> to vector<32x256xi1>
    %60 = vector.broadcast %57 : bf16 to vector<32x256xbf16>
    %61 = arith.select %59, %54, %60 : vector<32x256xi1>, vector<32x256xbf16>
    %c160 = arith.constant 160 : index
    %c0_30 = arith.constant 0 : index
    %62 = vector.load %arg6[%c160, %c0_30] : memref<288x256xbf16, #tpu.memory_space<vmem>>, vector<32x256xbf16>
    tpu.vector_store %arg6[%c160, %c0_30], %61 {strides = array<i32>} : memref<288x256xbf16, #tpu.memory_space<vmem>>, vector<32x256xbf16>,
    %c0_31 = arith.constant 0 : index
    %c143 = arith.constant 143 : index
    %63 = vector.load %arg5[%c0_31, %c143] : memref<32x401xbf16, #tpu.memory_space<vmem>>, vector<32x256xbf16>
    %c240_i32 = arith.constant 240 : i32
    %64 = vector.broadcast %c240_i32 : i32 to vector<1x256xi32>
    %65 = arith.cmpi slt, %7, %64 : vector<1x256xi32>
    %c1_i32_32 = arith.constant 1 : i32
    %66 = vector.broadcast %c1_i32_32 : i32 to vector<1x256xi32>
    %67 = arith.cmpi sge, %9, %66 : vector<1x256xi32>
    %68 = arith.andi %65, %67 : vector<1x256xi1>
    %cst_33 = arith.constant 0.000000e+00 : f32
    %69 = arith.truncf %cst_33 : f32 to bf16
    %70 = vector.shape_cast %68 : vector<1x256xi1> to vector<1x256xi1>
    %71 = vector.broadcast %70 : vector<1x256xi1> to vector<32x256xi1>
    %72 = vector.broadcast %69 : bf16 to vector<32x256xbf16>
    %73 = arith.select %71, %63, %72 : vector<32x256xi1>, vector<32x256xbf16>
    %c192 = arith.constant 192 : index
    %c0_34 = arith.constant 0 : index
    %74 = vector.load %arg6[%c192, %c0_34] : memref<288x256xbf16, #tpu.memory_space<vmem>>, vector<32x256xbf16>
    tpu.vector_store %arg6[%c192, %c0_34], %73 {strides = array<i32>} : memref<288x256xbf16, #tpu.memory_space<vmem>>, vector<32x256xbf16>,
    %c0_35 = arith.constant 0 : index
    %c144 = arith.constant 144 : index
    %75 = vector.load %arg5[%c0_35, %c144] : memref<32x401xbf16, #tpu.memory_space<vmem>>, vector<32x256xbf16>
    %c240_i32_36 = arith.constant 240 : i32
    %76 = vector.broadcast %c240_i32_36 : i32 to vector<1x256xi32>
    %77 = arith.cmpi slt, %7, %76 : vector<1x256xi32>
    %cst_37 = arith.constant 0.000000e+00 : f32
    %78 = arith.truncf %cst_37 : f32 to bf16
    %79 = vector.shape_cast %77 : vector<1x256xi1> to vector<1x256xi1>
    %80 = vector.broadcast %79 : vector<1x256xi1> to vector<32x256xi1>
    %81 = vector.broadcast %78 : bf16 to vector<32x256xbf16>
    %82 = arith.select %80, %75, %81 : vector<32x256xi1>, vector<32x256xbf16>
    %c224 = arith.constant 224 : index
    %c0_38 = arith.constant 0 : index
    %83 = vector.load %arg6[%c224, %c0_38] : memref<288x256xbf16, #tpu.memory_space<vmem>>, vector<32x256xbf16>
    tpu.vector_store %arg6[%c224, %c0_38], %82 {strides = array<i32>} : memref<288x256xbf16, #tpu.memory_space<vmem>>, vector<32x256xbf16>,
    %c0_39 = arith.constant 0 : index
    %c145 = arith.constant 145 : index
    %84 = vector.load %arg5[%c0_39, %c145] : memref<32x401xbf16, #tpu.memory_space<vmem>>, vector<32x256xbf16>
    %c240_i32_40 = arith.constant 240 : i32
    %85 = vector.broadcast %c240_i32_40 : i32 to vector<1x256xi32>
    %86 = arith.cmpi slt, %7, %85 : vector<1x256xi32>
    %c14_i32_41 = arith.constant 14 : i32
    %87 = vector.broadcast %c14_i32_41 : i32 to vector<1x256xi32>
    %88 = arith.cmpi sle, %9, %87 : vector<1x256xi32>
    %89 = arith.andi %86, %88 : vector<1x256xi1>
    %cst_42 = arith.constant 0.000000e+00 : f32
    %90 = arith.truncf %cst_42 : f32 to bf16
    %91 = vector.shape_cast %89 : vector<1x256xi1> to vector<1x256xi1>
    %92 = vector.broadcast %91 : vector<1x256xi1> to vector<32x256xi1>
    %93 = vector.broadcast %90 : bf16 to vector<32x256xbf16>
    %94 = arith.select %92, %84, %93 : vector<32x256xi1>, vector<32x256xbf16>
    %c256 = arith.constant 256 : index
    %c0_43 = arith.constant 0 : index
    %95 = vector.load %arg6[%c256, %c0_43] : memref<288x256xbf16, #tpu.memory_space<vmem>>, vector<32x256xbf16>
    tpu.vector_store %arg6[%c256, %c0_43], %94 {strides = array<i32>} : memref<288x256xbf16, #tpu.memory_space<vmem>>, vector<32x256xbf16>,
    %c0_44 = arith.constant 0 : index
    %c0_45 = arith.constant 0 : index
    %96 = vector.load %arg2[%c0_44, %c0_45] : memref<16x288xbf16, #tpu.memory_space<vmem>>, vector<16x288xbf16>
    %c0_46 = arith.constant 0 : index
    %c0_47 = arith.constant 0 : index
    %97 = vector.load %arg6[%c0_46, %c0_47] : memref<288x256xbf16, #tpu.memory_space<vmem>>, vector<288x256xbf16>
    %cst_48 = arith.constant dense<0.000000e+00> : vector<16x256xf32>
    %98 = tpu.matmul %96, %97, %cst_48 {dimension_numbers = #tpu.dot_dimension_numbers<[1], [0], [0], [1], [0, 0, 1, 1], [], []>} : vector<16x288xbf16>, vector<288x256xbf16>, vector<16x256xf32> -> vector<16x256xf32>
    %c0_49 = arith.constant 0 : index
    %c0_50 = arith.constant 0 : index
    %99 = vector.load %arg3[%c0_49, %c0_50] : memref<16x1xf32, #tpu.memory_space<vmem>>, vector<16x1xf32>
    %100 = vector.broadcast %99 : vector<16x1xf32> to vector<16x256xf32>
    %101 = arith.addf %98, %100 : vector<16x256xf32>
    %cst_51 = arith.constant 0.000000e+00 : f32
    %102 = vector.broadcast %cst_51 : f32 to vector<16x256xf32>
    %103 = arith.maximumf %101, %102 : vector<16x256xf32>
    %104 = arith.truncf %103 : vector<16x256xf32> to vector<16x256xbf16>
    %c0_52 = arith.constant 0 : index
    %c0_53 = arith.constant 0 : index
    %c0_54 = arith.constant 0 : index
    %105 = vector.load %arg4[%c0_52, %c0_53, %c0_54] : memref<1x16x256xbf16, #tpu.memory_space<vmem>>, vector<1x16x256xbf16>
    %106 = vector.shape_cast %105 : vector<1x16x256xbf16> to vector<16x256xbf16>
    %107 = vector.shape_cast %104 : vector<16x256xbf16> to vector<1x16x256xbf16>
    tpu.vector_store %arg4[%c0_52, %c0_53, %c0_54], %107 {strides = array<i32>} : memref<1x16x256xbf16, #tpu.memory_space<vmem>>, vector<1x16x256xbf16>,
    return
  }
  func.func @transform_0(%arg0: i32) -> (i32, i32, i32) {
    %c0_i32 = arith.constant 0 : i32
    %c0_i32_0 = arith.constant 0 : i32
    %c0_i32_1 = arith.constant 0 : i32
    return %arg0, %c0_i32, %c0_i32_0 : i32, i32, i32
  }
  func.func @transform_1(%arg0: i32) -> (i32, i32) {
    %c0_i32 = arith.constant 0 : i32
    %c0_i32_0 = arith.constant 0 : i32
    %c0_i32_1 = arith.constant 0 : i32
    return %c0_i32, %c0_i32_0 : i32, i32
  }
  func.func @transform_2(%arg0: i32) -> (i32, i32) {
    %c0_i32 = arith.constant 0 : i32
    %c0_i32_0 = arith.constant 0 : i32
    %c0_i32_1 = arith.constant 0 : i32
    return %c0_i32, %c0_i32_0 : i32, i32
  }
  func.func @transform_3(%arg0: i32) -> (i32, i32, i32) {
    %c0_i32 = arith.constant 0 : i32
    %c0_i32_0 = arith.constant 0 : i32
    %c0_i32_1 = arith.constant 0 : i32
    return %arg0, %c0_i32, %c0_i32_0 : i32, i32, i32
  }
}

module attributes {stable_mosaic.version = 11 : i64} {
  func.func @_conv3x3_kernel(%arg0: i32, %arg1: memref<1x16x256xbf16, #tpu.memory_space<vmem>>, %arg2: memref<8x144xbf16, #tpu.memory_space<vmem>>, %arg3: memref<8x1xf32, #tpu.memory_space<vmem>>, %arg4: memref<1x8x256xf32, #tpu.memory_space<vmem>>, %arg5: memref<16x401xbf16, #tpu.memory_space<vmem>>, %arg6: memref<144x256xbf16, #tpu.memory_space<vmem>>) attributes {dimension_semantics = [#tpu.dimension_semantics<parallel>], iteration_bounds = array<i64: 2>, scalar_prefetch = 0 : i64, scratch_operands = 2 : i64, tpu.core_type = #tpu.core_type<tc>, window_params = [{transform_indices = @transform_0, window_bounds = array<i64: 1, 16, 256>}, {pipeline_mode = #tpu.pipeline_mode<synchronous>, transform_indices = @transform_1, window_bounds = array<i64: 8, 144>}, {pipeline_mode = #tpu.pipeline_mode<synchronous>, transform_indices = @transform_2, window_bounds = array<i64: 8, 1>}, {transform_indices = @transform_3, window_bounds = array<i64: 1, 8, 256>}]} {
    %cst = arith.constant 0.000000e+00 : bf16
    %0 = vector.broadcast %cst : bf16 to vector<16x128xbf16>
    %c0 = arith.constant 0 : index
    %c0_0 = arith.constant 0 : index
    %1 = vector.load %arg5[%c0, %c0_0] : memref<16x401xbf16, #tpu.memory_space<vmem>>, vector<16x128xbf16>
    tpu.vector_store %arg5[%c0, %c0_0], %0 {strides = array<i32>} : memref<16x401xbf16, #tpu.memory_space<vmem>>, vector<16x128xbf16>,
    %cst_1 = arith.constant 0.000000e+00 : bf16
    %2 = vector.broadcast %cst_1 : bf16 to vector<16x17xbf16>
    %c0_2 = arith.constant 0 : index
    %c384 = arith.constant 384 : index
    %3 = vector.load %arg5[%c0_2, %c384] : memref<16x401xbf16, #tpu.memory_space<vmem>>, vector<16x17xbf16>
    tpu.vector_store %arg5[%c0_2, %c384], %2 {strides = array<i32>} : memref<16x401xbf16, #tpu.memory_space<vmem>>, vector<16x17xbf16>,
    %c0_3 = arith.constant 0 : index
    %c0_4 = arith.constant 0 : index
    %c0_5 = arith.constant 0 : index
    %4 = vector.load %arg1[%c0_3, %c0_4, %c0_5] : memref<1x16x256xbf16, #tpu.memory_space<vmem>>, vector<1x16x256xbf16>
    %5 = vector.shape_cast %4 : vector<1x16x256xbf16> to vector<16x256xbf16>
    %c0_6 = arith.constant 0 : index
    %c128 = arith.constant 128 : index
    %6 = vector.load %arg5[%c0_6, %c128] : memref<16x401xbf16, #tpu.memory_space<vmem>>, vector<16x256xbf16>
    tpu.vector_store %arg5[%c0_6, %c128], %5 {strides = array<i32>} : memref<16x401xbf16, #tpu.memory_space<vmem>>, vector<16x256xbf16>,
    %7 = tpu.iota {dimensions = array<i32: 1>} : vector<1x256xi32>
    %c15_i32 = arith.constant 15 : i32
    %8 = vector.broadcast %c15_i32 : i32 to vector<1x256xi32>
    %9 = arith.andi %7, %8 : vector<1x256xi32>
    %c0_7 = arith.constant 0 : index
    %c111 = arith.constant 111 : index
    %10 = vector.load %arg5[%c0_7, %c111] : memref<16x401xbf16, #tpu.memory_space<vmem>>, vector<16x256xbf16>
    %c16_i32 = arith.constant 16 : i32
    %11 = vector.broadcast %c16_i32 : i32 to vector<1x256xi32>
    %12 = arith.cmpi sge, %7, %11 : vector<1x256xi32>
    %c1_i32 = arith.constant 1 : i32
    %13 = vector.broadcast %c1_i32 : i32 to vector<1x256xi32>
    %14 = arith.cmpi sge, %9, %13 : vector<1x256xi32>
    %15 = arith.andi %12, %14 : vector<1x256xi1>
    %cst_8 = arith.constant 0.000000e+00 : f32
    %16 = arith.truncf %cst_8 : f32 to bf16
    %17 = vector.shape_cast %15 : vector<1x256xi1> to vector<1x256xi1>
    %18 = vector.broadcast %17 : vector<1x256xi1> to vector<16x256xi1>
    %19 = vector.broadcast %16 : bf16 to vector<16x256xbf16>
    %20 = arith.select %18, %10, %19 : vector<16x256xi1>, vector<16x256xbf16>
    %c0_9 = arith.constant 0 : index
    %c0_10 = arith.constant 0 : index
    %21 = vector.load %arg6[%c0_9, %c0_10] : memref<144x256xbf16, #tpu.memory_space<vmem>>, vector<16x256xbf16>
    tpu.vector_store %arg6[%c0_9, %c0_10], %20 {strides = array<i32>} : memref<144x256xbf16, #tpu.memory_space<vmem>>, vector<16x256xbf16>,
    %c0_11 = arith.constant 0 : index
    %c112 = arith.constant 112 : index
    %22 = vector.load %arg5[%c0_11, %c112] : memref<16x401xbf16, #tpu.memory_space<vmem>>, vector<16x256xbf16>
    %c16_i32_12 = arith.constant 16 : i32
    %23 = vector.broadcast %c16_i32_12 : i32 to vector<1x256xi32>
    %24 = arith.cmpi sge, %7, %23 : vector<1x256xi32>
    %cst_13 = arith.constant 0.000000e+00 : f32
    %25 = arith.truncf %cst_13 : f32 to bf16
    %26 = vector.shape_cast %24 : vector<1x256xi1> to vector<1x256xi1>
    %27 = vector.broadcast %26 : vector<1x256xi1> to vector<16x256xi1>
    %28 = vector.broadcast %25 : bf16 to vector<16x256xbf16>
    %29 = arith.select %27, %22, %28 : vector<16x256xi1>, vector<16x256xbf16>
    %c16 = arith.constant 16 : index
    %c0_14 = arith.constant 0 : index
    %30 = vector.load %arg6[%c16, %c0_14] : memref<144x256xbf16, #tpu.memory_space<vmem>>, vector<16x256xbf16>
    tpu.vector_store %arg6[%c16, %c0_14], %29 {strides = array<i32>} : memref<144x256xbf16, #tpu.memory_space<vmem>>, vector<16x256xbf16>,
    %c0_15 = arith.constant 0 : index
    %c113 = arith.constant 113 : index
    %31 = vector.load %arg5[%c0_15, %c113] : memref<16x401xbf16, #tpu.memory_space<vmem>>, vector<16x256xbf16>
    %c16_i32_16 = arith.constant 16 : i32
    %32 = vector.broadcast %c16_i32_16 : i32 to vector<1x256xi32>
    %33 = arith.cmpi sge, %7, %32 : vector<1x256xi32>
    %c14_i32 = arith.constant 14 : i32
    %34 = vector.broadcast %c14_i32 : i32 to vector<1x256xi32>
    %35 = arith.cmpi sle, %9, %34 : vector<1x256xi32>
    %36 = arith.andi %33, %35 : vector<1x256xi1>
    %cst_17 = arith.constant 0.000000e+00 : f32
    %37 = arith.truncf %cst_17 : f32 to bf16
    %38 = vector.shape_cast %36 : vector<1x256xi1> to vector<1x256xi1>
    %39 = vector.broadcast %38 : vector<1x256xi1> to vector<16x256xi1>
    %40 = vector.broadcast %37 : bf16 to vector<16x256xbf16>
    %41 = arith.select %39, %31, %40 : vector<16x256xi1>, vector<16x256xbf16>
    %c32 = arith.constant 32 : index
    %c0_18 = arith.constant 0 : index
    %42 = vector.load %arg6[%c32, %c0_18] : memref<144x256xbf16, #tpu.memory_space<vmem>>, vector<16x256xbf16>
    tpu.vector_store %arg6[%c32, %c0_18], %41 {strides = array<i32>} : memref<144x256xbf16, #tpu.memory_space<vmem>>, vector<16x256xbf16>,
    %c0_19 = arith.constant 0 : index
    %c127 = arith.constant 127 : index
    %43 = vector.load %arg5[%c0_19, %c127] : memref<16x401xbf16, #tpu.memory_space<vmem>>, vector<16x256xbf16>
    %c1_i32_20 = arith.constant 1 : i32
    %44 = vector.broadcast %c1_i32_20 : i32 to vector<1x256xi32>
    %45 = arith.cmpi sge, %9, %44 : vector<1x256xi32>
    %cst_21 = arith.constant 0.000000e+00 : f32
    %46 = arith.truncf %cst_21 : f32 to bf16
    %47 = vector.shape_cast %45 : vector<1x256xi1> to vector<1x256xi1>
    %48 = vector.broadcast %47 : vector<1x256xi1> to vector<16x256xi1>
    %49 = vector.broadcast %46 : bf16 to vector<16x256xbf16>
    %50 = arith.select %48, %43, %49 : vector<16x256xi1>, vector<16x256xbf16>
    %c48 = arith.constant 48 : index
    %c0_22 = arith.constant 0 : index
    %51 = vector.load %arg6[%c48, %c0_22] : memref<144x256xbf16, #tpu.memory_space<vmem>>, vector<16x256xbf16>
    tpu.vector_store %arg6[%c48, %c0_22], %50 {strides = array<i32>} : memref<144x256xbf16, #tpu.memory_space<vmem>>, vector<16x256xbf16>,
    %c0_23 = arith.constant 0 : index
    %c128_24 = arith.constant 128 : index
    %52 = vector.load %arg5[%c0_23, %c128_24] : memref<16x401xbf16, #tpu.memory_space<vmem>>, vector<16x256xbf16>
    %c64 = arith.constant 64 : index
    %c0_25 = arith.constant 0 : index
    %53 = vector.load %arg6[%c64, %c0_25] : memref<144x256xbf16, #tpu.memory_space<vmem>>, vector<16x256xbf16>
    tpu.vector_store %arg6[%c64, %c0_25], %52 {strides = array<i32>} : memref<144x256xbf16, #tpu.memory_space<vmem>>, vector<16x256xbf16>,
    %c0_26 = arith.constant 0 : index
    %c129 = arith.constant 129 : index
    %54 = vector.load %arg5[%c0_26, %c129] : memref<16x401xbf16, #tpu.memory_space<vmem>>, vector<16x256xbf16>
    %c14_i32_27 = arith.constant 14 : i32
    %55 = vector.broadcast %c14_i32_27 : i32 to vector<1x256xi32>
    %56 = arith.cmpi sle, %9, %55 : vector<1x256xi32>
    %cst_28 = arith.constant 0.000000e+00 : f32
    %57 = arith.truncf %cst_28 : f32 to bf16
    %58 = vector.shape_cast %56 : vector<1x256xi1> to vector<1x256xi1>
    %59 = vector.broadcast %58 : vector<1x256xi1> to vector<16x256xi1>
    %60 = vector.broadcast %57 : bf16 to vector<16x256xbf16>
    %61 = arith.select %59, %54, %60 : vector<16x256xi1>, vector<16x256xbf16>
    %c80 = arith.constant 80 : index
    %c0_29 = arith.constant 0 : index
    %62 = vector.load %arg6[%c80, %c0_29] : memref<144x256xbf16, #tpu.memory_space<vmem>>, vector<16x256xbf16>
    tpu.vector_store %arg6[%c80, %c0_29], %61 {strides = array<i32>} : memref<144x256xbf16, #tpu.memory_space<vmem>>, vector<16x256xbf16>,
    %c0_30 = arith.constant 0 : index
    %c143 = arith.constant 143 : index
    %63 = vector.load %arg5[%c0_30, %c143] : memref<16x401xbf16, #tpu.memory_space<vmem>>, vector<16x256xbf16>
    %c240_i32 = arith.constant 240 : i32
    %64 = vector.broadcast %c240_i32 : i32 to vector<1x256xi32>
    %65 = arith.cmpi slt, %7, %64 : vector<1x256xi32>
    %c1_i32_31 = arith.constant 1 : i32
    %66 = vector.broadcast %c1_i32_31 : i32 to vector<1x256xi32>
    %67 = arith.cmpi sge, %9, %66 : vector<1x256xi32>
    %68 = arith.andi %65, %67 : vector<1x256xi1>
    %cst_32 = arith.constant 0.000000e+00 : f32
    %69 = arith.truncf %cst_32 : f32 to bf16
    %70 = vector.shape_cast %68 : vector<1x256xi1> to vector<1x256xi1>
    %71 = vector.broadcast %70 : vector<1x256xi1> to vector<16x256xi1>
    %72 = vector.broadcast %69 : bf16 to vector<16x256xbf16>
    %73 = arith.select %71, %63, %72 : vector<16x256xi1>, vector<16x256xbf16>
    %c96 = arith.constant 96 : index
    %c0_33 = arith.constant 0 : index
    %74 = vector.load %arg6[%c96, %c0_33] : memref<144x256xbf16, #tpu.memory_space<vmem>>, vector<16x256xbf16>
    tpu.vector_store %arg6[%c96, %c0_33], %73 {strides = array<i32>} : memref<144x256xbf16, #tpu.memory_space<vmem>>, vector<16x256xbf16>,
    %c0_34 = arith.constant 0 : index
    %c144 = arith.constant 144 : index
    %75 = vector.load %arg5[%c0_34, %c144] : memref<16x401xbf16, #tpu.memory_space<vmem>>, vector<16x256xbf16>
    %c240_i32_35 = arith.constant 240 : i32
    %76 = vector.broadcast %c240_i32_35 : i32 to vector<1x256xi32>
    %77 = arith.cmpi slt, %7, %76 : vector<1x256xi32>
    %cst_36 = arith.constant 0.000000e+00 : f32
    %78 = arith.truncf %cst_36 : f32 to bf16
    %79 = vector.shape_cast %77 : vector<1x256xi1> to vector<1x256xi1>
    %80 = vector.broadcast %79 : vector<1x256xi1> to vector<16x256xi1>
    %81 = vector.broadcast %78 : bf16 to vector<16x256xbf16>
    %82 = arith.select %80, %75, %81 : vector<16x256xi1>, vector<16x256xbf16>
    %c112_37 = arith.constant 112 : index
    %c0_38 = arith.constant 0 : index
    %83 = vector.load %arg6[%c112_37, %c0_38] : memref<144x256xbf16, #tpu.memory_space<vmem>>, vector<16x256xbf16>
    tpu.vector_store %arg6[%c112_37, %c0_38], %82 {strides = array<i32>} : memref<144x256xbf16, #tpu.memory_space<vmem>>, vector<16x256xbf16>,
    %c0_39 = arith.constant 0 : index
    %c145 = arith.constant 145 : index
    %84 = vector.load %arg5[%c0_39, %c145] : memref<16x401xbf16, #tpu.memory_space<vmem>>, vector<16x256xbf16>
    %c240_i32_40 = arith.constant 240 : i32
    %85 = vector.broadcast %c240_i32_40 : i32 to vector<1x256xi32>
    %86 = arith.cmpi slt, %7, %85 : vector<1x256xi32>
    %c14_i32_41 = arith.constant 14 : i32
    %87 = vector.broadcast %c14_i32_41 : i32 to vector<1x256xi32>
    %88 = arith.cmpi sle, %9, %87 : vector<1x256xi32>
    %89 = arith.andi %86, %88 : vector<1x256xi1>
    %cst_42 = arith.constant 0.000000e+00 : f32
    %90 = arith.truncf %cst_42 : f32 to bf16
    %91 = vector.shape_cast %89 : vector<1x256xi1> to vector<1x256xi1>
    %92 = vector.broadcast %91 : vector<1x256xi1> to vector<16x256xi1>
    %93 = vector.broadcast %90 : bf16 to vector<16x256xbf16>
    %94 = arith.select %92, %84, %93 : vector<16x256xi1>, vector<16x256xbf16>
    %c128_43 = arith.constant 128 : index
    %c0_44 = arith.constant 0 : index
    %95 = vector.load %arg6[%c128_43, %c0_44] : memref<144x256xbf16, #tpu.memory_space<vmem>>, vector<16x256xbf16>
    tpu.vector_store %arg6[%c128_43, %c0_44], %94 {strides = array<i32>} : memref<144x256xbf16, #tpu.memory_space<vmem>>, vector<16x256xbf16>,
    %c0_45 = arith.constant 0 : index
    %c0_46 = arith.constant 0 : index
    %96 = vector.load %arg2[%c0_45, %c0_46] : memref<8x144xbf16, #tpu.memory_space<vmem>>, vector<8x144xbf16>
    %c0_47 = arith.constant 0 : index
    %c0_48 = arith.constant 0 : index
    %97 = vector.load %arg6[%c0_47, %c0_48] : memref<144x256xbf16, #tpu.memory_space<vmem>>, vector<144x256xbf16>
    %cst_49 = arith.constant dense<0.000000e+00> : vector<8x256xf32>
    %98 = tpu.matmul %96, %97, %cst_49 {dimension_numbers = #tpu.dot_dimension_numbers<[1], [0], [0], [1], [0, 0, 1, 1], [], []>} : vector<8x144xbf16>, vector<144x256xbf16>, vector<8x256xf32> -> vector<8x256xf32>
    %c0_50 = arith.constant 0 : index
    %c0_51 = arith.constant 0 : index
    %99 = vector.load %arg3[%c0_50, %c0_51] : memref<8x1xf32, #tpu.memory_space<vmem>>, vector<8x1xf32>
    %100 = vector.broadcast %99 : vector<8x1xf32> to vector<8x256xf32>
    %101 = arith.addf %98, %100 : vector<8x256xf32>
    %102 = arith.negf %101 : vector<8x256xf32>
    %103 = math.exp %102 : vector<8x256xf32>
    %cst_52 = arith.constant 1.000000e+00 : f32
    %104 = vector.broadcast %cst_52 : f32 to vector<8x256xf32>
    %105 = arith.addf %104, %103 : vector<8x256xf32>
    %106 = arith.divf %104, %105 : vector<8x256xf32>
    %c0_53 = arith.constant 0 : index
    %c0_54 = arith.constant 0 : index
    %c0_55 = arith.constant 0 : index
    %107 = vector.load %arg4[%c0_53, %c0_54, %c0_55] : memref<1x8x256xf32, #tpu.memory_space<vmem>>, vector<1x8x256xf32>
    %108 = vector.shape_cast %107 : vector<1x8x256xf32> to vector<8x256xf32>
    %109 = vector.shape_cast %106 : vector<8x256xf32> to vector<1x8x256xf32>
    tpu.vector_store %arg4[%c0_53, %c0_54, %c0_55], %109 {strides = array<i32>} : memref<1x8x256xf32, #tpu.memory_space<vmem>>, vector<1x8x256xf32>,
    return
  }
  func.func @transform_0(%arg0: i32) -> (i32, i32, i32) {
    %c0_i32 = arith.constant 0 : i32
    %c0_i32_0 = arith.constant 0 : i32
    %c0_i32_1 = arith.constant 0 : i32
    return %arg0, %c0_i32, %c0_i32_0 : i32, i32, i32
  }
  func.func @transform_1(%arg0: i32) -> (i32, i32) {
    %c0_i32 = arith.constant 0 : i32
    %c0_i32_0 = arith.constant 0 : i32
    %c0_i32_1 = arith.constant 0 : i32
    return %c0_i32, %c0_i32_0 : i32, i32
  }
  func.func @transform_2(%arg0: i32) -> (i32, i32) {
    %c0_i32 = arith.constant 0 : i32
    %c0_i32_0 = arith.constant 0 : i32
    %c0_i32_1 = arith.constant 0 : i32
    return %c0_i32, %c0_i32_0 : i32, i32
  }
  func.func @transform_3(%arg0: i32) -> (i32, i32, i32) {
    %c0_i32 = arith.constant 0 : i32
    %c0_i32_0 = arith.constant 0 : i32
    %c0_i32_1 = arith.constant 0 : i32
    return %arg0, %c0_i32, %c0_i32_0 : i32, i32, i32
  }
}

</mosaic_0001>

<llo_original>
// kernel: sipr_forward.7
$region0: #{sipr_forward.7}
  #allocation0 [shape = 'u32[]', space=smem, size = 0x4, offset = 0x4, fixed_abs, tag = 'smem constant byte address 0x4 - core index']
  #allocation1 [shape = 'u32[72,128]{1,0:T(1,128)}', space=vmem, size = 0x9000, scoped, tag = 'internal scratch']
  #allocation2 [shape = 'bf16[16,401]{1,0:T(8,128)(2,1)}', space=vmem, size = 0x4000, scoped, tag = 'scratch operand']
  #allocation3 [shape = 'bf16[144,256]{1,0:T(8,128)(2,1)}', space=vmem, size = 0x12000, scoped, tag = 'scratch operand']
  %s0 = inlined_call_operand.vmem [shape: bf16[2,16,256], index: 0, kind: input, shape index: {}]
  %s1 = inlined_call_operand.vmem [shape: bf16[32,144], index: 1, kind: input, shape index: {}]
  %s2 = inlined_call_operand.vmem [shape: f32[32,1], index: 2, kind: input, shape index: {}]
  %s3 = inlined_call_operand.vmem [shape: bf16[2,32,256], index: 3, kind: output, shape index: {}]
  %s4 = sld [smem:[#allocation0]]
  $region45: #{sipr_forward.7} parent=0
    _
  %s6 = ssub.s32 1, %s4
  %s7 = scalar_select 0, %s6, %s4
  loop: start=0, step=1, limit=4
  $region2: #{sipr_forward.7} parent=0 // loop_pre_header
    _
  $region3: #{sipr_forward.7} parent=0 // loop_header
    %s9 = sphi 0, %s13
    %p10 = scmp.ge.s32.totalorder %s9, 4
    %s19 = sphi 0, %s21
    %s22 = sphi 0, %s19
    %s23 = sphi 0, %s22
    %s39 = sphi 0, %s23
    %s43 = sphi 0, %s43
    %s45 = sphi 0, %s43
    %s46 = sphi 0, %s45
    %s60 = sphi 0, %s46
    %s64 = sphi 0, %s64
    %s66 = sphi 0, %s64
    %s67 = sphi 0, %s66
    %s81 = sphi 0, %s67
    %s87 = sphi 0, %s89
    %s90 = sphi 0, %s87
    %s91 = sphi 0, %s90
    %s107 = sphi 0, %s91
  $region4: #{sipr_forward.7} parent=0 // loop_header_branch
    %12 = sbr.rel (%p10) target = $region8
  $region5: #{sipr_forward.7} parent=0 // loop_body
    %s14 = ssub.s32 %s9, 1
    %s15 = ssub.s32 %s9, 2
    %s16 = sadd.s32 %s9, 1
    %s17 = ssub.s32 %s9, %s16
    %p18 = scmp.eq.s32.totalorder %s17, 0
    %s20 = sadd.s32 %s19, 1
    %s21 = scalar_select %p18, %s19, %s20
    %p24 = pneg %p18
    %p25 = scmp.eq.s32.totalorder %s9, 1
    %p26 = por %p24, %p25
    %p27 = scmp.ne.s32.totalorder %s19, %s22
    %p28 = scmp.eq.s32.totalorder %s9, 0
    %p29 = por %p27, %p28
    %p30 = scmp.ne.s32.totalorder %s19, %s22
    %p31 = scmp.eq.s32.totalorder %s14, 1
    %p32 = por %p30, %p31
    %p33 = scmp.ne.s32.totalorder %s22, %s23
    %p34 = scmp.eq.s32.totalorder %s14, 0
    %p35 = por %p33, %p34
    %p36 = scmp.ne.s32.totalorder %s22, %s23
    %p37 = scmp.eq.s32.totalorder %s15, 1
    %p38 = por %p36, %p37
    %p40 = scmp.ne.s32.totalorder %s23, %s39
    %p41 = scmp.eq.s32.totalorder %s15, 0
    %p42 = por %p40, %p41
    %s44 = sadd.s32 %s43, 1
    %p47 = scmp.eq.s32.totalorder %s9, 1
    %p48 = scmp.ne.s32.totalorder %s43, %s45
    %p49 = scmp.eq.s32.totalorder %s9, 0
    %p50 = por %p48, %p49
    %p51 = scmp.ne.s32.totalorder %s43, %s45
    %p52 = scmp.eq.s32.totalorder %s14, 1
    %p53 = por %p51, %p52
    %p54 = scmp.ne.s32.totalorder %s45, %s46
    %p55 = scmp.eq.s32.totalorder %s14, 0
    %p56 = por %p54, %p55
    %p57 = scmp.ne.s32.totalorder %s45, %s46
    %p58 = scmp.eq.s32.totalorder %s15, 1
    %p59 = por %p57, %p58
    %p61 = scmp.ne.s32.totalorder %s46, %s60
    %p62 = scmp.eq.s32.totalorder %s15, 0
    %p63 = por %p61, %p62
    %s65 = sadd.s32 %s64, 1
    %p68 = scmp.eq.s32.totalorder %s9, 1
    %p69 = scmp.ne.s32.totalorder %s64, %s66
    %p70 = scmp.eq.s32.totalorder %s9, 0
    %p71 = por %p69, %p70
    %p72 = scmp.ne.s32.totalorder %s64, %s66
    %p73 = scmp.eq.s32.totalorder %s14, 1
    %p74 = por %p72, %p73
    %p75 = scmp.ne.s32.totalorder %s66, %s67
    %p76 = scmp.eq.s32.totalorder %s14, 0
    %p77 = por %p75, %p76
    %p78 = scmp.ne.s32.totalorder %s66, %s67
    %p79 = scmp.eq.s32.totalorder %s15, 1
    %p80 = por %p78, %p79
    %p82 = scmp.ne.s32.totalorder %s67, %s81
    %p83 = scmp.eq.s32.totalorder %s15, 0
    %p84 = por %p82, %p83
    %s85 = ssub.s32 %s9, %s16
    %p86 = scmp.eq.s32.totalorder %s85, 0
    %s88 = sadd.s32 %s87, 1
    %s89 = scalar_select %p86, %s87, %s88
    %p92 = pneg %p86
    %p93 = scmp.eq.s32.totalorder %s9, 1
    %p94 = por %p92, %p93
    %p95 = scmp.ne.s32.totalorder %s87, %s90
    %p96 = scmp.eq.s32.totalorder %s9, 0
    %p97 = por %p95, %p96
    %p98 = scmp.ne.s32.totalorder %s87, %s90
    %p99 = scmp.eq.s32.totalorder %s14, 1
    %p100 = por %p98, %p99
    %p101 = scmp.ne.s32.totalorder %s90, %s91
    %p102 = scmp.eq.s32.totalorder %s14, 0
    %p103 = por %p101, %p102
    %p104 = scmp.ne.s32.totalorder %s90, %s91
    %p105 = scmp.eq.s32.totalorder %s15, 1
    %p106 = por %p104, %p105
    %p108 = scmp.ne.s32.totalorder %s91, %s107
    %p109 = scmp.eq.s32.totalorder %s15, 0
    %p110 = por %p108, %p109
    %p111 = scmp.le.s32.totalorder 1, %s9
    %p112 = scmp.lt.s32.totalorder %s9, 3
    %p113 = pnand %p111, %p112
    %p114 = pneg %p113
    // Predicated region
    $region9: #{sipr_forward.7} parent=5 // pred_check
      _
    $region10: #{sipr_forward.7} parent=5 // pred_check_branch
      %116 = sbr.rel (%p113) target = $region12
    $region11: #{sipr_forward.7} parent=5 // pred_region
      %s117 = ssub.s32 %s9, 1
      // Predicated region
      $region13: #{sipr_forward.7} parent=11 // pred_check
        %p118 = pneg %p56
      $region14: #{sipr_forward.7} parent=11 // pred_check_branch
        %120 = sbr.rel (%p118) target = $region16
      $region15: #{sipr_forward.7} parent=11 // pred_region
        _
      $region16: #{sipr_forward.7} parent=11 // pred_fallthru
        _
      // Predicated region
      $region17: #{sipr_forward.7} parent=11 // pred_check
        %p121 = pneg %p77
      $region18: #{sipr_forward.7} parent=11 // pred_check_branch
        %123 = sbr.rel (%p121) target = $region20
      $region19: #{sipr_forward.7} parent=11 // pred_region
        _
      $region20: #{sipr_forward.7} parent=11 // pred_fallthru
        _
    $region12: #{sipr_forward.7} parent=5 // pred_fallthru
      _
    %p124 = scmp.lt.s32.totalorder %s9, 2
    // Predicated region
    $region21: #{sipr_forward.7} parent=5 // pred_check
      %p125 = pneg %p124
    $region22: #{sipr_forward.7} parent=5 // pred_check_branch
      %127 = sbr.rel (%p125) target = $region24
    $region23: #{sipr_forward.7} parent=5 // pred_region
      // Predicated region
      $region25: #{sipr_forward.7} parent=23 // pred_check
        %p128 = pneg %p29
      $region26: #{sipr_forward.7} parent=23 // pred_check_branch
        %130 = sbr.rel (%p128) target = $region28
      $region27: #{sipr_forward.7} parent=23 // pred_region
        %p131 = scmp.lt.s32.totalorder %s9, 1
        %s132 = scalar_select %p131, %s9, 1
        %s133 = smul.addr %s132, 4
        %s134 = smul.addr %s133, 4
        %s135 = scalar_lea.vmem %s0, %s134
      $region28: #{sipr_forward.7} parent=23 // pred_fallthru
        _
    $region24: #{sipr_forward.7} parent=5 // pred_fallthru
      _
    %p136 = scmp.le.s32.totalorder 1, %s9
    %p137 = scmp.lt.s32.totalorder %s9, 3
    %p138 = pnand %p136, %p137
    %p139 = pneg %p138
    // Predicated region
    $region29: #{sipr_forward.7} parent=5 // pred_check
      _
    $region30: #{sipr_forward.7} parent=5 // pred_check_branch
      %141 = sbr.rel (%p138) target = $region32
    $region31: #{sipr_forward.7} parent=5 // pred_region
      %s142 = ssub.s32 %s9, 1
      %p143 = scmp.lt.s32.totalorder %s14, 1
      %s144 = scalar_select %p143, %s14, 1
      %s145 = smul.addr %s144, 4
      %s146 = smul.addr %s145, 4
      %s147 = scalar_lea.vmem %s0, %s146
      %p148 = pneg %p35
      %p149 = pneg %p32
      %p150 = pneg %p56
      %p151 = pneg %p53
      %p152 = pneg %p77
      %p153 = pneg %p74
      %p154 = pneg %p103
      %p155 = pneg %p100
      %p156 = scmp.lt.s32.totalorder %s14, 1
      %s157 = scalar_select %p156, %s14, 1
      %s158 = smul.addr %s157, 8
      %s159 = smul.addr %s158, 4
      %s160 = scalar_lea.vmem %s3, %s159
      %p161 = scmp.lt.s32.totalorder %s14, 1
      %s162 = scalar_select %p161, %s14, 1
      %s163 = smul.addr %s162, 4
      %s164 = smul.addr %s163, 4
      %s165 = scalar_lea.vmem %s0, %s164
      %p166 = scmp.lt.s32.totalorder %s14, 1
      %s167 = scalar_select %p166, %s14, 1
      %s168 = smul.addr %s167, 8
      %s169 = smul.addr %s168, 4
      %s170 = scalar_lea.vmem %s3, %s169
      %174 = vst [vmem:[#allocation2] sm:$0xf] 0
      %175 = vst [vmem:[#allocation2 + $0x10] sm:$0xf] 0
      %vm176 = vcmask 134144
      %177 = vst.msk [vmem:[#allocation2 + $0xc] sm:$0xf] %vm176, 0
      %178 = vst.msk [vmem:[#allocation2 + $0x1c] sm:$0xf] %vm176, 0
      %v179 = vld [vmem:[%s165] sm:$0xff]
      %v180 = vld [vmem:[%s165 + $0x8] sm:$0xff]
      %181 = vst [vmem:[#allocation2 + $0x4] sm:$0xff] %v179
      %182 = vst [vmem:[#allocation2 + $0x14] sm:$0xff] %v180
      %v183 = vlaneseq
      %v184 = vand.u32 %v183, 127
      %v185 = vadd.s32 %v184, 128
      %v186 = vand.u32 %v184, 15
      %v187 = vand.u32 %v185, 15
      %v188 = vld [vmem:[#allocation2] sm:$0xff]
      %v189 = vld [vmem:[#allocation2 + $0x8] sm:$0xf]
      %v190 = vld [vmem:[#allocation2 + $0x10] sm:$0xff]
      %v191 = vld [vmem:[#allocation2 + $0x18] sm:$0xf]
      %vm192 = vcmp.ge.s32.totalorder %v184, 16
      %vm193 = vcmp.ge.s32.totalorder %v185, 16
      %vm194 = vcmp.ge.s32.totalorder %v186, 1
      %vm195 = vcmp.ge.s32.totalorder %v187, 1
      %vm196 = vmand %vm192, %vm194
      %vm197 = vmand %vm193, %vm195
      %v198 = vsel %vm196, 1, 0
      %v199 = vsel %vm197, 1, 0
      %vm200 = vcmp.eq.s32.totalorder %v198, 1
      %vm201 = vcmp.eq.s32.totalorder %v199, 1
      %vm202 = vmpackc.low %vm201, %vm200
      %v203 = vsel %vm202, 65537, 0
      %204 = vrot.lane.b32.xlu0 %v203, 111
      %v205 = vpop.permute.xlu0 %204
      %v206 = vrot.slane %v205, 4
      %vm207 = vcmask 908288
      %v208 = vsel %vm207, %v206, %v205
      %v209 = vunpack.c.l.b16 %v208
      %v210 = vunpack.c.h.b16 %v208
      %v211 = vunpack.c.l.b16 0
      %v212 = vunpack.c.h.b16 0
      %vm213 = vcmp.ne.s32.totalorder %v209, %v211
      %vm214 = vcmp.ne.s32.totalorder %v210, %v212
      %vm215 = vmpackc.low %vm214, %vm213
      %v216 = vunpack.c.l.b16 %v206
      %v217 = vunpack.c.h.b16 %v206
      %v218 = vunpack.c.l.b16 0
      %v219 = vunpack.c.h.b16 0
      %vm220 = vcmp.ne.s32.totalorder %v216, %v218
      %vm221 = vcmp.ne.s32.totalorder %v217, %v219
      %vm222 = vmpackc.low %vm221, %vm220
      %v223 = vsel %vm215, %v188, 0
      %v224 = vsel %vm222, %v189, 0
      %v225 = vsel %vm215, %v190, 0
      %v226 = vsel %vm222, %v191, 0
      %231 = vrot.lane.b32.xlu0 %v223, 17
      %v232 = vpop.permute.xlu0 %231
      %233 = vrot.lane.b32.xlu0 %v224, 17
      %v234 = vpop.permute.xlu0 %233
      %235 = vrot.lane.b32.xlu0 %v225, 17
      %v236 = vpop.permute.xlu0 %235
      %237 = vrot.lane.b32.xlu0 %v226, 17
      %v238 = vpop.permute.xlu0 %237
      %v239 = vrot.slane %v232, 4
      %v240 = vrot.slane %v234, 4
      %v241 = vrot.slane %v236, 4
      %v242 = vrot.slane %v238, 4
      %vm243 = vcmask 1043456
      %v244 = vsel %vm243, %v239, %v240
      %vm245 = vcmask 138240
      %v246 = vsel %vm245, %v232, %v244
      %v247 = vsel %vm243, %v241, %v242
      %v248 = vsel %vm245, %v236, %v247
      %251 = vst [vmem:[#allocation3] sm:$0xff] %v246
      %252 = vst [vmem:[#allocation3 + $0x8] sm:$0xff] %v248
      %v253 = vld [vmem:[#allocation2] sm:$0xff]
      %v254 = vld [vmem:[#allocation2 + $0x8] sm:$0xf]
      %v255 = vld [vmem:[#allocation2 + $0x10] sm:$0xff]
      %v256 = vld [vmem:[#allocation2 + $0x18] sm:$0xf]
      %v257 = vsel %vm192, 1, 0
      %v258 = vsel %vm193, 1, 0
      %vm259 = vcmp.eq.s32.totalorder %v257, 1
      %vm260 = vcmp.eq.s32.totalorder %v258, 1
      %vm261 = vmpackc.low %vm260, %vm259
      %v262 = vsel %vm261, 65537, 0
      %263 = vrot.lane.b32.xlu0 %v262, 112
      %v264 = vpop.permute.xlu0 %263
      %v265 = vrot.slane %v264, 4
      %vm266 = vcmask 916480
      %v267 = vsel %vm266, %v265, %v264
      %v268 = vunpack.c.l.b16 %v267
      %v269 = vunpack.c.h.b16 %v267
      %v270 = vunpack.c.l.b16 0
      %v271 = vunpack.c.h.b16 0
      %vm272 = vcmp.ne.s32.totalorder %v268, %v270
      %vm273 = vcmp.ne.s32.totalorder %v269, %v271
      %vm274 = vmpackc.low %vm273, %vm272
      %v275 = vunpack.c.l.b16 %v265
      %v276 = vunpack.c.h.b16 %v265
      %v277 = vunpack.c.l.b16 0
      %v278 = vunpack.c.h.b16 0
      %vm279 = vcmp.ne.s32.totalorder %v275, %v277
      %vm280 = vcmp.ne.s32.totalorder %v276, %v278
      %vm281 = vmpackc.low %vm280, %vm279
      %v282 = vsel %vm274, %v253, 0
      %v283 = vsel %vm281, %v254, 0
      %v284 = vsel %vm274, %v255, 0
      %v285 = vsel %vm281, %v256, 0
      %290 = vrot.lane.b32.xlu0 %v282, 16
      %v291 = vpop.permute.xlu0 %290
      %292 = vrot.lane.b32.xlu0 %v283, 16
      %v293 = vpop.permute.xlu0 %292
      %294 = vrot.lane.b32.xlu0 %v284, 16
      %v295 = vpop.permute.xlu0 %294
      %296 = vrot.lane.b32.xlu0 %v285, 16
      %v297 = vpop.permute.xlu0 %296
      %v298 = vrot.slane %v291, 4
      %v299 = vrot.slane %v293, 4
      %v300 = vrot.slane %v295, 4
      %v301 = vrot.slane %v297, 4
      %v302 = vsel %vm243, %v298, %v299
      %vm303 = vcmask 130048
      %v304 = vsel %vm303, %v291, %v302
      %v305 = vsel %vm243, %v300, %v301
      %v306 = vsel %vm303, %v295, %v305
      %309 = vst [vmem:[#allocation3 + $0x10] sm:$0xff] %v304
      %310 = vst [vmem:[#allocation3 + $0x18] sm:$0xff] %v306
      %v311 = vld [vmem:[#allocation2] sm:$0xff]
      %v312 = vld [vmem:[#allocation2 + $0x8] sm:$0xf]
      %v313 = vld [vmem:[#allocation2 + $0x10] sm:$0xff]
      %v314 = vld [vmem:[#allocation2 + $0x18] sm:$0xf]
      %vm315 = vcmp.le.s32.totalorder %v186, 14
      %vm316 = vcmp.le.s32.totalorder %v187, 14
      %vm317 = vmand %vm192, %vm315
      %vm318 = vmand %vm193, %vm316
      %v319 = vsel %vm317, 1, 0
      %v320 = vsel %vm318, 1, 0
      %vm321 = vcmp.eq.s32.totalorder %v319, 1
      %vm322 = vcmp.eq.s32.totalorder %v320, 1
      %vm323 = vmpackc.low %vm322, %vm321
      %v324 = vsel %vm323, 65537, 0
      %325 = vrot.lane.b32.xlu0 %v324, 113
      %v326 = vpop.permute.xlu0 %325
      %v327 = vrot.slane %v326, 4
      %vm328 = vcmask 924672
      %v329 = vsel %vm328, %v327, %v326
      %v330 = vunpack.c.l.b16 %v329
      %v331 = vunpack.c.h.b16 %v329
      %v332 = vunpack.c.l.b16 0
      %v333 = vunpack.c.h.b16 0
      %vm334 = vcmp.ne.s32.totalorder %v330, %v332
      %vm335 = vcmp.ne.s32.totalorder %v331, %v333
      %vm336 = vmpackc.low %vm335, %vm334
      %v337 = vunpack.c.l.b16 %v327
      %v338 = vunpack.c.h.b16 %v327
      %v339 = vunpack.c.l.b16 0
      %v340 = vunpack.c.h.b16 0
      %vm341 = vcmp.ne.s32.totalorder %v337, %v339
      %vm342 = vcmp.ne.s32.totalorder %v338, %v340
      %vm343 = vmpackc.low %vm342, %vm341
      %v344 = vsel %vm336, %v311, 0
      %v345 = vsel %vm343, %v312, 0
      %v346 = vsel %vm336, %v313, 0
      %v347 = vsel %vm343, %v314, 0
      %352 = vrot.lane.b32.xlu0 %v344, 15
      %v353 = vpop.permute.xlu0 %352
      %354 = vrot.lane.b32.xlu0 %v345, 15
      %v355 = vpop.permute.xlu0 %354
      %356 = vrot.lane.b32.xlu0 %v346, 15
      %v357 = vpop.permute.xlu0 %356
      %358 = vrot.lane.b32.xlu0 %v347, 15
      %v359 = vpop.permute.xlu0 %358
      %v360 = vrot.slane %v353, 4
      %v361 = vrot.slane %v355, 4
      %v362 = vrot.slane %v357, 4
      %v363 = vrot.slane %v359, 4
      %v364 = vsel %vm243, %v360, %v361
      %vm365 = vcmask 121856
      %v366 = vsel %vm365, %v353, %v364
      %v367 = vsel %vm243, %v362, %v363
      %v368 = vsel %vm365, %v357, %v367
      %371 = vst [vmem:[#allocation3 + $0x20] sm:$0xff] %v366
      %372 = vst [vmem:[#allocation3 + $0x28] sm:$0xff] %v368
      %v373 = vld [vmem:[#allocation2] sm:$0xff]
      %v374 = vld [vmem:[#allocation2 + $0x8] sm:$0xf]
      %v375 = vld [vmem:[#allocation2 + $0x10] sm:$0xff]
      %v376 = vld [vmem:[#allocation2 + $0x18] sm:$0xf]
      %v377 = vsel %vm194, 1, 0
      %v378 = vsel %vm195, 1, 0
      %vm379 = vcmp.eq.s32.totalorder %v377, 1
      %vm380 = vcmp.eq.s32.totalorder %v378, 1
      %vm381 = vmpackc.low %vm380, %vm379
      %v382 = vsel %vm381, 65537, 0
      %383 = vrot.lane.b32.xlu0 %v382, 127
      %v384 = vpop.permute.xlu0 %383
      %v385 = vrot.slane %v384, 4
      %vm386 = vcmask 1039360
      %v387 = vsel %vm386, %v385, %v384
      %v388 = vunpack.c.l.b16 %v387
      %v389 = vunpack.c.h.b16 %v387
      %v390 = vunpack.c.l.b16 0
      %v391 = vunpack.c.h.b16 0
      %vm392 = vcmp.ne.s32.totalorder %v388, %v390
      %vm393 = vcmp.ne.s32.totalorder %v389, %v391
      %vm394 = vmpackc.low %vm393, %vm392
      %v395 = vunpack.c.l.b16 %v385
      %v396 = vunpack.c.h.b16 %v385
      %v397 = vunpack.c.l.b16 0
      %v398 = vunpack.c.h.b16 0
      %vm399 = vcmp.ne.s32.totalorder %v395, %v397
      %vm400 = vcmp.ne.s32.totalorder %v396, %v398
      %vm401 = vmpackc.low %vm400, %vm399
      %v402 = vsel %vm394, %v373, 0
      %v403 = vsel %vm401, %v374, 0
      %v404 = vsel %vm394, %v375, 0
      %v405 = vsel %vm401, %v376, 0
      %410 = vrot.lane.b32.xlu0 %v402, 1
      %v411 = vpop.permute.xlu0 %410
      %412 = vrot.lane.b32.xlu0 %v403, 1
      %v413 = vpop.permute.xlu0 %412
      %414 = vrot.lane.b32.xlu0 %v404, 1
      %v415 = vpop.permute.xlu0 %414
      %416 = vrot.lane.b32.xlu0 %v405, 1
      %v417 = vpop.permute.xlu0 %416
      %v418 = vrot.slane %v411, 4
      %v419 = vrot.slane %v413, 4
      %v420 = vrot.slane %v415, 4
      %v421 = vrot.slane %v417, 4
      %v422 = vsel %vm243, %v418, %v419
      %vm423 = vcmask 7168
      %v424 = vsel %vm423, %v411, %v422
      %v425 = vsel %vm243, %v420, %v421
      %v426 = vsel %vm423, %v415, %v425
      %429 = vst [vmem:[#allocation3 + $0x30] sm:$0xff] %v424
      %430 = vst [vmem:[#allocation3 + $0x38] sm:$0xff] %v426
      %v431 = vld [vmem:[#allocation2 + $0x4] sm:$0xff]
      %v432 = vld [vmem:[#allocation2 + $0x14] sm:$0xff]
      %433 = vst [vmem:[#allocation3 + $0x40] sm:$0xff] %v431
      %434 = vst [vmem:[#allocation3 + $0x48] sm:$0xff] %v432
      %v435 = vld [vmem:[#allocation2 + $0x4] sm:$0xff]
      %v436 = vld [vmem:[#allocation2 + $0xc] sm:$0xf]
      %v437 = vld [vmem:[#allocation2 + $0x14] sm:$0xff]
      %v438 = vld [vmem:[#allocation2 + $0x1c] sm:$0xf]
      %v439 = vsel %vm315, 1, 0
      %v440 = vsel %vm316, 1, 0
      %vm441 = vcmp.eq.s32.totalorder %v439, 1
      %vm442 = vcmp.eq.s32.totalorder %v440, 1
      %vm443 = vmpackc.low %vm442, %vm441
      %v444 = vsel %vm443, 65537, 0
      %445 = vrot.lane.b32.xlu0 %v444, 1
      %v446 = vpop.permute.xlu0 %445
      %v447 = vrot.slane %v446, 4
      %v448 = vsel %vm423, %v447, %v446
      %v449 = vunpack.c.l.b16 %v448
      %v450 = vunpack.c.h.b16 %v448
      %v451 = vunpack.c.l.b16 0
      %v452 = vunpack.c.h.b16 0
      %vm453 = vcmp.ne.s32.totalorder %v449, %v451
      %vm454 = vcmp.ne.s32.totalorder %v450, %v452
      %vm455 = vmpackc.low %vm454, %vm453
      %v456 = vunpack.c.l.b16 %v447
      %v457 = vunpack.c.h.b16 %v447
      %v458 = vunpack.c.l.b16 0
      %v459 = vunpack.c.h.b16 0
      %vm460 = vcmp.ne.s32.totalorder %v456, %v458
      %vm461 = vcmp.ne.s32.totalorder %v457, %v459
      %vm462 = vmpackc.low %vm461, %vm460
      %v463 = vsel %vm455, %v435, 0
      %v464 = vsel %vm462, %v436, 0
      %v465 = vsel %vm455, %v437, 0
      %v466 = vsel %vm462, %v438, 0
      %471 = vrot.lane.b32.xlu0 %v463, 127
      %v472 = vpop.permute.xlu0 %471
      %473 = vrot.lane.b32.xlu0 %v464, 127
      %v474 = vpop.permute.xlu0 %473
      %475 = vrot.lane.b32.xlu0 %v465, 127
      %v476 = vpop.permute.xlu0 %475
      %477 = vrot.lane.b32.xlu0 %v466, 127
      %v478 = vpop.permute.xlu0 %477
      %v479 = vrot.slane %v472, 4
      %v480 = vrot.slane %v474, 4
      %v481 = vrot.slane %v476, 4
      %v482 = vrot.slane %v478, 4
      %v483 = vsel %vm243, %v479, %v480
      %v484 = vsel %vm386, %v472, %v483
      %v485 = vsel %vm243, %v481, %v482
      %v486 = vsel %vm386, %v476, %v485
      %489 = vst [vmem:[#allocation3 + $0x50] sm:$0xff] %v484
      %490 = vst [vmem:[#allocation3 + $0x58] sm:$0xff] %v486
      %v491 = vld [vmem:[#allocation2 + $0x4] sm:$0xff]
      %v492 = vld [vmem:[#allocation2 + $0xc] sm:$0xf]
      %v493 = vld [vmem:[#allocation2 + $0x14] sm:$0xff]
      %v494 = vld [vmem:[#allocation2 + $0x1c] sm:$0xf]
      %vm495 = vcmp.lt.s32.totalorder %v184, 240
      %vm496 = vcmp.lt.s32.totalorder %v185, 240
      %vm497 = vmand %vm495, %vm194
      %vm498 = vmand %vm496, %vm195
      %v499 = vsel %vm497, 1, 0
      %v500 = vsel %vm498, 1, 0
      %vm501 = vcmp.eq.s32.totalorder %v499, 1
      %vm502 = vcmp.eq.s32.totalorder %v500, 1
      %vm503 = vmpackc.low %vm502, %vm501
      %v504 = vsel %vm503, 65537, 0
      %505 = vrot.lane.b32.xlu0 %v504, 15
      %v506 = vpop.permute.xlu0 %505
      %v507 = vrot.slane %v506, 4
      %v508 = vsel %vm365, %v507, %v506
      %v509 = vunpack.c.l.b16 %v508
      %v510 = vunpack.c.h.b16 %v508
      %v511 = vunpack.c.l.b16 0
      %v512 = vunpack.c.h.b16 0
      %vm513 = vcmp.ne.s32.totalorder %v509, %v511
      %vm514 = vcmp.ne.s32.totalorder %v510, %v512
      %vm515 = vmpackc.low %vm514, %vm513
      %v516 = vunpack.c.l.b16 %v507
      %v517 = vunpack.c.h.b16 %v507
      %v518 = vunpack.c.l.b16 0
      %v519 = vunpack.c.h.b16 0
      %vm520 = vcmp.ne.s32.totalorder %v516, %v518
      %vm521 = vcmp.ne.s32.totalorder %v517, %v519
      %vm522 = vmpackc.low %vm521, %vm520
      %v523 = vsel %vm515, %v491, 0
      %v524 = vsel %vm522, %v492, 0
      %v525 = vsel %vm515, %v493, 0
      %v526 = vsel %vm522, %v494, 0
      %531 = vrot.lane.b32.xlu0 %v523, 113
      %v532 = vpop.permute.xlu0 %531
      %533 = vrot.lane.b32.xlu0 %v524, 113
      %v534 = vpop.permute.xlu0 %533
      %535 = vrot.lane.b32.xlu0 %v525, 113
      %v536 = vpop.permute.xlu0 %535
      %537 = vrot.lane.b32.xlu0 %v526, 113
      %v538 = vpop.permute.xlu0 %537
      %v539 = vrot.slane %v532, 4
      %v540 = vrot.slane %v534, 4
      %v541 = vrot.slane %v536, 4
      %v542 = vrot.slane %v538, 4
      %v543 = vsel %vm243, %v539, %v540
      %v544 = vsel %vm328, %v532, %v543
      %v545 = vsel %vm243, %v541, %v542
      %v546 = vsel %vm328, %v536, %v545
      %549 = vst [vmem:[#allocation3 + $0x60] sm:$0xff] %v544
      %550 = vst [vmem:[#allocation3 + $0x68] sm:$0xff] %v546
      %v551 = vld [vmem:[#allocation2 + $0x4] sm:$0xff]
      %v552 = vld [vmem:[#allocation2 + $0xc] sm:$0xf]
      %v553 = vld [vmem:[#allocation2 + $0x14] sm:$0xff]
      %v554 = vld [vmem:[#allocation2 + $0x1c] sm:$0xf]
      %v555 = vsel %vm495, 1, 0
      %v556 = vsel %vm496, 1, 0
      %vm557 = vcmp.eq.s32.totalorder %v555, 1
      %vm558 = vcmp.eq.s32.totalorder %v556, 1
      %vm559 = vmpackc.low %vm558, %vm557
      %v560 = vsel %vm559, 65537, 0
      %561 = vrot.lane.b32.xlu0 %v560, 16
      %v562 = vpop.permute.xlu0 %561
      %v563 = vrot.slane %v562, 4
      %v564 = vsel %vm303, %v563, %v562
      %v565 = vunpack.c.l.b16 %v564
      %v566 = vunpack.c.h.b16 %v564
      %v567 = vunpack.c.l.b16 0
      %v568 = vunpack.c.h.b16 0
      %vm569 = vcmp.ne.s32.totalorder %v565, %v567
      %vm570 = vcmp.ne.s32.totalorder %v566, %v568
      %vm571 = vmpackc.low %vm570, %vm569
      %v572 = vunpack.c.l.b16 %v563
      %v573 = vunpack.c.h.b16 %v563
      %v574 = vunpack.c.l.b16 0
      %v575 = vunpack.c.h.b16 0
      %vm576 = vcmp.ne.s32.totalorder %v572, %v574
      %vm577 = vcmp.ne.s32.totalorder %v573, %v575
      %vm578 = vmpackc.low %vm577, %vm576
      %v579 = vsel %vm571, %v551, 0
      %v580 = vsel %vm578, %v552, 0
      %v581 = vsel %vm571, %v553, 0
      %v582 = vsel %vm578, %v554, 0
      %587 = vrot.lane.b32.xlu0 %v579, 112
      %v588 = vpop.permute.xlu0 %587
      %589 = vrot.lane.b32.xlu0 %v580, 112
      %v590 = vpop.permute.xlu0 %589
      %591 = vrot.lane.b32.xlu0 %v581, 112
      %v592 = vpop.permute.xlu0 %591
      %593 = vrot.lane.b32.xlu0 %v582, 112
      %v594 = vpop.permute.xlu0 %593
      %v595 = vrot.slane %v588, 4
      %v596 = vrot.slane %v590, 4
      %v597 = vrot.slane %v592, 4
      %v598 = vrot.slane %v594, 4
      %v599 = vsel %vm243, %v595, %v596
      %v600 = vsel %vm266, %v588, %v599
      %v601 = vsel %vm243, %v597, %v598
      %v602 = vsel %vm266, %v592, %v601
      %605 = vst [vmem:[#allocation3 + $0x70] sm:$0xff] %v600
      %606 = vst [vmem:[#allocation3 + $0x78] sm:$0xff] %v602
      %v607 = vld [vmem:[#allocation2 + $0x4] sm:$0xff]
      %v608 = vld [vmem:[#allocation2 + $0xc] sm:$0xf]
      %v609 = vld [vmem:[#allocation2 + $0x14] sm:$0xff]
      %v610 = vld [vmem:[#allocation2 + $0x1c] sm:$0xf]
      %vm611 = vmand %vm495, %vm315
      %vm612 = vmand %vm496, %vm316
      %v613 = vsel %vm611, 1, 0
      %v614 = vsel %vm612, 1, 0
      %vm615 = vcmp.eq.s32.totalorder %v613, 1
      %vm616 = vcmp.eq.s32.totalorder %v614, 1
      %vm617 = vmpackc.low %vm616, %vm615
      %v618 = vsel %vm617, 65537, 0
      %619 = vrot.lane.b32.xlu0 %v618, 17
      %v620 = vpop.permute.xlu0 %619
      %v621 = vrot.slane %v620, 4
      %v622 = vsel %vm245, %v621, %v620
      %v623 = vunpack.c.l.b16 %v622
      %v624 = vunpack.c.h.b16 %v622
      %v625 = vunpack.c.l.b16 0
      %v626 = vunpack.c.h.b16 0
      %vm627 = vcmp.ne.s32.totalorder %v623, %v625
      %vm628 = vcmp.ne.s32.totalorder %v624, %v626
      %vm629 = vmpackc.low %vm628, %vm627
      %v630 = vunpack.c.l.b16 %v621
      %v631 = vunpack.c.h.b16 %v621
      %v632 = vunpack.c.l.b16 0
      %v633 = vunpack.c.h.b16 0
      %vm634 = vcmp.ne.s32.totalorder %v630, %v632
      %vm635 = vcmp.ne.s32.totalorder %v631, %v633
      %vm636 = vmpackc.low %vm635, %vm634
      %v637 = vsel %vm629, %v607, 0
      %v638 = vsel %vm636, %v608, 0
      %v639 = vsel %vm629, %v609, 0
      %v640 = vsel %vm636, %v610, 0
      %645 = vrot.lane.b32.xlu0 %v637, 111
      %v646 = vpop.permute.xlu0 %645
      %647 = vrot.lane.b32.xlu0 %v638, 111
      %v648 = vpop.permute.xlu0 %647
      %649 = vrot.lane.b32.xlu0 %v639, 111
      %v650 = vpop.permute.xlu0 %649
      %651 = vrot.lane.b32.xlu0 %v640, 111
      %v652 = vpop.permute.xlu0 %651
      %v653 = vrot.slane %v646, 4
      %v654 = vrot.slane %v648, 4
      %v655 = vrot.slane %v650, 4
      %v656 = vrot.slane %v652, 4
      %v657 = vsel %vm243, %v653, %v654
      %v658 = vsel %vm207, %v646, %v657
      %v659 = vsel %vm243, %v655, %v656
      %v660 = vsel %vm207, %v650, %v659
      %663 = vst [vmem:[#allocation3 + $0x80] sm:$0xff] %v658
      %664 = vst [vmem:[#allocation3 + $0x88] sm:$0xff] %v660
      %v665 = vld [vmem:[%s1] sm:$0xff]
      %v666 = vld [vmem:[%s1 + $0x8] sm:$0xff]
      %v667 = vld [vmem:[%s1 + $0x10] sm:$0xff]
      %v668 = vld [vmem:[%s1 + $0x18] sm:$0xff]
      %v669 = vld [vmem:[#allocation3] sm:$0xff]
      %v670 = vld [vmem:[#allocation3 + $0x8] sm:$0xff]
      %v671 = vld [vmem:[#allocation3 + $0x10] sm:$0xff]
      %v672 = vld [vmem:[#allocation3 + $0x18] sm:$0xff]
      %v673 = vld [vmem:[#allocation3 + $0x20] sm:$0xff]
      %v674 = vld [vmem:[#allocation3 + $0x28] sm:$0xff]
      %v675 = vld [vmem:[#allocation3 + $0x30] sm:$0xff]
      %v676 = vld [vmem:[#allocation3 + $0x38] sm:$0xff]
      %v677 = vld [vmem:[#allocation3 + $0x40] sm:$0xff]
      %v678 = vld [vmem:[#allocation3 + $0x48] sm:$0xff]
      %v679 = vld [vmem:[#allocation3 + $0x50] sm:$0xff]
      %v680 = vld [vmem:[#allocation3 + $0x58] sm:$0xff]
      %v681 = vld [vmem:[#allocation3 + $0x60] sm:$0xff]
      %v682 = vld [vmem:[#allocation3 + $0x68] sm:$0xff]
      %v683 = vld [vmem:[#allocation3 + $0x70] sm:$0xff]
      %v684 = vld [vmem:[#allocation3 + $0x78] sm:$0xff]
      %v685 = vld [vmem:[#allocation3 + $0x80] sm:$0xff]
      %v686 = vld [vmem:[#allocation3 + $0x88] sm:$0xff]
      %v687 = vld [vmem:[%s2] sm:$0xff]
      %v688 = vld [vmem:[%s2 + $0x8] sm:$0xff]
      %v689 = vld [vmem:[%s2 + $0x10] sm:$0xff]
      %v690 = vld [vmem:[%s2 + $0x18] sm:$0xff]
      %692 = vset.pattern.permute.xlu0 0
      %693 = vperm.xlu0 %692, %v687
      %v694 = vpop.permute.xlu0 %693
      %697 = vset.pattern.permute.xlu0 0
      %698 = vperm.xlu0 %697, %v688
      %v699 = vpop.permute.xlu0 %698
      %702 = vset.pattern.permute.xlu0 0
      %703 = vperm.xlu0 %702, %v689
      %v704 = vpop.permute.xlu0 %703
      %707 = vset.pattern.permute.xlu0 0
      %708 = vperm.xlu0 %707, %v690
      %v709 = vpop.permute.xlu0 %708
      %v715 = vunpack.c.l.b16 %v665
      %v716 = vunpack.c.h.b16 %v665
      %v717 = vunpack.c.l.b16 %v666
      %v718 = vunpack.c.h.b16 %v666
      %v719 = vunpack.c.l.b16 %v667
      %v720 = vunpack.c.h.b16 %v667
      %v721 = vunpack.c.l.b16 %v668
      %v722 = vunpack.c.h.b16 %v668
      %v723 = vpack.c.b16 %v717, %v715
      %v724 = vpack.c.b16 %v718, %v716
      %v725 = vpack.c.b16 %v721, %v719
      %v726 = vpack.c.b16 %v722, %v720
      %v747 = vunpack.c.l.b16 %v669
      %v748 = vunpack.c.h.b16 %v669
      %v749 = vunpack.c.l.b16 %v670
      %v750 = vunpack.c.h.b16 %v670
      %v751 = vunpack.c.l.b16 %v671
      %v752 = vunpack.c.h.b16 %v671
      %v753 = vunpack.c.l.b16 %v672
      %v754 = vunpack.c.h.b16 %v672
      %v755 = vunpack.c.l.b16 %v673
      %v756 = vunpack.c.h.b16 %v673
      %v757 = vunpack.c.l.b16 %v674
      %v758 = vunpack.c.h.b16 %v674
      %v759 = vunpack.c.l.b16 %v675
      %v760 = vunpack.c.h.b16 %v675
      %v761 = vunpack.c.l.b16 %v676
      %v762 = vunpack.c.h.b16 %v676
      %v763 = vunpack.c.l.b16 %v677
      %v764 = vunpack.c.h.b16 %v677
      %v765 = vunpack.c.l.b16 %v678
      %v766 = vunpack.c.h.b16 %v678
      %v767 = vunpack.c.l.b16 %v679
      %v768 = vunpack.c.h.b16 %v679
      %v769 = vunpack.c.l.b16 %v680
      %v770 = vunpack.c.h.b16 %v680
      %v771 = vunpack.c.l.b16 %v681
      %v772 = vunpack.c.h.b16 %v681
      %v773 = vunpack.c.l.b16 %v682
      %v774 = vunpack.c.h.b16 %v682
      %v775 = vunpack.c.l.b16 %v683
      %v776 = vunpack.c.h.b16 %v683
      %v777 = vunpack.c.l.b16 %v684
      %v778 = vunpack.c.h.b16 %v684
      %v779 = vunpack.c.l.b16 %v685
      %v780 = vunpack.c.h.b16 %v685
      %v781 = vunpack.c.l.b16 %v686
      %v782 = vunpack.c.h.b16 %v686
      %v783 = vpack.c.b16 %v749, %v747
      %v784 = vpack.c.b16 %v750, %v748
      %v785 = vpack.c.b16 %v753, %v751
      %v786 = vpack.c.b16 %v754, %v752
      %v787 = vpack.c.b16 %v757, %v755
      %v788 = vpack.c.b16 %v758, %v756
      %v789 = vpack.c.b16 %v761, %v759
      %v790 = vpack.c.b16 %v762, %v760
      %v791 = vpack.c.b16 %v765, %v763
      %v792 = vpack.c.b16 %v766, %v764
      %v793 = vpack.c.b16 %v769, %v767
      %v794 = vpack.c.b16 %v770, %v768
      %v795 = vpack.c.b16 %v773, %v771
      %v796 = vpack.c.b16 %v774, %v772
      %v797 = vpack.c.b16 %v777, %v775
      %v798 = vpack.c.b16 %v778, %v776
      %v799 = vpack.c.b16 %v781, %v779
      %v800 = vpack.c.b16 %v782, %v780
      %vm819 = vcmask 130048
      %v821 = vsel %vm819, %v724, 0
      %v824 = vsel %vm819, %v726, 0
      %826 = vmatpush.bf16.msra.mxu0 %v797
      %827 = vmatpush.bf16.msra.mxu0 %v795
      %828 = vmatpush.bf16.msra.mxu0 %v793
      %829 = vmatpush.bf16.msra.mxu0 %v791
      %830 = vmatpush.bf16.msra.mxu0 %v789
      %831 = vmatpush.bf16.msra.mxu0 %v787
      %832 = vmatpush.bf16.msra.mxu0 %v785
      %833 = vmatpush.bf16.msra.mxu0 %v783
      %834 = vmatmul.bf16.gmra.mxu0 %v723
      %v835 = vpop.f32.mrf.mxu0
      %v836 = vadd.f32 %v694, %v835
      %v837 = vpop.f32.mrf.mxu0
      %v838 = vadd.f32 %v699, %v837
      %839 = vmatmul.bf16.gmra.mxu0 %v725
      %v840 = vpop.f32.mrf.mxu0
      %v841 = vadd.f32 %v704, %v840
      %v842 = vpop.f32.mrf.mxu0
      %v843 = vadd.f32 %v709, %v842
      %844 = vdwg.mxu0
      %845 = vmatpush.bf16.msra.mxu0 0
      %846 = vmatpush.bf16.msra.mxu0 0
      %847 = vmatpush.bf16.msra.mxu0 0
      %848 = vmatpush.bf16.msra.mxu0 0
      %849 = vmatpush.bf16.msra.mxu0 0
      %850 = vmatpush.bf16.msra.mxu0 0
      %851 = vmatpush.bf16.msra.mxu0 0
      %852 = vmatpush.bf16.msra.mxu0 %v799
      %853 = vmatmul.bf16.gmra.mxu0 %v821
      %v854 = vpop.f32.mrf.mxu0
      %v855 = vadd.f32 %v836, %v854
      %v856 = vpop.f32.mrf.mxu0
      %v857 = vadd.f32 %v838, %v856
      %858 = vmatmul.bf16.gmra.mxu0 %v824
      %v859 = vpop.f32.mrf.mxu0
      %v860 = vadd.f32 %v841, %v859
      %v861 = vpop.f32.mrf.mxu0
      %v862 = vadd.f32 %v843, %v861
      %863 = vdwg.mxu0
      %864 = vmatpush.bf16.msra.mxu0 %v798
      %865 = vmatpush.bf16.msra.mxu0 %v796
      %866 = vmatpush.bf16.msra.mxu0 %v794
      %867 = vmatpush.bf16.msra.mxu0 %v792
      %868 = vmatpush.bf16.msra.mxu0 %v790
      %869 = vmatpush.bf16.msra.mxu0 %v788
      %870 = vmatpush.bf16.msra.mxu0 %v786
      %871 = vmatpush.bf16.msra.mxu0 %v784
      %872 = vmatmul.bf16.gmra.mxu0 %v723
      %v873 = vpop.f32.mrf.mxu0
      %v874 = vadd.f32 %v694, %v873
      %v875 = vpop.f32.mrf.mxu0
      %v876 = vadd.f32 %v699, %v875
      %877 = vmatmul.bf16.gmra.mxu0 %v725
      %v878 = vpop.f32.mrf.mxu0
      %v879 = vadd.f32 %v704, %v878
      %v880 = vpop.f32.mrf.mxu0
      %v881 = vadd.f32 %v709, %v880
      %882 = vdwg.mxu0
      %883 = vmatpush.bf16.msra.mxu0 0
      %884 = vmatpush.bf16.msra.mxu0 0
      %885 = vmatpush.bf16.msra.mxu0 0
      %886 = vmatpush.bf16.msra.mxu0 0
      %887 = vmatpush.bf16.msra.mxu0 0
      %888 = vmatpush.bf16.msra.mxu0 0
      %889 = vmatpush.bf16.msra.mxu0 0
      %890 = vmatpush.bf16.msra.mxu0 %v800
      %891 = vmatmul.bf16.gmra.mxu0 %v821
      %v892 = vpop.f32.mrf.mxu0
      %v893 = vadd.f32 %v874, %v892
      %v894 = vpop.f32.mrf.mxu0
      %v895 = vadd.f32 %v876, %v894
      %896 = vmatmul.bf16.gmra.mxu0 %v824
      %v897 = vpop.f32.mrf.mxu0
      %v898 = vadd.f32 %v879, %v897
      %v899 = vpop.f32.mrf.mxu0
      %v900 = vadd.f32 %v881, %v899
      %901 = vdwg.mxu0
      %v902 = vmax.f32 %v855, 0.0
      %v903 = vmax.f32 %v893, 0.0
      %v904 = vmax.f32 %v857, 0.0
      %v905 = vmax.f32 %v895, 0.0
      %v906 = vmax.f32 %v860, 0.0
      %v907 = vmax.f32 %v898, 0.0
      %v908 = vmax.f32 %v862, 0.0
      %v909 = vmax.f32 %v900, 0.0
      %v910 = vpack.c.bf16 %v903, %v902
      %v911 = vpack.c.bf16 %v905, %v904
      %v912 = vpack.c.bf16 %v907, %v906
      %v913 = vpack.c.bf16 %v909, %v908
      %914 = vst [vmem:[%s170] sm:$0xff] %v910
      %915 = vst [vmem:[%s170 + $0x8] sm:$0xff] %v911
      %916 = vst [vmem:[%s170 + $0x10] sm:$0xff] %v912
      %917 = vst [vmem:[%s170 + $0x18] sm:$0xff] %v913
      %p918 = scmp.lt.s32.totalorder %s14, 1
      %s919 = scalar_select %p918, %s14, 1
      %s920 = smul.addr %s919, 8
      %s921 = smul.addr %s920, 4
      %s922 = scalar_lea.vmem %s3, %s921
      // Predicated region
      $region33: #{sipr_forward.7} parent=31 // pred_check
        %p923 = pneg %p100
      $region34: #{sipr_forward.7} parent=31 // pred_check_branch
        %925 = sbr.rel (%p923) target = $region36
      $region35: #{sipr_forward.7} parent=31 // pred_region
        _
      $region36: #{sipr_forward.7} parent=31 // pred_fallthru
        _
    $region32: #{sipr_forward.7} parent=5 // pred_fallthru
      _
    %p926 = scmp.le.s32.totalorder 2, %s9
    // Predicated region
    $region37: #{sipr_forward.7} parent=5 // pred_check
      %p927 = pneg %p926
    $region38: #{sipr_forward.7} parent=5 // pred_check_branch
      %929 = sbr.rel (%p927) target = $region40
    $region39: #{sipr_forward.7} parent=5 // pred_region
      %s930 = ssub.s32 %s9, 2
      // Predicated region
      $region41: #{sipr_forward.7} parent=39 // pred_check
        %p931 = pneg %p106
      $region42: #{sipr_forward.7} parent=39 // pred_check_branch
        %933 = sbr.rel (%p931) target = $region44
      $region43: #{sipr_forward.7} parent=39 // pred_region
        %p934 = scmp.lt.s32.totalorder %s15, 1
        %s935 = scalar_select %p934, %s15, 1
        %s936 = smul.addr %s935, 8
        %s937 = smul.addr %s936, 4
        %s938 = scalar_lea.vmem %s3, %s937
      $region44: #{sipr_forward.7} parent=39 // pred_fallthru
        _
    $region40: #{sipr_forward.7} parent=5 // pred_fallthru
      _
  $region6: #{sipr_forward.7} parent=0 // loop_footer
    %s13 = sadd.s32 1, %s9
  $region7: #{sipr_forward.7} parent=0 // loop_footer_branch
    %8 = sbr.rel target = $region3
  $region8: #{sipr_forward.7} parent=0 // loop_exit
    _

// kernel: sipr_forward.8
$region0: #{sipr_forward.8}
  #allocation0 [shape = 'u32[]', space=smem, size = 0x4, offset = 0x4, fixed_abs, tag = 'smem constant byte address 0x4 - core index']
  #allocation1 [shape = 'u32[72,128]{1,0:T(1,128)}', space=vmem, size = 0x9000, scoped, tag = 'internal scratch']
  #allocation2 [shape = 'bf16[32,201]{1,0:T(8,128)(2,1)}', space=vmem, size = 0x4000, scoped, tag = 'scratch operand']
  #allocation3 [shape = 'bf16[288,64]{1,0:T(8,128)(2,1)}', space=vmem, size = 0x12000, scoped, tag = 'scratch operand']
  %s0 = inlined_call_operand.vmem [shape: bf16[2,32,64], index: 0, kind: input, shape index: {}]
  %s1 = inlined_call_operand.vmem [shape: bf16[64,288], index: 1, kind: input, shape index: {}]
  %s2 = inlined_call_operand.vmem [shape: f32[64,1], index: 2, kind: input, shape index: {}]
  %s3 = inlined_call_operand.vmem [shape: bf16[2,64,64], index: 3, kind: output, shape index: {}]
  %s4 = sld [smem:[#allocation0]]
  $region45: #{sipr_forward.8} parent=0
    _
  %s6 = ssub.s32 1, %s4
  %s7 = scalar_select 0, %s6, %s4
  loop: start=0, step=1, limit=4
  $region2: #{sipr_forward.8} parent=0 // loop_pre_header
    _
  $region3: #{sipr_forward.8} parent=0 // loop_header
    %s9 = sphi 0, %s13
    %p10 = scmp.ge.s32.totalorder %s9, 4
    %s19 = sphi 0, %s21
    %s22 = sphi 0, %s19
    %s23 = sphi 0, %s22
    %s39 = sphi 0, %s23
    %s43 = sphi 0, %s43
    %s45 = sphi 0, %s43
    %s46 = sphi 0, %s45
    %s60 = sphi 0, %s46
    %s64 = sphi 0, %s64
    %s66 = sphi 0, %s64
    %s67 = sphi 0, %s66
    %s81 = sphi 0, %s67
    %s87 = sphi 0, %s89
    %s90 = sphi 0, %s87
    %s91 = sphi 0, %s90
    %s107 = sphi 0, %s91
  $region4: #{sipr_forward.8} parent=0 // loop_header_branch
    %12 = sbr.rel (%p10) target = $region8
  $region5: #{sipr_forward.8} parent=0 // loop_body
    %s14 = ssub.s32 %s9, 1
    %s15 = ssub.s32 %s9, 2
    %s16 = sadd.s32 %s9, 1
    %s17 = ssub.s32 %s9, %s16
    %p18 = scmp.eq.s32.totalorder %s17, 0
    %s20 = sadd.s32 %s19, 1
    %s21 = scalar_select %p18, %s19, %s20
    %p24 = pneg %p18
    %p25 = scmp.eq.s32.totalorder %s9, 1
    %p26 = por %p24, %p25
    %p27 = scmp.ne.s32.totalorder %s19, %s22
    %p28 = scmp.eq.s32.totalorder %s9, 0
    %p29 = por %p27, %p28
    %p30 = scmp.ne.s32.totalorder %s19, %s22
    %p31 = scmp.eq.s32.totalorder %s14, 1
    %p32 = por %p30, %p31
    %p33 = scmp.ne.s32.totalorder %s22, %s23
    %p34 = scmp.eq.s32.totalorder %s14, 0
    %p35 = por %p33, %p34
    %p36 = scmp.ne.s32.totalorder %s22, %s23
    %p37 = scmp.eq.s32.totalorder %s15, 1
    %p38 = por %p36, %p37
    %p40 = scmp.ne.s32.totalorder %s23, %s39
    %p41 = scmp.eq.s32.totalorder %s15, 0
    %p42 = por %p40, %p41
    %s44 = sadd.s32 %s43, 1
    %p47 = scmp.eq.s32.totalorder %s9, 1
    %p48 = scmp.ne.s32.totalorder %s43, %s45
    %p49 = scmp.eq.s32.totalorder %s9, 0
    %p50 = por %p48, %p49
    %p51 = scmp.ne.s32.totalorder %s43, %s45
    %p52 = scmp.eq.s32.totalorder %s14, 1
    %p53 = por %p51, %p52
    %p54 = scmp.ne.s32.totalorder %s45, %s46
    %p55 = scmp.eq.s32.totalorder %s14, 0
    %p56 = por %p54, %p55
    %p57 = scmp.ne.s32.totalorder %s45, %s46
    %p58 = scmp.eq.s32.totalorder %s15, 1
    %p59 = por %p57, %p58
    %p61 = scmp.ne.s32.totalorder %s46, %s60
    %p62 = scmp.eq.s32.totalorder %s15, 0
    %p63 = por %p61, %p62
    %s65 = sadd.s32 %s64, 1
    %p68 = scmp.eq.s32.totalorder %s9, 1
    %p69 = scmp.ne.s32.totalorder %s64, %s66
    %p70 = scmp.eq.s32.totalorder %s9, 0
    %p71 = por %p69, %p70
    %p72 = scmp.ne.s32.totalorder %s64, %s66
    %p73 = scmp.eq.s32.totalorder %s14, 1
    %p74 = por %p72, %p73
    %p75 = scmp.ne.s32.totalorder %s66, %s67
    %p76 = scmp.eq.s32.totalorder %s14, 0
    %p77 = por %p75, %p76
    %p78 = scmp.ne.s32.totalorder %s66, %s67
    %p79 = scmp.eq.s32.totalorder %s15, 1
    %p80 = por %p78, %p79
    %p82 = scmp.ne.s32.totalorder %s67, %s81
    %p83 = scmp.eq.s32.totalorder %s15, 0
    %p84 = por %p82, %p83
    %s85 = ssub.s32 %s9, %s16
    %p86 = scmp.eq.s32.totalorder %s85, 0
    %s88 = sadd.s32 %s87, 1
    %s89 = scalar_select %p86, %s87, %s88
    %p92 = pneg %p86
    %p93 = scmp.eq.s32.totalorder %s9, 1
    %p94 = por %p92, %p93
    %p95 = scmp.ne.s32.totalorder %s87, %s90
    %p96 = scmp.eq.s32.totalorder %s9, 0
    %p97 = por %p95, %p96
    %p98 = scmp.ne.s32.totalorder %s87, %s90
    %p99 = scmp.eq.s32.totalorder %s14, 1
    %p100 = por %p98, %p99
    %p101 = scmp.ne.s32.totalorder %s90, %s91
    %p102 = scmp.eq.s32.totalorder %s14, 0
    %p103 = por %p101, %p102
    %p104 = scmp.ne.s32.totalorder %s90, %s91
    %p105 = scmp.eq.s32.totalorder %s15, 1
    %p106 = por %p104, %p105
    %p108 = scmp.ne.s32.totalorder %s91, %s107
    %p109 = scmp.eq.s32.totalorder %s15, 0
    %p110 = por %p108, %p109
    %p111 = scmp.le.s32.totalorder 1, %s9
    %p112 = scmp.lt.s32.totalorder %s9, 3
    %p113 = pnand %p111, %p112
    %p114 = pneg %p113
    // Predicated region
    $region9: #{sipr_forward.8} parent=5 // pred_check
      _
    $region10: #{sipr_forward.8} parent=5 // pred_check_branch
      %116 = sbr.rel (%p113) target = $region12
    $region11: #{sipr_forward.8} parent=5 // pred_region
      %s117 = ssub.s32 %s9, 1
      // Predicated region
      $region13: #{sipr_forward.8} parent=11 // pred_check
        %p118 = pneg %p56
      $region14: #{sipr_forward.8} parent=11 // pred_check_branch
        %120 = sbr.rel (%p118) target = $region16
      $region15: #{sipr_forward.8} parent=11 // pred_region
        _
      $region16: #{sipr_forward.8} parent=11 // pred_fallthru
        _
      // Predicated region
      $region17: #{sipr_forward.8} parent=11 // pred_check
        %p121 = pneg %p77
      $region18: #{sipr_forward.8} parent=11 // pred_check_branch
        %123 = sbr.rel (%p121) target = $region20
      $region19: #{sipr_forward.8} parent=11 // pred_region
        _
      $region20: #{sipr_forward.8} parent=11 // pred_fallthru
        _
    $region12: #{sipr_forward.8} parent=5 // pred_fallthru
      _
    %p124 = scmp.lt.s32.totalorder %s9, 2
    // Predicated region
    $region21: #{sipr_forward.8} parent=5 // pred_check
      %p125 = pneg %p124
    $region22: #{sipr_forward.8} parent=5 // pred_check_branch
      %127 = sbr.rel (%p125) target = $region24
    $region23: #{sipr_forward.8} parent=5 // pred_region
      // Predicated region
      $region25: #{sipr_forward.8} parent=23 // pred_check
        %p128 = pneg %p29
      $region26: #{sipr_forward.8} parent=23 // pred_check_branch
        %130 = sbr.rel (%p128) target = $region28
      $region27: #{sipr_forward.8} parent=23 // pred_region
        %p131 = scmp.lt.s32.totalorder %s9, 1
        %s132 = scalar_select %p131, %s9, 1
        %s133 = smul.addr %s132, 4
        %s134 = smul.addr %s133, 4
        %s135 = scalar_lea.vmem %s0, %s134
      $region28: #{sipr_forward.8} parent=23 // pred_fallthru
        _
    $region24: #{sipr_forward.8} parent=5 // pred_fallthru
      _
    %p136 = scmp.le.s32.totalorder 1, %s9
    %p137 = scmp.lt.s32.totalorder %s9, 3
    %p138 = pnand %p136, %p137
    %p139 = pneg %p138
    // Predicated region
    $region29: #{sipr_forward.8} parent=5 // pred_check
      _
    $region30: #{sipr_forward.8} parent=5 // pred_check_branch
      %141 = sbr.rel (%p138) target = $region32
    $region31: #{sipr_forward.8} parent=5 // pred_region
      %s142 = ssub.s32 %s9, 1
      %p143 = scmp.lt.s32.totalorder %s14, 1
      %s144 = scalar_select %p143, %s14, 1
      %s145 = smul.addr %s144, 4
      %s146 = smul.addr %s145, 4
      %s147 = scalar_lea.vmem %s0, %s146
      %p148 = pneg %p35
      %p149 = pneg %p32
      %p150 = pneg %p56
      %p151 = pneg %p53
      %p152 = pneg %p77
      %p153 = pneg %p74
      %p154 = pneg %p103
      %p155 = pneg %p100
      %p156 = scmp.lt.s32.totalorder %s14, 1
      %s157 = scalar_select %p156, %s14, 1
      %s158 = smul.addr %s157, 8
      %s159 = smul.addr %s158, 4
      %s160 = scalar_lea.vmem %s3, %s159
      %p161 = scmp.lt.s32.totalorder %s14, 1
      %s162 = scalar_select %p161, %s14, 1
      %s163 = smul.addr %s162, 4
      %s164 = smul.addr %s163, 4
      %s165 = scalar_lea.vmem %s0, %s164
      %p166 = scmp.lt.s32.totalorder %s14, 1
      %s167 = scalar_select %p166, %s14, 1
      %s168 = smul.addr %s167, 8
      %s169 = smul.addr %s168, 4
      %s170 = scalar_lea.vmem %s3, %s169
      %174 = vst [vmem:[#allocation2] sm:$0xf] 0
      %175 = vst [vmem:[#allocation2 + $0x8] sm:$0xf] 0
      %176 = vst [vmem:[#allocation2 + $0x10] sm:$0xf] 0
      %177 = vst [vmem:[#allocation2 + $0x18] sm:$0xf] 0
      %vm178 = vcmask 593408
      %179 = vst.msk [vmem:[#allocation2 + $0x4] sm:$0xf] %vm178, 0
      %180 = vst.msk [vmem:[#allocation2 + $0xc] sm:$0xf] %vm178, 0
      %181 = vst.msk [vmem:[#allocation2 + $0x14] sm:$0xf] %vm178, 0
      %182 = vst.msk [vmem:[#allocation2 + $0x1c] sm:$0xf] %vm178, 0
      %v183 = vld [vmem:[%s165] sm:$0xf]
      %v184 = vld [vmem:[%s165 + $0x4] sm:$0xf]
      %v185 = vld [vmem:[%s165 + $0x8] sm:$0xf]
      %v186 = vld [vmem:[%s165 + $0xc] sm:$0xf]
      %vm187 = vcmask 519168
      %188 = vst.msk [vmem:[#allocation2 + $0x4] sm:$0xf] %vm187, %v183
      %189 = vst.msk [vmem:[#allocation2 + $0xc] sm:$0xf] %vm187, %v184
      %190 = vst.msk [vmem:[#allocation2 + $0x14] sm:$0xf] %vm187, %v185
      %191 = vst.msk [vmem:[#allocation2 + $0x1c] sm:$0xf] %vm187, %v186
      %v192 = vlaneseq
      %v193 = vand.u32 %v192, 127
      %v194 = vand.u32 %v193, 7
      %v195 = vld [vmem:[#allocation2] sm:$0xff]
      %v196 = vld [vmem:[#allocation2 + $0x8] sm:$0xff]
      %v197 = vld [vmem:[#allocation2 + $0x10] sm:$0xff]
      %v198 = vld [vmem:[#allocation2 + $0x18] sm:$0xff]
      %vm199 = vcmp.ge.s32.totalorder %v193, 8
      %vm200 = vcmp.ge.s32.totalorder %v194, 1
      %vm201 = vmand %vm199, %vm200
      %v202 = vsel %vm201, 1, 0
      %vm203 = vcmp.eq.s32.totalorder %v202, 1
      %vm204 = vmpackc.low %vm203, %vm203
      %v205 = vsel %vm204, 65537, 0
      %206 = vrot.lane.b32.xlu0 %v205, 119
      %v207 = vpop.permute.xlu0 %206
      %v208 = vrot.slane %v207, 4
      %vm209 = vcmask 973824
      %v210 = vsel %vm209, %v208, %v207
      %v211 = vunpack.c.l.b16 %v210
      %v212 = vunpack.c.h.b16 %v210
      %v213 = vunpack.c.l.b16 0
      %v214 = vunpack.c.h.b16 0
      %vm215 = vcmp.ne.s32.totalorder %v211, %v213
      %vm216 = vcmp.ne.s32.totalorder %v212, %v214
      %vm217 = vmpackc.low %vm216, %vm215
      %v218 = vsel %vm217, %v195, 0
      %v219 = vsel %vm217, %v196, 0
      %v220 = vsel %vm217, %v197, 0
      %v221 = vsel %vm217, %v198, 0
      %226 = vrot.lane.b32.xlu0 %v218, 9
      %v227 = vpop.permute.xlu0 %226
      %228 = vrot.lane.b32.xlu0 %v219, 9
      %v229 = vpop.permute.xlu0 %228
      %230 = vrot.lane.b32.xlu0 %v220, 9
      %v231 = vpop.permute.xlu0 %230
      %232 = vrot.lane.b32.xlu0 %v221, 9
      %v233 = vpop.permute.xlu0 %232
      %v234 = vrot.slane %v227, 4
      %v235 = vrot.slane %v229, 4
      %v236 = vrot.slane %v231, 4
      %v237 = vrot.slane %v233, 4
      %vm238 = vcmask 72704
      %v239 = vsel %vm238, %v227, %v234
      %v240 = vsel %vm238, %v229, %v235
      %v241 = vsel %vm238, %v231, %v236
      %v242 = vsel %vm238, %v233, %v237
      %247 = vst.msk [vmem:[#allocation3] sm:$0xf] %vm187, %v239
      %248 = vst.msk [vmem:[#allocation3 + $0x4] sm:$0xf] %vm187, %v240
      %249 = vst.msk [vmem:[#allocation3 + $0x8] sm:$0xf] %vm187, %v241
      %250 = vst.msk [vmem:[#allocation3 + $0xc] sm:$0xf] %vm187, %v242
      %v251 = vld [vmem:[#allocation2] sm:$0xff]
      %v252 = vld [vmem:[#allocation2 + $0x8] sm:$0xff]
      %v253 = vld [vmem:[#allocation2 + $0x10] sm:$0xff]
      %v254 = vld [vmem:[#allocation2 + $0x18] sm:$0xff]
      %v255 = vsel %vm199, 1, 0
      %vm256 = vcmp.eq.s32.totalorder %v255, 1
      %vm257 = vmpackc.low %vm256, %vm256
      %v258 = vsel %vm257, 65537, 0
      %259 = vrot.lane.b32.xlu0 %v258, 120
      %v260 = vpop.permute.xlu0 %259
      %v261 = vrot.slane %v260, 4
      %vm262 = vcmask 982016
      %v263 = vsel %vm262, %v261, %v260
      %v264 = vunpack.c.l.b16 %v263
      %v265 = vunpack.c.h.b16 %v263
      %v266 = vunpack.c.l.b16 0
      %v267 = vunpack.c.h.b16 0
      %vm268 = vcmp.ne.s32.totalorder %v264, %v266
      %vm269 = vcmp.ne.s32.totalorder %v265, %v267
      %vm270 = vmpackc.low %vm269, %vm268
      %v271 = vsel %vm270, %v251, 0
      %v272 = vsel %vm270, %v252, 0
      %v273 = vsel %vm270, %v253, 0
      %v274 = vsel %vm270, %v254, 0
      %279 = vrot.lane.b32.xlu0 %v271, 8
      %v280 = vpop.permute.xlu0 %279
      %281 = vrot.lane.b32.xlu0 %v272, 8
      %v282 = vpop.permute.xlu0 %281
      %283 = vrot.lane.b32.xlu0 %v273, 8
      %v284 = vpop.permute.xlu0 %283
      %285 = vrot.lane.b32.xlu0 %v274, 8
      %v286 = vpop.permute.xlu0 %285
      %v287 = vrot.slane %v280, 4
      %v288 = vrot.slane %v282, 4
      %v289 = vrot.slane %v284, 4
      %v290 = vrot.slane %v286, 4
      %vm291 = vcmask 64512
      %v292 = vsel %vm291, %v280, %v287
      %v293 = vsel %vm291, %v282, %v288
      %v294 = vsel %vm291, %v284, %v289
      %v295 = vsel %vm291, %v286, %v290
      %300 = vst.msk [vmem:[#allocation3 + $0x10] sm:$0xf] %vm187, %v292
      %301 = vst.msk [vmem:[#allocation3 + $0x14] sm:$0xf] %vm187, %v293
      %302 = vst.msk [vmem:[#allocation3 + $0x18] sm:$0xf] %vm187, %v294
      %303 = vst.msk [vmem:[#allocation3 + $0x1c] sm:$0xf] %vm187, %v295
      %v304 = vld [vmem:[#allocation2] sm:$0xff]
      %v305 = vld [vmem:[#allocation2 + $0x8] sm:$0xff]
      %v306 = vld [vmem:[#allocation2 + $0x10] sm:$0xff]
      %v307 = vld [vmem:[#allocation2 + $0x18] sm:$0xff]
      %vm308 = vcmp.le.s32.totalorder %v194, 6
      %vm309 = vmand %vm199, %vm308
      %v310 = vsel %vm309, 1, 0
      %vm311 = vcmp.eq.s32.totalorder %v310, 1
      %vm312 = vmpackc.low %vm311, %vm311
      %v313 = vsel %vm312, 65537, 0
      %314 = vrot.lane.b32.xlu0 %v313, 121
      %v315 = vpop.permute.xlu0 %314
      %v316 = vrot.slane %v315, 4
      %vm317 = vcmask 990208
      %v318 = vsel %vm317, %v316, %v315
      %v319 = vunpack.c.l.b16 %v318
      %v320 = vunpack.c.h.b16 %v318
      %v321 = vunpack.c.l.b16 0
      %v322 = vunpack.c.h.b16 0
      %vm323 = vcmp.ne.s32.totalorder %v319, %v321
      %vm324 = vcmp.ne.s32.totalorder %v320, %v322
      %vm325 = vmpackc.low %vm324, %vm323
      %v326 = vsel %vm325, %v304, 0
      %v327 = vsel %vm325, %v305, 0
      %v328 = vsel %vm325, %v306, 0
      %v329 = vsel %vm325, %v307, 0
      %334 = vrot.lane.b32.xlu0 %v326, 7
      %v335 = vpop.permute.xlu0 %334
      %336 = vrot.lane.b32.xlu0 %v327, 7
      %v337 = vpop.permute.xlu0 %336
      %338 = vrot.lane.b32.xlu0 %v328, 7
      %v339 = vpop.permute.xlu0 %338
      %340 = vrot.lane.b32.xlu0 %v329, 7
      %v341 = vpop.permute.xlu0 %340
      %v342 = vrot.slane %v335, 4
      %v343 = vrot.slane %v337, 4
      %v344 = vrot.slane %v339, 4
      %v345 = vrot.slane %v341, 4
      %vm346 = vcmask 56320
      %v347 = vsel %vm346, %v335, %v342
      %v348 = vsel %vm346, %v337, %v343
      %v349 = vsel %vm346, %v339, %v344
      %v350 = vsel %vm346, %v341, %v345
      %355 = vst.msk [vmem:[#allocation3 + $0x20] sm:$0xf] %vm187, %v347
      %356 = vst.msk [vmem:[#allocation3 + $0x24] sm:$0xf] %vm187, %v348
      %357 = vst.msk [vmem:[#allocation3 + $0x28] sm:$0xf] %vm187, %v349
      %358 = vst.msk [vmem:[#allocation3 + $0x2c] sm:$0xf] %vm187, %v350
      %v359 = vld [vmem:[#allocation2] sm:$0xff]
      %v360 = vld [vmem:[#allocation2 + $0x8] sm:$0xff]
      %v361 = vld [vmem:[#allocation2 + $0x10] sm:$0xff]
      %v362 = vld [vmem:[#allocation2 + $0x18] sm:$0xff]
      %v363 = vsel %vm200, 1, 0
      %vm364 = vcmp.eq.s32.totalorder %v363, 1
      %vm365 = vmpackc.low %vm364, %vm364
      %v366 = vsel %vm365, 65537, 0
      %367 = vrot.lane.b32.xlu0 %v366, 127
      %v368 = vpop.permute.xlu0 %367
      %v369 = vrot.slane %v368, 4
      %vm370 = vcmask 1039360
      %v371 = vsel %vm370, %v369, %v368
      %v372 = vunpack.c.l.b16 %v371
      %v373 = vunpack.c.h.b16 %v371
      %v374 = vunpack.c.l.b16 0
      %v375 = vunpack.c.h.b16 0
      %vm376 = vcmp.ne.s32.totalorder %v372, %v374
      %vm377 = vcmp.ne.s32.totalorder %v373, %v375
      %vm378 = vmpackc.low %vm377, %vm376
      %v379 = vsel %vm378, %v359, 0
      %v380 = vsel %vm378, %v360, 0
      %v381 = vsel %vm378, %v361, 0
      %v382 = vsel %vm378, %v362, 0
      %387 = vrot.lane.b32.xlu0 %v379, 1
      %v388 = vpop.permute.xlu0 %387
      %389 = vrot.lane.b32.xlu0 %v380, 1
      %v390 = vpop.permute.xlu0 %389
      %391 = vrot.lane.b32.xlu0 %v381, 1
      %v392 = vpop.permute.xlu0 %391
      %393 = vrot.lane.b32.xlu0 %v382, 1
      %v394 = vpop.permute.xlu0 %393
      %v395 = vrot.slane %v388, 4
      %v396 = vrot.slane %v390, 4
      %v397 = vrot.slane %v392, 4
      %v398 = vrot.slane %v394, 4
      %vm399 = vcmask 7168
      %v400 = vsel %vm399, %v388, %v395
      %v401 = vsel %vm399, %v390, %v396
      %v402 = vsel %vm399, %v392, %v397
      %v403 = vsel %vm399, %v394, %v398
      %408 = vst.msk [vmem:[#allocation3 + $0x30] sm:$0xf] %vm187, %v400
      %409 = vst.msk [vmem:[#allocation3 + $0x34] sm:$0xf] %vm187, %v401
      %410 = vst.msk [vmem:[#allocation3 + $0x38] sm:$0xf] %vm187, %v402
      %411 = vst.msk [vmem:[#allocation3 + $0x3c] sm:$0xf] %vm187, %v403
      %v412 = vld [vmem:[#allocation2 + $0x4] sm:$0xf]
      %v413 = vld [vmem:[#allocation2 + $0xc] sm:$0xf]
      %v414 = vld [vmem:[#allocation2 + $0x14] sm:$0xf]
      %v415 = vld [vmem:[#allocation2 + $0x1c] sm:$0xf]
      %416 = vst.msk [vmem:[#allocation3 + $0x40] sm:$0xf] %vm187, %v412
      %417 = vst.msk [vmem:[#allocation3 + $0x44] sm:$0xf] %vm187, %v413
      %418 = vst.msk [vmem:[#allocation3 + $0x48] sm:$0xf] %vm187, %v414
      %419 = vst.msk [vmem:[#allocation3 + $0x4c] sm:$0xf] %vm187, %v415
      %v420 = vld [vmem:[#allocation2 + $0x4] sm:$0xf]
      %v421 = vld [vmem:[#allocation2 + $0xc] sm:$0xf]
      %v422 = vld [vmem:[#allocation2 + $0x14] sm:$0xf]
      %v423 = vld [vmem:[#allocation2 + $0x1c] sm:$0xf]
      %v424 = vsel %vm308, 1, 0
      %vm425 = vcmp.eq.s32.totalorder %v424, 1
      %vm426 = vmpackc.low %vm425, %vm425
      %v427 = vsel %vm426, 65537, 0
      %428 = vrot.lane.b32.xlu0 %v427, 1
      %v429 = vpop.permute.xlu0 %428
      %v430 = vunpack.c.l.b16 %v429
      %v431 = vunpack.c.h.b16 %v429
      %v432 = vunpack.c.l.b16 0
      %v433 = vunpack.c.h.b16 0
      %vm434 = vcmp.ne.s32.totalorder %v430, %v432
      %vm435 = vcmp.ne.s32.totalorder %v431, %v433
      %vm436 = vmpackc.low %vm435, %vm434
      %v437 = vsel %vm436, %v420, 0
      %v438 = vsel %vm436, %v421, 0
      %v439 = vsel %vm436, %v422, 0
      %v440 = vsel %vm436, %v423, 0
      %445 = vrot.lane.b32.xlu0 %v437, 127
      %v446 = vpop.permute.xlu0 %445
      %447 = vrot.lane.b32.xlu0 %v438, 127
      %v448 = vpop.permute.xlu0 %447
      %449 = vrot.lane.b32.xlu0 %v439, 127
      %v450 = vpop.permute.xlu0 %449
      %451 = vrot.lane.b32.xlu0 %v440, 127
      %v452 = vpop.permute.xlu0 %451
      %457 = vst.msk [vmem:[#allocation3 + $0x50] sm:$0xf] %vm187, %v446
      %458 = vst.msk [vmem:[#allocation3 + $0x54] sm:$0xf] %vm187, %v448
      %459 = vst.msk [vmem:[#allocation3 + $0x58] sm:$0xf] %vm187, %v450
      %460 = vst.msk [vmem:[#allocation3 + $0x5c] sm:$0xf] %vm187, %v452
      %v461 = vld [vmem:[#allocation2 + $0x4] sm:$0xf]
      %v462 = vld [vmem:[#allocation2 + $0xc] sm:$0xf]
      %v463 = vld [vmem:[#allocation2 + $0x14] sm:$0xf]
      %v464 = vld [vmem:[#allocation2 + $0x1c] sm:$0xf]
      %vm465 = vcmp.lt.s32.totalorder %v193, 56
      %vm466 = vmand %vm465, %vm200
      %v467 = vsel %vm466, 1, 0
      %vm468 = vcmp.eq.s32.totalorder %v467, 1
      %vm469 = vmpackc.low %vm468, %vm468
      %v470 = vsel %vm469, 65537, 0
      %471 = vrot.lane.b32.xlu0 %v470, 7
      %v472 = vpop.permute.xlu0 %471
      %v473 = vunpack.c.l.b16 %v472
      %v474 = vunpack.c.h.b16 %v472
      %v475 = vunpack.c.l.b16 0
      %v476 = vunpack.c.h.b16 0
      %vm477 = vcmp.ne.s32.totalorder %v473, %v475
      %vm478 = vcmp.ne.s32.totalorder %v474, %v476
      %vm479 = vmpackc.low %vm478, %vm477
      %v480 = vsel %vm479, %v461, 0
      %v481 = vsel %vm479, %v462, 0
      %v482 = vsel %vm479, %v463, 0
      %v483 = vsel %vm479, %v464, 0
      %488 = vrot.lane.b32.xlu0 %v480, 121
      %v489 = vpop.permute.xlu0 %488
      %490 = vrot.lane.b32.xlu0 %v481, 121
      %v491 = vpop.permute.xlu0 %490
      %492 = vrot.lane.b32.xlu0 %v482, 121
      %v493 = vpop.permute.xlu0 %492
      %494 = vrot.lane.b32.xlu0 %v483, 121
      %v495 = vpop.permute.xlu0 %494
      %500 = vst.msk [vmem:[#allocation3 + $0x60] sm:$0xf] %vm187, %v489
      %501 = vst.msk [vmem:[#allocation3 + $0x64] sm:$0xf] %vm187, %v491
      %502 = vst.msk [vmem:[#allocation3 + $0x68] sm:$0xf] %vm187, %v493
      %503 = vst.msk [vmem:[#allocation3 + $0x6c] sm:$0xf] %vm187, %v495
      %v504 = vld [vmem:[#allocation2 + $0x4] sm:$0xf]
      %v505 = vld [vmem:[#allocation2 + $0xc] sm:$0xf]
      %v506 = vld [vmem:[#allocation2 + $0x14] sm:$0xf]
      %v507 = vld [vmem:[#allocation2 + $0x1c] sm:$0xf]
      %v508 = vsel %vm465, 1, 0
      %vm509 = vcmp.eq.s32.totalorder %v508, 1
      %vm510 = vmpackc.low %vm509, %vm509
      %v511 = vsel %vm510, 65537, 0
      %512 = vrot.lane.b32.xlu0 %v511, 8
      %v513 = vpop.permute.xlu0 %512
      %v514 = vunpack.c.l.b16 %v513
      %v515 = vunpack.c.h.b16 %v513
      %v516 = vunpack.c.l.b16 0
      %v517 = vunpack.c.h.b16 0
      %vm518 = vcmp.ne.s32.totalorder %v514, %v516
      %vm519 = vcmp.ne.s32.totalorder %v515, %v517
      %vm520 = vmpackc.low %vm519, %vm518
      %v521 = vsel %vm520, %v504, 0
      %v522 = vsel %vm520, %v505, 0
      %v523 = vsel %vm520, %v506, 0
      %v524 = vsel %vm520, %v507, 0
      %529 = vrot.lane.b32.xlu0 %v521, 120
      %v530 = vpop.permute.xlu0 %529
      %531 = vrot.lane.b32.xlu0 %v522, 120
      %v532 = vpop.permute.xlu0 %531
      %533 = vrot.lane.b32.xlu0 %v523, 120
      %v534 = vpop.permute.xlu0 %533
      %535 = vrot.lane.b32.xlu0 %v524, 120
      %v536 = vpop.permute.xlu0 %535
      %541 = vst.msk [vmem:[#allocation3 + $0x70] sm:$0xf] %vm187, %v530
      %542 = vst.msk [vmem:[#allocation3 + $0x74] sm:$0xf] %vm187, %v532
      %543 = vst.msk [vmem:[#allocation3 + $0x78] sm:$0xf] %vm187, %v534
      %544 = vst.msk [vmem:[#allocation3 + $0x7c] sm:$0xf] %vm187, %v536
      %v545 = vld [vmem:[#allocation2 + $0x4] sm:$0xf]
      %v546 = vld [vmem:[#allocation2 + $0xc] sm:$0xf]
      %v547 = vld [vmem:[#allocation2 + $0x14] sm:$0xf]
      %v548 = vld [vmem:[#allocation2 + $0x1c] sm:$0xf]
      %vm549 = vmand %vm465, %vm308
      %v550 = vsel %vm549, 1, 0
      %vm551 = vcmp.eq.s32.totalorder %v550, 1
      %vm552 = vmpackc.low %vm551, %vm551
      %v553 = vsel %vm552, 65537, 0
      %554 = vrot.lane.b32.xlu0 %v553, 9
      %v555 = vpop.permute.xlu0 %554
      %v556 = vunpack.c.l.b16 %v555
      %v557 = vunpack.c.h.b16 %v555
      %v558 = vunpack.c.l.b16 0
      %v559 = vunpack.c.h.b16 0
      %vm560 = vcmp.ne.s32.totalorder %v556, %v558
      %vm561 = vcmp.ne.s32.totalorder %v557, %v559
      %vm562 = vmpackc.low %vm561, %vm560
      %v563 = vsel %vm562, %v545, 0
      %v564 = vsel %vm562, %v546, 0
      %v565 = vsel %vm562, %v547, 0
      %v566 = vsel %vm562, %v548, 0
      %571 = vrot.lane.b32.xlu0 %v563, 119
      %v572 = vpop.permute.xlu0 %571
      %573 = vrot.lane.b32.xlu0 %v564, 119
      %v574 = vpop.permute.xlu0 %573
      %575 = vrot.lane.b32.xlu0 %v565, 119
      %v576 = vpop.permute.xlu0 %575
      %577 = vrot.lane.b32.xlu0 %v566, 119
      %v578 = vpop.permute.xlu0 %577
      %583 = vst.msk [vmem:[#allocation3 + $0x80] sm:$0xf] %vm187, %v572
      %584 = vst.msk [vmem:[#allocation3 + $0x84] sm:$0xf] %vm187, %v574
      %585 = vst.msk [vmem:[#allocation3 + $0x88] sm:$0xf] %vm187, %v576
      %586 = vst.msk [vmem:[#allocation3 + $0x8c] sm:$0xf] %vm187, %v578
      %v587 = vld [vmem:[%s1] sm:$0xff]
      %v588 = vld [vmem:[%s1 + $0x8] sm:$0xf]
      %v589 = vld [vmem:[%s1 + $0xc] sm:$0xff]
      %v590 = vld [vmem:[%s1 + $0x14] sm:$0xf]
      %v591 = vld [vmem:[%s1 + $0x18] sm:$0xff]
      %v592 = vld [vmem:[%s1 + $0x20] sm:$0xf]
      %v593 = vld [vmem:[%s1 + $0x24] sm:$0xff]
      %v594 = vld [vmem:[%s1 + $0x2c] sm:$0xf]
      %v595 = vld [vmem:[%s1 + $0x30] sm:$0xff]
      %v596 = vld [vmem:[%s1 + $0x38] sm:$0xf]
      %v597 = vld [vmem:[%s1 + $0x3c] sm:$0xff]
      %v598 = vld [vmem:[%s1 + $0x44] sm:$0xf]
      %v599 = vld [vmem:[%s1 + $0x48] sm:$0xff]
      %v600 = vld [vmem:[%s1 + $0x50] sm:$0xf]
      %v601 = vld [vmem:[%s1 + $0x54] sm:$0xff]
      %v602 = vld [vmem:[%s1 + $0x5c] sm:$0xf]
      %v603 = vld [vmem:[#allocation3] sm:$0xf]
      %v604 = vld [vmem:[#allocation3 + $0x4] sm:$0xf]
      %v605 = vld [vmem:[#allocation3 + $0x8] sm:$0xf]
      %v606 = vld [vmem:[#allocation3 + $0xc] sm:$0xf]
      %v607 = vld [vmem:[#allocation3 + $0x10] sm:$0xf]
      %v608 = vld [vmem:[#allocation3 + $0x14] sm:$0xf]
      %v609 = vld [vmem:[#allocation3 + $0x18] sm:$0xf]
      %v610 = vld [vmem:[#allocation3 + $0x1c] sm:$0xf]
      %v611 = vld [vmem:[#allocation3 + $0x20] sm:$0xf]
      %v612 = vld [vmem:[#allocation3 + $0x24] sm:$0xf]
      %v613 = vld [vmem:[#allocation3 + $0x28] sm:$0xf]
      %v614 = vld [vmem:[#allocation3 + $0x2c] sm:$0xf]
      %v615 = vld [vmem:[#allocation3 + $0x30] sm:$0xf]
      %v616 = vld [vmem:[#allocation3 + $0x34] sm:$0xf]
      %v617 = vld [vmem:[#allocation3 + $0x38] sm:$0xf]
      %v618 = vld [vmem:[#allocation3 + $0x3c] sm:$0xf]
      %v619 = vld [vmem:[#allocation3 + $0x40] sm:$0xf]
      %v620 = vld [vmem:[#allocation3 + $0x44] sm:$0xf]
      %v621 = vld [vmem:[#allocation3 + $0x48] sm:$0xf]
      %v622 = vld [vmem:[#allocation3 + $0x4c] sm:$0xf]
      %v623 = vld [vmem:[#allocation3 + $0x50] sm:$0xf]
      %v624 = vld [vmem:[#allocation3 + $0x54] sm:$0xf]
      %v625 = vld [vmem:[#allocation3 + $0x58] sm:$0xf]
      %v626 = vld [vmem:[#allocation3 + $0x5c] sm:$0xf]
      %v627 = vld [vmem:[#allocation3 + $0x60] sm:$0xf]
      %v628 = vld [vmem:[#allocation3 + $0x64] sm:$0xf]
      %v629 = vld [vmem:[#allocation3 + $0x68] sm:$0xf]
      %v630 = vld [vmem:[#allocation3 + $0x6c] sm:$0xf]
      %v631 = vld [vmem:[#allocation3 + $0x70] sm:$0xf]
      %v632 = vld [vmem:[#allocation3 + $0x74] sm:$0xf]
      %v633 = vld [vmem:[#allocation3 + $0x78] sm:$0xf]
      %v634 = vld [vmem:[#allocation3 + $0x7c] sm:$0xf]
      %v635 = vld [vmem:[#allocation3 + $0x80] sm:$0xf]
      %v636 = vld [vmem:[#allocation3 + $0x84] sm:$0xf]
      %v637 = vld [vmem:[#allocation3 + $0x88] sm:$0xf]
      %v638 = vld [vmem:[#allocation3 + $0x8c] sm:$0xf]
      %v639 = vld [vmem:[%s2] sm:$0xff]
      %v640 = vld [vmem:[%s2 + $0x8] sm:$0xff]
      %v641 = vld [vmem:[%s2 + $0x10] sm:$0xff]
      %v642 = vld [vmem:[%s2 + $0x18] sm:$0xff]
      %v643 = vld [vmem:[%s2 + $0x20] sm:$0xff]
      %v644 = vld [vmem:[%s2 + $0x28] sm:$0xff]
      %v645 = vld [vmem:[%s2 + $0x30] sm:$0xff]
      %v646 = vld [vmem:[%s2 + $0x38] sm:$0xff]
      %648 = vset.pattern.permute.xlu0 0
      %649 = vperm.xlu0 %648, %v639
      %v650 = vpop.permute.xlu0 %649
      %653 = vset.pattern.permute.xlu0 0
      %654 = vperm.xlu0 %653, %v640
      %v655 = vpop.permute.xlu0 %654
      %658 = vset.pattern.permute.xlu0 0
      %659 = vperm.xlu0 %658, %v641
      %v660 = vpop.permute.xlu0 %659
      %663 = vset.pattern.permute.xlu0 0
      %664 = vperm.xlu0 %663, %v642
      %v665 = vpop.permute.xlu0 %664
      %668 = vset.pattern.permute.xlu0 0
      %669 = vperm.xlu0 %668, %v643
      %v670 = vpop.permute.xlu0 %669
      %673 = vset.pattern.permute.xlu0 0
      %674 = vperm.xlu0 %673, %v644
      %v675 = vpop.permute.xlu0 %674
      %678 = vset.pattern.permute.xlu0 0
      %679 = vperm.xlu0 %678, %v645
      %v680 = vpop.permute.xlu0 %679
      %683 = vset.pattern.permute.xlu0 0
      %684 = vperm.xlu0 %683, %v646
      %v685 = vpop.permute.xlu0 %684
      %v703 = vunpack.c.l.b16 %v587
      %v704 = vunpack.c.h.b16 %v587
      %v705 = vunpack.c.l.b16 %v588
      %v706 = vunpack.c.l.b16 %v589
      %v707 = vunpack.c.h.b16 %v589
      %v708 = vunpack.c.l.b16 %v590
      %v709 = vunpack.c.l.b16 %v591
      %v710 = vunpack.c.h.b16 %v591
      %v711 = vunpack.c.l.b16 %v592
      %v712 = vunpack.c.l.b16 %v593
      %v713 = vunpack.c.h.b16 %v593
      %v714 = vunpack.c.l.b16 %v594
      %v715 = vunpack.c.l.b16 %v595
      %v716 = vunpack.c.h.b16 %v595
      %v717 = vunpack.c.l.b16 %v596
      %v718 = vunpack.c.l.b16 %v597
      %v719 = vunpack.c.h.b16 %v597
      %v720 = vunpack.c.l.b16 %v598
      %v721 = vunpack.c.l.b16 %v599
      %v722 = vunpack.c.h.b16 %v599
      %v723 = vunpack.c.l.b16 %v600
      %v724 = vunpack.c.l.b16 %v601
      %v725 = vunpack.c.h.b16 %v601
      %v726 = vunpack.c.l.b16 %v602
      %v727 = vpack.c.b16 %v706, %v703
      %v728 = vpack.c.b16 %v707, %v704
      %v729 = vpack.c.b16 %v708, %v705
      %v730 = vpack.c.b16 %v712, %v709
      %v731 = vpack.c.b16 %v713, %v710
      %v732 = vpack.c.b16 %v714, %v711
      %v733 = vpack.c.b16 %v718, %v715
      %v734 = vpack.c.b16 %v719, %v716
      %v735 = vpack.c.b16 %v720, %v717
      %v736 = vpack.c.b16 %v724, %v721
      %v737 = vpack.c.b16 %v725, %v722
      %v738 = vpack.c.b16 %v726, %v723
      %v783 = vunpack.c.l.b16 %v603
      %v784 = vunpack.c.l.b16 %v604
      %v785 = vunpack.c.l.b16 %v605
      %v786 = vunpack.c.l.b16 %v606
      %v787 = vunpack.c.l.b16 %v607
      %v788 = vunpack.c.l.b16 %v608
      %v789 = vunpack.c.l.b16 %v609
      %v790 = vunpack.c.l.b16 %v610
      %v791 = vunpack.c.l.b16 %v611
      %v792 = vunpack.c.l.b16 %v612
      %v793 = vunpack.c.l.b16 %v613
      %v794 = vunpack.c.l.b16 %v614
      %v795 = vunpack.c.l.b16 %v615
      %v796 = vunpack.c.l.b16 %v616
      %v797 = vunpack.c.l.b16 %v617
      %v798 = vunpack.c.l.b16 %v618
      %v799 = vunpack.c.l.b16 %v619
      %v800 = vunpack.c.l.b16 %v620
      %v801 = vunpack.c.l.b16 %v621
      %v802 = vunpack.c.l.b16 %v622
      %v803 = vunpack.c.l.b16 %v623
      %v804 = vunpack.c.l.b16 %v624
      %v805 = vunpack.c.l.b16 %v625
      %v806 = vunpack.c.l.b16 %v626
      %v807 = vunpack.c.l.b16 %v627
      %v808 = vunpack.c.l.b16 %v628
      %v809 = vunpack.c.l.b16 %v629
      %v810 = vunpack.c.l.b16 %v630
      %v811 = vunpack.c.l.b16 %v631
      %v812 = vunpack.c.l.b16 %v632
      %v813 = vunpack.c.l.b16 %v633
      %v814 = vunpack.c.l.b16 %v634
      %v815 = vunpack.c.l.b16 %v635
      %v816 = vunpack.c.l.b16 %v636
      %v817 = vunpack.c.l.b16 %v637
      %v818 = vunpack.c.l.b16 %v638
      %v819 = vpack.c.b16 %v784, %v783
      %v820 = vpack.c.b16 %v786, %v785
      %v821 = vpack.c.b16 %v788, %v787
      %v822 = vpack.c.b16 %v790, %v789
      %v823 = vpack.c.b16 %v792, %v791
      %v824 = vpack.c.b16 %v794, %v793
      %v825 = vpack.c.b16 %v796, %v795
      %v826 = vpack.c.b16 %v798, %v797
      %v827 = vpack.c.b16 %v800, %v799
      %v828 = vpack.c.b16 %v802, %v801
      %v829 = vpack.c.b16 %v804, %v803
      %v830 = vpack.c.b16 %v806, %v805
      %v831 = vpack.c.b16 %v808, %v807
      %v832 = vpack.c.b16 %v810, %v809
      %v833 = vpack.c.b16 %v812, %v811
      %v834 = vpack.c.b16 %v814, %v813
      %v835 = vpack.c.b16 %v816, %v815
      %v836 = vpack.c.b16 %v818, %v817
      %vm855 = vcmask 261120
      %v857 = vsel %vm855, %v729, 0
      %v860 = vsel %vm855, %v732, 0
      %v863 = vsel %vm855, %v735, 0
      %v866 = vsel %vm855, %v738, 0
      %868 = vmatpush.bf16.msra.mxu0 %v826
      %869 = vmatpush.bf16.msra.mxu0 %v825
      %870 = vmatpush.bf16.msra.mxu0 %v824
      %871 = vmatpush.bf16.msra.mxu0 %v823
      %872 = vmatpush.bf16.msra.mxu0 %v822
      %873 = vmatpush.bf16.msra.mxu0 %v821
      %874 = vmatpush.bf16.msra.mxu0 %v820
      %875 = vmatpush.bf16.msra.mxu0 %v819
      %876 = vmatmul.bf16.gmra.mxu0 %v727
      %v877 = vpop.f32.mrf.mxu0
      %v878 = vadd.f32 %v650, %v877
      %v879 = vpop.f32.mrf.mxu0
      %v880 = vadd.f32 %v655, %v879
      %881 = vmatmul.bf16.gmra.mxu0 %v730
      %v882 = vpop.f32.mrf.mxu0
      %v883 = vadd.f32 %v660, %v882
      %v884 = vpop.f32.mrf.mxu0
      %v885 = vadd.f32 %v665, %v884
      %886 = vmatmul.bf16.gmra.mxu0 %v733
      %v887 = vpop.f32.mrf.mxu0
      %v888 = vadd.f32 %v670, %v887
      %v889 = vpop.f32.mrf.mxu0
      %v890 = vadd.f32 %v675, %v889
      %891 = vmatmul.bf16.gmra.mxu0 %v736
      %v892 = vpop.f32.mrf.mxu0
      %v893 = vadd.f32 %v680, %v892
      %v894 = vpop.f32.mrf.mxu0
      %v895 = vadd.f32 %v685, %v894
      %896 = vdwg.mxu0
      %897 = vmatpush.bf16.msra.mxu0 %v834
      %898 = vmatpush.bf16.msra.mxu0 %v833
      %899 = vmatpush.bf16.msra.mxu0 %v832
      %900 = vmatpush.bf16.msra.mxu0 %v831
      %901 = vmatpush.bf16.msra.mxu0 %v830
      %902 = vmatpush.bf16.msra.mxu0 %v829
      %903 = vmatpush.bf16.msra.mxu0 %v828
      %904 = vmatpush.bf16.msra.mxu0 %v827
      %905 = vmatmul.bf16.gmra.mxu0 %v728
      %v906 = vpop.f32.mrf.mxu0
      %v907 = vadd.f32 %v878, %v906
      %v908 = vpop.f32.mrf.mxu0
      %v909 = vadd.f32 %v880, %v908
      %910 = vmatmul.bf16.gmra.mxu0 %v731
      %v911 = vpop.f32.mrf.mxu0
      %v912 = vadd.f32 %v883, %v911
      %v913 = vpop.f32.mrf.mxu0
      %v914 = vadd.f32 %v885, %v913
      %915 = vmatmul.bf16.gmra.mxu0 %v734
      %v916 = vpop.f32.mrf.mxu0
      %v917 = vadd.f32 %v888, %v916
      %v918 = vpop.f32.mrf.mxu0
      %v919 = vadd.f32 %v890, %v918
      %920 = vmatmul.bf16.gmra.mxu0 %v737
      %v921 = vpop.f32.mrf.mxu0
      %v922 = vadd.f32 %v893, %v921
      %v923 = vpop.f32.mrf.mxu0
      %v924 = vadd.f32 %v895, %v923
      %925 = vdwg.mxu0
      %926 = vmatpush.bf16.msra.mxu0 0
      %927 = vmatpush.bf16.msra.mxu0 0
      %928 = vmatpush.bf16.msra.mxu0 0
      %929 = vmatpush.bf16.msra.mxu0 0
      %930 = vmatpush.bf16.msra.mxu0 0
      %931 = vmatpush.bf16.msra.mxu0 0
      %932 = vmatpush.bf16.msra.mxu0 %v836
      %933 = vmatpush.bf16.msra.mxu0 %v835
      %934 = vmatmul.bf16.gmra.mxu0 %v857
      %v935 = vpop.f32.mrf.mxu0
      %v936 = vadd.f32 %v907, %v935
      %v937 = vpop.f32.mrf.mxu0
      %v938 = vadd.f32 %v909, %v937
      %939 = vmatmul.bf16.gmra.mxu0 %v860
      %v940 = vpop.f32.mrf.mxu0
      %v941 = vadd.f32 %v912, %v940
      %v942 = vpop.f32.mrf.mxu0
      %v943 = vadd.f32 %v914, %v942
      %944 = vmatmul.bf16.gmra.mxu0 %v863
      %v945 = vpop.f32.mrf.mxu0
      %v946 = vadd.f32 %v917, %v945
      %v947 = vpop.f32.mrf.mxu0
      %v948 = vadd.f32 %v919, %v947
      %949 = vmatmul.bf16.gmra.mxu0 %v866
      %v950 = vpop.f32.mrf.mxu0
      %v951 = vadd.f32 %v922, %v950
      %v952 = vpop.f32.mrf.mxu0
      %v953 = vadd.f32 %v924, %v952
      %954 = vdwg.mxu0
      %v955 = vmax.f32 %v936, 0.0
      %v956 = vmax.f32 %v938, 0.0
      %v957 = vmax.f32 %v941, 0.0
      %v958 = vmax.f32 %v943, 0.0
      %v959 = vmax.f32 %v946, 0.0
      %v960 = vmax.f32 %v948, 0.0
      %v961 = vmax.f32 %v951, 0.0
      %v962 = vmax.f32 %v953, 0.0
      %v963 = vpack.c.bf16 %v955, %v955
      %v964 = vpack.c.bf16 %v956, %v956
      %v965 = vpack.c.bf16 %v957, %v957
      %v966 = vpack.c.bf16 %v958, %v958
      %v967 = vpack.c.bf16 %v959, %v959
      %v968 = vpack.c.bf16 %v960, %v960
      %v969 = vpack.c.bf16 %v961, %v961
      %v970 = vpack.c.bf16 %v962, %v962
      %971 = vst.msk [vmem:[%s170] sm:$0xf] %vm187, %v963
      %972 = vst.msk [vmem:[%s170 + $0x4] sm:$0xf] %vm187, %v964
      %973 = vst.msk [vmem:[%s170 + $0x8] sm:$0xf] %vm187, %v965
      %974 = vst.msk [vmem:[%s170 + $0xc] sm:$0xf] %vm187, %v966
      %975 = vst.msk [vmem:[%s170 + $0x10] sm:$0xf] %vm187, %v967
      %976 = vst.msk [vmem:[%s170 + $0x14] sm:$0xf] %vm187, %v968
      %977 = vst.msk [vmem:[%s170 + $0x18] sm:$0xf] %vm187, %v969
      %978 = vst.msk [vmem:[%s170 + $0x1c] sm:$0xf] %vm187, %v970
      %p979 = scmp.lt.s32.totalorder %s14, 1
      %s980 = scalar_select %p979, %s14, 1
      %s981 = smul.addr %s980, 8
      %s982 = smul.addr %s981, 4
      %s983 = scalar_lea.vmem %s3, %s982
      // Predicated region
      $region33: #{sipr_forward.8} parent=31 // pred_check
        %p984 = pneg %p100
      $region34: #{sipr_forward.8} parent=31 // pred_check_branch
        %986 = sbr.rel (%p984) target = $region36
      $region35: #{sipr_forward.8} parent=31 // pred_region
        _
      $region36: #{sipr_forward.8} parent=31 // pred_fallthru
        _
    $region32: #{sipr_forward.8} parent=5 // pred_fallthru
      _
    %p987 = scmp.le.s32.totalorder 2, %s9
    // Predicated region
    $region37: #{sipr_forward.8} parent=5 // pred_check
      %p988 = pneg %p987
    $region38: #{sipr_forward.8} parent=5 // pred_check_branch
      %990 = sbr.rel (%p988) target = $region40
    $region39: #{sipr_forward.8} parent=5 // pred_region
      %s991 = ssub.s32 %s9, 2
      // Predicated region
      $region41: #{sipr_forward.8} parent=39 // pred_check
        %p992 = pneg %p106
      $region42: #{sipr_forward.8} parent=39 // pred_check_branch
        %994 = sbr.rel (%p992) target = $region44
      $region43: #{sipr_forward.8} parent=39 // pred_region
        %p995 = scmp.lt.s32.totalorder %s15, 1
        %s996 = scalar_select %p995, %s15, 1
        %s997 = smul.addr %s996, 8
        %s998 = smul.addr %s997, 4
        %s999 = scalar_lea.vmem %s3, %s998
      $region44: #{sipr_forward.8} parent=39 // pred_fallthru
        _
    $region40: #{sipr_forward.8} parent=5 // pred_fallthru
      _
  $region6: #{sipr_forward.8} parent=0 // loop_footer
    %s13 = sadd.s32 1, %s9
  $region7: #{sipr_forward.8} parent=0 // loop_footer_branch
    %8 = sbr.rel target = $region3
  $region8: #{sipr_forward.8} parent=0 // loop_exit
    _

// kernel: sipr_forward.6
$region0: #{sipr_forward.6}
  #allocation0 [shape = 'u32[]', space=smem, size = 0x4, offset = 0x4, fixed_abs, tag = 'smem constant byte address 0x4 - core index']
  #allocation1 [shape = 'u32[72,128]{1,0:T(1,128)}', space=vmem, size = 0x9000, scoped, tag = 'internal scratch']
  #allocation2 [shape = 'bf16[16,401]{1,0:T(8,128)(2,1)}', space=vmem, size = 0x4000, scoped, tag = 'scratch operand']
  #allocation3 [shape = 'bf16[144,256]{1,0:T(8,128)(2,1)}', space=vmem, size = 0x12000, scoped, tag = 'scratch operand']
  %s0 = inlined_call_operand.vmem [shape: bf16[2,16,256], index: 0, kind: input, shape index: {}]
  %s1 = inlined_call_operand.vmem [shape: bf16[16,144], index: 1, kind: input, shape index: {}]
  %s2 = inlined_call_operand.vmem [shape: f32[16,1], index: 2, kind: input, shape index: {}]
  %s3 = inlined_call_operand.vmem [shape: bf16[2,16,256], index: 3, kind: output, shape index: {}]
  %s4 = sld [smem:[#allocation0]]
  $region45: #{sipr_forward.6} parent=0
    _
  %s6 = ssub.s32 1, %s4
  %s7 = scalar_select 0, %s6, %s4
  loop: start=0, step=1, limit=4
  $region2: #{sipr_forward.6} parent=0 // loop_pre_header
    _
  $region3: #{sipr_forward.6} parent=0 // loop_header
    %s9 = sphi 0, %s13
    %p10 = scmp.ge.s32.totalorder %s9, 4
    %s19 = sphi 0, %s21
    %s22 = sphi 0, %s19
    %s23 = sphi 0, %s22
    %s39 = sphi 0, %s23
    %s43 = sphi 0, %s43
    %s45 = sphi 0, %s43
    %s46 = sphi 0, %s45
    %s60 = sphi 0, %s46
    %s64 = sphi 0, %s64
    %s66 = sphi 0, %s64
    %s67 = sphi 0, %s66
    %s81 = sphi 0, %s67
    %s87 = sphi 0, %s89
    %s90 = sphi 0, %s87
    %s91 = sphi 0, %s90
    %s107 = sphi 0, %s91
  $region4: #{sipr_forward.6} parent=0 // loop_header_branch
    %12 = sbr.rel (%p10) target = $region8
  $region5: #{sipr_forward.6} parent=0 // loop_body
    %s14 = ssub.s32 %s9, 1
    %s15 = ssub.s32 %s9, 2
    %s16 = sadd.s32 %s9, 1
    %s17 = ssub.s32 %s9, %s16
    %p18 = scmp.eq.s32.totalorder %s17, 0
    %s20 = sadd.s32 %s19, 1
    %s21 = scalar_select %p18, %s19, %s20
    %p24 = pneg %p18
    %p25 = scmp.eq.s32.totalorder %s9, 1
    %p26 = por %p24, %p25
    %p27 = scmp.ne.s32.totalorder %s19, %s22
    %p28 = scmp.eq.s32.totalorder %s9, 0
    %p29 = por %p27, %p28
    %p30 = scmp.ne.s32.totalorder %s19, %s22
    %p31 = scmp.eq.s32.totalorder %s14, 1
    %p32 = por %p30, %p31
    %p33 = scmp.ne.s32.totalorder %s22, %s23
    %p34 = scmp.eq.s32.totalorder %s14, 0
    %p35 = por %p33, %p34
    %p36 = scmp.ne.s32.totalorder %s22, %s23
    %p37 = scmp.eq.s32.totalorder %s15, 1
    %p38 = por %p36, %p37
    %p40 = scmp.ne.s32.totalorder %s23, %s39
    %p41 = scmp.eq.s32.totalorder %s15, 0
    %p42 = por %p40, %p41
    %s44 = sadd.s32 %s43, 1
    %p47 = scmp.eq.s32.totalorder %s9, 1
    %p48 = scmp.ne.s32.totalorder %s43, %s45
    %p49 = scmp.eq.s32.totalorder %s9, 0
    %p50 = por %p48, %p49
    %p51 = scmp.ne.s32.totalorder %s43, %s45
    %p52 = scmp.eq.s32.totalorder %s14, 1
    %p53 = por %p51, %p52
    %p54 = scmp.ne.s32.totalorder %s45, %s46
    %p55 = scmp.eq.s32.totalorder %s14, 0
    %p56 = por %p54, %p55
    %p57 = scmp.ne.s32.totalorder %s45, %s46
    %p58 = scmp.eq.s32.totalorder %s15, 1
    %p59 = por %p57, %p58
    %p61 = scmp.ne.s32.totalorder %s46, %s60
    %p62 = scmp.eq.s32.totalorder %s15, 0
    %p63 = por %p61, %p62
    %s65 = sadd.s32 %s64, 1
    %p68 = scmp.eq.s32.totalorder %s9, 1
    %p69 = scmp.ne.s32.totalorder %s64, %s66
    %p70 = scmp.eq.s32.totalorder %s9, 0
    %p71 = por %p69, %p70
    %p72 = scmp.ne.s32.totalorder %s64, %s66
    %p73 = scmp.eq.s32.totalorder %s14, 1
    %p74 = por %p72, %p73
    %p75 = scmp.ne.s32.totalorder %s66, %s67
    %p76 = scmp.eq.s32.totalorder %s14, 0
    %p77 = por %p75, %p76
    %p78 = scmp.ne.s32.totalorder %s66, %s67
    %p79 = scmp.eq.s32.totalorder %s15, 1
    %p80 = por %p78, %p79
    %p82 = scmp.ne.s32.totalorder %s67, %s81
    %p83 = scmp.eq.s32.totalorder %s15, 0
    %p84 = por %p82, %p83
    %s85 = ssub.s32 %s9, %s16
    %p86 = scmp.eq.s32.totalorder %s85, 0
    %s88 = sadd.s32 %s87, 1
    %s89 = scalar_select %p86, %s87, %s88
    %p92 = pneg %p86
    %p93 = scmp.eq.s32.totalorder %s9, 1
    %p94 = por %p92, %p93
    %p95 = scmp.ne.s32.totalorder %s87, %s90
    %p96 = scmp.eq.s32.totalorder %s9, 0
    %p97 = por %p95, %p96
    %p98 = scmp.ne.s32.totalorder %s87, %s90
    %p99 = scmp.eq.s32.totalorder %s14, 1
    %p100 = por %p98, %p99
    %p101 = scmp.ne.s32.totalorder %s90, %s91
    %p102 = scmp.eq.s32.totalorder %s14, 0
    %p103 = por %p101, %p102
    %p104 = scmp.ne.s32.totalorder %s90, %s91
    %p105 = scmp.eq.s32.totalorder %s15, 1
    %p106 = por %p104, %p105
    %p108 = scmp.ne.s32.totalorder %s91, %s107
    %p109 = scmp.eq.s32.totalorder %s15, 0
    %p110 = por %p108, %p109
    %p111 = scmp.le.s32.totalorder 1, %s9
    %p112 = scmp.lt.s32.totalorder %s9, 3
    %p113 = pnand %p111, %p112
    %p114 = pneg %p113
    // Predicated region
    $region9: #{sipr_forward.6} parent=5 // pred_check
      _
    $region10: #{sipr_forward.6} parent=5 // pred_check_branch
      %116 = sbr.rel (%p113) target = $region12
    $region11: #{sipr_forward.6} parent=5 // pred_region
      %s117 = ssub.s32 %s9, 1
      // Predicated region
      $region13: #{sipr_forward.6} parent=11 // pred_check
        %p118 = pneg %p56
      $region14: #{sipr_forward.6} parent=11 // pred_check_branch
        %120 = sbr.rel (%p118) target = $region16
      $region15: #{sipr_forward.6} parent=11 // pred_region
        _
      $region16: #{sipr_forward.6} parent=11 // pred_fallthru
        _
      // Predicated region
      $region17: #{sipr_forward.6} parent=11 // pred_check
        %p121 = pneg %p77
      $region18: #{sipr_forward.6} parent=11 // pred_check_branch
        %123 = sbr.rel (%p121) target = $region20
      $region19: #{sipr_forward.6} parent=11 // pred_region
        _
      $region20: #{sipr_forward.6} parent=11 // pred_fallthru
        _
    $region12: #{sipr_forward.6} parent=5 // pred_fallthru
      _
    %p124 = scmp.lt.s32.totalorder %s9, 2
    // Predicated region
    $region21: #{sipr_forward.6} parent=5 // pred_check
      %p125 = pneg %p124
    $region22: #{sipr_forward.6} parent=5 // pred_check_branch
      %127 = sbr.rel (%p125) target = $region24
    $region23: #{sipr_forward.6} parent=5 // pred_region
      // Predicated region
      $region25: #{sipr_forward.6} parent=23 // pred_check
        %p128 = pneg %p29
      $region26: #{sipr_forward.6} parent=23 // pred_check_branch
        %130 = sbr.rel (%p128) target = $region28
      $region27: #{sipr_forward.6} parent=23 // pred_region
        %p131 = scmp.lt.s32.totalorder %s9, 1
        %s132 = scalar_select %p131, %s9, 1
        %s133 = smul.addr %s132, 4
        %s134 = smul.addr %s133, 4
        %s135 = scalar_lea.vmem %s0, %s134
      $region28: #{sipr_forward.6} parent=23 // pred_fallthru
        _
    $region24: #{sipr_forward.6} parent=5 // pred_fallthru
      _
    %p136 = scmp.le.s32.totalorder 1, %s9
    %p137 = scmp.lt.s32.totalorder %s9, 3
    %p138 = pnand %p136, %p137
    %p139 = pneg %p138
    // Predicated region
    $region29: #{sipr_forward.6} parent=5 // pred_check
      _
    $region30: #{sipr_forward.6} parent=5 // pred_check_branch
      %141 = sbr.rel (%p138) target = $region32
    $region31: #{sipr_forward.6} parent=5 // pred_region
      %s142 = ssub.s32 %s9, 1
      %p143 = scmp.lt.s32.totalorder %s14, 1
      %s144 = scalar_select %p143, %s14, 1
      %s145 = smul.addr %s144, 4
      %s146 = smul.addr %s145, 4
      %s147 = scalar_lea.vmem %s0, %s146
      %p148 = pneg %p35
      %p149 = pneg %p32
      %p150 = pneg %p56
      %p151 = pneg %p53
      %p152 = pneg %p77
      %p153 = pneg %p74
      %p154 = pneg %p103
      %p155 = pneg %p100
      %p156 = scmp.lt.s32.totalorder %s14, 1
      %s157 = scalar_select %p156, %s14, 1
      %s158 = smul.addr %s157, 4
      %s159 = smul.addr %s158, 4
      %s160 = scalar_lea.vmem %s3, %s159
      %p161 = scmp.lt.s32.totalorder %s14, 1
      %s162 = scalar_select %p161, %s14, 1
      %s163 = smul.addr %s162, 4
      %s164 = smul.addr %s163, 4
      %s165 = scalar_lea.vmem %s0, %s164
      %p166 = scmp.lt.s32.totalorder %s14, 1
      %s167 = scalar_select %p166, %s14, 1
      %s168 = smul.addr %s167, 4
      %s169 = smul.addr %s168, 4
      %s170 = scalar_lea.vmem %s3, %s169
      %174 = vst [vmem:[#allocation2] sm:$0xf] 0
      %175 = vst [vmem:[#allocation2 + $0x10] sm:$0xf] 0
      %vm176 = vcmask 134144
      %177 = vst.msk [vmem:[#allocation2 + $0xc] sm:$0xf] %vm176, 0
      %178 = vst.msk [vmem:[#allocation2 + $0x1c] sm:$0xf] %vm176, 0
      %v179 = vld [vmem:[%s165] sm:$0xff]
      %v180 = vld [vmem:[%s165 + $0x8] sm:$0xff]
      %181 = vst [vmem:[#allocation2 + $0x4] sm:$0xff] %v179
      %182 = vst [vmem:[#allocation2 + $0x14] sm:$0xff] %v180
      %v183 = vlaneseq
      %v184 = vand.u32 %v183, 127
      %v185 = vadd.s32 %v184, 128
      %v186 = vand.u32 %v184, 15
      %v187 = vand.u32 %v185, 15
      %v188 = vld [vmem:[#allocation2] sm:$0xff]
      %v189 = vld [vmem:[#allocation2 + $0x8] sm:$0xf]
      %v190 = vld [vmem:[#allocation2 + $0x10] sm:$0xff]
      %v191 = vld [vmem:[#allocation2 + $0x18] sm:$0xf]
      %vm192 = vcmp.ge.s32.totalorder %v184, 16
      %vm193 = vcmp.ge.s32.totalorder %v185, 16
      %vm194 = vcmp.ge.s32.totalorder %v186, 1
      %vm195 = vcmp.ge.s32.totalorder %v187, 1
      %vm196 = vmand %vm192, %vm194
      %vm197 = vmand %vm193, %vm195
      %v198 = vsel %vm196, 1, 0
      %v199 = vsel %vm197, 1, 0
      %vm200 = vcmp.eq.s32.totalorder %v198, 1
      %vm201 = vcmp.eq.s32.totalorder %v199, 1
      %vm202 = vmpackc.low %vm201, %vm200
      %v203 = vsel %vm202, 65537, 0
      %204 = vrot.lane.b32.xlu0 %v203, 111
      %v205 = vpop.permute.xlu0 %204
      %v206 = vrot.slane %v205, 4
      %vm207 = vcmask 908288
      %v208 = vsel %vm207, %v206, %v205
      %v209 = vunpack.c.l.b16 %v208
      %v210 = vunpack.c.h.b16 %v208
      %v211 = vunpack.c.l.b16 0
      %v212 = vunpack.c.h.b16 0
      %vm213 = vcmp.ne.s32.totalorder %v209, %v211
      %vm214 = vcmp.ne.s32.totalorder %v210, %v212
      %vm215 = vmpackc.low %vm214, %vm213
      %v216 = vunpack.c.l.b16 %v206
      %v217 = vunpack.c.h.b16 %v206
      %v218 = vunpack.c.l.b16 0
      %v219 = vunpack.c.h.b16 0
      %vm220 = vcmp.ne.s32.totalorder %v216, %v218
      %vm221 = vcmp.ne.s32.totalorder %v217, %v219
      %vm222 = vmpackc.low %vm221, %vm220
      %v223 = vsel %vm215, %v188, 0
      %v224 = vsel %vm222, %v189, 0
      %v225 = vsel %vm215, %v190, 0
      %v226 = vsel %vm222, %v191, 0
      %231 = vrot.lane.b32.xlu0 %v223, 17
      %v232 = vpop.permute.xlu0 %231
      %233 = vrot.lane.b32.xlu0 %v224, 17
      %v234 = vpop.permute.xlu0 %233
      %235 = vrot.lane.b32.xlu0 %v225, 17
      %v236 = vpop.permute.xlu0 %235
      %237 = vrot.lane.b32.xlu0 %v226, 17
      %v238 = vpop.permute.xlu0 %237
      %v239 = vrot.slane %v232, 4
      %v240 = vrot.slane %v234, 4
      %v241 = vrot.slane %v236, 4
      %v242 = vrot.slane %v238, 4
      %vm243 = vcmask 1043456
      %v244 = vsel %vm243, %v239, %v240
      %vm245 = vcmask 138240
      %v246 = vsel %vm245, %v232, %v244
      %v247 = vsel %vm243, %v241, %v242
      %v248 = vsel %vm245, %v236, %v247
      %251 = vst [vmem:[#allocation3] sm:$0xff] %v246
      %252 = vst [vmem:[#allocation3 + $0x8] sm:$0xff] %v248
      %v253 = vld [vmem:[#allocation2] sm:$0xff]
      %v254 = vld [vmem:[#allocation2 + $0x8] sm:$0xf]
      %v255 = vld [vmem:[#allocation2 + $0x10] sm:$0xff]
      %v256 = vld [vmem:[#allocation2 + $0x18] sm:$0xf]
      %v257 = vsel %vm192, 1, 0
      %v258 = vsel %vm193, 1, 0
      %vm259 = vcmp.eq.s32.totalorder %v257, 1
      %vm260 = vcmp.eq.s32.totalorder %v258, 1
      %vm261 = vmpackc.low %vm260, %vm259
      %v262 = vsel %vm261, 65537, 0
      %263 = vrot.lane.b32.xlu0 %v262, 112
      %v264 = vpop.permute.xlu0 %263
      %v265 = vrot.slane %v264, 4
      %vm266 = vcmask 916480
      %v267 = vsel %vm266, %v265, %v264
      %v268 = vunpack.c.l.b16 %v267
      %v269 = vunpack.c.h.b16 %v267
      %v270 = vunpack.c.l.b16 0
      %v271 = vunpack.c.h.b16 0
      %vm272 = vcmp.ne.s32.totalorder %v268, %v270
      %vm273 = vcmp.ne.s32.totalorder %v269, %v271
      %vm274 = vmpackc.low %vm273, %vm272
      %v275 = vunpack.c.l.b16 %v265
      %v276 = vunpack.c.h.b16 %v265
      %v277 = vunpack.c.l.b16 0
      %v278 = vunpack.c.h.b16 0
      %vm279 = vcmp.ne.s32.totalorder %v275, %v277
      %vm280 = vcmp.ne.s32.totalorder %v276, %v278
      %vm281 = vmpackc.low %vm280, %vm279
      %v282 = vsel %vm274, %v253, 0
      %v283 = vsel %vm281, %v254, 0
      %v284 = vsel %vm274, %v255, 0
      %v285 = vsel %vm281, %v256, 0
      %290 = vrot.lane.b32.xlu0 %v282, 16
      %v291 = vpop.permute.xlu0 %290
      %292 = vrot.lane.b32.xlu0 %v283, 16
      %v293 = vpop.permute.xlu0 %292
      %294 = vrot.lane.b32.xlu0 %v284, 16
      %v295 = vpop.permute.xlu0 %294
      %296 = vrot.lane.b32.xlu0 %v285, 16
      %v297 = vpop.permute.xlu0 %296
      %v298 = vrot.slane %v291, 4
      %v299 = vrot.slane %v293, 4
      %v300 = vrot.slane %v295, 4
      %v301 = vrot.slane %v297, 4
      %v302 = vsel %vm243, %v298, %v299
      %vm303 = vcmask 130048
      %v304 = vsel %vm303, %v291, %v302
      %v305 = vsel %vm243, %v300, %v301
      %v306 = vsel %vm303, %v295, %v305
      %309 = vst [vmem:[#allocation3 + $0x10] sm:$0xff] %v304
      %310 = vst [vmem:[#allocation3 + $0x18] sm:$0xff] %v306
      %v311 = vld [vmem:[#allocation2] sm:$0xff]
      %v312 = vld [vmem:[#allocation2 + $0x8] sm:$0xf]
      %v313 = vld [vmem:[#allocation2 + $0x10] sm:$0xff]
      %v314 = vld [vmem:[#allocation2 + $0x18] sm:$0xf]
      %vm315 = vcmp.le.s32.totalorder %v186, 14
      %vm316 = vcmp.le.s32.totalorder %v187, 14
      %vm317 = vmand %vm192, %vm315
      %vm318 = vmand %vm193, %vm316
      %v319 = vsel %vm317, 1, 0
      %v320 = vsel %vm318, 1, 0
      %vm321 = vcmp.eq.s32.totalorder %v319, 1
      %vm322 = vcmp.eq.s32.totalorder %v320, 1
      %vm323 = vmpackc.low %vm322, %vm321
      %v324 = vsel %vm323, 65537, 0
      %325 = vrot.lane.b32.xlu0 %v324, 113
      %v326 = vpop.permute.xlu0 %325
      %v327 = vrot.slane %v326, 4
      %vm328 = vcmask 924672
      %v329 = vsel %vm328, %v327, %v326
      %v330 = vunpack.c.l.b16 %v329
      %v331 = vunpack.c.h.b16 %v329
      %v332 = vunpack.c.l.b16 0
      %v333 = vunpack.c.h.b16 0
      %vm334 = vcmp.ne.s32.totalorder %v330, %v332
      %vm335 = vcmp.ne.s32.totalorder %v331, %v333
      %vm336 = vmpackc.low %vm335, %vm334
      %v337 = vunpack.c.l.b16 %v327
      %v338 = vunpack.c.h.b16 %v327
      %v339 = vunpack.c.l.b16 0
      %v340 = vunpack.c.h.b16 0
      %vm341 = vcmp.ne.s32.totalorder %v337, %v339
      %vm342 = vcmp.ne.s32.totalorder %v338, %v340
      %vm343 = vmpackc.low %vm342, %vm341
      %v344 = vsel %vm336, %v311, 0
      %v345 = vsel %vm343, %v312, 0
      %v346 = vsel %vm336, %v313, 0
      %v347 = vsel %vm343, %v314, 0
      %352 = vrot.lane.b32.xlu0 %v344, 15
      %v353 = vpop.permute.xlu0 %352
      %354 = vrot.lane.b32.xlu0 %v345, 15
      %v355 = vpop.permute.xlu0 %354
      %356 = vrot.lane.b32.xlu0 %v346, 15
      %v357 = vpop.permute.xlu0 %356
      %358 = vrot.lane.b32.xlu0 %v347, 15
      %v359 = vpop.permute.xlu0 %358
      %v360 = vrot.slane %v353, 4
      %v361 = vrot.slane %v355, 4
      %v362 = vrot.slane %v357, 4
      %v363 = vrot.slane %v359, 4
      %v364 = vsel %vm243, %v360, %v361
      %vm365 = vcmask 121856
      %v366 = vsel %vm365, %v353, %v364
      %v367 = vsel %vm243, %v362, %v363
      %v368 = vsel %vm365, %v357, %v367
      %371 = vst [vmem:[#allocation3 + $0x20] sm:$0xff] %v366
      %372 = vst [vmem:[#allocation3 + $0x28] sm:$0xff] %v368
      %v373 = vld [vmem:[#allocation2] sm:$0xff]
      %v374 = vld [vmem:[#allocation2 + $0x8] sm:$0xf]
      %v375 = vld [vmem:[#allocation2 + $0x10] sm:$0xff]
      %v376 = vld [vmem:[#allocation2 + $0x18] sm:$0xf]
      %v377 = vsel %vm194, 1, 0
      %v378 = vsel %vm195, 1, 0
      %vm379 = vcmp.eq.s32.totalorder %v377, 1
      %vm380 = vcmp.eq.s32.totalorder %v378, 1
      %vm381 = vmpackc.low %vm380, %vm379
      %v382 = vsel %vm381, 65537, 0
      %383 = vrot.lane.b32.xlu0 %v382, 127
      %v384 = vpop.permute.xlu0 %383
      %v385 = vrot.slane %v384, 4
      %vm386 = vcmask 1039360
      %v387 = vsel %vm386, %v385, %v384
      %v388 = vunpack.c.l.b16 %v387
      %v389 = vunpack.c.h.b16 %v387
      %v390 = vunpack.c.l.b16 0
      %v391 = vunpack.c.h.b16 0
      %vm392 = vcmp.ne.s32.totalorder %v388, %v390
      %vm393 = vcmp.ne.s32.totalorder %v389, %v391
      %vm394 = vmpackc.low %vm393, %vm392
      %v395 = vunpack.c.l.b16 %v385
      %v396 = vunpack.c.h.b16 %v385
      %v397 = vunpack.c.l.b16 0
      %v398 = vunpack.c.h.b16 0
      %vm399 = vcmp.ne.s32.totalorder %v395, %v397
      %vm400 = vcmp.ne.s32.totalorder %v396, %v398
      %vm401 = vmpackc.low %vm400, %vm399
      %v402 = vsel %vm394, %v373, 0
      %v403 = vsel %vm401, %v374, 0
      %v404 = vsel %vm394, %v375, 0
      %v405 = vsel %vm401, %v376, 0
      %410 = vrot.lane.b32.xlu0 %v402, 1
      %v411 = vpop.permute.xlu0 %410
      %412 = vrot.lane.b32.xlu0 %v403, 1
      %v413 = vpop.permute.xlu0 %412
      %414 = vrot.lane.b32.xlu0 %v404, 1
      %v415 = vpop.permute.xlu0 %414
      %416 = vrot.lane.b32.xlu0 %v405, 1
      %v417 = vpop.permute.xlu0 %416
      %v418 = vrot.slane %v411, 4
      %v419 = vrot.slane %v413, 4
      %v420 = vrot.slane %v415, 4
      %v421 = vrot.slane %v417, 4
      %v422 = vsel %vm243, %v418, %v419
      %vm423 = vcmask 7168
      %v424 = vsel %vm423, %v411, %v422
      %v425 = vsel %vm243, %v420, %v421
      %v426 = vsel %vm423, %v415, %v425
      %429 = vst [vmem:[#allocation3 + $0x30] sm:$0xff] %v424
      %430 = vst [vmem:[#allocation3 + $0x38] sm:$0xff] %v426
      %v431 = vld [vmem:[#allocation2 + $0x4] sm:$0xff]
      %v432 = vld [vmem:[#allocation2 + $0x14] sm:$0xff]
      %433 = vst [vmem:[#allocation3 + $0x40] sm:$0xff] %v431
      %434 = vst [vmem:[#allocation3 + $0x48] sm:$0xff] %v432
      %v435 = vld [vmem:[#allocation2 + $0x4] sm:$0xff]
      %v436 = vld [vmem:[#allocation2 + $0xc] sm:$0xf]
      %v437 = vld [vmem:[#allocation2 + $0x14] sm:$0xff]
      %v438 = vld [vmem:[#allocation2 + $0x1c] sm:$0xf]
      %v439 = vsel %vm315, 1, 0
      %v440 = vsel %vm316, 1, 0
      %vm441 = vcmp.eq.s32.totalorder %v439, 1
      %vm442 = vcmp.eq.s32.totalorder %v440, 1
      %vm443 = vmpackc.low %vm442, %vm441
      %v444 = vsel %vm443, 65537, 0
      %445 = vrot.lane.b32.xlu0 %v444, 1
      %v446 = vpop.permute.xlu0 %445
      %v447 = vrot.slane %v446, 4
      %v448 = vsel %vm423, %v447, %v446
      %v449 = vunpack.c.l.b16 %v448
      %v450 = vunpack.c.h.b16 %v448
      %v451 = vunpack.c.l.b16 0
      %v452 = vunpack.c.h.b16 0
      %vm453 = vcmp.ne.s32.totalorder %v449, %v451
      %vm454 = vcmp.ne.s32.totalorder %v450, %v452
      %vm455 = vmpackc.low %vm454, %vm453
      %v456 = vunpack.c.l.b16 %v447
      %v457 = vunpack.c.h.b16 %v447
      %v458 = vunpack.c.l.b16 0
      %v459 = vunpack.c.h.b16 0
      %vm460 = vcmp.ne.s32.totalorder %v456, %v458
      %vm461 = vcmp.ne.s32.totalorder %v457, %v459
      %vm462 = vmpackc.low %vm461, %vm460
      %v463 = vsel %vm455, %v435, 0
      %v464 = vsel %vm462, %v436, 0
      %v465 = vsel %vm455, %v437, 0
      %v466 = vsel %vm462, %v438, 0
      %471 = vrot.lane.b32.xlu0 %v463, 127
      %v472 = vpop.permute.xlu0 %471
      %473 = vrot.lane.b32.xlu0 %v464, 127
      %v474 = vpop.permute.xlu0 %473
      %475 = vrot.lane.b32.xlu0 %v465, 127
      %v476 = vpop.permute.xlu0 %475
      %477 = vrot.lane.b32.xlu0 %v466, 127
      %v478 = vpop.permute.xlu0 %477
      %v479 = vrot.slane %v472, 4
      %v480 = vrot.slane %v474, 4
      %v481 = vrot.slane %v476, 4
      %v482 = vrot.slane %v478, 4
      %v483 = vsel %vm243, %v479, %v480
      %v484 = vsel %vm386, %v472, %v483
      %v485 = vsel %vm243, %v481, %v482
      %v486 = vsel %vm386, %v476, %v485
      %489 = vst [vmem:[#allocation3 + $0x50] sm:$0xff] %v484
      %490 = vst [vmem:[#allocation3 + $0x58] sm:$0xff] %v486
      %v491 = vld [vmem:[#allocation2 + $0x4] sm:$0xff]
      %v492 = vld [vmem:[#allocation2 + $0xc] sm:$0xf]
      %v493 = vld [vmem:[#allocation2 + $0x14] sm:$0xff]
      %v494 = vld [vmem:[#allocation2 + $0x1c] sm:$0xf]
      %vm495 = vcmp.lt.s32.totalorder %v184, 240
      %vm496 = vcmp.lt.s32.totalorder %v185, 240
      %vm497 = vmand %vm495, %vm194
      %vm498 = vmand %vm496, %vm195
      %v499 = vsel %vm497, 1, 0
      %v500 = vsel %vm498, 1, 0
      %vm501 = vcmp.eq.s32.totalorder %v499, 1
      %vm502 = vcmp.eq.s32.totalorder %v500, 1
      %vm503 = vmpackc.low %vm502, %vm501
      %v504 = vsel %vm503, 65537, 0
      %505 = vrot.lane.b32.xlu0 %v504, 15
      %v506 = vpop.permute.xlu0 %505
      %v507 = vrot.slane %v506, 4
      %v508 = vsel %vm365, %v507, %v506
      %v509 = vunpack.c.l.b16 %v508
      %v510 = vunpack.c.h.b16 %v508
      %v511 = vunpack.c.l.b16 0
      %v512 = vunpack.c.h.b16 0
      %vm513 = vcmp.ne.s32.totalorder %v509, %v511
      %vm514 = vcmp.ne.s32.totalorder %v510, %v512
      %vm515 = vmpackc.low %vm514, %vm513
      %v516 = vunpack.c.l.b16 %v507
      %v517 = vunpack.c.h.b16 %v507
      %v518 = vunpack.c.l.b16 0
      %v519 = vunpack.c.h.b16 0
      %vm520 = vcmp.ne.s32.totalorder %v516, %v518
      %vm521 = vcmp.ne.s32.totalorder %v517, %v519
      %vm522 = vmpackc.low %vm521, %vm520
      %v523 = vsel %vm515, %v491, 0
      %v524 = vsel %vm522, %v492, 0
      %v525 = vsel %vm515, %v493, 0
      %v526 = vsel %vm522, %v494, 0
      %531 = vrot.lane.b32.xlu0 %v523, 113
      %v532 = vpop.permute.xlu0 %531
      %533 = vrot.lane.b32.xlu0 %v524, 113
      %v534 = vpop.permute.xlu0 %533
      %535 = vrot.lane.b32.xlu0 %v525, 113
      %v536 = vpop.permute.xlu0 %535
      %537 = vrot.lane.b32.xlu0 %v526, 113
      %v538 = vpop.permute.xlu0 %537
      %v539 = vrot.slane %v532, 4
      %v540 = vrot.slane %v534, 4
      %v541 = vrot.slane %v536, 4
      %v542 = vrot.slane %v538, 4
      %v543 = vsel %vm243, %v539, %v540
      %v544 = vsel %vm328, %v532, %v543
      %v545 = vsel %vm243, %v541, %v542
      %v546 = vsel %vm328, %v536, %v545
      %549 = vst [vmem:[#allocation3 + $0x60] sm:$0xff] %v544
      %550 = vst [vmem:[#allocation3 + $0x68] sm:$0xff] %v546
      %v551 = vld [vmem:[#allocation2 + $0x4] sm:$0xff]
      %v552 = vld [vmem:[#allocation2 + $0xc] sm:$0xf]
      %v553 = vld [vmem:[#allocation2 + $0x14] sm:$0xff]
      %v554 = vld [vmem:[#allocation2 + $0x1c] sm:$0xf]
      %v555 = vsel %vm495, 1, 0
      %v556 = vsel %vm496, 1, 0
      %vm557 = vcmp.eq.s32.totalorder %v555, 1
      %vm558 = vcmp.eq.s32.totalorder %v556, 1
      %vm559 = vmpackc.low %vm558, %vm557
      %v560 = vsel %vm559, 65537, 0
      %561 = vrot.lane.b32.xlu0 %v560, 16
      %v562 = vpop.permute.xlu0 %561
      %v563 = vrot.slane %v562, 4
      %v564 = vsel %vm303, %v563, %v562
      %v565 = vunpack.c.l.b16 %v564
      %v566 = vunpack.c.h.b16 %v564
      %v567 = vunpack.c.l.b16 0
      %v568 = vunpack.c.h.b16 0
      %vm569 = vcmp.ne.s32.totalorder %v565, %v567
      %vm570 = vcmp.ne.s32.totalorder %v566, %v568
      %vm571 = vmpackc.low %vm570, %vm569
      %v572 = vunpack.c.l.b16 %v563
      %v573 = vunpack.c.h.b16 %v563
      %v574 = vunpack.c.l.b16 0
      %v575 = vunpack.c.h.b16 0
      %vm576 = vcmp.ne.s32.totalorder %v572, %v574
      %vm577 = vcmp.ne.s32.totalorder %v573, %v575
      %vm578 = vmpackc.low %vm577, %vm576
      %v579 = vsel %vm571, %v551, 0
      %v580 = vsel %vm578, %v552, 0
      %v581 = vsel %vm571, %v553, 0
      %v582 = vsel %vm578, %v554, 0
      %587 = vrot.lane.b32.xlu0 %v579, 112
      %v588 = vpop.permute.xlu0 %587
      %589 = vrot.lane.b32.xlu0 %v580, 112
      %v590 = vpop.permute.xlu0 %589
      %591 = vrot.lane.b32.xlu0 %v581, 112
      %v592 = vpop.permute.xlu0 %591
      %593 = vrot.lane.b32.xlu0 %v582, 112
      %v594 = vpop.permute.xlu0 %593
      %v595 = vrot.slane %v588, 4
      %v596 = vrot.slane %v590, 4
      %v597 = vrot.slane %v592, 4
      %v598 = vrot.slane %v594, 4
      %v599 = vsel %vm243, %v595, %v596
      %v600 = vsel %vm266, %v588, %v599
      %v601 = vsel %vm243, %v597, %v598
      %v602 = vsel %vm266, %v592, %v601
      %605 = vst [vmem:[#allocation3 + $0x70] sm:$0xff] %v600
      %606 = vst [vmem:[#allocation3 + $0x78] sm:$0xff] %v602
      %v607 = vld [vmem:[#allocation2 + $0x4] sm:$0xff]
      %v608 = vld [vmem:[#allocation2 + $0xc] sm:$0xf]
      %v609 = vld [vmem:[#allocation2 + $0x14] sm:$0xff]
      %v610 = vld [vmem:[#allocation2 + $0x1c] sm:$0xf]
      %vm611 = vmand %vm495, %vm315
      %vm612 = vmand %vm496, %vm316
      %v613 = vsel %vm611, 1, 0
      %v614 = vsel %vm612, 1, 0
      %vm615 = vcmp.eq.s32.totalorder %v613, 1
      %vm616 = vcmp.eq.s32.totalorder %v614, 1
      %vm617 = vmpackc.low %vm616, %vm615
      %v618 = vsel %vm617, 65537, 0
      %619 = vrot.lane.b32.xlu0 %v618, 17
      %v620 = vpop.permute.xlu0 %619
      %v621 = vrot.slane %v620, 4
      %v622 = vsel %vm245, %v621, %v620
      %v623 = vunpack.c.l.b16 %v622
      %v624 = vunpack.c.h.b16 %v622
      %v625 = vunpack.c.l.b16 0
      %v626 = vunpack.c.h.b16 0
      %vm627 = vcmp.ne.s32.totalorder %v623, %v625
      %vm628 = vcmp.ne.s32.totalorder %v624, %v626
      %vm629 = vmpackc.low %vm628, %vm627
      %v630 = vunpack.c.l.b16 %v621
      %v631 = vunpack.c.h.b16 %v621
      %v632 = vunpack.c.l.b16 0
      %v633 = vunpack.c.h.b16 0
      %vm634 = vcmp.ne.s32.totalorder %v630, %v632
      %vm635 = vcmp.ne.s32.totalorder %v631, %v633
      %vm636 = vmpackc.low %vm635, %vm634
      %v637 = vsel %vm629, %v607, 0
      %v638 = vsel %vm636, %v608, 0
      %v639 = vsel %vm629, %v609, 0
      %v640 = vsel %vm636, %v610, 0
      %645 = vrot.lane.b32.xlu0 %v637, 111
      %v646 = vpop.permute.xlu0 %645
      %647 = vrot.lane.b32.xlu0 %v638, 111
      %v648 = vpop.permute.xlu0 %647
      %649 = vrot.lane.b32.xlu0 %v639, 111
      %v650 = vpop.permute.xlu0 %649
      %651 = vrot.lane.b32.xlu0 %v640, 111
      %v652 = vpop.permute.xlu0 %651
      %v653 = vrot.slane %v646, 4
      %v654 = vrot.slane %v648, 4
      %v655 = vrot.slane %v650, 4
      %v656 = vrot.slane %v652, 4
      %v657 = vsel %vm243, %v653, %v654
      %v658 = vsel %vm207, %v646, %v657
      %v659 = vsel %vm243, %v655, %v656
      %v660 = vsel %vm207, %v650, %v659
      %663 = vst [vmem:[#allocation3 + $0x80] sm:$0xff] %v658
      %664 = vst [vmem:[#allocation3 + $0x88] sm:$0xff] %v660
      %v665 = vld [vmem:[%s1] sm:$0xff]
      %v666 = vld [vmem:[%s1 + $0x8] sm:$0xff]
      %v667 = vld [vmem:[#allocation3] sm:$0xff]
      %v668 = vld [vmem:[#allocation3 + $0x8] sm:$0xff]
      %v669 = vld [vmem:[#allocation3 + $0x10] sm:$0xff]
      %v670 = vld [vmem:[#allocation3 + $0x18] sm:$0xff]
      %v671 = vld [vmem:[#allocation3 + $0x20] sm:$0xff]
      %v672 = vld [vmem:[#allocation3 + $0x28] sm:$0xff]
      %v673 = vld [vmem:[#allocation3 + $0x30] sm:$0xff]
      %v674 = vld [vmem:[#allocation3 + $0x38] sm:$0xff]
      %v675 = vld [vmem:[#allocation3 + $0x40] sm:$0xff]
      %v676 = vld [vmem:[#allocation3 + $0x48] sm:$0xff]
      %v677 = vld [vmem:[#allocation3 + $0x50] sm:$0xff]
      %v678 = vld [vmem:[#allocation3 + $0x58] sm:$0xff]
      %v679 = vld [vmem:[#allocation3 + $0x60] sm:$0xff]
      %v680 = vld [vmem:[#allocation3 + $0x68] sm:$0xff]
      %v681 = vld [vmem:[#allocation3 + $0x70] sm:$0xff]
      %v682 = vld [vmem:[#allocation3 + $0x78] sm:$0xff]
      %v683 = vld [vmem:[#allocation3 + $0x80] sm:$0xff]
      %v684 = vld [vmem:[#allocation3 + $0x88] sm:$0xff]
      %v685 = vld [vmem:[%s2] sm:$0xff]
      %v686 = vld [vmem:[%s2 + $0x8] sm:$0xff]
      %688 = vset.pattern.permute.xlu0 0
      %689 = vperm.xlu0 %688, %v685
      %v690 = vpop.permute.xlu0 %689
      %693 = vset.pattern.permute.xlu0 0
      %694 = vperm.xlu0 %693, %v686
      %v695 = vpop.permute.xlu0 %694
      %v699 = vunpack.c.l.b16 %v665
      %v700 = vunpack.c.h.b16 %v665
      %v701 = vunpack.c.l.b16 %v666
      %v702 = vunpack.c.h.b16 %v666
      %v703 = vpack.c.b16 %v701, %v699
      %v704 = vpack.c.b16 %v702, %v700
      %v724 = vunpack.c.l.b16 %v667
      %v725 = vunpack.c.h.b16 %v667
      %v726 = vunpack.c.l.b16 %v668
      %v727 = vunpack.c.h.b16 %v668
      %v728 = vunpack.c.l.b16 %v669
      %v729 = vunpack.c.h.b16 %v669
      %v730 = vunpack.c.l.b16 %v670
      %v731 = vunpack.c.h.b16 %v670
      %v732 = vunpack.c.l.b16 %v671
      %v733 = vunpack.c.h.b16 %v671
      %v734 = vunpack.c.l.b16 %v672
      %v735 = vunpack.c.h.b16 %v672
      %v736 = vunpack.c.l.b16 %v673
      %v737 = vunpack.c.h.b16 %v673
      %v738 = vunpack.c.l.b16 %v674
      %v739 = vunpack.c.h.b16 %v674
      %v740 = vunpack.c.l.b16 %v675
      %v741 = vunpack.c.h.b16 %v675
      %v742 = vunpack.c.l.b16 %v676
      %v743 = vunpack.c.h.b16 %v676
      %v744 = vunpack.c.l.b16 %v677
      %v745 = vunpack.c.h.b16 %v677
      %v746 = vunpack.c.l.b16 %v678
      %v747 = vunpack.c.h.b16 %v678
      %v748 = vunpack.c.l.b16 %v679
      %v749 = vunpack.c.h.b16 %v679
      %v750 = vunpack.c.l.b16 %v680
      %v751 = vunpack.c.h.b16 %v680
      %v752 = vunpack.c.l.b16 %v681
      %v753 = vunpack.c.h.b16 %v681
      %v754 = vunpack.c.l.b16 %v682
      %v755 = vunpack.c.h.b16 %v682
      %v756 = vunpack.c.l.b16 %v683
      %v757 = vunpack.c.h.b16 %v683
      %v758 = vunpack.c.l.b16 %v684
      %v759 = vunpack.c.h.b16 %v684
      %v760 = vpack.c.b16 %v726, %v724
      %v761 = vpack.c.b16 %v727, %v725
      %v762 = vpack.c.b16 %v730, %v728
      %v763 = vpack.c.b16 %v731, %v729
      %v764 = vpack.c.b16 %v734, %v732
      %v765 = vpack.c.b16 %v735, %v733
      %v766 = vpack.c.b16 %v738, %v736
      %v767 = vpack.c.b16 %v739, %v737
      %v768 = vpack.c.b16 %v742, %v740
      %v769 = vpack.c.b16 %v743, %v741
      %v770 = vpack.c.b16 %v746, %v744
      %v771 = vpack.c.b16 %v747, %v745
      %v772 = vpack.c.b16 %v750, %v748
      %v773 = vpack.c.b16 %v751, %v749
      %v774 = vpack.c.b16 %v754, %v752
      %v775 = vpack.c.b16 %v755, %v753
      %v776 = vpack.c.b16 %v758, %v756
      %v777 = vpack.c.b16 %v759, %v757
      %vm796 = vcmask 130048
      %v798 = vsel %vm796, %v704, 0
      %800 = vmatpush.bf16.msra.mxu0 %v774
      %801 = vmatpush.bf16.msra.mxu0 %v772
      %802 = vmatpush.bf16.msra.mxu0 %v770
      %803 = vmatpush.bf16.msra.mxu0 %v768
      %804 = vmatpush.bf16.msra.mxu0 %v766
      %805 = vmatpush.bf16.msra.mxu0 %v764
      %806 = vmatpush.bf16.msra.mxu0 %v762
      %807 = vmatpush.bf16.msra.mxu0 %v760
      %808 = vmatmul.bf16.gmra.mxu0 %v703
      %v809 = vpop.f32.mrf.mxu0
      %v810 = vadd.f32 %v690, %v809
      %v811 = vpop.f32.mrf.mxu0
      %v812 = vadd.f32 %v695, %v811
      %813 = vdwg.mxu0
      %814 = vmatpush.bf16.msra.mxu0 0
      %815 = vmatpush.bf16.msra.mxu0 0
      %816 = vmatpush.bf16.msra.mxu0 0
      %817 = vmatpush.bf16.msra.mxu0 0
      %818 = vmatpush.bf16.msra.mxu0 0
      %819 = vmatpush.bf16.msra.mxu0 0
      %820 = vmatpush.bf16.msra.mxu0 0
      %821 = vmatpush.bf16.msra.mxu0 %v776
      %822 = vmatmul.bf16.gmra.mxu0 %v798
      %v823 = vpop.f32.mrf.mxu0
      %v824 = vadd.f32 %v810, %v823
      %v825 = vpop.f32.mrf.mxu0
      %v826 = vadd.f32 %v812, %v825
      %827 = vdwg.mxu0
      %828 = vmatpush.bf16.msra.mxu0 %v775
      %829 = vmatpush.bf16.msra.mxu0 %v773
      %830 = vmatpush.bf16.msra.mxu0 %v771
      %831 = vmatpush.bf16.msra.mxu0 %v769
      %832 = vmatpush.bf16.msra.mxu0 %v767
      %833 = vmatpush.bf16.msra.mxu0 %v765
      %834 = vmatpush.bf16.msra.mxu0 %v763
      %835 = vmatpush.bf16.msra.mxu0 %v761
      %836 = vmatmul.bf16.gmra.mxu0 %v703
      %v837 = vpop.f32.mrf.mxu0
      %v838 = vadd.f32 %v690, %v837
      %v839 = vpop.f32.mrf.mxu0
      %v840 = vadd.f32 %v695, %v839
      %841 = vdwg.mxu0
      %842 = vmatpush.bf16.msra.mxu0 0
      %843 = vmatpush.bf16.msra.mxu0 0
      %844 = vmatpush.bf16.msra.mxu0 0
      %845 = vmatpush.bf16.msra.mxu0 0
      %846 = vmatpush.bf16.msra.mxu0 0
      %847 = vmatpush.bf16.msra.mxu0 0
      %848 = vmatpush.bf16.msra.mxu0 0
      %849 = vmatpush.bf16.msra.mxu0 %v777
      %850 = vmatmul.bf16.gmra.mxu0 %v798
      %v851 = vpop.f32.mrf.mxu0
      %v852 = vadd.f32 %v838, %v851
      %v853 = vpop.f32.mrf.mxu0
      %v854 = vadd.f32 %v840, %v853
      %855 = vdwg.mxu0
      %v856 = vmax.f32 %v824, 0.0
      %v857 = vmax.f32 %v852, 0.0
      %v858 = vmax.f32 %v826, 0.0
      %v859 = vmax.f32 %v854, 0.0
      %v860 = vpack.c.bf16 %v857, %v856
      %v861 = vpack.c.bf16 %v859, %v858
      %862 = vst [vmem:[%s170] sm:$0xff] %v860
      %863 = vst [vmem:[%s170 + $0x8] sm:$0xff] %v861
      %p864 = scmp.lt.s32.totalorder %s14, 1
      %s865 = scalar_select %p864, %s14, 1
      %s866 = smul.addr %s865, 4
      %s867 = smul.addr %s866, 4
      %s868 = scalar_lea.vmem %s3, %s867
      // Predicated region
      $region33: #{sipr_forward.6} parent=31 // pred_check
        %p869 = pneg %p100
      $region34: #{sipr_forward.6} parent=31 // pred_check_branch
        %871 = sbr.rel (%p869) target = $region36
      $region35: #{sipr_forward.6} parent=31 // pred_region
        _
      $region36: #{sipr_forward.6} parent=31 // pred_fallthru
        _
    $region32: #{sipr_forward.6} parent=5 // pred_fallthru
      _
    %p872 = scmp.le.s32.totalorder 2, %s9
    // Predicated region
    $region37: #{sipr_forward.6} parent=5 // pred_check
      %p873 = pneg %p872
    $region38: #{sipr_forward.6} parent=5 // pred_check_branch
      %875 = sbr.rel (%p873) target = $region40
    $region39: #{sipr_forward.6} parent=5 // pred_region
      %s876 = ssub.s32 %s9, 2
      // Predicated region
      $region41: #{sipr_forward.6} parent=39 // pred_check
        %p877 = pneg %p106
      $region42: #{sipr_forward.6} parent=39 // pred_check_branch
        %879 = sbr.rel (%p877) target = $region44
      $region43: #{sipr_forward.6} parent=39 // pred_region
        %p880 = scmp.lt.s32.totalorder %s15, 1
        %s881 = scalar_select %p880, %s15, 1
        %s882 = smul.addr %s881, 4
        %s883 = smul.addr %s882, 4
        %s884 = scalar_lea.vmem %s3, %s883
      $region44: #{sipr_forward.6} parent=39 // pred_fallthru
        _
    $region40: #{sipr_forward.6} parent=5 // pred_fallthru
      _
  $region6: #{sipr_forward.6} parent=0 // loop_footer
    %s13 = sadd.s32 1, %s9
  $region7: #{sipr_forward.6} parent=0 // loop_footer_branch
    %8 = sbr.rel target = $region3
  $region8: #{sipr_forward.6} parent=0 // loop_exit
    _

// kernel: sipr_forward.9
$region0: #{sipr_forward.9}
  #allocation0 [shape = 'u32[]', space=smem, size = 0x4, offset = 0x4, fixed_abs, tag = 'smem constant byte address 0x4 - core index']
  #allocation1 [shape = 'u32[72,128]{1,0:T(1,128)}', space=vmem, size = 0x9000, scoped, tag = 'internal scratch']
  #allocation2 [shape = 'bf16[64,201]{1,0:T(8,128)(2,1)}', space=vmem, size = 0x8000, scoped, tag = 'scratch operand']
  #allocation3 [shape = 'bf16[576,64]{1,0:T(8,128)(2,1)}', space=vmem, size = 0x24000, scoped, tag = 'scratch operand']
  %s0 = inlined_call_operand.vmem [shape: bf16[2,64,64], index: 0, kind: input, shape index: {}]
  %s1 = inlined_call_operand.vmem [shape: bf16[32,576], index: 1, kind: input, shape index: {}]
  %s2 = inlined_call_operand.vmem [shape: f32[32,1], index: 2, kind: input, shape index: {}]
  %s3 = inlined_call_operand.vmem [shape: bf16[2,32,64], index: 3, kind: output, shape index: {}]
  %s4 = sld [smem:[#allocation0]]
  $region45: #{sipr_forward.9} parent=0
    _
  %s6 = ssub.s32 1, %s4
  %s7 = scalar_select 0, %s6, %s4
  loop: start=0, step=1, limit=4
  $region2: #{sipr_forward.9} parent=0 // loop_pre_header
    _
  $region3: #{sipr_forward.9} parent=0 // loop_header
    %s9 = sphi 0, %s13
    %p10 = scmp.ge.s32.totalorder %s9, 4
    %s19 = sphi 0, %s21
    %s22 = sphi 0, %s19
    %s23 = sphi 0, %s22
    %s39 = sphi 0, %s23
    %s43 = sphi 0, %s43
    %s45 = sphi 0, %s43
    %s46 = sphi 0, %s45
    %s60 = sphi 0, %s46
    %s64 = sphi 0, %s64
    %s66 = sphi 0, %s64
    %s67 = sphi 0, %s66
    %s81 = sphi 0, %s67
    %s87 = sphi 0, %s89
    %s90 = sphi 0, %s87
    %s91 = sphi 0, %s90
    %s107 = sphi 0, %s91
  $region4: #{sipr_forward.9} parent=0 // loop_header_branch
    %12 = sbr.rel (%p10) target = $region8
  $region5: #{sipr_forward.9} parent=0 // loop_body
    %s14 = ssub.s32 %s9, 1
    %s15 = ssub.s32 %s9, 2
    %s16 = sadd.s32 %s9, 1
    %s17 = ssub.s32 %s9, %s16
    %p18 = scmp.eq.s32.totalorder %s17, 0
    %s20 = sadd.s32 %s19, 1
    %s21 = scalar_select %p18, %s19, %s20
    %p24 = pneg %p18
    %p25 = scmp.eq.s32.totalorder %s9, 1
    %p26 = por %p24, %p25
    %p27 = scmp.ne.s32.totalorder %s19, %s22
    %p28 = scmp.eq.s32.totalorder %s9, 0
    %p29 = por %p27, %p28
    %p30 = scmp.ne.s32.totalorder %s19, %s22
    %p31 = scmp.eq.s32.totalorder %s14, 1
    %p32 = por %p30, %p31
    %p33 = scmp.ne.s32.totalorder %s22, %s23
    %p34 = scmp.eq.s32.totalorder %s14, 0
    %p35 = por %p33, %p34
    %p36 = scmp.ne.s32.totalorder %s22, %s23
    %p37 = scmp.eq.s32.totalorder %s15, 1
    %p38 = por %p36, %p37
    %p40 = scmp.ne.s32.totalorder %s23, %s39
    %p41 = scmp.eq.s32.totalorder %s15, 0
    %p42 = por %p40, %p41
    %s44 = sadd.s32 %s43, 1
    %p47 = scmp.eq.s32.totalorder %s9, 1
    %p48 = scmp.ne.s32.totalorder %s43, %s45
    %p49 = scmp.eq.s32.totalorder %s9, 0
    %p50 = por %p48, %p49
    %p51 = scmp.ne.s32.totalorder %s43, %s45
    %p52 = scmp.eq.s32.totalorder %s14, 1
    %p53 = por %p51, %p52
    %p54 = scmp.ne.s32.totalorder %s45, %s46
    %p55 = scmp.eq.s32.totalorder %s14, 0
    %p56 = por %p54, %p55
    %p57 = scmp.ne.s32.totalorder %s45, %s46
    %p58 = scmp.eq.s32.totalorder %s15, 1
    %p59 = por %p57, %p58
    %p61 = scmp.ne.s32.totalorder %s46, %s60
    %p62 = scmp.eq.s32.totalorder %s15, 0
    %p63 = por %p61, %p62
    %s65 = sadd.s32 %s64, 1
    %p68 = scmp.eq.s32.totalorder %s9, 1
    %p69 = scmp.ne.s32.totalorder %s64, %s66
    %p70 = scmp.eq.s32.totalorder %s9, 0
    %p71 = por %p69, %p70
    %p72 = scmp.ne.s32.totalorder %s64, %s66
    %p73 = scmp.eq.s32.totalorder %s14, 1
    %p74 = por %p72, %p73
    %p75 = scmp.ne.s32.totalorder %s66, %s67
    %p76 = scmp.eq.s32.totalorder %s14, 0
    %p77 = por %p75, %p76
    %p78 = scmp.ne.s32.totalorder %s66, %s67
    %p79 = scmp.eq.s32.totalorder %s15, 1
    %p80 = por %p78, %p79
    %p82 = scmp.ne.s32.totalorder %s67, %s81
    %p83 = scmp.eq.s32.totalorder %s15, 0
    %p84 = por %p82, %p83
    %s85 = ssub.s32 %s9, %s16
    %p86 = scmp.eq.s32.totalorder %s85, 0
    %s88 = sadd.s32 %s87, 1
    %s89 = scalar_select %p86, %s87, %s88
    %p92 = pneg %p86
    %p93 = scmp.eq.s32.totalorder %s9, 1
    %p94 = por %p92, %p93
    %p95 = scmp.ne.s32.totalorder %s87, %s90
    %p96 = scmp.eq.s32.totalorder %s9, 0
    %p97 = por %p95, %p96
    %p98 = scmp.ne.s32.totalorder %s87, %s90
    %p99 = scmp.eq.s32.totalorder %s14, 1
    %p100 = por %p98, %p99
    %p101 = scmp.ne.s32.totalorder %s90, %s91
    %p102 = scmp.eq.s32.totalorder %s14, 0
    %p103 = por %p101, %p102
    %p104 = scmp.ne.s32.totalorder %s90, %s91
    %p105 = scmp.eq.s32.totalorder %s15, 1
    %p106 = por %p104, %p105
    %p108 = scmp.ne.s32.totalorder %s91, %s107
    %p109 = scmp.eq.s32.totalorder %s15, 0
    %p110 = por %p108, %p109
    %p111 = scmp.le.s32.totalorder 1, %s9
    %p112 = scmp.lt.s32.totalorder %s9, 3
    %p113 = pnand %p111, %p112
    %p114 = pneg %p113
    // Predicated region
    $region9: #{sipr_forward.9} parent=5 // pred_check
      _
    $region10: #{sipr_forward.9} parent=5 // pred_check_branch
      %116 = sbr.rel (%p113) target = $region12
    $region11: #{sipr_forward.9} parent=5 // pred_region
      %s117 = ssub.s32 %s9, 1
      // Predicated region
      $region13: #{sipr_forward.9} parent=11 // pred_check
        %p118 = pneg %p56
      $region14: #{sipr_forward.9} parent=11 // pred_check_branch
        %120 = sbr.rel (%p118) target = $region16
      $region15: #{sipr_forward.9} parent=11 // pred_region
        _
      $region16: #{sipr_forward.9} parent=11 // pred_fallthru
        _
      // Predicated region
      $region17: #{sipr_forward.9} parent=11 // pred_check
        %p121 = pneg %p77
      $region18: #{sipr_forward.9} parent=11 // pred_check_branch
        %123 = sbr.rel (%p121) target = $region20
      $region19: #{sipr_forward.9} parent=11 // pred_region
        _
      $region20: #{sipr_forward.9} parent=11 // pred_fallthru
        _
    $region12: #{sipr_forward.9} parent=5 // pred_fallthru
      _
    %p124 = scmp.lt.s32.totalorder %s9, 2
    // Predicated region
    $region21: #{sipr_forward.9} parent=5 // pred_check
      %p125 = pneg %p124
    $region22: #{sipr_forward.9} parent=5 // pred_check_branch
      %127 = sbr.rel (%p125) target = $region24
    $region23: #{sipr_forward.9} parent=5 // pred_region
      // Predicated region
      $region25: #{sipr_forward.9} parent=23 // pred_check
        %p128 = pneg %p29
      $region26: #{sipr_forward.9} parent=23 // pred_check_branch
        %130 = sbr.rel (%p128) target = $region28
      $region27: #{sipr_forward.9} parent=23 // pred_region
        %p131 = scmp.lt.s32.totalorder %s9, 1
        %s132 = scalar_select %p131, %s9, 1
        %s133 = smul.addr %s132, 8
        %s134 = smul.addr %s133, 4
        %s135 = scalar_lea.vmem %s0, %s134
      $region28: #{sipr_forward.9} parent=23 // pred_fallthru
        _
    $region24: #{sipr_forward.9} parent=5 // pred_fallthru
      _
    %p136 = scmp.le.s32.totalorder 1, %s9
    %p137 = scmp.lt.s32.totalorder %s9, 3
    %p138 = pnand %p136, %p137
    %p139 = pneg %p138
    // Predicated region
    $region29: #{sipr_forward.9} parent=5 // pred_check
      _
    $region30: #{sipr_forward.9} parent=5 // pred_check_branch
      %141 = sbr.rel (%p138) target = $region32
    $region31: #{sipr_forward.9} parent=5 // pred_region
      %s142 = ssub.s32 %s9, 1
      %p143 = scmp.lt.s32.totalorder %s14, 1
      %s144 = scalar_select %p143, %s14, 1
      %s145 = smul.addr %s144, 8
      %s146 = smul.addr %s145, 4
      %s147 = scalar_lea.vmem %s0, %s146
      %p148 = pneg %p35
      %p149 = pneg %p32
      %p150 = pneg %p56
      %p151 = pneg %p53
      %p152 = pneg %p77
      %p153 = pneg %p74
      %p154 = pneg %p103
      %p155 = pneg %p100
      %p156 = scmp.lt.s32.totalorder %s14, 1
      %s157 = scalar_select %p156, %s14, 1
      %s158 = smul.addr %s157, 4
      %s159 = smul.addr %s158, 4
      %s160 = scalar_lea.vmem %s3, %s159
      %p161 = scmp.lt.s32.totalorder %s14, 1
      %s162 = scalar_select %p161, %s14, 1
      %s163 = smul.addr %s162, 8
      %s164 = smul.addr %s163, 4
      %s165 = scalar_lea.vmem %s0, %s164
      %p166 = scmp.lt.s32.totalorder %s14, 1
      %s167 = scalar_select %p166, %s14, 1
      %s168 = smul.addr %s167, 4
      %s169 = smul.addr %s168, 4
      %s170 = scalar_lea.vmem %s3, %s169
      %174 = vst [vmem:[#allocation2] sm:$0xf] 0
      %175 = vst [vmem:[#allocation2 + $0x8] sm:$0xf] 0
      %176 = vst [vmem:[#allocation2 + $0x10] sm:$0xf] 0
      %177 = vst [vmem:[#allocation2 + $0x18] sm:$0xf] 0
      %178 = vst [vmem:[#allocation2 + $0x20] sm:$0xf] 0
      %179 = vst [vmem:[#allocation2 + $0x28] sm:$0xf] 0
      %180 = vst [vmem:[#allocation2 + $0x30] sm:$0xf] 0
      %181 = vst [vmem:[#allocation2 + $0x38] sm:$0xf] 0
      %vm182 = vcmask 593408
      %183 = vst.msk [vmem:[#allocation2 + $0x4] sm:$0xf] %vm182, 0
      %184 = vst.msk [vmem:[#allocation2 + $0xc] sm:$0xf] %vm182, 0
      %185 = vst.msk [vmem:[#allocation2 + $0x14] sm:$0xf] %vm182, 0
      %186 = vst.msk [vmem:[#allocation2 + $0x1c] sm:$0xf] %vm182, 0
      %187 = vst.msk [vmem:[#allocation2 + $0x24] sm:$0xf] %vm182, 0
      %188 = vst.msk [vmem:[#allocation2 + $0x2c] sm:$0xf] %vm182, 0
      %189 = vst.msk [vmem:[#allocation2 + $0x34] sm:$0xf] %vm182, 0
      %190 = vst.msk [vmem:[#allocation2 + $0x3c] sm:$0xf] %vm182, 0
      %v191 = vld [vmem:[%s165] sm:$0xf]
      %v192 = vld [vmem:[%s165 + $0x4] sm:$0xf]
      %v193 = vld [vmem:[%s165 + $0x8] sm:$0xf]
      %v194 = vld [vmem:[%s165 + $0xc] sm:$0xf]
      %v195 = vld [vmem:[%s165 + $0x10] sm:$0xf]
      %v196 = vld [vmem:[%s165 + $0x14] sm:$0xf]
      %v197 = vld [vmem:[%s165 + $0x18] sm:$0xf]
      %v198 = vld [vmem:[%s165 + $0x1c] sm:$0xf]
      %vm199 = vcmask 519168
      %200 = vst.msk [vmem:[#allocation2 + $0x4] sm:$0xf] %vm199, %v191
      %201 = vst.msk [vmem:[#allocation2 + $0xc] sm:$0xf] %vm199, %v192
      %202 = vst.msk [vmem:[#allocation2 + $0x14] sm:$0xf] %vm199, %v193
      %203 = vst.msk [vmem:[#allocation2 + $0x1c] sm:$0xf] %vm199, %v194
      %204 = vst.msk [vmem:[#allocation2 + $0x24] sm:$0xf] %vm199, %v195
      %205 = vst.msk [vmem:[#allocation2 + $0x2c] sm:$0xf] %vm199, %v196
      %206 = vst.msk [vmem:[#allocation2 + $0x34] sm:$0xf] %vm199, %v197
      %207 = vst.msk [vmem:[#allocation2 + $0x3c] sm:$0xf] %vm199, %v198
      %v208 = vlaneseq
      %v209 = vand.u32 %v208, 127
      %v210 = vand.u32 %v209, 7
      %v211 = vld [vmem:[#allocation2] sm:$0xff]
      %v212 = vld [vmem:[#allocation2 + $0x8] sm:$0xff]
      %v213 = vld [vmem:[#allocation2 + $0x10] sm:$0xff]
      %v214 = vld [vmem:[#allocation2 + $0x18] sm:$0xff]
      %v215 = vld [vmem:[#allocation2 + $0x20] sm:$0xff]
      %v216 = vld [vmem:[#allocation2 + $0x28] sm:$0xff]
      %v217 = vld [vmem:[#allocation2 + $0x30] sm:$0xff]
      %v218 = vld [vmem:[#allocation2 + $0x38] sm:$0xff]
      %vm219 = vcmp.ge.s32.totalorder %v209, 8
      %vm220 = vcmp.ge.s32.totalorder %v210, 1
      %vm221 = vmand %vm219, %vm220
      %v222 = vsel %vm221, 1, 0
      %vm223 = vcmp.eq.s32.totalorder %v222, 1
      %vm224 = vmpackc.low %vm223, %vm223
      %v225 = vsel %vm224, 65537, 0
      %226 = vrot.lane.b32.xlu0 %v225, 119
      %v227 = vpop.permute.xlu0 %226
      %v228 = vrot.slane %v227, 4
      %vm229 = vcmask 973824
      %v230 = vsel %vm229, %v228, %v227
      %v231 = vunpack.c.l.b16 %v230
      %v232 = vunpack.c.h.b16 %v230
      %v233 = vunpack.c.l.b16 0
      %v234 = vunpack.c.h.b16 0
      %vm235 = vcmp.ne.s32.totalorder %v231, %v233
      %vm236 = vcmp.ne.s32.totalorder %v232, %v234
      %vm237 = vmpackc.low %vm236, %vm235
      %v238 = vsel %vm237, %v211, 0
      %v239 = vsel %vm237, %v212, 0
      %v240 = vsel %vm237, %v213, 0
      %v241 = vsel %vm237, %v214, 0
      %v242 = vsel %vm237, %v215, 0
      %v243 = vsel %vm237, %v216, 0
      %v244 = vsel %vm237, %v217, 0
      %v245 = vsel %vm237, %v218, 0
      %254 = vrot.lane.b32.xlu0 %v238, 9
      %v255 = vpop.permute.xlu0 %254
      %256 = vrot.lane.b32.xlu0 %v239, 9
      %v257 = vpop.permute.xlu0 %256
      %258 = vrot.lane.b32.xlu0 %v240, 9
      %v259 = vpop.permute.xlu0 %258
      %260 = vrot.lane.b32.xlu0 %v241, 9
      %v261 = vpop.permute.xlu0 %260
      %262 = vrot.lane.b32.xlu0 %v242, 9
      %v263 = vpop.permute.xlu0 %262
      %264 = vrot.lane.b32.xlu0 %v243, 9
      %v265 = vpop.permute.xlu0 %264
      %266 = vrot.lane.b32.xlu0 %v244, 9
      %v267 = vpop.permute.xlu0 %266
      %268 = vrot.lane.b32.xlu0 %v245, 9
      %v269 = vpop.permute.xlu0 %268
      %v270 = vrot.slane %v255, 4
      %v271 = vrot.slane %v257, 4
      %v272 = vrot.slane %v259, 4
      %v273 = vrot.slane %v261, 4
      %v274 = vrot.slane %v263, 4
      %v275 = vrot.slane %v265, 4
      %v276 = vrot.slane %v267, 4
      %v277 = vrot.slane %v269, 4
      %vm278 = vcmask 72704
      %v279 = vsel %vm278, %v255, %v270
      %v280 = vsel %vm278, %v257, %v271
      %v281 = vsel %vm278, %v259, %v272
      %v282 = vsel %vm278, %v261, %v273
      %v283 = vsel %vm278, %v263, %v274
      %v284 = vsel %vm278, %v265, %v275
      %v285 = vsel %vm278, %v267, %v276
      %v286 = vsel %vm278, %v269, %v277
      %295 = vst.msk [vmem:[#allocation3] sm:$0xf] %vm199, %v279
      %296 = vst.msk [vmem:[#allocation3 + $0x4] sm:$0xf] %vm199, %v280
      %297 = vst.msk [vmem:[#allocation3 + $0x8] sm:$0xf] %vm199, %v281
      %298 = vst.msk [vmem:[#allocation3 + $0xc] sm:$0xf] %vm199, %v282
      %299 = vst.msk [vmem:[#allocation3 + $0x10] sm:$0xf] %vm199, %v283
      %300 = vst.msk [vmem:[#allocation3 + $0x14] sm:$0xf] %vm199, %v284
      %301 = vst.msk [vmem:[#allocation3 + $0x18] sm:$0xf] %vm199, %v285
      %302 = vst.msk [vmem:[#allocation3 + $0x1c] sm:$0xf] %vm199, %v286
      %v303 = vld [vmem:[#allocation2] sm:$0xff]
      %v304 = vld [vmem:[#allocation2 + $0x8] sm:$0xff]
      %v305 = vld [vmem:[#allocation2 + $0x10] sm:$0xff]
      %v306 = vld [vmem:[#allocation2 + $0x18] sm:$0xff]
      %v307 = vld [vmem:[#allocation2 + $0x20] sm:$0xff]
      %v308 = vld [vmem:[#allocation2 + $0x28] sm:$0xff]
      %v309 = vld [vmem:[#allocation2 + $0x30] sm:$0xff]
      %v310 = vld [vmem:[#allocation2 + $0x38] sm:$0xff]
      %v311 = vsel %vm219, 1, 0
      %vm312 = vcmp.eq.s32.totalorder %v311, 1
      %vm313 = vmpackc.low %vm312, %vm312
      %v314 = vsel %vm313, 65537, 0
      %315 = vrot.lane.b32.xlu0 %v314, 120
      %v316 = vpop.permute.xlu0 %315
      %v317 = vrot.slane %v316, 4
      %vm318 = vcmask 982016
      %v319 = vsel %vm318, %v317, %v316
      %v320 = vunpack.c.l.b16 %v319
      %v321 = vunpack.c.h.b16 %v319
      %v322 = vunpack.c.l.b16 0
      %v323 = vunpack.c.h.b16 0
      %vm324 = vcmp.ne.s32.totalorder %v320, %v322
      %vm325 = vcmp.ne.s32.totalorder %v321, %v323
      %vm326 = vmpackc.low %vm325, %vm324
      %v327 = vsel %vm326, %v303, 0
      %v328 = vsel %vm326, %v304, 0
      %v329 = vsel %vm326, %v305, 0
      %v330 = vsel %vm326, %v306, 0
      %v331 = vsel %vm326, %v307, 0
      %v332 = vsel %vm326, %v308, 0
      %v333 = vsel %vm326, %v309, 0
      %v334 = vsel %vm326, %v310, 0
      %343 = vrot.lane.b32.xlu0 %v327, 8
      %v344 = vpop.permute.xlu0 %343
      %345 = vrot.lane.b32.xlu0 %v328, 8
      %v346 = vpop.permute.xlu0 %345
      %347 = vrot.lane.b32.xlu0 %v329, 8
      %v348 = vpop.permute.xlu0 %347
      %349 = vrot.lane.b32.xlu0 %v330, 8
      %v350 = vpop.permute.xlu0 %349
      %351 = vrot.lane.b32.xlu0 %v331, 8
      %v352 = vpop.permute.xlu0 %351
      %353 = vrot.lane.b32.xlu0 %v332, 8
      %v354 = vpop.permute.xlu0 %353
      %355 = vrot.lane.b32.xlu0 %v333, 8
      %v356 = vpop.permute.xlu0 %355
      %357 = vrot.lane.b32.xlu0 %v334, 8
      %v358 = vpop.permute.xlu0 %357
      %v359 = vrot.slane %v344, 4
      %v360 = vrot.slane %v346, 4
      %v361 = vrot.slane %v348, 4
      %v362 = vrot.slane %v350, 4
      %v363 = vrot.slane %v352, 4
      %v364 = vrot.slane %v354, 4
      %v365 = vrot.slane %v356, 4
      %v366 = vrot.slane %v358, 4
      %vm367 = vcmask 64512
      %v368 = vsel %vm367, %v344, %v359
      %v369 = vsel %vm367, %v346, %v360
      %v370 = vsel %vm367, %v348, %v361
      %v371 = vsel %vm367, %v350, %v362
      %v372 = vsel %vm367, %v352, %v363
      %v373 = vsel %vm367, %v354, %v364
      %v374 = vsel %vm367, %v356, %v365
      %v375 = vsel %vm367, %v358, %v366
      %384 = vst.msk [vmem:[#allocation3 + $0x20] sm:$0xf] %vm199, %v368
      %385 = vst.msk [vmem:[#allocation3 + $0x24] sm:$0xf] %vm199, %v369
      %386 = vst.msk [vmem:[#allocation3 + $0x28] sm:$0xf] %vm199, %v370
      %387 = vst.msk [vmem:[#allocation3 + $0x2c] sm:$0xf] %vm199, %v371
      %388 = vst.msk [vmem:[#allocation3 + $0x30] sm:$0xf] %vm199, %v372
      %389 = vst.msk [vmem:[#allocation3 + $0x34] sm:$0xf] %vm199, %v373
      %390 = vst.msk [vmem:[#allocation3 + $0x38] sm:$0xf] %vm199, %v374
      %391 = vst.msk [vmem:[#allocation3 + $0x3c] sm:$0xf] %vm199, %v375
      %v392 = vld [vmem:[#allocation2] sm:$0xff]
      %v393 = vld [vmem:[#allocation2 + $0x8] sm:$0xff]
      %v394 = vld [vmem:[#allocation2 + $0x10] sm:$0xff]
      %v395 = vld [vmem:[#allocation2 + $0x18] sm:$0xff]
      %v396 = vld [vmem:[#allocation2 + $0x20] sm:$0xff]
      %v397 = vld [vmem:[#allocation2 + $0x28] sm:$0xff]
      %v398 = vld [vmem:[#allocation2 + $0x30] sm:$0xff]
      %v399 = vld [vmem:[#allocation2 + $0x38] sm:$0xff]
      %vm400 = vcmp.le.s32.totalorder %v210, 6
      %vm401 = vmand %vm219, %vm400
      %v402 = vsel %vm401, 1, 0
      %vm403 = vcmp.eq.s32.totalorder %v402, 1
      %vm404 = vmpackc.low %vm403, %vm403
      %v405 = vsel %vm404, 65537, 0
      %406 = vrot.lane.b32.xlu0 %v405, 121
      %v407 = vpop.permute.xlu0 %406
      %v408 = vrot.slane %v407, 4
      %vm409 = vcmask 990208
      %v410 = vsel %vm409, %v408, %v407
      %v411 = vunpack.c.l.b16 %v410
      %v412 = vunpack.c.h.b16 %v410
      %v413 = vunpack.c.l.b16 0
      %v414 = vunpack.c.h.b16 0
      %vm415 = vcmp.ne.s32.totalorder %v411, %v413
      %vm416 = vcmp.ne.s32.totalorder %v412, %v414
      %vm417 = vmpackc.low %vm416, %vm415
      %v418 = vsel %vm417, %v392, 0
      %v419 = vsel %vm417, %v393, 0
      %v420 = vsel %vm417, %v394, 0
      %v421 = vsel %vm417, %v395, 0
      %v422 = vsel %vm417, %v396, 0
      %v423 = vsel %vm417, %v397, 0
      %v424 = vsel %vm417, %v398, 0
      %v425 = vsel %vm417, %v399, 0
      %434 = vrot.lane.b32.xlu0 %v418, 7
      %v435 = vpop.permute.xlu0 %434
      %436 = vrot.lane.b32.xlu0 %v419, 7
      %v437 = vpop.permute.xlu0 %436
      %438 = vrot.lane.b32.xlu0 %v420, 7
      %v439 = vpop.permute.xlu0 %438
      %440 = vrot.lane.b32.xlu0 %v421, 7
      %v441 = vpop.permute.xlu0 %440
      %442 = vrot.lane.b32.xlu0 %v422, 7
      %v443 = vpop.permute.xlu0 %442
      %444 = vrot.lane.b32.xlu0 %v423, 7
      %v445 = vpop.permute.xlu0 %444
      %446 = vrot.lane.b32.xlu0 %v424, 7
      %v447 = vpop.permute.xlu0 %446
      %448 = vrot.lane.b32.xlu0 %v425, 7
      %v449 = vpop.permute.xlu0 %448
      %v450 = vrot.slane %v435, 4
      %v451 = vrot.slane %v437, 4
      %v452 = vrot.slane %v439, 4
      %v453 = vrot.slane %v441, 4
      %v454 = vrot.slane %v443, 4
      %v455 = vrot.slane %v445, 4
      %v456 = vrot.slane %v447, 4
      %v457 = vrot.slane %v449, 4
      %vm458 = vcmask 56320
      %v459 = vsel %vm458, %v435, %v450
      %v460 = vsel %vm458, %v437, %v451
      %v461 = vsel %vm458, %v439, %v452
      %v462 = vsel %vm458, %v441, %v453
      %v463 = vsel %vm458, %v443, %v454
      %v464 = vsel %vm458, %v445, %v455
      %v465 = vsel %vm458, %v447, %v456
      %v466 = vsel %vm458, %v449, %v457
      %475 = vst.msk [vmem:[#allocation3 + $0x40] sm:$0xf] %vm199, %v459
      %476 = vst.msk [vmem:[#allocation3 + $0x44] sm:$0xf] %vm199, %v460
      %477 = vst.msk [vmem:[#allocation3 + $0x48] sm:$0xf] %vm199, %v461
      %478 = vst.msk [vmem:[#allocation3 + $0x4c] sm:$0xf] %vm199, %v462
      %479 = vst.msk [vmem:[#allocation3 + $0x50] sm:$0xf] %vm199, %v463
      %480 = vst.msk [vmem:[#allocation3 + $0x54] sm:$0xf] %vm199, %v464
      %481 = vst.msk [vmem:[#allocation3 + $0x58] sm:$0xf] %vm199, %v465
      %482 = vst.msk [vmem:[#allocation3 + $0x5c] sm:$0xf] %vm199, %v466
      %v483 = vld [vmem:[#allocation2] sm:$0xff]
      %v484 = vld [vmem:[#allocation2 + $0x8] sm:$0xff]
      %v485 = vld [vmem:[#allocation2 + $0x10] sm:$0xff]
      %v486 = vld [vmem:[#allocation2 + $0x18] sm:$0xff]
      %v487 = vld [vmem:[#allocation2 + $0x20] sm:$0xff]
      %v488 = vld [vmem:[#allocation2 + $0x28] sm:$0xff]
      %v489 = vld [vmem:[#allocation2 + $0x30] sm:$0xff]
      %v490 = vld [vmem:[#allocation2 + $0x38] sm:$0xff]
      %v491 = vsel %vm220, 1, 0
      %vm492 = vcmp.eq.s32.totalorder %v491, 1
      %vm493 = vmpackc.low %vm492, %vm492
      %v494 = vsel %vm493, 65537, 0
      %495 = vrot.lane.b32.xlu0 %v494, 127
      %v496 = vpop.permute.xlu0 %495
      %v497 = vrot.slane %v496, 4
      %vm498 = vcmask 1039360
      %v499 = vsel %vm498, %v497, %v496
      %v500 = vunpack.c.l.b16 %v499
      %v501 = vunpack.c.h.b16 %v499
      %v502 = vunpack.c.l.b16 0
      %v503 = vunpack.c.h.b16 0
      %vm504 = vcmp.ne.s32.totalorder %v500, %v502
      %vm505 = vcmp.ne.s32.totalorder %v501, %v503
      %vm506 = vmpackc.low %vm505, %vm504
      %v507 = vsel %vm506, %v483, 0
      %v508 = vsel %vm506, %v484, 0
      %v509 = vsel %vm506, %v485, 0
      %v510 = vsel %vm506, %v486, 0
      %v511 = vsel %vm506, %v487, 0
      %v512 = vsel %vm506, %v488, 0
      %v513 = vsel %vm506, %v489, 0
      %v514 = vsel %vm506, %v490, 0
      %523 = vrot.lane.b32.xlu0 %v507, 1
      %v524 = vpop.permute.xlu0 %523
      %525 = vrot.lane.b32.xlu0 %v508, 1
      %v526 = vpop.permute.xlu0 %525
      %527 = vrot.lane.b32.xlu0 %v509, 1
      %v528 = vpop.permute.xlu0 %527
      %529 = vrot.lane.b32.xlu0 %v510, 1
      %v530 = vpop.permute.xlu0 %529
      %531 = vrot.lane.b32.xlu0 %v511, 1
      %v532 = vpop.permute.xlu0 %531
      %533 = vrot.lane.b32.xlu0 %v512, 1
      %v534 = vpop.permute.xlu0 %533
      %535 = vrot.lane.b32.xlu0 %v513, 1
      %v536 = vpop.permute.xlu0 %535
      %537 = vrot.lane.b32.xlu0 %v514, 1
      %v538 = vpop.permute.xlu0 %537
      %v539 = vrot.slane %v524, 4
      %v540 = vrot.slane %v526, 4
      %v541 = vrot.slane %v528, 4
      %v542 = vrot.slane %v530, 4
      %v543 = vrot.slane %v532, 4
      %v544 = vrot.slane %v534, 4
      %v545 = vrot.slane %v536, 4
      %v546 = vrot.slane %v538, 4
      %vm547 = vcmask 7168
      %v548 = vsel %vm547, %v524, %v539
      %v549 = vsel %vm547, %v526, %v540
      %v550 = vsel %vm547, %v528, %v541
      %v551 = vsel %vm547, %v530, %v542
      %v552 = vsel %vm547, %v532, %v543
      %v553 = vsel %vm547, %v534, %v544
      %v554 = vsel %vm547, %v536, %v545
      %v555 = vsel %vm547, %v538, %v546
      %564 = vst.msk [vmem:[#allocation3 + $0x60] sm:$0xf] %vm199, %v548
      %565 = vst.msk [vmem:[#allocation3 + $0x64] sm:$0xf] %vm199, %v549
      %566 = vst.msk [vmem:[#allocation3 + $0x68] sm:$0xf] %vm199, %v550
      %567 = vst.msk [vmem:[#allocation3 + $0x6c] sm:$0xf] %vm199, %v551
      %568 = vst.msk [vmem:[#allocation3 + $0x70] sm:$0xf] %vm199, %v552
      %569 = vst.msk [vmem:[#allocation3 + $0x74] sm:$0xf] %vm199, %v553
      %570 = vst.msk [vmem:[#allocation3 + $0x78] sm:$0xf] %vm199, %v554
      %571 = vst.msk [vmem:[#allocation3 + $0x7c] sm:$0xf] %vm199, %v555
      %v572 = vld [vmem:[#allocation2 + $0x4] sm:$0xf]
      %v573 = vld [vmem:[#allocation2 + $0xc] sm:$0xf]
      %v574 = vld [vmem:[#allocation2 + $0x14] sm:$0xf]
      %v575 = vld [vmem:[#allocation2 + $0x1c] sm:$0xf]
      %v576 = vld [vmem:[#allocation2 + $0x24] sm:$0xf]
      %v577 = vld [vmem:[#allocation2 + $0x2c] sm:$0xf]
      %v578 = vld [vmem:[#allocation2 + $0x34] sm:$0xf]
      %v579 = vld [vmem:[#allocation2 + $0x3c] sm:$0xf]
      %580 = vst.msk [vmem:[#allocation3 + $0x80] sm:$0xf] %vm199, %v572
      %581 = vst.msk [vmem:[#allocation3 + $0x84] sm:$0xf] %vm199, %v573
      %582 = vst.msk [vmem:[#allocation3 + $0x88] sm:$0xf] %vm199, %v574
      %583 = vst.msk [vmem:[#allocation3 + $0x8c] sm:$0xf] %vm199, %v575
      %584 = vst.msk [vmem:[#allocation3 + $0x90] sm:$0xf] %vm199, %v576
      %585 = vst.msk [vmem:[#allocation3 + $0x94] sm:$0xf] %vm199, %v577
      %586 = vst.msk [vmem:[#allocation3 + $0x98] sm:$0xf] %vm199, %v578
      %587 = vst.msk [vmem:[#allocation3 + $0x9c] sm:$0xf] %vm199, %v579
      %v588 = vld [vmem:[#allocation2 + $0x4] sm:$0xf]
      %v589 = vld [vmem:[#allocation2 + $0xc] sm:$0xf]
      %v590 = vld [vmem:[#allocation2 + $0x14] sm:$0xf]
      %v591 = vld [vmem:[#allocation2 + $0x1c] sm:$0xf]
      %v592 = vld [vmem:[#allocation2 + $0x24] sm:$0xf]
      %v593 = vld [vmem:[#allocation2 + $0x2c] sm:$0xf]
      %v594 = vld [vmem:[#allocation2 + $0x34] sm:$0xf]
      %v595 = vld [vmem:[#allocation2 + $0x3c] sm:$0xf]
      %v596 = vsel %vm400, 1, 0
      %vm597 = vcmp.eq.s32.totalorder %v596, 1
      %vm598 = vmpackc.low %vm597, %vm597
      %v599 = vsel %vm598, 65537, 0
      %600 = vrot.lane.b32.xlu0 %v599, 1
      %v601 = vpop.permute.xlu0 %600
      %v602 = vunpack.c.l.b16 %v601
      %v603 = vunpack.c.h.b16 %v601
      %v604 = vunpack.c.l.b16 0
      %v605 = vunpack.c.h.b16 0
      %vm606 = vcmp.ne.s32.totalorder %v602, %v604
      %vm607 = vcmp.ne.s32.totalorder %v603, %v605
      %vm608 = vmpackc.low %vm607, %vm606
      %v609 = vsel %vm608, %v588, 0
      %v610 = vsel %vm608, %v589, 0
      %v611 = vsel %vm608, %v590, 0
      %v612 = vsel %vm608, %v591, 0
      %v613 = vsel %vm608, %v592, 0
      %v614 = vsel %vm608, %v593, 0
      %v615 = vsel %vm608, %v594, 0
      %v616 = vsel %vm608, %v595, 0
      %625 = vrot.lane.b32.xlu0 %v609, 127
      %v626 = vpop.permute.xlu0 %625
      %627 = vrot.lane.b32.xlu0 %v610, 127
      %v628 = vpop.permute.xlu0 %627
      %629 = vrot.lane.b32.xlu0 %v611, 127
      %v630 = vpop.permute.xlu0 %629
      %631 = vrot.lane.b32.xlu0 %v612, 127
      %v632 = vpop.permute.xlu0 %631
      %633 = vrot.lane.b32.xlu0 %v613, 127
      %v634 = vpop.permute.xlu0 %633
      %635 = vrot.lane.b32.xlu0 %v614, 127
      %v636 = vpop.permute.xlu0 %635
      %637 = vrot.lane.b32.xlu0 %v615, 127
      %v638 = vpop.permute.xlu0 %637
      %639 = vrot.lane.b32.xlu0 %v616, 127
      %v640 = vpop.permute.xlu0 %639
      %649 = vst.msk [vmem:[#allocation3 + $0xa0] sm:$0xf] %vm199, %v626
      %650 = vst.msk [vmem:[#allocation3 + $0xa4] sm:$0xf] %vm199, %v628
      %651 = vst.msk [vmem:[#allocation3 + $0xa8] sm:$0xf] %vm199, %v630
      %652 = vst.msk [vmem:[#allocation3 + $0xac] sm:$0xf] %vm199, %v632
      %653 = vst.msk [vmem:[#allocation3 + $0xb0] sm:$0xf] %vm199, %v634
      %654 = vst.msk [vmem:[#allocation3 + $0xb4] sm:$0xf] %vm199, %v636
      %655 = vst.msk [vmem:[#allocation3 + $0xb8] sm:$0xf] %vm199, %v638
      %656 = vst.msk [vmem:[#allocation3 + $0xbc] sm:$0xf] %vm199, %v640
      %v657 = vld [vmem:[#allocation2 + $0x4] sm:$0xf]
      %v658 = vld [vmem:[#allocation2 + $0xc] sm:$0xf]
      %v659 = vld [vmem:[#allocation2 + $0x14] sm:$0xf]
      %v660 = vld [vmem:[#allocation2 + $0x1c] sm:$0xf]
      %v661 = vld [vmem:[#allocation2 + $0x24] sm:$0xf]
      %v662 = vld [vmem:[#allocation2 + $0x2c] sm:$0xf]
      %v663 = vld [vmem:[#allocation2 + $0x34] sm:$0xf]
      %v664 = vld [vmem:[#allocation2 + $0x3c] sm:$0xf]
      %vm665 = vcmp.lt.s32.totalorder %v209, 56
      %vm666 = vmand %vm665, %vm220
      %v667 = vsel %vm666, 1, 0
      %vm668 = vcmp.eq.s32.totalorder %v667, 1
      %vm669 = vmpackc.low %vm668, %vm668
      %v670 = vsel %vm669, 65537, 0
      %671 = vrot.lane.b32.xlu0 %v670, 7
      %v672 = vpop.permute.xlu0 %671
      %v673 = vunpack.c.l.b16 %v672
      %v674 = vunpack.c.h.b16 %v672
      %v675 = vunpack.c.l.b16 0
      %v676 = vunpack.c.h.b16 0
      %vm677 = vcmp.ne.s32.totalorder %v673, %v675
      %vm678 = vcmp.ne.s32.totalorder %v674, %v676
      %vm679 = vmpackc.low %vm678, %vm677
      %v680 = vsel %vm679, %v657, 0
      %v681 = vsel %vm679, %v658, 0
      %v682 = vsel %vm679, %v659, 0
      %v683 = vsel %vm679, %v660, 0
      %v684 = vsel %vm679, %v661, 0
      %v685 = vsel %vm679, %v662, 0
      %v686 = vsel %vm679, %v663, 0
      %v687 = vsel %vm679, %v664, 0
      %696 = vrot.lane.b32.xlu0 %v680, 121
      %v697 = vpop.permute.xlu0 %696
      %698 = vrot.lane.b32.xlu0 %v681, 121
      %v699 = vpop.permute.xlu0 %698
      %700 = vrot.lane.b32.xlu0 %v682, 121
      %v701 = vpop.permute.xlu0 %700
      %702 = vrot.lane.b32.xlu0 %v683, 121
      %v703 = vpop.permute.xlu0 %702
      %704 = vrot.lane.b32.xlu0 %v684, 121
      %v705 = vpop.permute.xlu0 %704
      %706 = vrot.lane.b32.xlu0 %v685, 121
      %v707 = vpop.permute.xlu0 %706
      %708 = vrot.lane.b32.xlu0 %v686, 121
      %v709 = vpop.permute.xlu0 %708
      %710 = vrot.lane.b32.xlu0 %v687, 121
      %v711 = vpop.permute.xlu0 %710
      %720 = vst.msk [vmem:[#allocation3 + $0xc0] sm:$0xf] %vm199, %v697
      %721 = vst.msk [vmem:[#allocation3 + $0xc4] sm:$0xf] %vm199, %v699
      %722 = vst.msk [vmem:[#allocation3 + $0xc8] sm:$0xf] %vm199, %v701
      %723 = vst.msk [vmem:[#allocation3 + $0xcc] sm:$0xf] %vm199, %v703
      %724 = vst.msk [vmem:[#allocation3 + $0xd0] sm:$0xf] %vm199, %v705
      %725 = vst.msk [vmem:[#allocation3 + $0xd4] sm:$0xf] %vm199, %v707
      %726 = vst.msk [vmem:[#allocation3 + $0xd8] sm:$0xf] %vm199, %v709
      %727 = vst.msk [vmem:[#allocation3 + $0xdc] sm:$0xf] %vm199, %v711
      %v728 = vld [vmem:[#allocation2 + $0x4] sm:$0xf]
      %v729 = vld [vmem:[#allocation2 + $0xc] sm:$0xf]
      %v730 = vld [vmem:[#allocation2 + $0x14] sm:$0xf]
      %v731 = vld [vmem:[#allocation2 + $0x1c] sm:$0xf]
      %v732 = vld [vmem:[#allocation2 + $0x24] sm:$0xf]
      %v733 = vld [vmem:[#allocation2 + $0x2c] sm:$0xf]
      %v734 = vld [vmem:[#allocation2 + $0x34] sm:$0xf]
      %v735 = vld [vmem:[#allocation2 + $0x3c] sm:$0xf]
      %v736 = vsel %vm665, 1, 0
      %vm737 = vcmp.eq.s32.totalorder %v736, 1
      %vm738 = vmpackc.low %vm737, %vm737
      %v739 = vsel %vm738, 65537, 0
      %740 = vrot.lane.b32.xlu0 %v739, 8
      %v741 = vpop.permute.xlu0 %740
      %v742 = vunpack.c.l.b16 %v741
      %v743 = vunpack.c.h.b16 %v741
      %v744 = vunpack.c.l.b16 0
      %v745 = vunpack.c.h.b16 0
      %vm746 = vcmp.ne.s32.totalorder %v742, %v744
      %vm747 = vcmp.ne.s32.totalorder %v743, %v745
      %vm748 = vmpackc.low %vm747, %vm746
      %v749 = vsel %vm748, %v728, 0
      %v750 = vsel %vm748, %v729, 0
      %v751 = vsel %vm748, %v730, 0
      %v752 = vsel %vm748, %v731, 0
      %v753 = vsel %vm748, %v732, 0
      %v754 = vsel %vm748, %v733, 0
      %v755 = vsel %vm748, %v734, 0
      %v756 = vsel %vm748, %v735, 0
      %765 = vrot.lane.b32.xlu0 %v749, 120
      %v766 = vpop.permute.xlu0 %765
      %767 = vrot.lane.b32.xlu0 %v750, 120
      %v768 = vpop.permute.xlu0 %767
      %769 = vrot.lane.b32.xlu0 %v751, 120
      %v770 = vpop.permute.xlu0 %769
      %771 = vrot.lane.b32.xlu0 %v752, 120
      %v772 = vpop.permute.xlu0 %771
      %773 = vrot.lane.b32.xlu0 %v753, 120
      %v774 = vpop.permute.xlu0 %773
      %775 = vrot.lane.b32.xlu0 %v754, 120
      %v776 = vpop.permute.xlu0 %775
      %777 = vrot.lane.b32.xlu0 %v755, 120
      %v778 = vpop.permute.xlu0 %777
      %779 = vrot.lane.b32.xlu0 %v756, 120
      %v780 = vpop.permute.xlu0 %779
      %789 = vst.msk [vmem:[#allocation3 + $0xe0] sm:$0xf] %vm199, %v766
      %790 = vst.msk [vmem:[#allocation3 + $0xe4] sm:$0xf] %vm199, %v768
      %791 = vst.msk [vmem:[#allocation3 + $0xe8] sm:$0xf] %vm199, %v770
      %792 = vst.msk [vmem:[#allocation3 + $0xec] sm:$0xf] %vm199, %v772
      %793 = vst.msk [vmem:[#allocation3 + $0xf0] sm:$0xf] %vm199, %v774
      %794 = vst.msk [vmem:[#allocation3 + $0xf4] sm:$0xf] %vm199, %v776
      %795 = vst.msk [vmem:[#allocation3 + $0xf8] sm:$0xf] %vm199, %v778
      %796 = vst.msk [vmem:[#allocation3 + $0xfc] sm:$0xf] %vm199, %v780
      %v797 = vld [vmem:[#allocation2 + $0x4] sm:$0xf]
      %v798 = vld [vmem:[#allocation2 + $0xc] sm:$0xf]
      %v799 = vld [vmem:[#allocation2 + $0x14] sm:$0xf]
      %v800 = vld [vmem:[#allocation2 + $0x1c] sm:$0xf]
      %v801 = vld [vmem:[#allocation2 + $0x24] sm:$0xf]
      %v802 = vld [vmem:[#allocation2 + $0x2c] sm:$0xf]
      %v803 = vld [vmem:[#allocation2 + $0x34] sm:$0xf]
      %v804 = vld [vmem:[#allocation2 + $0x3c] sm:$0xf]
      %vm805 = vmand %vm665, %vm400
      %v806 = vsel %vm805, 1, 0
      %vm807 = vcmp.eq.s32.totalorder %v806, 1
      %vm808 = vmpackc.low %vm807, %vm807
      %v809 = vsel %vm808, 65537, 0
      %810 = vrot.lane.b32.xlu0 %v809, 9
      %v811 = vpop.permute.xlu0 %810
      %v812 = vunpack.c.l.b16 %v811
      %v813 = vunpack.c.h.b16 %v811
      %v814 = vunpack.c.l.b16 0
      %v815 = vunpack.c.h.b16 0
      %vm816 = vcmp.ne.s32.totalorder %v812, %v814
      %vm817 = vcmp.ne.s32.totalorder %v813, %v815
      %vm818 = vmpackc.low %vm817, %vm816
      %v819 = vsel %vm818, %v797, 0
      %v820 = vsel %vm818, %v798, 0
      %v821 = vsel %vm818, %v799, 0
      %v822 = vsel %vm818, %v800, 0
      %v823 = vsel %vm818, %v801, 0
      %v824 = vsel %vm818, %v802, 0
      %v825 = vsel %vm818, %v803, 0
      %v826 = vsel %vm818, %v804, 0
      %835 = vrot.lane.b32.xlu0 %v819, 119
      %v836 = vpop.permute.xlu0 %835
      %837 = vrot.lane.b32.xlu0 %v820, 119
      %v838 = vpop.permute.xlu0 %837
      %839 = vrot.lane.b32.xlu0 %v821, 119
      %v840 = vpop.permute.xlu0 %839
      %841 = vrot.lane.b32.xlu0 %v822, 119
      %v842 = vpop.permute.xlu0 %841
      %843 = vrot.lane.b32.xlu0 %v823, 119
      %v844 = vpop.permute.xlu0 %843
      %845 = vrot.lane.b32.xlu0 %v824, 119
      %v846 = vpop.permute.xlu0 %845
      %847 = vrot.lane.b32.xlu0 %v825, 119
      %v848 = vpop.permute.xlu0 %847
      %849 = vrot.lane.b32.xlu0 %v826, 119
      %v850 = vpop.permute.xlu0 %849
      %859 = vst.msk [vmem:[#allocation3 + $0x100] sm:$0xf] %vm199, %v836
      %860 = vst.msk [vmem:[#allocation3 + $0x104] sm:$0xf] %vm199, %v838
      %861 = vst.msk [vmem:[#allocation3 + $0x108] sm:$0xf] %vm199, %v840
      %862 = vst.msk [vmem:[#allocation3 + $0x10c] sm:$0xf] %vm199, %v842
      %863 = vst.msk [vmem:[#allocation3 + $0x110] sm:$0xf] %vm199, %v844
      %864 = vst.msk [vmem:[#allocation3 + $0x114] sm:$0xf] %vm199, %v846
      %865 = vst.msk [vmem:[#allocation3 + $0x118] sm:$0xf] %vm199, %v848
      %866 = vst.msk [vmem:[#allocation3 + $0x11c] sm:$0xf] %vm199, %v850
      %v867 = vld [vmem:[%s1] sm:$0xff]
      %v868 = vld [vmem:[%s1 + $0x8] sm:$0xff]
      %v869 = vld [vmem:[%s1 + $0x10] sm:$0xf]
      %v870 = vld [vmem:[%s1 + $0x14] sm:$0xff]
      %v871 = vld [vmem:[%s1 + $0x1c] sm:$0xff]
      %v872 = vld [vmem:[%s1 + $0x24] sm:$0xf]
      %v873 = vld [vmem:[%s1 + $0x28] sm:$0xff]
      %v874 = vld [vmem:[%s1 + $0x30] sm:$0xff]
      %v875 = vld [vmem:[%s1 + $0x38] sm:$0xf]
      %v876 = vld [vmem:[%s1 + $0x3c] sm:$0xff]
      %v877 = vld [vmem:[%s1 + $0x44] sm:$0xff]
      %v878 = vld [vmem:[%s1 + $0x4c] sm:$0xf]
      %v879 = vld [vmem:[#allocation3] sm:$0xf]
      %v880 = vld [vmem:[#allocation3 + $0x4] sm:$0xf]
      %v881 = vld [vmem:[#allocation3 + $0x8] sm:$0xf]
      %v882 = vld [vmem:[#allocation3 + $0xc] sm:$0xf]
      %v883 = vld [vmem:[#allocation3 + $0x10] sm:$0xf]
      %v884 = vld [vmem:[#allocation3 + $0x14] sm:$0xf]
      %v885 = vld [vmem:[#allocation3 + $0x18] sm:$0xf]
      %v886 = vld [vmem:[#allocation3 + $0x1c] sm:$0xf]
      %v887 = vld [vmem:[#allocation3 + $0x20] sm:$0xf]
      %v888 = vld [vmem:[#allocation3 + $0x24] sm:$0xf]
      %v889 = vld [vmem:[#allocation3 + $0x28] sm:$0xf]
      %v890 = vld [vmem:[#allocation3 + $0x2c] sm:$0xf]
      %v891 = vld [vmem:[#allocation3 + $0x30] sm:$0xf]
      %v892 = vld [vmem:[#allocation3 + $0x34] sm:$0xf]
      %v893 = vld [vmem:[#allocation3 + $0x38] sm:$0xf]
      %v894 = vld [vmem:[#allocation3 + $0x3c] sm:$0xf]
      %v895 = vld [vmem:[#allocation3 + $0x40] sm:$0xf]
      %v896 = vld [vmem:[#allocation3 + $0x44] sm:$0xf]
      %v897 = vld [vmem:[#allocation3 + $0x48] sm:$0xf]
      %v898 = vld [vmem:[#allocation3 + $0x4c] sm:$0xf]
      %v899 = vld [vmem:[#allocation3 + $0x50] sm:$0xf]
      %v900 = vld [vmem:[#allocation3 + $0x54] sm:$0xf]
      %v901 = vld [vmem:[#allocation3 + $0x58] sm:$0xf]
      %v902 = vld [vmem:[#allocation3 + $0x5c] sm:$0xf]
      %v903 = vld [vmem:[#allocation3 + $0x60] sm:$0xf]
      %v904 = vld [vmem:[#allocation3 + $0x64] sm:$0xf]
      %v905 = vld [vmem:[#allocation3 + $0x68] sm:$0xf]
      %v906 = vld [vmem:[#allocation3 + $0x6c] sm:$0xf]
      %v907 = vld [vmem:[#allocation3 + $0x70] sm:$0xf]
      %v908 = vld [vmem:[#allocation3 + $0x74] sm:$0xf]
      %v909 = vld [vmem:[#allocation3 + $0x78] sm:$0xf]
      %v910 = vld [vmem:[#allocation3 + $0x7c] sm:$0xf]
      %v911 = vld [vmem:[#allocation3 + $0x80] sm:$0xf]
      %v912 = vld [vmem:[#allocation3 + $0x84] sm:$0xf]
      %v913 = vld [vmem:[#allocation3 + $0x88] sm:$0xf]
      %v914 = vld [vmem:[#allocation3 + $0x8c] sm:$0xf]
      %v915 = vld [vmem:[#allocation3 + $0x90] sm:$0xf]
      %v916 = vld [vmem:[#allocation3 + $0x94] sm:$0xf]
      %v917 = vld [vmem:[#allocation3 + $0x98] sm:$0xf]
      %v918 = vld [vmem:[#allocation3 + $0x9c] sm:$0xf]
      %v919 = vld [vmem:[#allocation3 + $0xa0] sm:$0xf]
      %v920 = vld [vmem:[#allocation3 + $0xa4] sm:$0xf]
      %v921 = vld [vmem:[#allocation3 + $0xa8] sm:$0xf]
      %v922 = vld [vmem:[#allocation3 + $0xac] sm:$0xf]
      %v923 = vld [vmem:[#allocation3 + $0xb0] sm:$0xf]
      %v924 = vld [vmem:[#allocation3 + $0xb4] sm:$0xf]
      %v925 = vld [vmem:[#allocation3 + $0xb8] sm:$0xf]
      %v926 = vld [vmem:[#allocation3 + $0xbc] sm:$0xf]
      %v927 = vld [vmem:[#allocation3 + $0xc0] sm:$0xf]
      %v928 = vld [vmem:[#allocation3 + $0xc4] sm:$0xf]
      %v929 = vld [vmem:[#allocation3 + $0xc8] sm:$0xf]
      %v930 = vld [vmem:[#allocation3 + $0xcc] sm:$0xf]
      %v931 = vld [vmem:[#allocation3 + $0xd0] sm:$0xf]
      %v932 = vld [vmem:[#allocation3 + $0xd4] sm:$0xf]
      %v933 = vld [vmem:[#allocation3 + $0xd8] sm:$0xf]
      %v934 = vld [vmem:[#allocation3 + $0xdc] sm:$0xf]
      %v935 = vld [vmem:[#allocation3 + $0xe0] sm:$0xf]
      %v936 = vld [vmem:[#allocation3 + $0xe4] sm:$0xf]
      %v937 = vld [vmem:[#allocation3 + $0xe8] sm:$0xf]
      %v938 = vld [vmem:[#allocation3 + $0xec] sm:$0xf]
      %v939 = vld [vmem:[#allocation3 + $0xf0] sm:$0xf]
      %v940 = vld [vmem:[#allocation3 + $0xf4] sm:$0xf]
      %v941 = vld [vmem:[#allocation3 + $0xf8] sm:$0xf]
      %v942 = vld [vmem:[#allocation3 + $0xfc] sm:$0xf]
      %v943 = vld [vmem:[#allocation3 + $0x100] sm:$0xf]
      %v944 = vld [vmem:[#allocation3 + $0x104] sm:$0xf]
      %v945 = vld [vmem:[#allocation3 + $0x108] sm:$0xf]
      %v946 = vld [vmem:[#allocation3 + $0x10c] sm:$0xf]
      %v947 = vld [vmem:[#allocation3 + $0x110] sm:$0xf]
      %v948 = vld [vmem:[#allocation3 + $0x114] sm:$0xf]
      %v949 = vld [vmem:[#allocation3 + $0x118] sm:$0xf]
      %v950 = vld [vmem:[#allocation3 + $0x11c] sm:$0xf]
      %v951 = vld [vmem:[%s2] sm:$0xff]
      %v952 = vld [vmem:[%s2 + $0x8] sm:$0xff]
      %v953 = vld [vmem:[%s2 + $0x10] sm:$0xff]
      %v954 = vld [vmem:[%s2 + $0x18] sm:$0xff]
      %956 = vset.pattern.permute.xlu0 0
      %957 = vperm.xlu0 %956, %v951
      %v958 = vpop.permute.xlu0 %957
      %961 = vset.pattern.permute.xlu0 0
      %962 = vperm.xlu0 %961, %v952
      %v963 = vpop.permute.xlu0 %962
      %966 = vset.pattern.permute.xlu0 0
      %967 = vperm.xlu0 %966, %v953
      %v968 = vpop.permute.xlu0 %967
      %971 = vset.pattern.permute.xlu0 0
      %972 = vperm.xlu0 %971, %v954
      %v973 = vpop.permute.xlu0 %972
      %v987 = vunpack.c.l.b16 %v867
      %v988 = vunpack.c.h.b16 %v867
      %v989 = vunpack.c.l.b16 %v868
      %v990 = vunpack.c.h.b16 %v868
      %v991 = vunpack.c.l.b16 %v869
      %v992 = vunpack.c.l.b16 %v870
      %v993 = vunpack.c.h.b16 %v870
      %v994 = vunpack.c.l.b16 %v871
      %v995 = vunpack.c.h.b16 %v871
      %v996 = vunpack.c.l.b16 %v872
      %v997 = vunpack.c.l.b16 %v873
      %v998 = vunpack.c.h.b16 %v873
      %v999 = vunpack.c.l.b16 %v874
      %v1000 = vunpack.c.h.b16 %v874
      %v1001 = vunpack.c.l.b16 %v875
      %v1002 = vunpack.c.l.b16 %v876
      %v1003 = vunpack.c.h.b16 %v876
      %v1004 = vunpack.c.l.b16 %v877
      %v1005 = vunpack.c.h.b16 %v877
      %v1006 = vunpack.c.l.b16 %v878
      %v1007 = vpack.c.b16 %v992, %v987
      %v1008 = vpack.c.b16 %v993, %v988
      %v1009 = vpack.c.b16 %v994, %v989
      %v1010 = vpack.c.b16 %v995, %v990
      %v1011 = vpack.c.b16 %v996, %v991
      %v1012 = vpack.c.b16 %v1002, %v997
      %v1013 = vpack.c.b16 %v1003, %v998
      %v1014 = vpack.c.b16 %v1004, %v999
      %v1015 = vpack.c.b16 %v1005, %v1000
      %v1016 = vpack.c.b16 %v1006, %v1001
      %v1097 = vunpack.c.l.b16 %v879
      %v1098 = vunpack.c.l.b16 %v880
      %v1099 = vunpack.c.l.b16 %v881
      %v1100 = vunpack.c.l.b16 %v882
      %v1101 = vunpack.c.l.b16 %v883
      %v1102 = vunpack.c.l.b16 %v884
      %v1103 = vunpack.c.l.b16 %v885
      %v1104 = vunpack.c.l.b16 %v886
      %v1105 = vunpack.c.l.b16 %v887
      %v1106 = vunpack.c.l.b16 %v888
      %v1107 = vunpack.c.l.b16 %v889
      %v1108 = vunpack.c.l.b16 %v890
      %v1109 = vunpack.c.l.b16 %v891
      %v1110 = vunpack.c.l.b16 %v892
      %v1111 = vunpack.c.l.b16 %v893
      %v1112 = vunpack.c.l.b16 %v894
      %v1113 = vunpack.c.l.b16 %v895
      %v1114 = vunpack.c.l.b16 %v896
      %v1115 = vunpack.c.l.b16 %v897
      %v1116 = vunpack.c.l.b16 %v898
      %v1117 = vunpack.c.l.b16 %v899
      %v1118 = vunpack.c.l.b16 %v900
      %v1119 = vunpack.c.l.b16 %v901
      %v1120 = vunpack.c.l.b16 %v902
      %v1121 = vunpack.c.l.b16 %v903
      %v1122 = vunpack.c.l.b16 %v904
      %v1123 = vunpack.c.l.b16 %v905
      %v1124 = vunpack.c.l.b16 %v906
      %v1125 = vunpack.c.l.b16 %v907
      %v1126 = vunpack.c.l.b16 %v908
      %v1127 = vunpack.c.l.b16 %v909
      %v1128 = vunpack.c.l.b16 %v910
      %v1129 = vunpack.c.l.b16 %v911
      %v1130 = vunpack.c.l.b16 %v912
      %v1131 = vunpack.c.l.b16 %v913
      %v1132 = vunpack.c.l.b16 %v914
      %v1133 = vunpack.c.l.b16 %v915
      %v1134 = vunpack.c.l.b16 %v916
      %v1135 = vunpack.c.l.b16 %v917
      %v1136 = vunpack.c.l.b16 %v918
      %v1137 = vunpack.c.l.b16 %v919
      %v1138 = vunpack.c.l.b16 %v920
      %v1139 = vunpack.c.l.b16 %v921
      %v1140 = vunpack.c.l.b16 %v922
      %v1141 = vunpack.c.l.b16 %v923
      %v1142 = vunpack.c.l.b16 %v924
      %v1143 = vunpack.c.l.b16 %v925
      %v1144 = vunpack.c.l.b16 %v926
      %v1145 = vunpack.c.l.b16 %v927
      %v1146 = vunpack.c.l.b16 %v928
      %v1147 = vunpack.c.l.b16 %v929
      %v1148 = vunpack.c.l.b16 %v930
      %v1149 = vunpack.c.l.b16 %v931
      %v1150 = vunpack.c.l.b16 %v932
      %v1151 = vunpack.c.l.b16 %v933
      %v1152 = vunpack.c.l.b16 %v934
      %v1153 = vunpack.c.l.b16 %v935
      %v1154 = vunpack.c.l.b16 %v936
      %v1155 = vunpack.c.l.b16 %v937
      %v1156 = vunpack.c.l.b16 %v938
      %v1157 = vunpack.c.l.b16 %v939
      %v1158 = vunpack.c.l.b16 %v940
      %v1159 = vunpack.c.l.b16 %v941
      %v1160 = vunpack.c.l.b16 %v942
      %v1161 = vunpack.c.l.b16 %v943
      %v1162 = vunpack.c.l.b16 %v944
      %v1163 = vunpack.c.l.b16 %v945
      %v1164 = vunpack.c.l.b16 %v946
      %v1165 = vunpack.c.l.b16 %v947
      %v1166 = vunpack.c.l.b16 %v948
      %v1167 = vunpack.c.l.b16 %v949
      %v1168 = vunpack.c.l.b16 %v950
      %v1169 = vpack.c.b16 %v1098, %v1097
      %v1170 = vpack.c.b16 %v1100, %v1099
      %v1171 = vpack.c.b16 %v1102, %v1101
      %v1172 = vpack.c.b16 %v1104, %v1103
      %v1173 = vpack.c.b16 %v1106, %v1105
      %v1174 = vpack.c.b16 %v1108, %v1107
      %v1175 = vpack.c.b16 %v1110, %v1109
      %v1176 = vpack.c.b16 %v1112, %v1111
      %v1177 = vpack.c.b16 %v1114, %v1113
      %v1178 = vpack.c.b16 %v1116, %v1115
      %v1179 = vpack.c.b16 %v1118, %v1117
      %v1180 = vpack.c.b16 %v1120, %v1119
      %v1181 = vpack.c.b16 %v1122, %v1121
      %v1182 = vpack.c.b16 %v1124, %v1123
      %v1183 = vpack.c.b16 %v1126, %v1125
      %v1184 = vpack.c.b16 %v1128, %v1127
      %v1185 = vpack.c.b16 %v1130, %v1129
      %v1186 = vpack.c.b16 %v1132, %v1131
      %v1187 = vpack.c.b16 %v1134, %v1133
      %v1188 = vpack.c.b16 %v1136, %v1135
      %v1189 = vpack.c.b16 %v1138, %v1137
      %v1190 = vpack.c.b16 %v1140, %v1139
      %v1191 = vpack.c.b16 %v1142, %v1141
      %v1192 = vpack.c.b16 %v1144, %v1143
      %v1193 = vpack.c.b16 %v1146, %v1145
      %v1194 = vpack.c.b16 %v1148, %v1147
      %v1195 = vpack.c.b16 %v1150, %v1149
      %v1196 = vpack.c.b16 %v1152, %v1151
      %v1197 = vpack.c.b16 %v1154, %v1153
      %v1198 = vpack.c.b16 %v1156, %v1155
      %v1199 = vpack.c.b16 %v1158, %v1157
      %v1200 = vpack.c.b16 %v1160, %v1159
      %v1201 = vpack.c.b16 %v1162, %v1161
      %v1202 = vpack.c.b16 %v1164, %v1163
      %v1203 = vpack.c.b16 %v1166, %v1165
      %v1204 = vpack.c.b16 %v1168, %v1167
      %vm1241 = vcmask 523264
      %v1243 = vsel %vm1241, %v1011, 0
      %v1246 = vsel %vm1241, %v1016, 0
      %1248 = vmatpush.bf16.msra.mxu0 %v1176
      %1249 = vmatpush.bf16.msra.mxu0 %v1175
      %1250 = vmatpush.bf16.msra.mxu0 %v1174
      %1251 = vmatpush.bf16.msra.mxu0 %v1173
      %1252 = vmatpush.bf16.msra.mxu0 %v1172
      %1253 = vmatpush.bf16.msra.mxu0 %v1171
      %1254 = vmatpush.bf16.msra.mxu0 %v1170
      %1255 = vmatpush.bf16.msra.mxu0 %v1169
      %1256 = vmatmul.bf16.gmra.mxu0 %v1007
      %v1257 = vpop.f32.mrf.mxu0
      %v1258 = vadd.f32 %v958, %v1257
      %v1259 = vpop.f32.mrf.mxu0
      %v1260 = vadd.f32 %v963, %v1259
      %1261 = vmatmul.bf16.gmra.mxu0 %v1012
      %v1262 = vpop.f32.mrf.mxu0
      %v1263 = vadd.f32 %v968, %v1262
      %v1264 = vpop.f32.mrf.mxu0
      %v1265 = vadd.f32 %v973, %v1264
      %1266 = vdwg.mxu0
      %1267 = vmatpush.bf16.msra.mxu0 %v1184
      %1268 = vmatpush.bf16.msra.mxu0 %v1183
      %1269 = vmatpush.bf16.msra.mxu0 %v1182
      %1270 = vmatpush.bf16.msra.mxu0 %v1181
      %1271 = vmatpush.bf16.msra.mxu0 %v1180
      %1272 = vmatpush.bf16.msra.mxu0 %v1179
      %1273 = vmatpush.bf16.msra.mxu0 %v1178
      %1274 = vmatpush.bf16.msra.mxu0 %v1177
      %1275 = vmatmul.bf16.gmra.mxu0 %v1008
      %v1276 = vpop.f32.mrf.mxu0
      %v1277 = vadd.f32 %v1258, %v1276
      %v1278 = vpop.f32.mrf.mxu0
      %v1279 = vadd.f32 %v1260, %v1278
      %1280 = vmatmul.bf16.gmra.mxu0 %v1013
      %v1281 = vpop.f32.mrf.mxu0
      %v1282 = vadd.f32 %v1263, %v1281
      %v1283 = vpop.f32.mrf.mxu0
      %v1284 = vadd.f32 %v1265, %v1283
      %1285 = vdwg.mxu0
      %1286 = vmatpush.bf16.msra.mxu0 %v1192
      %1287 = vmatpush.bf16.msra.mxu0 %v1191
      %1288 = vmatpush.bf16.msra.mxu0 %v1190
      %1289 = vmatpush.bf16.msra.mxu0 %v1189
      %1290 = vmatpush.bf16.msra.mxu0 %v1188
      %1291 = vmatpush.bf16.msra.mxu0 %v1187
      %1292 = vmatpush.bf16.msra.mxu0 %v1186
      %1293 = vmatpush.bf16.msra.mxu0 %v1185
      %1294 = vmatmul.bf16.gmra.mxu0 %v1009
      %v1295 = vpop.f32.mrf.mxu0
      %v1296 = vadd.f32 %v1277, %v1295
      %v1297 = vpop.f32.mrf.mxu0
      %v1298 = vadd.f32 %v1279, %v1297
      %1299 = vmatmul.bf16.gmra.mxu0 %v1014
      %v1300 = vpop.f32.mrf.mxu0
      %v1301 = vadd.f32 %v1282, %v1300
      %v1302 = vpop.f32.mrf.mxu0
      %v1303 = vadd.f32 %v1284, %v1302
      %1304 = vdwg.mxu0
      %1305 = vmatpush.bf16.msra.mxu0 %v1200
      %1306 = vmatpush.bf16.msra.mxu0 %v1199
      %1307 = vmatpush.bf16.msra.mxu0 %v1198
      %1308 = vmatpush.bf16.msra.mxu0 %v1197
      %1309 = vmatpush.bf16.msra.mxu0 %v1196
      %1310 = vmatpush.bf16.msra.mxu0 %v1195
      %1311 = vmatpush.bf16.msra.mxu0 %v1194
      %1312 = vmatpush.bf16.msra.mxu0 %v1193
      %1313 = vmatmul.bf16.gmra.mxu0 %v1010
      %v1314 = vpop.f32.mrf.mxu0
      %v1315 = vadd.f32 %v1296, %v1314
      %v1316 = vpop.f32.mrf.mxu0
      %v1317 = vadd.f32 %v1298, %v1316
      %1318 = vmatmul.bf16.gmra.mxu0 %v1015
      %v1319 = vpop.f32.mrf.mxu0
      %v1320 = vadd.f32 %v1301, %v1319
      %v1321 = vpop.f32.mrf.mxu0
      %v1322 = vadd.f32 %v1303, %v1321
      %1323 = vdwg.mxu0
      %1324 = vmatpush.bf16.msra.mxu0 0
      %1325 = vmatpush.bf16.msra.mxu0 0
      %1326 = vmatpush.bf16.msra.mxu0 0
      %1327 = vmatpush.bf16.msra.mxu0 0
      %1328 = vmatpush.bf16.msra.mxu0 %v1204
      %1329 = vmatpush.bf16.msra.mxu0 %v1203
      %1330 = vmatpush.bf16.msra.mxu0 %v1202
      %1331 = vmatpush.bf16.msra.mxu0 %v1201
      %1332 = vmatmul.bf16.gmra.mxu0 %v1243
      %v1333 = vpop.f32.mrf.mxu0
      %v1334 = vadd.f32 %v1315, %v1333
      %v1335 = vpop.f32.mrf.mxu0
      %v1336 = vadd.f32 %v1317, %v1335
      %1337 = vmatmul.bf16.gmra.mxu0 %v1246
      %v1338 = vpop.f32.mrf.mxu0
      %v1339 = vadd.f32 %v1320, %v1338
      %v1340 = vpop.f32.mrf.mxu0
      %v1341 = vadd.f32 %v1322, %v1340
      %1342 = vdwg.mxu0
      %v1343 = vmax.f32 %v1334, 0.0
      %v1344 = vmax.f32 %v1336, 0.0
      %v1345 = vmax.f32 %v1339, 0.0
      %v1346 = vmax.f32 %v1341, 0.0
      %v1347 = vpack.c.bf16 %v1343, %v1343
      %v1348 = vpack.c.bf16 %v1344, %v1344
      %v1349 = vpack.c.bf16 %v1345, %v1345
      %v1350 = vpack.c.bf16 %v1346, %v1346
      %1351 = vst.msk [vmem:[%s170] sm:$0xf] %vm199, %v1347
      %1352 = vst.msk [vmem:[%s170 + $0x4] sm:$0xf] %vm199, %v1348
      %1353 = vst.msk [vmem:[%s170 + $0x8] sm:$0xf] %vm199, %v1349
      %1354 = vst.msk [vmem:[%s170 + $0xc] sm:$0xf] %vm199, %v1350
      %p1355 = scmp.lt.s32.totalorder %s14, 1
      %s1356 = scalar_select %p1355, %s14, 1
      %s1357 = smul.addr %s1356, 4
      %s1358 = smul.addr %s1357, 4
      %s1359 = scalar_lea.vmem %s3, %s1358
      // Predicated region
      $region33: #{sipr_forward.9} parent=31 // pred_check
        %p1360 = pneg %p100
      $region34: #{sipr_forward.9} parent=31 // pred_check_branch
        %1362 = sbr.rel (%p1360) target = $region36
      $region35: #{sipr_forward.9} parent=31 // pred_region
        _
      $region36: #{sipr_forward.9} parent=31 // pred_fallthru
        _
    $region32: #{sipr_forward.9} parent=5 // pred_fallthru
      _
    %p1363 = scmp.le.s32.totalorder 2, %s9
    // Predicated region
    $region37: #{sipr_forward.9} parent=5 // pred_check
      %p1364 = pneg %p1363
    $region38: #{sipr_forward.9} parent=5 // pred_check_branch
      %1366 = sbr.rel (%p1364) target = $region40
    $region39: #{sipr_forward.9} parent=5 // pred_region
      %s1367 = ssub.s32 %s9, 2
      // Predicated region
      $region41: #{sipr_forward.9} parent=39 // pred_check
        %p1368 = pneg %p106
      $region42: #{sipr_forward.9} parent=39 // pred_check_branch
        %1370 = sbr.rel (%p1368) target = $region44
      $region43: #{sipr_forward.9} parent=39 // pred_region
        %p1371 = scmp.lt.s32.totalorder %s15, 1
        %s1372 = scalar_select %p1371, %s15, 1
        %s1373 = smul.addr %s1372, 4
        %s1374 = smul.addr %s1373, 4
        %s1375 = scalar_lea.vmem %s3, %s1374
      $region44: #{sipr_forward.9} parent=39 // pred_fallthru
        _
    $region40: #{sipr_forward.9} parent=5 // pred_fallthru
      _
  $region6: #{sipr_forward.9} parent=0 // loop_footer
    %s13 = sadd.s32 1, %s9
  $region7: #{sipr_forward.9} parent=0 // loop_footer_branch
    %8 = sbr.rel target = $region3
  $region8: #{sipr_forward.9} parent=0 // loop_exit
    _

// kernel: sipr_forward.11
$region0: #{sipr_forward.11}
  #allocation0 [shape = 'u32[]', space=smem, size = 0x4, offset = 0x4, fixed_abs, tag = 'smem constant byte address 0x4 - core index']
  #allocation1 [shape = 'u32[72,128]{1,0:T(1,128)}', space=vmem, size = 0x9000, scoped, tag = 'internal scratch']
  #allocation2 [shape = 'bf16[16,401]{1,0:T(8,128)(2,1)}', space=vmem, size = 0x4000, scoped, tag = 'scratch operand']
  #allocation3 [shape = 'bf16[144,256]{1,0:T(8,128)(2,1)}', space=vmem, size = 0x12000, scoped, tag = 'scratch operand']
  %s0 = inlined_call_operand.vmem [shape: bf16[2,16,256], index: 0, kind: input, shape index: {}]
  %s1 = inlined_call_operand.vmem [shape: bf16[8,144], index: 1, kind: input, shape index: {}]
  %s2 = inlined_call_operand.vmem [shape: f32[8,1], index: 2, kind: input, shape index: {}]
  %s3 = inlined_call_operand.vmem [shape: f32[2,8,256], index: 3, kind: output, shape index: {}]
  %s4 = sld [smem:[#allocation0]]
  $region45: #{sipr_forward.11} parent=0
    _
  %s6 = ssub.s32 1, %s4
  %s7 = scalar_select 0, %s6, %s4
  loop: start=0, step=1, limit=4
  $region2: #{sipr_forward.11} parent=0 // loop_pre_header
    _
  $region3: #{sipr_forward.11} parent=0 // loop_header
    %s9 = sphi 0, %s13
    %p10 = scmp.ge.s32.totalorder %s9, 4
    %s19 = sphi 0, %s21
    %s22 = sphi 0, %s19
    %s23 = sphi 0, %s22
    %s39 = sphi 0, %s23
    %s43 = sphi 0, %s43
    %s45 = sphi 0, %s43
    %s46 = sphi 0, %s45
    %s60 = sphi 0, %s46
    %s64 = sphi 0, %s64
    %s66 = sphi 0, %s64
    %s67 = sphi 0, %s66
    %s81 = sphi 0, %s67
    %s87 = sphi 0, %s89
    %s90 = sphi 0, %s87
    %s91 = sphi 0, %s90
    %s107 = sphi 0, %s91
  $region4: #{sipr_forward.11} parent=0 // loop_header_branch
    %12 = sbr.rel (%p10) target = $region8
  $region5: #{sipr_forward.11} parent=0 // loop_body
    %s14 = ssub.s32 %s9, 1
    %s15 = ssub.s32 %s9, 2
    %s16 = sadd.s32 %s9, 1
    %s17 = ssub.s32 %s9, %s16
    %p18 = scmp.eq.s32.totalorder %s17, 0
    %s20 = sadd.s32 %s19, 1
    %s21 = scalar_select %p18, %s19, %s20
    %p24 = pneg %p18
    %p25 = scmp.eq.s32.totalorder %s9, 1
    %p26 = por %p24, %p25
    %p27 = scmp.ne.s32.totalorder %s19, %s22
    %p28 = scmp.eq.s32.totalorder %s9, 0
    %p29 = por %p27, %p28
    %p30 = scmp.ne.s32.totalorder %s19, %s22
    %p31 = scmp.eq.s32.totalorder %s14, 1
    %p32 = por %p30, %p31
    %p33 = scmp.ne.s32.totalorder %s22, %s23
    %p34 = scmp.eq.s32.totalorder %s14, 0
    %p35 = por %p33, %p34
    %p36 = scmp.ne.s32.totalorder %s22, %s23
    %p37 = scmp.eq.s32.totalorder %s15, 1
    %p38 = por %p36, %p37
    %p40 = scmp.ne.s32.totalorder %s23, %s39
    %p41 = scmp.eq.s32.totalorder %s15, 0
    %p42 = por %p40, %p41
    %s44 = sadd.s32 %s43, 1
    %p47 = scmp.eq.s32.totalorder %s9, 1
    %p48 = scmp.ne.s32.totalorder %s43, %s45
    %p49 = scmp.eq.s32.totalorder %s9, 0
    %p50 = por %p48, %p49
    %p51 = scmp.ne.s32.totalorder %s43, %s45
    %p52 = scmp.eq.s32.totalorder %s14, 1
    %p53 = por %p51, %p52
    %p54 = scmp.ne.s32.totalorder %s45, %s46
    %p55 = scmp.eq.s32.totalorder %s14, 0
    %p56 = por %p54, %p55
    %p57 = scmp.ne.s32.totalorder %s45, %s46
    %p58 = scmp.eq.s32.totalorder %s15, 1
    %p59 = por %p57, %p58
    %p61 = scmp.ne.s32.totalorder %s46, %s60
    %p62 = scmp.eq.s32.totalorder %s15, 0
    %p63 = por %p61, %p62
    %s65 = sadd.s32 %s64, 1
    %p68 = scmp.eq.s32.totalorder %s9, 1
    %p69 = scmp.ne.s32.totalorder %s64, %s66
    %p70 = scmp.eq.s32.totalorder %s9, 0
    %p71 = por %p69, %p70
    %p72 = scmp.ne.s32.totalorder %s64, %s66
    %p73 = scmp.eq.s32.totalorder %s14, 1
    %p74 = por %p72, %p73
    %p75 = scmp.ne.s32.totalorder %s66, %s67
    %p76 = scmp.eq.s32.totalorder %s14, 0
    %p77 = por %p75, %p76
    %p78 = scmp.ne.s32.totalorder %s66, %s67
    %p79 = scmp.eq.s32.totalorder %s15, 1
    %p80 = por %p78, %p79
    %p82 = scmp.ne.s32.totalorder %s67, %s81
    %p83 = scmp.eq.s32.totalorder %s15, 0
    %p84 = por %p82, %p83
    %s85 = ssub.s32 %s9, %s16
    %p86 = scmp.eq.s32.totalorder %s85, 0
    %s88 = sadd.s32 %s87, 1
    %s89 = scalar_select %p86, %s87, %s88
    %p92 = pneg %p86
    %p93 = scmp.eq.s32.totalorder %s9, 1
    %p94 = por %p92, %p93
    %p95 = scmp.ne.s32.totalorder %s87, %s90
    %p96 = scmp.eq.s32.totalorder %s9, 0
    %p97 = por %p95, %p96
    %p98 = scmp.ne.s32.totalorder %s87, %s90
    %p99 = scmp.eq.s32.totalorder %s14, 1
    %p100 = por %p98, %p99
    %p101 = scmp.ne.s32.totalorder %s90, %s91
    %p102 = scmp.eq.s32.totalorder %s14, 0
    %p103 = por %p101, %p102
    %p104 = scmp.ne.s32.totalorder %s90, %s91
    %p105 = scmp.eq.s32.totalorder %s15, 1
    %p106 = por %p104, %p105
    %p108 = scmp.ne.s32.totalorder %s91, %s107
    %p109 = scmp.eq.s32.totalorder %s15, 0
    %p110 = por %p108, %p109
    %p111 = scmp.le.s32.totalorder 1, %s9
    %p112 = scmp.lt.s32.totalorder %s9, 3
    %p113 = pnand %p111, %p112
    %p114 = pneg %p113
    // Predicated region
    $region9: #{sipr_forward.11} parent=5 // pred_check
      _
    $region10: #{sipr_forward.11} parent=5 // pred_check_branch
      %116 = sbr.rel (%p113) target = $region12
    $region11: #{sipr_forward.11} parent=5 // pred_region
      %s117 = ssub.s32 %s9, 1
      // Predicated region
      $region13: #{sipr_forward.11} parent=11 // pred_check
        %p118 = pneg %p56
      $region14: #{sipr_forward.11} parent=11 // pred_check_branch
        %120 = sbr.rel (%p118) target = $region16
      $region15: #{sipr_forward.11} parent=11 // pred_region
        _
      $region16: #{sipr_forward.11} parent=11 // pred_fallthru
        _
      // Predicated region
      $region17: #{sipr_forward.11} parent=11 // pred_check
        %p121 = pneg %p77
      $region18: #{sipr_forward.11} parent=11 // pred_check_branch
        %123 = sbr.rel (%p121) target = $region20
      $region19: #{sipr_forward.11} parent=11 // pred_region
        _
      $region20: #{sipr_forward.11} parent=11 // pred_fallthru
        _
    $region12: #{sipr_forward.11} parent=5 // pred_fallthru
      _
    %p124 = scmp.lt.s32.totalorder %s9, 2
    // Predicated region
    $region21: #{sipr_forward.11} parent=5 // pred_check
      %p125 = pneg %p124
    $region22: #{sipr_forward.11} parent=5 // pred_check_branch
      %127 = sbr.rel (%p125) target = $region24
    $region23: #{sipr_forward.11} parent=5 // pred_region
      // Predicated region
      $region25: #{sipr_forward.11} parent=23 // pred_check
        %p128 = pneg %p29
      $region26: #{sipr_forward.11} parent=23 // pred_check_branch
        %130 = sbr.rel (%p128) target = $region28
      $region27: #{sipr_forward.11} parent=23 // pred_region
        %p131 = scmp.lt.s32.totalorder %s9, 1
        %s132 = scalar_select %p131, %s9, 1
        %s133 = smul.addr %s132, 4
        %s134 = smul.addr %s133, 4
        %s135 = scalar_lea.vmem %s0, %s134
      $region28: #{sipr_forward.11} parent=23 // pred_fallthru
        _
    $region24: #{sipr_forward.11} parent=5 // pred_fallthru
      _
    %p136 = scmp.le.s32.totalorder 1, %s9
    %p137 = scmp.lt.s32.totalorder %s9, 3
    %p138 = pnand %p136, %p137
    %p139 = pneg %p138
    // Predicated region
    $region29: #{sipr_forward.11} parent=5 // pred_check
      _
    $region30: #{sipr_forward.11} parent=5 // pred_check_branch
      %141 = sbr.rel (%p138) target = $region32
    $region31: #{sipr_forward.11} parent=5 // pred_region
      %s142 = ssub.s32 %s9, 1
      %p143 = scmp.lt.s32.totalorder %s14, 1
      %s144 = scalar_select %p143, %s14, 1
      %s145 = smul.addr %s144, 4
      %s146 = smul.addr %s145, 4
      %s147 = scalar_lea.vmem %s0, %s146
      %p148 = pneg %p35
      %p149 = pneg %p32
      %p150 = pneg %p56
      %p151 = pneg %p53
      %p152 = pneg %p77
      %p153 = pneg %p74
      %p154 = pneg %p103
      %p155 = pneg %p100
      %p156 = scmp.lt.s32.totalorder %s14, 1
      %s157 = scalar_select %p156, %s14, 1
      %s158 = smul.addr %s157, 2
      %s159 = smul.addr %s158, 8
      %s160 = scalar_lea.vmem %s3, %s159
      %p161 = scmp.lt.s32.totalorder %s14, 1
      %s162 = scalar_select %p161, %s14, 1
      %s163 = smul.addr %s162, 4
      %s164 = smul.addr %s163, 4
      %s165 = scalar_lea.vmem %s0, %s164
      %p166 = scmp.lt.s32.totalorder %s14, 1
      %s167 = scalar_select %p166, %s14, 1
      %s168 = smul.addr %s167, 2
      %s169 = smul.addr %s168, 8
      %s170 = scalar_lea.vmem %s3, %s169
      %174 = vst [vmem:[#allocation2] sm:$0xf] 0
      %175 = vst [vmem:[#allocation2 + $0x10] sm:$0xf] 0
      %vm176 = vcmask 134144
      %177 = vst.msk [vmem:[#allocation2 + $0xc] sm:$0xf] %vm176, 0
      %178 = vst.msk [vmem:[#allocation2 + $0x1c] sm:$0xf] %vm176, 0
      %v179 = vld [vmem:[%s165] sm:$0xff]
      %v180 = vld [vmem:[%s165 + $0x8] sm:$0xff]
      %181 = vst [vmem:[#allocation2 + $0x4] sm:$0xff] %v179
      %182 = vst [vmem:[#allocation2 + $0x14] sm:$0xff] %v180
      %v183 = vlaneseq
      %v184 = vand.u32 %v183, 127
      %v185 = vadd.s32 %v184, 128
      %v186 = vand.u32 %v184, 15
      %v187 = vand.u32 %v185, 15
      %v188 = vld [vmem:[#allocation2] sm:$0xff]
      %v189 = vld [vmem:[#allocation2 + $0x8] sm:$0xf]
      %v190 = vld [vmem:[#allocation2 + $0x10] sm:$0xff]
      %v191 = vld [vmem:[#allocation2 + $0x18] sm:$0xf]
      %vm192 = vcmp.ge.s32.totalorder %v184, 16
      %vm193 = vcmp.ge.s32.totalorder %v185, 16
      %vm194 = vcmp.ge.s32.totalorder %v186, 1
      %vm195 = vcmp.ge.s32.totalorder %v187, 1
      %vm196 = vmand %vm192, %vm194
      %vm197 = vmand %vm193, %vm195
      %v198 = vsel %vm196, 1, 0
      %v199 = vsel %vm197, 1, 0
      %vm200 = vcmp.eq.s32.totalorder %v198, 1
      %vm201 = vcmp.eq.s32.totalorder %v199, 1
      %vm202 = vmpackc.low %vm201, %vm200
      %v203 = vsel %vm202, 65537, 0
      %204 = vrot.lane.b32.xlu0 %v203, 111
      %v205 = vpop.permute.xlu0 %204
      %v206 = vrot.slane %v205, 4
      %vm207 = vcmask 908288
      %v208 = vsel %vm207, %v206, %v205
      %v209 = vunpack.c.l.b16 %v208
      %v210 = vunpack.c.h.b16 %v208
      %v211 = vunpack.c.l.b16 0
      %v212 = vunpack.c.h.b16 0
      %vm213 = vcmp.ne.s32.totalorder %v209, %v211
      %vm214 = vcmp.ne.s32.totalorder %v210, %v212
      %vm215 = vmpackc.low %vm214, %vm213
      %v216 = vunpack.c.l.b16 %v206
      %v217 = vunpack.c.h.b16 %v206
      %v218 = vunpack.c.l.b16 0
      %v219 = vunpack.c.h.b16 0
      %vm220 = vcmp.ne.s32.totalorder %v216, %v218
      %vm221 = vcmp.ne.s32.totalorder %v217, %v219
      %vm222 = vmpackc.low %vm221, %vm220
      %v223 = vsel %vm215, %v188, 0
      %v224 = vsel %vm222, %v189, 0
      %v225 = vsel %vm215, %v190, 0
      %v226 = vsel %vm222, %v191, 0
      %231 = vrot.lane.b32.xlu0 %v223, 17
      %v232 = vpop.permute.xlu0 %231
      %233 = vrot.lane.b32.xlu0 %v224, 17
      %v234 = vpop.permute.xlu0 %233
      %235 = vrot.lane.b32.xlu0 %v225, 17
      %v236 = vpop.permute.xlu0 %235
      %237 = vrot.lane.b32.xlu0 %v226, 17
      %v238 = vpop.permute.xlu0 %237
      %v239 = vrot.slane %v232, 4
      %v240 = vrot.slane %v234, 4
      %v241 = vrot.slane %v236, 4
      %v242 = vrot.slane %v238, 4
      %vm243 = vcmask 1043456
      %v244 = vsel %vm243, %v239, %v240
      %vm245 = vcmask 138240
      %v246 = vsel %vm245, %v232, %v244
      %v247 = vsel %vm243, %v241, %v242
      %v248 = vsel %vm245, %v236, %v247
      %251 = vst [vmem:[#allocation3] sm:$0xff] %v246
      %252 = vst [vmem:[#allocation3 + $0x8] sm:$0xff] %v248
      %v253 = vld [vmem:[#allocation2] sm:$0xff]
      %v254 = vld [vmem:[#allocation2 + $0x8] sm:$0xf]
      %v255 = vld [vmem:[#allocation2 + $0x10] sm:$0xff]
      %v256 = vld [vmem:[#allocation2 + $0x18] sm:$0xf]
      %v257 = vsel %vm192, 1, 0
      %v258 = vsel %vm193, 1, 0
      %vm259 = vcmp.eq.s32.totalorder %v257, 1
      %vm260 = vcmp.eq.s32.totalorder %v258, 1
      %vm261 = vmpackc.low %vm260, %vm259
      %v262 = vsel %vm261, 65537, 0
      %263 = vrot.lane.b32.xlu0 %v262, 112
      %v264 = vpop.permute.xlu0 %263
      %v265 = vrot.slane %v264, 4
      %vm266 = vcmask 916480
      %v267 = vsel %vm266, %v265, %v264
      %v268 = vunpack.c.l.b16 %v267
      %v269 = vunpack.c.h.b16 %v267
      %v270 = vunpack.c.l.b16 0
      %v271 = vunpack.c.h.b16 0
      %vm272 = vcmp.ne.s32.totalorder %v268, %v270
      %vm273 = vcmp.ne.s32.totalorder %v269, %v271
      %vm274 = vmpackc.low %vm273, %vm272
      %v275 = vunpack.c.l.b16 %v265
      %v276 = vunpack.c.h.b16 %v265
      %v277 = vunpack.c.l.b16 0
      %v278 = vunpack.c.h.b16 0
      %vm279 = vcmp.ne.s32.totalorder %v275, %v277
      %vm280 = vcmp.ne.s32.totalorder %v276, %v278
      %vm281 = vmpackc.low %vm280, %vm279
      %v282 = vsel %vm274, %v253, 0
      %v283 = vsel %vm281, %v254, 0
      %v284 = vsel %vm274, %v255, 0
      %v285 = vsel %vm281, %v256, 0
      %290 = vrot.lane.b32.xlu0 %v282, 16
      %v291 = vpop.permute.xlu0 %290
      %292 = vrot.lane.b32.xlu0 %v283, 16
      %v293 = vpop.permute.xlu0 %292
      %294 = vrot.lane.b32.xlu0 %v284, 16
      %v295 = vpop.permute.xlu0 %294
      %296 = vrot.lane.b32.xlu0 %v285, 16
      %v297 = vpop.permute.xlu0 %296
      %v298 = vrot.slane %v291, 4
      %v299 = vrot.slane %v293, 4
      %v300 = vrot.slane %v295, 4
      %v301 = vrot.slane %v297, 4
      %v302 = vsel %vm243, %v298, %v299
      %vm303 = vcmask 130048
      %v304 = vsel %vm303, %v291, %v302
      %v305 = vsel %vm243, %v300, %v301
      %v306 = vsel %vm303, %v295, %v305
      %309 = vst [vmem:[#allocation3 + $0x10] sm:$0xff] %v304
      %310 = vst [vmem:[#allocation3 + $0x18] sm:$0xff] %v306
      %v311 = vld [vmem:[#allocation2] sm:$0xff]
      %v312 = vld [vmem:[#allocation2 + $0x8] sm:$0xf]
      %v313 = vld [vmem:[#allocation2 + $0x10] sm:$0xff]
      %v314 = vld [vmem:[#allocation2 + $0x18] sm:$0xf]
      %vm315 = vcmp.le.s32.totalorder %v186, 14
      %vm316 = vcmp.le.s32.totalorder %v187, 14
      %vm317 = vmand %vm192, %vm315
      %vm318 = vmand %vm193, %vm316
      %v319 = vsel %vm317, 1, 0
      %v320 = vsel %vm318, 1, 0
      %vm321 = vcmp.eq.s32.totalorder %v319, 1
      %vm322 = vcmp.eq.s32.totalorder %v320, 1
      %vm323 = vmpackc.low %vm322, %vm321
      %v324 = vsel %vm323, 65537, 0
      %325 = vrot.lane.b32.xlu0 %v324, 113
      %v326 = vpop.permute.xlu0 %325
      %v327 = vrot.slane %v326, 4
      %vm328 = vcmask 924672
      %v329 = vsel %vm328, %v327, %v326
      %v330 = vunpack.c.l.b16 %v329
      %v331 = vunpack.c.h.b16 %v329
      %v332 = vunpack.c.l.b16 0
      %v333 = vunpack.c.h.b16 0
      %vm334 = vcmp.ne.s32.totalorder %v330, %v332
      %vm335 = vcmp.ne.s32.totalorder %v331, %v333
      %vm336 = vmpackc.low %vm335, %vm334
      %v337 = vunpack.c.l.b16 %v327
      %v338 = vunpack.c.h.b16 %v327
      %v339 = vunpack.c.l.b16 0
      %v340 = vunpack.c.h.b16 0
      %vm341 = vcmp.ne.s32.totalorder %v337, %v339
      %vm342 = vcmp.ne.s32.totalorder %v338, %v340
      %vm343 = vmpackc.low %vm342, %vm341
      %v344 = vsel %vm336, %v311, 0
      %v345 = vsel %vm343, %v312, 0
      %v346 = vsel %vm336, %v313, 0
      %v347 = vsel %vm343, %v314, 0
      %352 = vrot.lane.b32.xlu0 %v344, 15
      %v353 = vpop.permute.xlu0 %352
      %354 = vrot.lane.b32.xlu0 %v345, 15
      %v355 = vpop.permute.xlu0 %354
      %356 = vrot.lane.b32.xlu0 %v346, 15
      %v357 = vpop.permute.xlu0 %356
      %358 = vrot.lane.b32.xlu0 %v347, 15
      %v359 = vpop.permute.xlu0 %358
      %v360 = vrot.slane %v353, 4
      %v361 = vrot.slane %v355, 4
      %v362 = vrot.slane %v357, 4
      %v363 = vrot.slane %v359, 4
      %v364 = vsel %vm243, %v360, %v361
      %vm365 = vcmask 121856
      %v366 = vsel %vm365, %v353, %v364
      %v367 = vsel %vm243, %v362, %v363
      %v368 = vsel %vm365, %v357, %v367
      %371 = vst [vmem:[#allocation3 + $0x20] sm:$0xff] %v366
      %372 = vst [vmem:[#allocation3 + $0x28] sm:$0xff] %v368
      %v373 = vld [vmem:[#allocation2] sm:$0xff]
      %v374 = vld [vmem:[#allocation2 + $0x8] sm:$0xf]
      %v375 = vld [vmem:[#allocation2 + $0x10] sm:$0xff]
      %v376 = vld [vmem:[#allocation2 + $0x18] sm:$0xf]
      %v377 = vsel %vm194, 1, 0
      %v378 = vsel %vm195, 1, 0
      %vm379 = vcmp.eq.s32.totalorder %v377, 1
      %vm380 = vcmp.eq.s32.totalorder %v378, 1
      %vm381 = vmpackc.low %vm380, %vm379
      %v382 = vsel %vm381, 65537, 0
      %383 = vrot.lane.b32.xlu0 %v382, 127
      %v384 = vpop.permute.xlu0 %383
      %v385 = vrot.slane %v384, 4
      %vm386 = vcmask 1039360
      %v387 = vsel %vm386, %v385, %v384
      %v388 = vunpack.c.l.b16 %v387
      %v389 = vunpack.c.h.b16 %v387
      %v390 = vunpack.c.l.b16 0
      %v391 = vunpack.c.h.b16 0
      %vm392 = vcmp.ne.s32.totalorder %v388, %v390
      %vm393 = vcmp.ne.s32.totalorder %v389, %v391
      %vm394 = vmpackc.low %vm393, %vm392
      %v395 = vunpack.c.l.b16 %v385
      %v396 = vunpack.c.h.b16 %v385
      %v397 = vunpack.c.l.b16 0
      %v398 = vunpack.c.h.b16 0
      %vm399 = vcmp.ne.s32.totalorder %v395, %v397
      %vm400 = vcmp.ne.s32.totalorder %v396, %v398
      %vm401 = vmpackc.low %vm400, %vm399
      %v402 = vsel %vm394, %v373, 0
      %v403 = vsel %vm401, %v374, 0
      %v404 = vsel %vm394, %v375, 0
      %v405 = vsel %vm401, %v376, 0
      %410 = vrot.lane.b32.xlu0 %v402, 1
      %v411 = vpop.permute.xlu0 %410
      %412 = vrot.lane.b32.xlu0 %v403, 1
      %v413 = vpop.permute.xlu0 %412
      %414 = vrot.lane.b32.xlu0 %v404, 1
      %v415 = vpop.permute.xlu0 %414
      %416 = vrot.lane.b32.xlu0 %v405, 1
      %v417 = vpop.permute.xlu0 %416
      %v418 = vrot.slane %v411, 4
      %v419 = vrot.slane %v413, 4
      %v420 = vrot.slane %v415, 4
      %v421 = vrot.slane %v417, 4
      %v422 = vsel %vm243, %v418, %v419
      %vm423 = vcmask 7168
      %v424 = vsel %vm423, %v411, %v422
      %v425 = vsel %vm243, %v420, %v421
      %v426 = vsel %vm423, %v415, %v425
      %429 = vst [vmem:[#allocation3 + $0x30] sm:$0xff] %v424
      %430 = vst [vmem:[#allocation3 + $0x38] sm:$0xff] %v426
      %v431 = vld [vmem:[#allocation2 + $0x4] sm:$0xff]
      %v432 = vld [vmem:[#allocation2 + $0x14] sm:$0xff]
      %433 = vst [vmem:[#allocation3 + $0x40] sm:$0xff] %v431
      %434 = vst [vmem:[#allocation3 + $0x48] sm:$0xff] %v432
      %v435 = vld [vmem:[#allocation2 + $0x4] sm:$0xff]
      %v436 = vld [vmem:[#allocation2 + $0xc] sm:$0xf]
      %v437 = vld [vmem:[#allocation2 + $0x14] sm:$0xff]
      %v438 = vld [vmem:[#allocation2 + $0x1c] sm:$0xf]
      %v439 = vsel %vm315, 1, 0
      %v440 = vsel %vm316, 1, 0
      %vm441 = vcmp.eq.s32.totalorder %v439, 1
      %vm442 = vcmp.eq.s32.totalorder %v440, 1
      %vm443 = vmpackc.low %vm442, %vm441
      %v444 = vsel %vm443, 65537, 0
      %445 = vrot.lane.b32.xlu0 %v444, 1
      %v446 = vpop.permute.xlu0 %445
      %v447 = vrot.slane %v446, 4
      %v448 = vsel %vm423, %v447, %v446
      %v449 = vunpack.c.l.b16 %v448
      %v450 = vunpack.c.h.b16 %v448
      %v451 = vunpack.c.l.b16 0
      %v452 = vunpack.c.h.b16 0
      %vm453 = vcmp.ne.s32.totalorder %v449, %v451
      %vm454 = vcmp.ne.s32.totalorder %v450, %v452
      %vm455 = vmpackc.low %vm454, %vm453
      %v456 = vunpack.c.l.b16 %v447
      %v457 = vunpack.c.h.b16 %v447
      %v458 = vunpack.c.l.b16 0
      %v459 = vunpack.c.h.b16 0
      %vm460 = vcmp.ne.s32.totalorder %v456, %v458
      %vm461 = vcmp.ne.s32.totalorder %v457, %v459
      %vm462 = vmpackc.low %vm461, %vm460
      %v463 = vsel %vm455, %v435, 0
      %v464 = vsel %vm462, %v436, 0
      %v465 = vsel %vm455, %v437, 0
      %v466 = vsel %vm462, %v438, 0
      %471 = vrot.lane.b32.xlu0 %v463, 127
      %v472 = vpop.permute.xlu0 %471
      %473 = vrot.lane.b32.xlu0 %v464, 127
      %v474 = vpop.permute.xlu0 %473
      %475 = vrot.lane.b32.xlu0 %v465, 127
      %v476 = vpop.permute.xlu0 %475
      %477 = vrot.lane.b32.xlu0 %v466, 127
      %v478 = vpop.permute.xlu0 %477
      %v479 = vrot.slane %v472, 4
      %v480 = vrot.slane %v474, 4
      %v481 = vrot.slane %v476, 4
      %v482 = vrot.slane %v478, 4
      %v483 = vsel %vm243, %v479, %v480
      %v484 = vsel %vm386, %v472, %v483
      %v485 = vsel %vm243, %v481, %v482
      %v486 = vsel %vm386, %v476, %v485
      %489 = vst [vmem:[#allocation3 + $0x50] sm:$0xff] %v484
      %490 = vst [vmem:[#allocation3 + $0x58] sm:$0xff] %v486
      %v491 = vld [vmem:[#allocation2 + $0x4] sm:$0xff]
      %v492 = vld [vmem:[#allocation2 + $0xc] sm:$0xf]
      %v493 = vld [vmem:[#allocation2 + $0x14] sm:$0xff]
      %v494 = vld [vmem:[#allocation2 + $0x1c] sm:$0xf]
      %vm495 = vcmp.lt.s32.totalorder %v184, 240
      %vm496 = vcmp.lt.s32.totalorder %v185, 240
      %vm497 = vmand %vm495, %vm194
      %vm498 = vmand %vm496, %vm195
      %v499 = vsel %vm497, 1, 0
      %v500 = vsel %vm498, 1, 0
      %vm501 = vcmp.eq.s32.totalorder %v499, 1
      %vm502 = vcmp.eq.s32.totalorder %v500, 1
      %vm503 = vmpackc.low %vm502, %vm501
      %v504 = vsel %vm503, 65537, 0
      %505 = vrot.lane.b32.xlu0 %v504, 15
      %v506 = vpop.permute.xlu0 %505
      %v507 = vrot.slane %v506, 4
      %v508 = vsel %vm365, %v507, %v506
      %v509 = vunpack.c.l.b16 %v508
      %v510 = vunpack.c.h.b16 %v508
      %v511 = vunpack.c.l.b16 0
      %v512 = vunpack.c.h.b16 0
      %vm513 = vcmp.ne.s32.totalorder %v509, %v511
      %vm514 = vcmp.ne.s32.totalorder %v510, %v512
      %vm515 = vmpackc.low %vm514, %vm513
      %v516 = vunpack.c.l.b16 %v507
      %v517 = vunpack.c.h.b16 %v507
      %v518 = vunpack.c.l.b16 0
      %v519 = vunpack.c.h.b16 0
      %vm520 = vcmp.ne.s32.totalorder %v516, %v518
      %vm521 = vcmp.ne.s32.totalorder %v517, %v519
      %vm522 = vmpackc.low %vm521, %vm520
      %v523 = vsel %vm515, %v491, 0
      %v524 = vsel %vm522, %v492, 0
      %v525 = vsel %vm515, %v493, 0
      %v526 = vsel %vm522, %v494, 0
      %531 = vrot.lane.b32.xlu0 %v523, 113
      %v532 = vpop.permute.xlu0 %531
      %533 = vrot.lane.b32.xlu0 %v524, 113
      %v534 = vpop.permute.xlu0 %533
      %535 = vrot.lane.b32.xlu0 %v525, 113
      %v536 = vpop.permute.xlu0 %535
      %537 = vrot.lane.b32.xlu0 %v526, 113
      %v538 = vpop.permute.xlu0 %537
      %v539 = vrot.slane %v532, 4
      %v540 = vrot.slane %v534, 4
      %v541 = vrot.slane %v536, 4
      %v542 = vrot.slane %v538, 4
      %v543 = vsel %vm243, %v539, %v540
      %v544 = vsel %vm328, %v532, %v543
      %v545 = vsel %vm243, %v541, %v542
      %v546 = vsel %vm328, %v536, %v545
      %549 = vst [vmem:[#allocation3 + $0x60] sm:$0xff] %v544
      %550 = vst [vmem:[#allocation3 + $0x68] sm:$0xff] %v546
      %v551 = vld [vmem:[#allocation2 + $0x4] sm:$0xff]
      %v552 = vld [vmem:[#allocation2 + $0xc] sm:$0xf]
      %v553 = vld [vmem:[#allocation2 + $0x14] sm:$0xff]
      %v554 = vld [vmem:[#allocation2 + $0x1c] sm:$0xf]
      %v555 = vsel %vm495, 1, 0
      %v556 = vsel %vm496, 1, 0
      %vm557 = vcmp.eq.s32.totalorder %v555, 1
      %vm558 = vcmp.eq.s32.totalorder %v556, 1
      %vm559 = vmpackc.low %vm558, %vm557
      %v560 = vsel %vm559, 65537, 0
      %561 = vrot.lane.b32.xlu0 %v560, 16
      %v562 = vpop.permute.xlu0 %561
      %v563 = vrot.slane %v562, 4
      %v564 = vsel %vm303, %v563, %v562
      %v565 = vunpack.c.l.b16 %v564
      %v566 = vunpack.c.h.b16 %v564
      %v567 = vunpack.c.l.b16 0
      %v568 = vunpack.c.h.b16 0
      %vm569 = vcmp.ne.s32.totalorder %v565, %v567
      %vm570 = vcmp.ne.s32.totalorder %v566, %v568
      %vm571 = vmpackc.low %vm570, %vm569
      %v572 = vunpack.c.l.b16 %v563
      %v573 = vunpack.c.h.b16 %v563
      %v574 = vunpack.c.l.b16 0
      %v575 = vunpack.c.h.b16 0
      %vm576 = vcmp.ne.s32.totalorder %v572, %v574
      %vm577 = vcmp.ne.s32.totalorder %v573, %v575
      %vm578 = vmpackc.low %vm577, %vm576
      %v579 = vsel %vm571, %v551, 0
      %v580 = vsel %vm578, %v552, 0
      %v581 = vsel %vm571, %v553, 0
      %v582 = vsel %vm578, %v554, 0
      %587 = vrot.lane.b32.xlu0 %v579, 112
      %v588 = vpop.permute.xlu0 %587
      %589 = vrot.lane.b32.xlu0 %v580, 112
      %v590 = vpop.permute.xlu0 %589
      %591 = vrot.lane.b32.xlu0 %v581, 112
      %v592 = vpop.permute.xlu0 %591
      %593 = vrot.lane.b32.xlu0 %v582, 112
      %v594 = vpop.permute.xlu0 %593
      %v595 = vrot.slane %v588, 4
      %v596 = vrot.slane %v590, 4
      %v597 = vrot.slane %v592, 4
      %v598 = vrot.slane %v594, 4
      %v599 = vsel %vm243, %v595, %v596
      %v600 = vsel %vm266, %v588, %v599
      %v601 = vsel %vm243, %v597, %v598
      %v602 = vsel %vm266, %v592, %v601
      %605 = vst [vmem:[#allocation3 + $0x70] sm:$0xff] %v600
      %606 = vst [vmem:[#allocation3 + $0x78] sm:$0xff] %v602
      %v607 = vld [vmem:[#allocation2 + $0x4] sm:$0xff]
      %v608 = vld [vmem:[#allocation2 + $0xc] sm:$0xf]
      %v609 = vld [vmem:[#allocation2 + $0x14] sm:$0xff]
      %v610 = vld [vmem:[#allocation2 + $0x1c] sm:$0xf]
      %vm611 = vmand %vm495, %vm315
      %vm612 = vmand %vm496, %vm316
      %v613 = vsel %vm611, 1, 0
      %v614 = vsel %vm612, 1, 0
      %vm615 = vcmp.eq.s32.totalorder %v613, 1
      %vm616 = vcmp.eq.s32.totalorder %v614, 1
      %vm617 = vmpackc.low %vm616, %vm615
      %v618 = vsel %vm617, 65537, 0
      %619 = vrot.lane.b32.xlu0 %v618, 17
      %v620 = vpop.permute.xlu0 %619
      %v621 = vrot.slane %v620, 4
      %v622 = vsel %vm245, %v621, %v620
      %v623 = vunpack.c.l.b16 %v622
      %v624 = vunpack.c.h.b16 %v622
      %v625 = vunpack.c.l.b16 0
      %v626 = vunpack.c.h.b16 0
      %vm627 = vcmp.ne.s32.totalorder %v623, %v625
      %vm628 = vcmp.ne.s32.totalorder %v624, %v626
      %vm629 = vmpackc.low %vm628, %vm627
      %v630 = vunpack.c.l.b16 %v621
      %v631 = vunpack.c.h.b16 %v621
      %v632 = vunpack.c.l.b16 0
      %v633 = vunpack.c.h.b16 0
      %vm634 = vcmp.ne.s32.totalorder %v630, %v632
      %vm635 = vcmp.ne.s32.totalorder %v631, %v633
      %vm636 = vmpackc.low %vm635, %vm634
      %v637 = vsel %vm629, %v607, 0
      %v638 = vsel %vm636, %v608, 0
      %v639 = vsel %vm629, %v609, 0
      %v640 = vsel %vm636, %v610, 0
      %645 = vrot.lane.b32.xlu0 %v637, 111
      %v646 = vpop.permute.xlu0 %645
      %647 = vrot.lane.b32.xlu0 %v638, 111
      %v648 = vpop.permute.xlu0 %647
      %649 = vrot.lane.b32.xlu0 %v639, 111
      %v650 = vpop.permute.xlu0 %649
      %651 = vrot.lane.b32.xlu0 %v640, 111
      %v652 = vpop.permute.xlu0 %651
      %v653 = vrot.slane %v646, 4
      %v654 = vrot.slane %v648, 4
      %v655 = vrot.slane %v650, 4
      %v656 = vrot.slane %v652, 4
      %v657 = vsel %vm243, %v653, %v654
      %v658 = vsel %vm207, %v646, %v657
      %v659 = vsel %vm243, %v655, %v656
      %v660 = vsel %vm207, %v650, %v659
      %663 = vst [vmem:[#allocation3 + $0x80] sm:$0xff] %v658
      %664 = vst [vmem:[#allocation3 + $0x88] sm:$0xff] %v660
      %v665 = vld [vmem:[%s1] sm:$0xff]
      %v666 = vld [vmem:[#allocation3] sm:$0xff]
      %v667 = vld [vmem:[#allocation3 + $0x8] sm:$0xff]
      %v668 = vld [vmem:[#allocation3 + $0x10] sm:$0xff]
      %v669 = vld [vmem:[#allocation3 + $0x18] sm:$0xff]
      %v670 = vld [vmem:[#allocation3 + $0x20] sm:$0xff]
      %v671 = vld [vmem:[#allocation3 + $0x28] sm:$0xff]
      %v672 = vld [vmem:[#allocation3 + $0x30] sm:$0xff]
      %v673 = vld [vmem:[#allocation3 + $0x38] sm:$0xff]
      %v674 = vld [vmem:[#allocation3 + $0x40] sm:$0xff]
      %v675 = vld [vmem:[#allocation3 + $0x48] sm:$0xff]
      %v676 = vld [vmem:[#allocation3 + $0x50] sm:$0xff]
      %v677 = vld [vmem:[#allocation3 + $0x58] sm:$0xff]
      %v678 = vld [vmem:[#allocation3 + $0x60] sm:$0xff]
      %v679 = vld [vmem:[#allocation3 + $0x68] sm:$0xff]
      %v680 = vld [vmem:[#allocation3 + $0x70] sm:$0xff]
      %v681 = vld [vmem:[#allocation3 + $0x78] sm:$0xff]
      %v682 = vld [vmem:[#allocation3 + $0x80] sm:$0xff]
      %v683 = vld [vmem:[#allocation3 + $0x88] sm:$0xff]
      %v684 = vld [vmem:[%s2] sm:$0xff]
      %686 = vset.pattern.permute.xlu0 0
      %687 = vperm.xlu0 %686, %v684
      %v688 = vpop.permute.xlu0 %687
      %v691 = vunpack.c.l.b16 %v665
      %v692 = vunpack.c.h.b16 %v665
      %v693 = vpack.c.b16 %v691, %v691
      %v694 = vpack.c.b16 %v692, %v692
      %v714 = vunpack.c.l.b16 %v666
      %v715 = vunpack.c.h.b16 %v666
      %v716 = vunpack.c.l.b16 %v667
      %v717 = vunpack.c.h.b16 %v667
      %v718 = vunpack.c.l.b16 %v668
      %v719 = vunpack.c.h.b16 %v668
      %v720 = vunpack.c.l.b16 %v669
      %v721 = vunpack.c.h.b16 %v669
      %v722 = vunpack.c.l.b16 %v670
      %v723 = vunpack.c.h.b16 %v670
      %v724 = vunpack.c.l.b16 %v671
      %v725 = vunpack.c.h.b16 %v671
      %v726 = vunpack.c.l.b16 %v672
      %v727 = vunpack.c.h.b16 %v672
      %v728 = vunpack.c.l.b16 %v673
      %v729 = vunpack.c.h.b16 %v673
      %v730 = vunpack.c.l.b16 %v674
      %v731 = vunpack.c.h.b16 %v674
      %v732 = vunpack.c.l.b16 %v675
      %v733 = vunpack.c.h.b16 %v675
      %v734 = vunpack.c.l.b16 %v676
      %v735 = vunpack.c.h.b16 %v676
      %v736 = vunpack.c.l.b16 %v677
      %v737 = vunpack.c.h.b16 %v677
      %v738 = vunpack.c.l.b16 %v678
      %v739 = vunpack.c.h.b16 %v678
      %v740 = vunpack.c.l.b16 %v679
      %v741 = vunpack.c.h.b16 %v679
      %v742 = vunpack.c.l.b16 %v680
      %v743 = vunpack.c.h.b16 %v680
      %v744 = vunpack.c.l.b16 %v681
      %v745 = vunpack.c.h.b16 %v681
      %v746 = vunpack.c.l.b16 %v682
      %v747 = vunpack.c.h.b16 %v682
      %v748 = vunpack.c.l.b16 %v683
      %v749 = vunpack.c.h.b16 %v683
      %v750 = vpack.c.b16 %v716, %v714
      %v751 = vpack.c.b16 %v717, %v715
      %v752 = vpack.c.b16 %v720, %v718
      %v753 = vpack.c.b16 %v721, %v719
      %v754 = vpack.c.b16 %v724, %v722
      %v755 = vpack.c.b16 %v725, %v723
      %v756 = vpack.c.b16 %v728, %v726
      %v757 = vpack.c.b16 %v729, %v727
      %v758 = vpack.c.b16 %v732, %v730
      %v759 = vpack.c.b16 %v733, %v731
      %v760 = vpack.c.b16 %v736, %v734
      %v761 = vpack.c.b16 %v737, %v735
      %v762 = vpack.c.b16 %v740, %v738
      %v763 = vpack.c.b16 %v741, %v739
      %v764 = vpack.c.b16 %v744, %v742
      %v765 = vpack.c.b16 %v745, %v743
      %v766 = vpack.c.b16 %v748, %v746
      %v767 = vpack.c.b16 %v749, %v747
      %vm786 = vcmask 130048
      %v788 = vsel %vm786, %v694, 0
      %790 = vmatpush.bf16.msra.mxu0 %v764
      %791 = vmatpush.bf16.msra.mxu0 %v762
      %792 = vmatpush.bf16.msra.mxu0 %v760
      %793 = vmatpush.bf16.msra.mxu0 %v758
      %794 = vmatpush.bf16.msra.mxu0 %v756
      %795 = vmatpush.bf16.msra.mxu0 %v754
      %796 = vmatpush.bf16.msra.mxu0 %v752
      %797 = vmatpush.bf16.msra.mxu0 %v750
      %798 = vmatmul.bf16.gmra.mxu0 %v693
      %v799 = vpop.f32.mrf.mxu0
      %v800 = vadd.f32 %v688, %v799
      %v801 = vpop.f32.mrf.mxu0
      %802 = vdwg.mxu0
      %803 = vmatpush.bf16.msra.mxu0 0
      %804 = vmatpush.bf16.msra.mxu0 0
      %805 = vmatpush.bf16.msra.mxu0 0
      %806 = vmatpush.bf16.msra.mxu0 0
      %807 = vmatpush.bf16.msra.mxu0 0
      %808 = vmatpush.bf16.msra.mxu0 0
      %809 = vmatpush.bf16.msra.mxu0 0
      %810 = vmatpush.bf16.msra.mxu0 %v766
      %811 = vmatmul.bf16.gmra.mxu0 %v788
      %v812 = vpop.f32.mrf.mxu0
      %v813 = vadd.f32 %v800, %v812
      %v814 = vpop.f32.mrf.mxu0
      %815 = vdwg.mxu0
      %816 = vmatpush.bf16.msra.mxu0 %v765
      %817 = vmatpush.bf16.msra.mxu0 %v763
      %818 = vmatpush.bf16.msra.mxu0 %v761
      %819 = vmatpush.bf16.msra.mxu0 %v759
      %820 = vmatpush.bf16.msra.mxu0 %v757
      %821 = vmatpush.bf16.msra.mxu0 %v755
      %822 = vmatpush.bf16.msra.mxu0 %v753
      %823 = vmatpush.bf16.msra.mxu0 %v751
      %824 = vmatmul.bf16.gmra.mxu0 %v693
      %v825 = vpop.f32.mrf.mxu0
      %v826 = vadd.f32 %v688, %v825
      %v827 = vpop.f32.mrf.mxu0
      %828 = vdwg.mxu0
      %829 = vmatpush.bf16.msra.mxu0 0
      %830 = vmatpush.bf16.msra.mxu0 0
      %831 = vmatpush.bf16.msra.mxu0 0
      %832 = vmatpush.bf16.msra.mxu0 0
      %833 = vmatpush.bf16.msra.mxu0 0
      %834 = vmatpush.bf16.msra.mxu0 0
      %835 = vmatpush.bf16.msra.mxu0 0
      %836 = vmatpush.bf16.msra.mxu0 %v767
      %837 = vmatmul.bf16.gmra.mxu0 %v788
      %v838 = vpop.f32.mrf.mxu0
      %v839 = vadd.f32 %v826, %v838
      %v840 = vpop.f32.mrf.mxu0
      %841 = vdwg.mxu0
      %v842 = vxor.u32 %v813, 2147483648
      %v843 = vxor.u32 %v839, 2147483648
      %v844 = vmul.f32 %v842, 1.442695
      %v845 = vpow.pop %v844
      %v846 = vmul.f32 %v843, 1.442695
      %v847 = vpow.pop %v846
      %v848 = vadd.f32 %v845, 1.0
      %v849 = vadd.f32 %v847, 1.0
      %v850 = vrcp.pop %v848
      %v851 = vmul.f32 %v848, %v850
      %v852 = vsub.f32 1.0, %v851
      %v853 = vmul.f32 %v850, %v852
      %v854 = vadd.f32 %v850, %v853
      %vm855 = vweird.f32 %v848
      %vm856 = vweird.f32 %v850
      %vm857 = vmor %vm855, %vm856
      %v858 = vsel %vm857, %v850, %v854
      %v859 = vand.u32 2147483647, %v848
      %vm860 = vcmp.eq.f32.partialorder %v859, 8.507059e+37
      %v861 = vand.u32 %v848, 2147483648
      %v862 = vor.u32 1.1754944e-38, %v861
      %v863 = vsel %vm860, %v862, %v858
      %v864 = vmul.f32 1.0, %v863
      %v865 = vrcp.pop %v849
      %v866 = vmul.f32 %v849, %v865
      %v867 = vsub.f32 1.0, %v866
      %v868 = vmul.f32 %v865, %v867
      %v869 = vadd.f32 %v865, %v868
      %vm870 = vweird.f32 %v849
      %vm871 = vweird.f32 %v865
      %vm872 = vmor %vm870, %vm871
      %v873 = vsel %vm872, %v865, %v869
      %v874 = vand.u32 2147483647, %v849
      %vm875 = vcmp.eq.f32.partialorder %v874, 8.507059e+37
      %v876 = vand.u32 %v849, 2147483648
      %v877 = vor.u32 1.1754944e-38, %v876
      %v878 = vsel %vm875, %v877, %v873
      %v879 = vmul.f32 1.0, %v878
      %880 = vst [vmem:[%s170] sm:$0xff] %v864
      %881 = vst [vmem:[%s170 + $0x8] sm:$0xff] %v879
      %p882 = scmp.lt.s32.totalorder %s14, 1
      %s883 = scalar_select %p882, %s14, 1
      %s884 = smul.addr %s883, 2
      %s885 = smul.addr %s884, 8
      %s886 = scalar_lea.vmem %s3, %s885
      // Predicated region
      $region33: #{sipr_forward.11} parent=31 // pred_check
        %p887 = pneg %p100
      $region34: #{sipr_forward.11} parent=31 // pred_check_branch
        %889 = sbr.rel (%p887) target = $region36
      $region35: #{sipr_forward.11} parent=31 // pred_region
        _
      $region36: #{sipr_forward.11} parent=31 // pred_fallthru
        _
    $region32: #{sipr_forward.11} parent=5 // pred_fallthru
      _
    %p890 = scmp.le.s32.totalorder 2, %s9
    // Predicated region
    $region37: #{sipr_forward.11} parent=5 // pred_check
      %p891 = pneg %p890
    $region38: #{sipr_forward.11} parent=5 // pred_check_branch
      %893 = sbr.rel (%p891) target = $region40
    $region39: #{sipr_forward.11} parent=5 // pred_region
      %s894 = ssub.s32 %s9, 2
      // Predicated region
      $region41: #{sipr_forward.11} parent=39 // pred_check
        %p895 = pneg %p106
      $region42: #{sipr_forward.11} parent=39 // pred_check_branch
        %897 = sbr.rel (%p895) target = $region44
      $region43: #{sipr_forward.11} parent=39 // pred_region
        %p898 = scmp.lt.s32.totalorder %s15, 1
        %s899 = scalar_select %p898, %s15, 1
        %s900 = smul.addr %s899, 2
        %s901 = smul.addr %s900, 8
        %s902 = scalar_lea.vmem %s3, %s901
      $region44: #{sipr_forward.11} parent=39 // pred_fallthru
        _
    $region40: #{sipr_forward.11} parent=5 // pred_fallthru
      _
  $region6: #{sipr_forward.11} parent=0 // loop_footer
    %s13 = sadd.s32 1, %s9
  $region7: #{sipr_forward.11} parent=0 // loop_footer_branch
    %8 = sbr.rel target = $region3
  $region8: #{sipr_forward.11} parent=0 // loop_exit
    _

// kernel: sipr_forward.10
$region0: #{sipr_forward.10}
  #allocation0 [shape = 'u32[]', space=smem, size = 0x4, offset = 0x4, fixed_abs, tag = 'smem constant byte address 0x4 - core index']
  #allocation1 [shape = 'u32[72,128]{1,0:T(1,128)}', space=vmem, size = 0x9000, scoped, tag = 'internal scratch']
  #allocation2 [shape = 'bf16[32,401]{1,0:T(8,128)(2,1)}', space=vmem, size = 0x8000, scoped, tag = 'scratch operand']
  #allocation3 [shape = 'bf16[288,256]{1,0:T(8,128)(2,1)}', space=vmem, size = 0x24000, scoped, tag = 'scratch operand']
  %s0 = inlined_call_operand.vmem [shape: bf16[2,32,256], index: 0, kind: input, shape index: {}]
  %s1 = inlined_call_operand.vmem [shape: bf16[16,288], index: 1, kind: input, shape index: {}]
  %s2 = inlined_call_operand.vmem [shape: f32[16,1], index: 2, kind: input, shape index: {}]
  %s3 = inlined_call_operand.vmem [shape: bf16[2,16,256], index: 3, kind: output, shape index: {}]
  %s4 = sld [smem:[#allocation0]]
  $region45: #{sipr_forward.10} parent=0
    _
  %s6 = ssub.s32 1, %s4
  %s7 = scalar_select 0, %s6, %s4
  loop: start=0, step=1, limit=4
  $region2: #{sipr_forward.10} parent=0 // loop_pre_header
    _
  $region3: #{sipr_forward.10} parent=0 // loop_header
    %s9 = sphi 0, %s13
    %p10 = scmp.ge.s32.totalorder %s9, 4
    %s19 = sphi 0, %s21
    %s22 = sphi 0, %s19
    %s23 = sphi 0, %s22
    %s39 = sphi 0, %s23
    %s43 = sphi 0, %s43
    %s45 = sphi 0, %s43
    %s46 = sphi 0, %s45
    %s60 = sphi 0, %s46
    %s64 = sphi 0, %s64
    %s66 = sphi 0, %s64
    %s67 = sphi 0, %s66
    %s81 = sphi 0, %s67
    %s87 = sphi 0, %s89
    %s90 = sphi 0, %s87
    %s91 = sphi 0, %s90
    %s107 = sphi 0, %s91
  $region4: #{sipr_forward.10} parent=0 // loop_header_branch
    %12 = sbr.rel (%p10) target = $region8
  $region5: #{sipr_forward.10} parent=0 // loop_body
    %s14 = ssub.s32 %s9, 1
    %s15 = ssub.s32 %s9, 2
    %s16 = sadd.s32 %s9, 1
    %s17 = ssub.s32 %s9, %s16
    %p18 = scmp.eq.s32.totalorder %s17, 0
    %s20 = sadd.s32 %s19, 1
    %s21 = scalar_select %p18, %s19, %s20
    %p24 = pneg %p18
    %p25 = scmp.eq.s32.totalorder %s9, 1
    %p26 = por %p24, %p25
    %p27 = scmp.ne.s32.totalorder %s19, %s22
    %p28 = scmp.eq.s32.totalorder %s9, 0
    %p29 = por %p27, %p28
    %p30 = scmp.ne.s32.totalorder %s19, %s22
    %p31 = scmp.eq.s32.totalorder %s14, 1
    %p32 = por %p30, %p31
    %p33 = scmp.ne.s32.totalorder %s22, %s23
    %p34 = scmp.eq.s32.totalorder %s14, 0
    %p35 = por %p33, %p34
    %p36 = scmp.ne.s32.totalorder %s22, %s23
    %p37 = scmp.eq.s32.totalorder %s15, 1
    %p38 = por %p36, %p37
    %p40 = scmp.ne.s32.totalorder %s23, %s39
    %p41 = scmp.eq.s32.totalorder %s15, 0
    %p42 = por %p40, %p41
    %s44 = sadd.s32 %s43, 1
    %p47 = scmp.eq.s32.totalorder %s9, 1
    %p48 = scmp.ne.s32.totalorder %s43, %s45
    %p49 = scmp.eq.s32.totalorder %s9, 0
    %p50 = por %p48, %p49
    %p51 = scmp.ne.s32.totalorder %s43, %s45
    %p52 = scmp.eq.s32.totalorder %s14, 1
    %p53 = por %p51, %p52
    %p54 = scmp.ne.s32.totalorder %s45, %s46
    %p55 = scmp.eq.s32.totalorder %s14, 0
    %p56 = por %p54, %p55
    %p57 = scmp.ne.s32.totalorder %s45, %s46
    %p58 = scmp.eq.s32.totalorder %s15, 1
    %p59 = por %p57, %p58
    %p61 = scmp.ne.s32.totalorder %s46, %s60
    %p62 = scmp.eq.s32.totalorder %s15, 0
    %p63 = por %p61, %p62
    %s65 = sadd.s32 %s64, 1
    %p68 = scmp.eq.s32.totalorder %s9, 1
    %p69 = scmp.ne.s32.totalorder %s64, %s66
    %p70 = scmp.eq.s32.totalorder %s9, 0
    %p71 = por %p69, %p70
    %p72 = scmp.ne.s32.totalorder %s64, %s66
    %p73 = scmp.eq.s32.totalorder %s14, 1
    %p74 = por %p72, %p73
    %p75 = scmp.ne.s32.totalorder %s66, %s67
    %p76 = scmp.eq.s32.totalorder %s14, 0
    %p77 = por %p75, %p76
    %p78 = scmp.ne.s32.totalorder %s66, %s67
    %p79 = scmp.eq.s32.totalorder %s15, 1
    %p80 = por %p78, %p79
    %p82 = scmp.ne.s32.totalorder %s67, %s81
    %p83 = scmp.eq.s32.totalorder %s15, 0
    %p84 = por %p82, %p83
    %s85 = ssub.s32 %s9, %s16
    %p86 = scmp.eq.s32.totalorder %s85, 0
    %s88 = sadd.s32 %s87, 1
    %s89 = scalar_select %p86, %s87, %s88
    %p92 = pneg %p86
    %p93 = scmp.eq.s32.totalorder %s9, 1
    %p94 = por %p92, %p93
    %p95 = scmp.ne.s32.totalorder %s87, %s90
    %p96 = scmp.eq.s32.totalorder %s9, 0
    %p97 = por %p95, %p96
    %p98 = scmp.ne.s32.totalorder %s87, %s90
    %p99 = scmp.eq.s32.totalorder %s14, 1
    %p100 = por %p98, %p99
    %p101 = scmp.ne.s32.totalorder %s90, %s91
    %p102 = scmp.eq.s32.totalorder %s14, 0
    %p103 = por %p101, %p102
    %p104 = scmp.ne.s32.totalorder %s90, %s91
    %p105 = scmp.eq.s32.totalorder %s15, 1
    %p106 = por %p104, %p105
    %p108 = scmp.ne.s32.totalorder %s91, %s107
    %p109 = scmp.eq.s32.totalorder %s15, 0
    %p110 = por %p108, %p109
    %p111 = scmp.le.s32.totalorder 1, %s9
    %p112 = scmp.lt.s32.totalorder %s9, 3
    %p113 = pnand %p111, %p112
    %p114 = pneg %p113
    // Predicated region
    $region9: #{sipr_forward.10} parent=5 // pred_check
      _
    $region10: #{sipr_forward.10} parent=5 // pred_check_branch
      %116 = sbr.rel (%p113) target = $region12
    $region11: #{sipr_forward.10} parent=5 // pred_region
      %s117 = ssub.s32 %s9, 1
      // Predicated region
      $region13: #{sipr_forward.10} parent=11 // pred_check
        %p118 = pneg %p56
      $region14: #{sipr_forward.10} parent=11 // pred_check_branch
        %120 = sbr.rel (%p118) target = $region16
      $region15: #{sipr_forward.10} parent=11 // pred_region
        _
      $region16: #{sipr_forward.10} parent=11 // pred_fallthru
        _
      // Predicated region
      $region17: #{sipr_forward.10} parent=11 // pred_check
        %p121 = pneg %p77
      $region18: #{sipr_forward.10} parent=11 // pred_check_branch
        %123 = sbr.rel (%p121) target = $region20
      $region19: #{sipr_forward.10} parent=11 // pred_region
        _
      $region20: #{sipr_forward.10} parent=11 // pred_fallthru
        _
    $region12: #{sipr_forward.10} parent=5 // pred_fallthru
      _
    %p124 = scmp.lt.s32.totalorder %s9, 2
    // Predicated region
    $region21: #{sipr_forward.10} parent=5 // pred_check
      %p125 = pneg %p124
    $region22: #{sipr_forward.10} parent=5 // pred_check_branch
      %127 = sbr.rel (%p125) target = $region24
    $region23: #{sipr_forward.10} parent=5 // pred_region
      // Predicated region
      $region25: #{sipr_forward.10} parent=23 // pred_check
        %p128 = pneg %p29
      $region26: #{sipr_forward.10} parent=23 // pred_check_branch
        %130 = sbr.rel (%p128) target = $region28
      $region27: #{sipr_forward.10} parent=23 // pred_region
        %p131 = scmp.lt.s32.totalorder %s9, 1
        %s132 = scalar_select %p131, %s9, 1
        %s133 = smul.addr %s132, 8
        %s134 = smul.addr %s133, 4
        %s135 = scalar_lea.vmem %s0, %s134
      $region28: #{sipr_forward.10} parent=23 // pred_fallthru
        _
    $region24: #{sipr_forward.10} parent=5 // pred_fallthru
      _
    %p136 = scmp.le.s32.totalorder 1, %s9
    %p137 = scmp.lt.s32.totalorder %s9, 3
    %p138 = pnand %p136, %p137
    %p139 = pneg %p138
    // Predicated region
    $region29: #{sipr_forward.10} parent=5 // pred_check
      _
    $region30: #{sipr_forward.10} parent=5 // pred_check_branch
      %141 = sbr.rel (%p138) target = $region32
    $region31: #{sipr_forward.10} parent=5 // pred_region
      %s142 = ssub.s32 %s9, 1
      %p143 = scmp.lt.s32.totalorder %s14, 1
      %s144 = scalar_select %p143, %s14, 1
      %s145 = smul.addr %s144, 8
      %s146 = smul.addr %s145, 4
      %s147 = scalar_lea.vmem %s0, %s146
      %p148 = pneg %p35
      %p149 = pneg %p32
      %p150 = pneg %p56
      %p151 = pneg %p53
      %p152 = pneg %p77
      %p153 = pneg %p74
      %p154 = pneg %p103
      %p155 = pneg %p100
      %p156 = scmp.lt.s32.totalorder %s14, 1
      %s157 = scalar_select %p156, %s14, 1
      %s158 = smul.addr %s157, 4
      %s159 = smul.addr %s158, 4
      %s160 = scalar_lea.vmem %s3, %s159
      %p161 = scmp.lt.s32.totalorder %s14, 1
      %s162 = scalar_select %p161, %s14, 1
      %s163 = smul.addr %s162, 8
      %s164 = smul.addr %s163, 4
      %s165 = scalar_lea.vmem %s0, %s164
      %p166 = scmp.lt.s32.totalorder %s14, 1
      %s167 = scalar_select %p166, %s14, 1
      %s168 = smul.addr %s167, 4
      %s169 = smul.addr %s168, 4
      %s170 = scalar_lea.vmem %s3, %s169
      %174 = vst [vmem:[#allocation2] sm:$0xf] 0
      %175 = vst [vmem:[#allocation2 + $0x10] sm:$0xf] 0
      %176 = vst [vmem:[#allocation2 + $0x20] sm:$0xf] 0
      %177 = vst [vmem:[#allocation2 + $0x30] sm:$0xf] 0
      %vm178 = vcmask 134144
      %179 = vst.msk [vmem:[#allocation2 + $0xc] sm:$0xf] %vm178, 0
      %180 = vst.msk [vmem:[#allocation2 + $0x1c] sm:$0xf] %vm178, 0
      %181 = vst.msk [vmem:[#allocation2 + $0x2c] sm:$0xf] %vm178, 0
      %182 = vst.msk [vmem:[#allocation2 + $0x3c] sm:$0xf] %vm178, 0
      %v183 = vld [vmem:[%s165] sm:$0xff]
      %v184 = vld [vmem:[%s165 + $0x8] sm:$0xff]
      %v185 = vld [vmem:[%s165 + $0x10] sm:$0xff]
      %v186 = vld [vmem:[%s165 + $0x18] sm:$0xff]
      %187 = vst [vmem:[#allocation2 + $0x4] sm:$0xff] %v183
      %188 = vst [vmem:[#allocation2 + $0x14] sm:$0xff] %v184
      %189 = vst [vmem:[#allocation2 + $0x24] sm:$0xff] %v185
      %190 = vst [vmem:[#allocation2 + $0x34] sm:$0xff] %v186
      %v191 = vlaneseq
      %v192 = vand.u32 %v191, 127
      %v193 = vadd.s32 %v192, 128
      %v194 = vand.u32 %v192, 15
      %v195 = vand.u32 %v193, 15
      %v196 = vld [vmem:[#allocation2] sm:$0xff]
      %v197 = vld [vmem:[#allocation2 + $0x8] sm:$0xf]
      %v198 = vld [vmem:[#allocation2 + $0x10] sm:$0xff]
      %v199 = vld [vmem:[#allocation2 + $0x18] sm:$0xf]
      %v200 = vld [vmem:[#allocation2 + $0x20] sm:$0xff]
      %v201 = vld [vmem:[#allocation2 + $0x28] sm:$0xf]
      %v202 = vld [vmem:[#allocation2 + $0x30] sm:$0xff]
      %v203 = vld [vmem:[#allocation2 + $0x38] sm:$0xf]
      %vm204 = vcmp.ge.s32.totalorder %v192, 16
      %vm205 = vcmp.ge.s32.totalorder %v193, 16
      %vm206 = vcmp.ge.s32.totalorder %v194, 1
      %vm207 = vcmp.ge.s32.totalorder %v195, 1
      %vm208 = vmand %vm204, %vm206
      %vm209 = vmand %vm205, %vm207
      %v210 = vsel %vm208, 1, 0
      %v211 = vsel %vm209, 1, 0
      %vm212 = vcmp.eq.s32.totalorder %v210, 1
      %vm213 = vcmp.eq.s32.totalorder %v211, 1
      %vm214 = vmpackc.low %vm213, %vm212
      %v215 = vsel %vm214, 65537, 0
      %216 = vrot.lane.b32.xlu0 %v215, 111
      %v217 = vpop.permute.xlu0 %216
      %v218 = vrot.slane %v217, 4
      %vm219 = vcmask 908288
      %v220 = vsel %vm219, %v218, %v217
      %v221 = vunpack.c.l.b16 %v220
      %v222 = vunpack.c.h.b16 %v220
      %v223 = vunpack.c.l.b16 0
      %v224 = vunpack.c.h.b16 0
      %vm225 = vcmp.ne.s32.totalorder %v221, %v223
      %vm226 = vcmp.ne.s32.totalorder %v222, %v224
      %vm227 = vmpackc.low %vm226, %vm225
      %v228 = vunpack.c.l.b16 %v218
      %v229 = vunpack.c.h.b16 %v218
      %v230 = vunpack.c.l.b16 0
      %v231 = vunpack.c.h.b16 0
      %vm232 = vcmp.ne.s32.totalorder %v228, %v230
      %vm233 = vcmp.ne.s32.totalorder %v229, %v231
      %vm234 = vmpackc.low %vm233, %vm232
      %v235 = vsel %vm227, %v196, 0
      %v236 = vsel %vm234, %v197, 0
      %v237 = vsel %vm227, %v198, 0
      %v238 = vsel %vm234, %v199, 0
      %v239 = vsel %vm227, %v200, 0
      %v240 = vsel %vm234, %v201, 0
      %v241 = vsel %vm227, %v202, 0
      %v242 = vsel %vm234, %v203, 0
      %251 = vrot.lane.b32.xlu0 %v235, 17
      %v252 = vpop.permute.xlu0 %251
      %253 = vrot.lane.b32.xlu0 %v236, 17
      %v254 = vpop.permute.xlu0 %253
      %255 = vrot.lane.b32.xlu0 %v237, 17
      %v256 = vpop.permute.xlu0 %255
      %257 = vrot.lane.b32.xlu0 %v238, 17
      %v258 = vpop.permute.xlu0 %257
      %259 = vrot.lane.b32.xlu0 %v239, 17
      %v260 = vpop.permute.xlu0 %259
      %261 = vrot.lane.b32.xlu0 %v240, 17
      %v262 = vpop.permute.xlu0 %261
      %263 = vrot.lane.b32.xlu0 %v241, 17
      %v264 = vpop.permute.xlu0 %263
      %265 = vrot.lane.b32.xlu0 %v242, 17
      %v266 = vpop.permute.xlu0 %265
      %v267 = vrot.slane %v252, 4
      %v268 = vrot.slane %v254, 4
      %v269 = vrot.slane %v256, 4
      %v270 = vrot.slane %v258, 4
      %v271 = vrot.slane %v260, 4
      %v272 = vrot.slane %v262, 4
      %v273 = vrot.slane %v264, 4
      %v274 = vrot.slane %v266, 4
      %vm275 = vcmask 1043456
      %v276 = vsel %vm275, %v267, %v268
      %vm277 = vcmask 138240
      %v278 = vsel %vm277, %v252, %v276
      %v279 = vsel %vm275, %v269, %v270
      %v280 = vsel %vm277, %v256, %v279
      %v281 = vsel %vm275, %v271, %v272
      %v282 = vsel %vm277, %v260, %v281
      %v283 = vsel %vm275, %v273, %v274
      %v284 = vsel %vm277, %v264, %v283
      %289 = vst [vmem:[#allocation3] sm:$0xff] %v278
      %290 = vst [vmem:[#allocation3 + $0x8] sm:$0xff] %v280
      %291 = vst [vmem:[#allocation3 + $0x10] sm:$0xff] %v282
      %292 = vst [vmem:[#allocation3 + $0x18] sm:$0xff] %v284
      %v293 = vld [vmem:[#allocation2] sm:$0xff]
      %v294 = vld [vmem:[#allocation2 + $0x8] sm:$0xf]
      %v295 = vld [vmem:[#allocation2 + $0x10] sm:$0xff]
      %v296 = vld [vmem:[#allocation2 + $0x18] sm:$0xf]
      %v297 = vld [vmem:[#allocation2 + $0x20] sm:$0xff]
      %v298 = vld [vmem:[#allocation2 + $0x28] sm:$0xf]
      %v299 = vld [vmem:[#allocation2 + $0x30] sm:$0xff]
      %v300 = vld [vmem:[#allocation2 + $0x38] sm:$0xf]
      %v301 = vsel %vm204, 1, 0
      %v302 = vsel %vm205, 1, 0
      %vm303 = vcmp.eq.s32.totalorder %v301, 1
      %vm304 = vcmp.eq.s32.totalorder %v302, 1
      %vm305 = vmpackc.low %vm304, %vm303
      %v306 = vsel %vm305, 65537, 0
      %307 = vrot.lane.b32.xlu0 %v306, 112
      %v308 = vpop.permute.xlu0 %307
      %v309 = vrot.slane %v308, 4
      %vm310 = vcmask 916480
      %v311 = vsel %vm310, %v309, %v308
      %v312 = vunpack.c.l.b16 %v311
      %v313 = vunpack.c.h.b16 %v311
      %v314 = vunpack.c.l.b16 0
      %v315 = vunpack.c.h.b16 0
      %vm316 = vcmp.ne.s32.totalorder %v312, %v314
      %vm317 = vcmp.ne.s32.totalorder %v313, %v315
      %vm318 = vmpackc.low %vm317, %vm316
      %v319 = vunpack.c.l.b16 %v309
      %v320 = vunpack.c.h.b16 %v309
      %v321 = vunpack.c.l.b16 0
      %v322 = vunpack.c.h.b16 0
      %vm323 = vcmp.ne.s32.totalorder %v319, %v321
      %vm324 = vcmp.ne.s32.totalorder %v320, %v322
      %vm325 = vmpackc.low %vm324, %vm323
      %v326 = vsel %vm318, %v293, 0
      %v327 = vsel %vm325, %v294, 0
      %v328 = vsel %vm318, %v295, 0
      %v329 = vsel %vm325, %v296, 0
      %v330 = vsel %vm318, %v297, 0
      %v331 = vsel %vm325, %v298, 0
      %v332 = vsel %vm318, %v299, 0
      %v333 = vsel %vm325, %v300, 0
      %342 = vrot.lane.b32.xlu0 %v326, 16
      %v343 = vpop.permute.xlu0 %342
      %344 = vrot.lane.b32.xlu0 %v327, 16
      %v345 = vpop.permute.xlu0 %344
      %346 = vrot.lane.b32.xlu0 %v328, 16
      %v347 = vpop.permute.xlu0 %346
      %348 = vrot.lane.b32.xlu0 %v329, 16
      %v349 = vpop.permute.xlu0 %348
      %350 = vrot.lane.b32.xlu0 %v330, 16
      %v351 = vpop.permute.xlu0 %350
      %352 = vrot.lane.b32.xlu0 %v331, 16
      %v353 = vpop.permute.xlu0 %352
      %354 = vrot.lane.b32.xlu0 %v332, 16
      %v355 = vpop.permute.xlu0 %354
      %356 = vrot.lane.b32.xlu0 %v333, 16
      %v357 = vpop.permute.xlu0 %356
      %v358 = vrot.slane %v343, 4
      %v359 = vrot.slane %v345, 4
      %v360 = vrot.slane %v347, 4
      %v361 = vrot.slane %v349, 4
      %v362 = vrot.slane %v351, 4
      %v363 = vrot.slane %v353, 4
      %v364 = vrot.slane %v355, 4
      %v365 = vrot.slane %v357, 4
      %v366 = vsel %vm275, %v358, %v359
      %vm367 = vcmask 130048
      %v368 = vsel %vm367, %v343, %v366
      %v369 = vsel %vm275, %v360, %v361
      %v370 = vsel %vm367, %v347, %v369
      %v371 = vsel %vm275, %v362, %v363
      %v372 = vsel %vm367, %v351, %v371
      %v373 = vsel %vm275, %v364, %v365
      %v374 = vsel %vm367, %v355, %v373
      %379 = vst [vmem:[#allocation3 + $0x20] sm:$0xff] %v368
      %380 = vst [vmem:[#allocation3 + $0x28] sm:$0xff] %v370
      %381 = vst [vmem:[#allocation3 + $0x30] sm:$0xff] %v372
      %382 = vst [vmem:[#allocation3 + $0x38] sm:$0xff] %v374
      %v383 = vld [vmem:[#allocation2] sm:$0xff]
      %v384 = vld [vmem:[#allocation2 + $0x8] sm:$0xf]
      %v385 = vld [vmem:[#allocation2 + $0x10] sm:$0xff]
      %v386 = vld [vmem:[#allocation2 + $0x18] sm:$0xf]
      %v387 = vld [vmem:[#allocation2 + $0x20] sm:$0xff]
      %v388 = vld [vmem:[#allocation2 + $0x28] sm:$0xf]
      %v389 = vld [vmem:[#allocation2 + $0x30] sm:$0xff]
      %v390 = vld [vmem:[#allocation2 + $0x38] sm:$0xf]
      %vm391 = vcmp.le.s32.totalorder %v194, 14
      %vm392 = vcmp.le.s32.totalorder %v195, 14
      %vm393 = vmand %vm204, %vm391
      %vm394 = vmand %vm205, %vm392
      %v395 = vsel %vm393, 1, 0
      %v396 = vsel %vm394, 1, 0
      %vm397 = vcmp.eq.s32.totalorder %v395, 1
      %vm398 = vcmp.eq.s32.totalorder %v396, 1
      %vm399 = vmpackc.low %vm398, %vm397
      %v400 = vsel %vm399, 65537, 0
      %401 = vrot.lane.b32.xlu0 %v400, 113
      %v402 = vpop.permute.xlu0 %401
      %v403 = vrot.slane %v402, 4
      %vm404 = vcmask 924672
      %v405 = vsel %vm404, %v403, %v402
      %v406 = vunpack.c.l.b16 %v405
      %v407 = vunpack.c.h.b16 %v405
      %v408 = vunpack.c.l.b16 0
      %v409 = vunpack.c.h.b16 0
      %vm410 = vcmp.ne.s32.totalorder %v406, %v408
      %vm411 = vcmp.ne.s32.totalorder %v407, %v409
      %vm412 = vmpackc.low %vm411, %vm410
      %v413 = vunpack.c.l.b16 %v403
      %v414 = vunpack.c.h.b16 %v403
      %v415 = vunpack.c.l.b16 0
      %v416 = vunpack.c.h.b16 0
      %vm417 = vcmp.ne.s32.totalorder %v413, %v415
      %vm418 = vcmp.ne.s32.totalorder %v414, %v416
      %vm419 = vmpackc.low %vm418, %vm417
      %v420 = vsel %vm412, %v383, 0
      %v421 = vsel %vm419, %v384, 0
      %v422 = vsel %vm412, %v385, 0
      %v423 = vsel %vm419, %v386, 0
      %v424 = vsel %vm412, %v387, 0
      %v425 = vsel %vm419, %v388, 0
      %v426 = vsel %vm412, %v389, 0
      %v427 = vsel %vm419, %v390, 0
      %436 = vrot.lane.b32.xlu0 %v420, 15
      %v437 = vpop.permute.xlu0 %436
      %438 = vrot.lane.b32.xlu0 %v421, 15
      %v439 = vpop.permute.xlu0 %438
      %440 = vrot.lane.b32.xlu0 %v422, 15
      %v441 = vpop.permute.xlu0 %440
      %442 = vrot.lane.b32.xlu0 %v423, 15
      %v443 = vpop.permute.xlu0 %442
      %444 = vrot.lane.b32.xlu0 %v424, 15
      %v445 = vpop.permute.xlu0 %444
      %446 = vrot.lane.b32.xlu0 %v425, 15
      %v447 = vpop.permute.xlu0 %446
      %448 = vrot.lane.b32.xlu0 %v426, 15
      %v449 = vpop.permute.xlu0 %448
      %450 = vrot.lane.b32.xlu0 %v427, 15
      %v451 = vpop.permute.xlu0 %450
      %v452 = vrot.slane %v437, 4
      %v453 = vrot.slane %v439, 4
      %v454 = vrot.slane %v441, 4
      %v455 = vrot.slane %v443, 4
      %v456 = vrot.slane %v445, 4
      %v457 = vrot.slane %v447, 4
      %v458 = vrot.slane %v449, 4
      %v459 = vrot.slane %v451, 4
      %v460 = vsel %vm275, %v452, %v453
      %vm461 = vcmask 121856
      %v462 = vsel %vm461, %v437, %v460
      %v463 = vsel %vm275, %v454, %v455
      %v464 = vsel %vm461, %v441, %v463
      %v465 = vsel %vm275, %v456, %v457
      %v466 = vsel %vm461, %v445, %v465
      %v467 = vsel %vm275, %v458, %v459
      %v468 = vsel %vm461, %v449, %v467
      %473 = vst [vmem:[#allocation3 + $0x40] sm:$0xff] %v462
      %474 = vst [vmem:[#allocation3 + $0x48] sm:$0xff] %v464
      %475 = vst [vmem:[#allocation3 + $0x50] sm:$0xff] %v466
      %476 = vst [vmem:[#allocation3 + $0x58] sm:$0xff] %v468
      %v477 = vld [vmem:[#allocation2] sm:$0xff]
      %v478 = vld [vmem:[#allocation2 + $0x8] sm:$0xf]
      %v479 = vld [vmem:[#allocation2 + $0x10] sm:$0xff]
      %v480 = vld [vmem:[#allocation2 + $0x18] sm:$0xf]
      %v481 = vld [vmem:[#allocation2 + $0x20] sm:$0xff]
      %v482 = vld [vmem:[#allocation2 + $0x28] sm:$0xf]
      %v483 = vld [vmem:[#allocation2 + $0x30] sm:$0xff]
      %v484 = vld [vmem:[#allocation2 + $0x38] sm:$0xf]
      %v485 = vsel %vm206, 1, 0
      %v486 = vsel %vm207, 1, 0
      %vm487 = vcmp.eq.s32.totalorder %v485, 1
      %vm488 = vcmp.eq.s32.totalorder %v486, 1
      %vm489 = vmpackc.low %vm488, %vm487
      %v490 = vsel %vm489, 65537, 0
      %491 = vrot.lane.b32.xlu0 %v490, 127
      %v492 = vpop.permute.xlu0 %491
      %v493 = vrot.slane %v492, 4
      %vm494 = vcmask 1039360
      %v495 = vsel %vm494, %v493, %v492
      %v496 = vunpack.c.l.b16 %v495
      %v497 = vunpack.c.h.b16 %v495
      %v498 = vunpack.c.l.b16 0
      %v499 = vunpack.c.h.b16 0
      %vm500 = vcmp.ne.s32.totalorder %v496, %v498
      %vm501 = vcmp.ne.s32.totalorder %v497, %v499
      %vm502 = vmpackc.low %vm501, %vm500
      %v503 = vunpack.c.l.b16 %v493
      %v504 = vunpack.c.h.b16 %v493
      %v505 = vunpack.c.l.b16 0
      %v506 = vunpack.c.h.b16 0
      %vm507 = vcmp.ne.s32.totalorder %v503, %v505
      %vm508 = vcmp.ne.s32.totalorder %v504, %v506
      %vm509 = vmpackc.low %vm508, %vm507
      %v510 = vsel %vm502, %v477, 0
      %v511 = vsel %vm509, %v478, 0
      %v512 = vsel %vm502, %v479, 0
      %v513 = vsel %vm509, %v480, 0
      %v514 = vsel %vm502, %v481, 0
      %v515 = vsel %vm509, %v482, 0
      %v516 = vsel %vm502, %v483, 0
      %v517 = vsel %vm509, %v484, 0
      %526 = vrot.lane.b32.xlu0 %v510, 1
      %v527 = vpop.permute.xlu0 %526
      %528 = vrot.lane.b32.xlu0 %v511, 1
      %v529 = vpop.permute.xlu0 %528
      %530 = vrot.lane.b32.xlu0 %v512, 1
      %v531 = vpop.permute.xlu0 %530
      %532 = vrot.lane.b32.xlu0 %v513, 1
      %v533 = vpop.permute.xlu0 %532
      %534 = vrot.lane.b32.xlu0 %v514, 1
      %v535 = vpop.permute.xlu0 %534
      %536 = vrot.lane.b32.xlu0 %v515, 1
      %v537 = vpop.permute.xlu0 %536
      %538 = vrot.lane.b32.xlu0 %v516, 1
      %v539 = vpop.permute.xlu0 %538
      %540 = vrot.lane.b32.xlu0 %v517, 1
      %v541 = vpop.permute.xlu0 %540
      %v542 = vrot.slane %v527, 4
      %v543 = vrot.slane %v529, 4
      %v544 = vrot.slane %v531, 4
      %v545 = vrot.slane %v533, 4
      %v546 = vrot.slane %v535, 4
      %v547 = vrot.slane %v537, 4
      %v548 = vrot.slane %v539, 4
      %v549 = vrot.slane %v541, 4
      %v550 = vsel %vm275, %v542, %v543
      %vm551 = vcmask 7168
      %v552 = vsel %vm551, %v527, %v550
      %v553 = vsel %vm275, %v544, %v545
      %v554 = vsel %vm551, %v531, %v553
      %v555 = vsel %vm275, %v546, %v547
      %v556 = vsel %vm551, %v535, %v555
      %v557 = vsel %vm275, %v548, %v549
      %v558 = vsel %vm551, %v539, %v557
      %563 = vst [vmem:[#allocation3 + $0x60] sm:$0xff] %v552
      %564 = vst [vmem:[#allocation3 + $0x68] sm:$0xff] %v554
      %565 = vst [vmem:[#allocation3 + $0x70] sm:$0xff] %v556
      %566 = vst [vmem:[#allocation3 + $0x78] sm:$0xff] %v558
      %v567 = vld [vmem:[#allocation2 + $0x4] sm:$0xff]
      %v568 = vld [vmem:[#allocation2 + $0x14] sm:$0xff]
      %v569 = vld [vmem:[#allocation2 + $0x24] sm:$0xff]
      %v570 = vld [vmem:[#allocation2 + $0x34] sm:$0xff]
      %571 = vst [vmem:[#allocation3 + $0x80] sm:$0xff] %v567
      %572 = vst [vmem:[#allocation3 + $0x88] sm:$0xff] %v568
      %573 = vst [vmem:[#allocation3 + $0x90] sm:$0xff] %v569
      %574 = vst [vmem:[#allocation3 + $0x98] sm:$0xff] %v570
      %v575 = vld [vmem:[#allocation2 + $0x4] sm:$0xff]
      %v576 = vld [vmem:[#allocation2 + $0xc] sm:$0xf]
      %v577 = vld [vmem:[#allocation2 + $0x14] sm:$0xff]
      %v578 = vld [vmem:[#allocation2 + $0x1c] sm:$0xf]
      %v579 = vld [vmem:[#allocation2 + $0x24] sm:$0xff]
      %v580 = vld [vmem:[#allocation2 + $0x2c] sm:$0xf]
      %v581 = vld [vmem:[#allocation2 + $0x34] sm:$0xff]
      %v582 = vld [vmem:[#allocation2 + $0x3c] sm:$0xf]
      %v583 = vsel %vm391, 1, 0
      %v584 = vsel %vm392, 1, 0
      %vm585 = vcmp.eq.s32.totalorder %v583, 1
      %vm586 = vcmp.eq.s32.totalorder %v584, 1
      %vm587 = vmpackc.low %vm586, %vm585
      %v588 = vsel %vm587, 65537, 0
      %589 = vrot.lane.b32.xlu0 %v588, 1
      %v590 = vpop.permute.xlu0 %589
      %v591 = vrot.slane %v590, 4
      %v592 = vsel %vm551, %v591, %v590
      %v593 = vunpack.c.l.b16 %v592
      %v594 = vunpack.c.h.b16 %v592
      %v595 = vunpack.c.l.b16 0
      %v596 = vunpack.c.h.b16 0
      %vm597 = vcmp.ne.s32.totalorder %v593, %v595
      %vm598 = vcmp.ne.s32.totalorder %v594, %v596
      %vm599 = vmpackc.low %vm598, %vm597
      %v600 = vunpack.c.l.b16 %v591
      %v601 = vunpack.c.h.b16 %v591
      %v602 = vunpack.c.l.b16 0
      %v603 = vunpack.c.h.b16 0
      %vm604 = vcmp.ne.s32.totalorder %v600, %v602
      %vm605 = vcmp.ne.s32.totalorder %v601, %v603
      %vm606 = vmpackc.low %vm605, %vm604
      %v607 = vsel %vm599, %v575, 0
      %v608 = vsel %vm606, %v576, 0
      %v609 = vsel %vm599, %v577, 0
      %v610 = vsel %vm606, %v578, 0
      %v611 = vsel %vm599, %v579, 0
      %v612 = vsel %vm606, %v580, 0
      %v613 = vsel %vm599, %v581, 0
      %v614 = vsel %vm606, %v582, 0
      %623 = vrot.lane.b32.xlu0 %v607, 127
      %v624 = vpop.permute.xlu0 %623
      %625 = vrot.lane.b32.xlu0 %v608, 127
      %v626 = vpop.permute.xlu0 %625
      %627 = vrot.lane.b32.xlu0 %v609, 127
      %v628 = vpop.permute.xlu0 %627
      %629 = vrot.lane.b32.xlu0 %v610, 127
      %v630 = vpop.permute.xlu0 %629
      %631 = vrot.lane.b32.xlu0 %v611, 127
      %v632 = vpop.permute.xlu0 %631
      %633 = vrot.lane.b32.xlu0 %v612, 127
      %v634 = vpop.permute.xlu0 %633
      %635 = vrot.lane.b32.xlu0 %v613, 127
      %v636 = vpop.permute.xlu0 %635
      %637 = vrot.lane.b32.xlu0 %v614, 127
      %v638 = vpop.permute.xlu0 %637
      %v639 = vrot.slane %v624, 4
      %v640 = vrot.slane %v626, 4
      %v641 = vrot.slane %v628, 4
      %v642 = vrot.slane %v630, 4
      %v643 = vrot.slane %v632, 4
      %v644 = vrot.slane %v634, 4
      %v645 = vrot.slane %v636, 4
      %v646 = vrot.slane %v638, 4
      %v647 = vsel %vm275, %v639, %v640
      %v648 = vsel %vm494, %v624, %v647
      %v649 = vsel %vm275, %v641, %v642
      %v650 = vsel %vm494, %v628, %v649
      %v651 = vsel %vm275, %v643, %v644
      %v652 = vsel %vm494, %v632, %v651
      %v653 = vsel %vm275, %v645, %v646
      %v654 = vsel %vm494, %v636, %v653
      %659 = vst [vmem:[#allocation3 + $0xa0] sm:$0xff] %v648
      %660 = vst [vmem:[#allocation3 + $0xa8] sm:$0xff] %v650
      %661 = vst [vmem:[#allocation3 + $0xb0] sm:$0xff] %v652
      %662 = vst [vmem:[#allocation3 + $0xb8] sm:$0xff] %v654
      %v663 = vld [vmem:[#allocation2 + $0x4] sm:$0xff]
      %v664 = vld [vmem:[#allocation2 + $0xc] sm:$0xf]
      %v665 = vld [vmem:[#allocation2 + $0x14] sm:$0xff]
      %v666 = vld [vmem:[#allocation2 + $0x1c] sm:$0xf]
      %v667 = vld [vmem:[#allocation2 + $0x24] sm:$0xff]
      %v668 = vld [vmem:[#allocation2 + $0x2c] sm:$0xf]
      %v669 = vld [vmem:[#allocation2 + $0x34] sm:$0xff]
      %v670 = vld [vmem:[#allocation2 + $0x3c] sm:$0xf]
      %vm671 = vcmp.lt.s32.totalorder %v192, 240
      %vm672 = vcmp.lt.s32.totalorder %v193, 240
      %vm673 = vmand %vm671, %vm206
      %vm674 = vmand %vm672, %vm207
      %v675 = vsel %vm673, 1, 0
      %v676 = vsel %vm674, 1, 0
      %vm677 = vcmp.eq.s32.totalorder %v675, 1
      %vm678 = vcmp.eq.s32.totalorder %v676, 1
      %vm679 = vmpackc.low %vm678, %vm677
      %v680 = vsel %vm679, 65537, 0
      %681 = vrot.lane.b32.xlu0 %v680, 15
      %v682 = vpop.permute.xlu0 %681
      %v683 = vrot.slane %v682, 4
      %v684 = vsel %vm461, %v683, %v682
      %v685 = vunpack.c.l.b16 %v684
      %v686 = vunpack.c.h.b16 %v684
      %v687 = vunpack.c.l.b16 0
      %v688 = vunpack.c.h.b16 0
      %vm689 = vcmp.ne.s32.totalorder %v685, %v687
      %vm690 = vcmp.ne.s32.totalorder %v686, %v688
      %vm691 = vmpackc.low %vm690, %vm689
      %v692 = vunpack.c.l.b16 %v683
      %v693 = vunpack.c.h.b16 %v683
      %v694 = vunpack.c.l.b16 0
      %v695 = vunpack.c.h.b16 0
      %vm696 = vcmp.ne.s32.totalorder %v692, %v694
      %vm697 = vcmp.ne.s32.totalorder %v693, %v695
      %vm698 = vmpackc.low %vm697, %vm696
      %v699 = vsel %vm691, %v663, 0
      %v700 = vsel %vm698, %v664, 0
      %v701 = vsel %vm691, %v665, 0
      %v702 = vsel %vm698, %v666, 0
      %v703 = vsel %vm691, %v667, 0
      %v704 = vsel %vm698, %v668, 0
      %v705 = vsel %vm691, %v669, 0
      %v706 = vsel %vm698, %v670, 0
      %715 = vrot.lane.b32.xlu0 %v699, 113
      %v716 = vpop.permute.xlu0 %715
      %717 = vrot.lane.b32.xlu0 %v700, 113
      %v718 = vpop.permute.xlu0 %717
      %719 = vrot.lane.b32.xlu0 %v701, 113
      %v720 = vpop.permute.xlu0 %719
      %721 = vrot.lane.b32.xlu0 %v702, 113
      %v722 = vpop.permute.xlu0 %721
      %723 = vrot.lane.b32.xlu0 %v703, 113
      %v724 = vpop.permute.xlu0 %723
      %725 = vrot.lane.b32.xlu0 %v704, 113
      %v726 = vpop.permute.xlu0 %725
      %727 = vrot.lane.b32.xlu0 %v705, 113
      %v728 = vpop.permute.xlu0 %727
      %729 = vrot.lane.b32.xlu0 %v706, 113
      %v730 = vpop.permute.xlu0 %729
      %v731 = vrot.slane %v716, 4
      %v732 = vrot.slane %v718, 4
      %v733 = vrot.slane %v720, 4
      %v734 = vrot.slane %v722, 4
      %v735 = vrot.slane %v724, 4
      %v736 = vrot.slane %v726, 4
      %v737 = vrot.slane %v728, 4
      %v738 = vrot.slane %v730, 4
      %v739 = vsel %vm275, %v731, %v732
      %v740 = vsel %vm404, %v716, %v739
      %v741 = vsel %vm275, %v733, %v734
      %v742 = vsel %vm404, %v720, %v741
      %v743 = vsel %vm275, %v735, %v736
      %v744 = vsel %vm404, %v724, %v743
      %v745 = vsel %vm275, %v737, %v738
      %v746 = vsel %vm404, %v728, %v745
      %751 = vst [vmem:[#allocation3 + $0xc0] sm:$0xff] %v740
      %752 = vst [vmem:[#allocation3 + $0xc8] sm:$0xff] %v742
      %753 = vst [vmem:[#allocation3 + $0xd0] sm:$0xff] %v744
      %754 = vst [vmem:[#allocation3 + $0xd8] sm:$0xff] %v746
      %v755 = vld [vmem:[#allocation2 + $0x4] sm:$0xff]
      %v756 = vld [vmem:[#allocation2 + $0xc] sm:$0xf]
      %v757 = vld [vmem:[#allocation2 + $0x14] sm:$0xff]
      %v758 = vld [vmem:[#allocation2 + $0x1c] sm:$0xf]
      %v759 = vld [vmem:[#allocation2 + $0x24] sm:$0xff]
      %v760 = vld [vmem:[#allocation2 + $0x2c] sm:$0xf]
      %v761 = vld [vmem:[#allocation2 + $0x34] sm:$0xff]
      %v762 = vld [vmem:[#allocation2 + $0x3c] sm:$0xf]
      %v763 = vsel %vm671, 1, 0
      %v764 = vsel %vm672, 1, 0
      %vm765 = vcmp.eq.s32.totalorder %v763, 1
      %vm766 = vcmp.eq.s32.totalorder %v764, 1
      %vm767 = vmpackc.low %vm766, %vm765
      %v768 = vsel %vm767, 65537, 0
      %769 = vrot.lane.b32.xlu0 %v768, 16
      %v770 = vpop.permute.xlu0 %769
      %v771 = vrot.slane %v770, 4
      %v772 = vsel %vm367, %v771, %v770
      %v773 = vunpack.c.l.b16 %v772
      %v774 = vunpack.c.h.b16 %v772
      %v775 = vunpack.c.l.b16 0
      %v776 = vunpack.c.h.b16 0
      %vm777 = vcmp.ne.s32.totalorder %v773, %v775
      %vm778 = vcmp.ne.s32.totalorder %v774, %v776
      %vm779 = vmpackc.low %vm778, %vm777
      %v780 = vunpack.c.l.b16 %v771
      %v781 = vunpack.c.h.b16 %v771
      %v782 = vunpack.c.l.b16 0
      %v783 = vunpack.c.h.b16 0
      %vm784 = vcmp.ne.s32.totalorder %v780, %v782
      %vm785 = vcmp.ne.s32.totalorder %v781, %v783
      %vm786 = vmpackc.low %vm785, %vm784
      %v787 = vsel %vm779, %v755, 0
      %v788 = vsel %vm786, %v756, 0
      %v789 = vsel %vm779, %v757, 0
      %v790 = vsel %vm786, %v758, 0
      %v791 = vsel %vm779, %v759, 0
      %v792 = vsel %vm786, %v760, 0
      %v793 = vsel %vm779, %v761, 0
      %v794 = vsel %vm786, %v762, 0
      %803 = vrot.lane.b32.xlu0 %v787, 112
      %v804 = vpop.permute.xlu0 %803
      %805 = vrot.lane.b32.xlu0 %v788, 112
      %v806 = vpop.permute.xlu0 %805
      %807 = vrot.lane.b32.xlu0 %v789, 112
      %v808 = vpop.permute.xlu0 %807
      %809 = vrot.lane.b32.xlu0 %v790, 112
      %v810 = vpop.permute.xlu0 %809
      %811 = vrot.lane.b32.xlu0 %v791, 112
      %v812 = vpop.permute.xlu0 %811
      %813 = vrot.lane.b32.xlu0 %v792, 112
      %v814 = vpop.permute.xlu0 %813
      %815 = vrot.lane.b32.xlu0 %v793, 112
      %v816 = vpop.permute.xlu0 %815
      %817 = vrot.lane.b32.xlu0 %v794, 112
      %v818 = vpop.permute.xlu0 %817
      %v819 = vrot.slane %v804, 4
      %v820 = vrot.slane %v806, 4
      %v821 = vrot.slane %v808, 4
      %v822 = vrot.slane %v810, 4
      %v823 = vrot.slane %v812, 4
      %v824 = vrot.slane %v814, 4
      %v825 = vrot.slane %v816, 4
      %v826 = vrot.slane %v818, 4
      %v827 = vsel %vm275, %v819, %v820
      %v828 = vsel %vm310, %v804, %v827
      %v829 = vsel %vm275, %v821, %v822
      %v830 = vsel %vm310, %v808, %v829
      %v831 = vsel %vm275, %v823, %v824
      %v832 = vsel %vm310, %v812, %v831
      %v833 = vsel %vm275, %v825, %v826
      %v834 = vsel %vm310, %v816, %v833
      %839 = vst [vmem:[#allocation3 + $0xe0] sm:$0xff] %v828
      %840 = vst [vmem:[#allocation3 + $0xe8] sm:$0xff] %v830
      %841 = vst [vmem:[#allocation3 + $0xf0] sm:$0xff] %v832
      %842 = vst [vmem:[#allocation3 + $0xf8] sm:$0xff] %v834
      %v843 = vld [vmem:[#allocation2 + $0x4] sm:$0xff]
      %v844 = vld [vmem:[#allocation2 + $0xc] sm:$0xf]
      %v845 = vld [vmem:[#allocation2 + $0x14] sm:$0xff]
      %v846 = vld [vmem:[#allocation2 + $0x1c] sm:$0xf]
      %v847 = vld [vmem:[#allocation2 + $0x24] sm:$0xff]
      %v848 = vld [vmem:[#allocation2 + $0x2c] sm:$0xf]
      %v849 = vld [vmem:[#allocation2 + $0x34] sm:$0xff]
      %v850 = vld [vmem:[#allocation2 + $0x3c] sm:$0xf]
      %vm851 = vmand %vm671, %vm391
      %vm852 = vmand %vm672, %vm392
      %v853 = vsel %vm851, 1, 0
      %v854 = vsel %vm852, 1, 0
      %vm855 = vcmp.eq.s32.totalorder %v853, 1
      %vm856 = vcmp.eq.s32.totalorder %v854, 1
      %vm857 = vmpackc.low %vm856, %vm855
      %v858 = vsel %vm857, 65537, 0
      %859 = vrot.lane.b32.xlu0 %v858, 17
      %v860 = vpop.permute.xlu0 %859
      %v861 = vrot.slane %v860, 4
      %v862 = vsel %vm277, %v861, %v860
      %v863 = vunpack.c.l.b16 %v862
      %v864 = vunpack.c.h.b16 %v862
      %v865 = vunpack.c.l.b16 0
      %v866 = vunpack.c.h.b16 0
      %vm867 = vcmp.ne.s32.totalorder %v863, %v865
      %vm868 = vcmp.ne.s32.totalorder %v864, %v866
      %vm869 = vmpackc.low %vm868, %vm867
      %v870 = vunpack.c.l.b16 %v861
      %v871 = vunpack.c.h.b16 %v861
      %v872 = vunpack.c.l.b16 0
      %v873 = vunpack.c.h.b16 0
      %vm874 = vcmp.ne.s32.totalorder %v870, %v872
      %vm875 = vcmp.ne.s32.totalorder %v871, %v873
      %vm876 = vmpackc.low %vm875, %vm874
      %v877 = vsel %vm869, %v843, 0
      %v878 = vsel %vm876, %v844, 0
      %v879 = vsel %vm869, %v845, 0
      %v880 = vsel %vm876, %v846, 0
      %v881 = vsel %vm869, %v847, 0
      %v882 = vsel %vm876, %v848, 0
      %v883 = vsel %vm869, %v849, 0
      %v884 = vsel %vm876, %v850, 0
      %893 = vrot.lane.b32.xlu0 %v877, 111
      %v894 = vpop.permute.xlu0 %893
      %895 = vrot.lane.b32.xlu0 %v878, 111
      %v896 = vpop.permute.xlu0 %895
      %897 = vrot.lane.b32.xlu0 %v879, 111
      %v898 = vpop.permute.xlu0 %897
      %899 = vrot.lane.b32.xlu0 %v880, 111
      %v900 = vpop.permute.xlu0 %899
      %901 = vrot.lane.b32.xlu0 %v881, 111
      %v902 = vpop.permute.xlu0 %901
      %903 = vrot.lane.b32.xlu0 %v882, 111
      %v904 = vpop.permute.xlu0 %903
      %905 = vrot.lane.b32.xlu0 %v883, 111
      %v906 = vpop.permute.xlu0 %905
      %907 = vrot.lane.b32.xlu0 %v884, 111
      %v908 = vpop.permute.xlu0 %907
      %v909 = vrot.slane %v894, 4
      %v910 = vrot.slane %v896, 4
      %v911 = vrot.slane %v898, 4
      %v912 = vrot.slane %v900, 4
      %v913 = vrot.slane %v902, 4
      %v914 = vrot.slane %v904, 4
      %v915 = vrot.slane %v906, 4
      %v916 = vrot.slane %v908, 4
      %v917 = vsel %vm275, %v909, %v910
      %v918 = vsel %vm219, %v894, %v917
      %v919 = vsel %vm275, %v911, %v912
      %v920 = vsel %vm219, %v898, %v919
      %v921 = vsel %vm275, %v913, %v914
      %v922 = vsel %vm219, %v902, %v921
      %v923 = vsel %vm275, %v915, %v916
      %v924 = vsel %vm219, %v906, %v923
      %929 = vst [vmem:[#allocation3 + $0x100] sm:$0xff] %v918
      %930 = vst [vmem:[#allocation3 + $0x108] sm:$0xff] %v920
      %931 = vst [vmem:[#allocation3 + $0x110] sm:$0xff] %v922
      %932 = vst [vmem:[#allocation3 + $0x118] sm:$0xff] %v924
      %v933 = vld [vmem:[%s1] sm:$0xff]
      %v934 = vld [vmem:[%s1 + $0x8] sm:$0xf]
      %v935 = vld [vmem:[%s1 + $0xc] sm:$0xff]
      %v936 = vld [vmem:[%s1 + $0x14] sm:$0xf]
      %v937 = vld [vmem:[#allocation3] sm:$0xff]
      %v938 = vld [vmem:[#allocation3 + $0x8] sm:$0xff]
      %v939 = vld [vmem:[#allocation3 + $0x10] sm:$0xff]
      %v940 = vld [vmem:[#allocation3 + $0x18] sm:$0xff]
      %v941 = vld [vmem:[#allocation3 + $0x20] sm:$0xff]
      %v942 = vld [vmem:[#allocation3 + $0x28] sm:$0xff]
      %v943 = vld [vmem:[#allocation3 + $0x30] sm:$0xff]
      %v944 = vld [vmem:[#allocation3 + $0x38] sm:$0xff]
      %v945 = vld [vmem:[#allocation3 + $0x40] sm:$0xff]
      %v946 = vld [vmem:[#allocation3 + $0x48] sm:$0xff]
      %v947 = vld [vmem:[#allocation3 + $0x50] sm:$0xff]
      %v948 = vld [vmem:[#allocation3 + $0x58] sm:$0xff]
      %v949 = vld [vmem:[#allocation3 + $0x60] sm:$0xff]
      %v950 = vld [vmem:[#allocation3 + $0x68] sm:$0xff]
      %v951 = vld [vmem:[#allocation3 + $0x70] sm:$0xff]
      %v952 = vld [vmem:[#allocation3 + $0x78] sm:$0xff]
      %v953 = vld [vmem:[#allocation3 + $0x80] sm:$0xff]
      %v954 = vld [vmem:[#allocation3 + $0x88] sm:$0xff]
      %v955 = vld [vmem:[#allocation3 + $0x90] sm:$0xff]
      %v956 = vld [vmem:[#allocation3 + $0x98] sm:$0xff]
      %v957 = vld [vmem:[#allocation3 + $0xa0] sm:$0xff]
      %v958 = vld [vmem:[#allocation3 + $0xa8] sm:$0xff]
      %v959 = vld [vmem:[#allocation3 + $0xb0] sm:$0xff]
      %v960 = vld [vmem:[#allocation3 + $0xb8] sm:$0xff]
      %v961 = vld [vmem:[#allocation3 + $0xc0] sm:$0xff]
      %v962 = vld [vmem:[#allocation3 + $0xc8] sm:$0xff]
      %v963 = vld [vmem:[#allocation3 + $0xd0] sm:$0xff]
      %v964 = vld [vmem:[#allocation3 + $0xd8] sm:$0xff]
      %v965 = vld [vmem:[#allocation3 + $0xe0] sm:$0xff]
      %v966 = vld [vmem:[#allocation3 + $0xe8] sm:$0xff]
      %v967 = vld [vmem:[#allocation3 + $0xf0] sm:$0xff]
      %v968 = vld [vmem:[#allocation3 + $0xf8] sm:$0xff]
      %v969 = vld [vmem:[#allocation3 + $0x100] sm:$0xff]
      %v970 = vld [vmem:[#allocation3 + $0x108] sm:$0xff]
      %v971 = vld [vmem:[#allocation3 + $0x110] sm:$0xff]
      %v972 = vld [vmem:[#allocation3 + $0x118] sm:$0xff]
      %v973 = vld [vmem:[%s2] sm:$0xff]
      %v974 = vld [vmem:[%s2 + $0x8] sm:$0xff]
      %976 = vset.pattern.permute.xlu0 0
      %977 = vperm.xlu0 %976, %v973
      %v978 = vpop.permute.xlu0 %977
      %981 = vset.pattern.permute.xlu0 0
      %982 = vperm.xlu0 %981, %v974
      %v983 = vpop.permute.xlu0 %982
      %v989 = vunpack.c.l.b16 %v933
      %v990 = vunpack.c.h.b16 %v933
      %v991 = vunpack.c.l.b16 %v934
      %v992 = vunpack.c.l.b16 %v935
      %v993 = vunpack.c.h.b16 %v935
      %v994 = vunpack.c.l.b16 %v936
      %v995 = vpack.c.b16 %v992, %v989
      %v996 = vpack.c.b16 %v993, %v990
      %v997 = vpack.c.b16 %v994, %v991
      %v1036 = vunpack.c.l.b16 %v937
      %v1037 = vunpack.c.h.b16 %v937
      %v1038 = vunpack.c.l.b16 %v938
      %v1039 = vunpack.c.h.b16 %v938
      %v1040 = vunpack.c.l.b16 %v939
      %v1041 = vunpack.c.h.b16 %v939
      %v1042 = vunpack.c.l.b16 %v940
      %v1043 = vunpack.c.h.b16 %v940
      %v1044 = vunpack.c.l.b16 %v941
      %v1045 = vunpack.c.h.b16 %v941
      %v1046 = vunpack.c.l.b16 %v942
      %v1047 = vunpack.c.h.b16 %v942
      %v1048 = vunpack.c.l.b16 %v943
      %v1049 = vunpack.c.h.b16 %v943
      %v1050 = vunpack.c.l.b16 %v944
      %v1051 = vunpack.c.h.b16 %v944
      %v1052 = vunpack.c.l.b16 %v945
      %v1053 = vunpack.c.h.b16 %v945
      %v1054 = vunpack.c.l.b16 %v946
      %v1055 = vunpack.c.h.b16 %v946
      %v1056 = vunpack.c.l.b16 %v947
      %v1057 = vunpack.c.h.b16 %v947
      %v1058 = vunpack.c.l.b16 %v948
      %v1059 = vunpack.c.h.b16 %v948
      %v1060 = vunpack.c.l.b16 %v949
      %v1061 = vunpack.c.h.b16 %v949
      %v1062 = vunpack.c.l.b16 %v950
      %v1063 = vunpack.c.h.b16 %v950
      %v1064 = vunpack.c.l.b16 %v951
      %v1065 = vunpack.c.h.b16 %v951
      %v1066 = vunpack.c.l.b16 %v952
      %v1067 = vunpack.c.h.b16 %v952
      %v1068 = vunpack.c.l.b16 %v953
      %v1069 = vunpack.c.h.b16 %v953
      %v1070 = vunpack.c.l.b16 %v954
      %v1071 = vunpack.c.h.b16 %v954
      %v1072 = vunpack.c.l.b16 %v955
      %v1073 = vunpack.c.h.b16 %v955
      %v1074 = vunpack.c.l.b16 %v956
      %v1075 = vunpack.c.h.b16 %v956
      %v1076 = vunpack.c.l.b16 %v957
      %v1077 = vunpack.c.h.b16 %v957
      %v1078 = vunpack.c.l.b16 %v958
      %v1079 = vunpack.c.h.b16 %v958
      %v1080 = vunpack.c.l.b16 %v959
      %v1081 = vunpack.c.h.b16 %v959
      %v1082 = vunpack.c.l.b16 %v960
      %v1083 = vunpack.c.h.b16 %v960
      %v1084 = vunpack.c.l.b16 %v961
      %v1085 = vunpack.c.h.b16 %v961
      %v1086 = vunpack.c.l.b16 %v962
      %v1087 = vunpack.c.h.b16 %v962
      %v1088 = vunpack.c.l.b16 %v963
      %v1089 = vunpack.c.h.b16 %v963
      %v1090 = vunpack.c.l.b16 %v964
      %v1091 = vunpack.c.h.b16 %v964
      %v1092 = vunpack.c.l.b16 %v965
      %v1093 = vunpack.c.h.b16 %v965
      %v1094 = vunpack.c.l.b16 %v966
      %v1095 = vunpack.c.h.b16 %v966
      %v1096 = vunpack.c.l.b16 %v967
      %v1097 = vunpack.c.h.b16 %v967
      %v1098 = vunpack.c.l.b16 %v968
      %v1099 = vunpack.c.h.b16 %v968
      %v1100 = vunpack.c.l.b16 %v969
      %v1101 = vunpack.c.h.b16 %v969
      %v1102 = vunpack.c.l.b16 %v970
      %v1103 = vunpack.c.h.b16 %v970
      %v1104 = vunpack.c.l.b16 %v971
      %v1105 = vunpack.c.h.b16 %v971
      %v1106 = vunpack.c.l.b16 %v972
      %v1107 = vunpack.c.h.b16 %v972
      %v1108 = vpack.c.b16 %v1038, %v1036
      %v1109 = vpack.c.b16 %v1039, %v1037
      %v1110 = vpack.c.b16 %v1042, %v1040
      %v1111 = vpack.c.b16 %v1043, %v1041
      %v1112 = vpack.c.b16 %v1046, %v1044
      %v1113 = vpack.c.b16 %v1047, %v1045
      %v1114 = vpack.c.b16 %v1050, %v1048
      %v1115 = vpack.c.b16 %v1051, %v1049
      %v1116 = vpack.c.b16 %v1054, %v1052
      %v1117 = vpack.c.b16 %v1055, %v1053
      %v1118 = vpack.c.b16 %v1058, %v1056
      %v1119 = vpack.c.b16 %v1059, %v1057
      %v1120 = vpack.c.b16 %v1062, %v1060
      %v1121 = vpack.c.b16 %v1063, %v1061
      %v1122 = vpack.c.b16 %v1066, %v1064
      %v1123 = vpack.c.b16 %v1067, %v1065
      %v1124 = vpack.c.b16 %v1070, %v1068
      %v1125 = vpack.c.b16 %v1071, %v1069
      %v1126 = vpack.c.b16 %v1074, %v1072
      %v1127 = vpack.c.b16 %v1075, %v1073
      %v1128 = vpack.c.b16 %v1078, %v1076
      %v1129 = vpack.c.b16 %v1079, %v1077
      %v1130 = vpack.c.b16 %v1082, %v1080
      %v1131 = vpack.c.b16 %v1083, %v1081
      %v1132 = vpack.c.b16 %v1086, %v1084
      %v1133 = vpack.c.b16 %v1087, %v1085
      %v1134 = vpack.c.b16 %v1090, %v1088
      %v1135 = vpack.c.b16 %v1091, %v1089
      %v1136 = vpack.c.b16 %v1094, %v1092
      %v1137 = vpack.c.b16 %v1095, %v1093
      %v1138 = vpack.c.b16 %v1098, %v1096
      %v1139 = vpack.c.b16 %v1099, %v1097
      %v1140 = vpack.c.b16 %v1102, %v1100
      %v1141 = vpack.c.b16 %v1103, %v1101
      %v1142 = vpack.c.b16 %v1106, %v1104
      %v1143 = vpack.c.b16 %v1107, %v1105
      %vm1180 = vcmask 261120
      %v1182 = vsel %vm1180, %v997, 0
      %1184 = vmatpush.bf16.msra.mxu0 %v1122
      %1185 = vmatpush.bf16.msra.mxu0 %v1120
      %1186 = vmatpush.bf16.msra.mxu0 %v1118
      %1187 = vmatpush.bf16.msra.mxu0 %v1116
      %1188 = vmatpush.bf16.msra.mxu0 %v1114
      %1189 = vmatpush.bf16.msra.mxu0 %v1112
      %1190 = vmatpush.bf16.msra.mxu0 %v1110
      %1191 = vmatpush.bf16.msra.mxu0 %v1108
      %1192 = vmatmul.bf16.gmra.mxu0 %v995
      %v1193 = vpop.f32.mrf.mxu0
      %v1194 = vadd.f32 %v978, %v1193
      %v1195 = vpop.f32.mrf.mxu0
      %v1196 = vadd.f32 %v983, %v1195
      %1197 = vdwg.mxu0
      %1198 = vmatpush.bf16.msra.mxu0 %v1138
      %1199 = vmatpush.bf16.msra.mxu0 %v1136
      %1200 = vmatpush.bf16.msra.mxu0 %v1134
      %1201 = vmatpush.bf16.msra.mxu0 %v1132
      %1202 = vmatpush.bf16.msra.mxu0 %v1130
      %1203 = vmatpush.bf16.msra.mxu0 %v1128
      %1204 = vmatpush.bf16.msra.mxu0 %v1126
      %1205 = vmatpush.bf16.msra.mxu0 %v1124
      %1206 = vmatmul.bf16.gmra.mxu0 %v996
      %v1207 = vpop.f32.mrf.mxu0
      %v1208 = vadd.f32 %v1194, %v1207
      %v1209 = vpop.f32.mrf.mxu0
      %v1210 = vadd.f32 %v1196, %v1209
      %1211 = vdwg.mxu0
      %1212 = vmatpush.bf16.msra.mxu0 0
      %1213 = vmatpush.bf16.msra.mxu0 0
      %1214 = vmatpush.bf16.msra.mxu0 0
      %1215 = vmatpush.bf16.msra.mxu0 0
      %1216 = vmatpush.bf16.msra.mxu0 0
      %1217 = vmatpush.bf16.msra.mxu0 0
      %1218 = vmatpush.bf16.msra.mxu0 %v1142
      %1219 = vmatpush.bf16.msra.mxu0 %v1140
      %1220 = vmatmul.bf16.gmra.mxu0 %v1182
      %v1221 = vpop.f32.mrf.mxu0
      %v1222 = vadd.f32 %v1208, %v1221
      %v1223 = vpop.f32.mrf.mxu0
      %v1224 = vadd.f32 %v1210, %v1223
      %1225 = vdwg.mxu0
      %1226 = vmatpush.bf16.msra.mxu0 %v1123
      %1227 = vmatpush.bf16.msra.mxu0 %v1121
      %1228 = vmatpush.bf16.msra.mxu0 %v1119
      %1229 = vmatpush.bf16.msra.mxu0 %v1117
      %1230 = vmatpush.bf16.msra.mxu0 %v1115
      %1231 = vmatpush.bf16.msra.mxu0 %v1113
      %1232 = vmatpush.bf16.msra.mxu0 %v1111
      %1233 = vmatpush.bf16.msra.mxu0 %v1109
      %1234 = vmatmul.bf16.gmra.mxu0 %v995
      %v1235 = vpop.f32.mrf.mxu0
      %v1236 = vadd.f32 %v978, %v1235
      %v1237 = vpop.f32.mrf.mxu0
      %v1238 = vadd.f32 %v983, %v1237
      %1239 = vdwg.mxu0
      %1240 = vmatpush.bf16.msra.mxu0 %v1139
      %1241 = vmatpush.bf16.msra.mxu0 %v1137
      %1242 = vmatpush.bf16.msra.mxu0 %v1135
      %1243 = vmatpush.bf16.msra.mxu0 %v1133
      %1244 = vmatpush.bf16.msra.mxu0 %v1131
      %1245 = vmatpush.bf16.msra.mxu0 %v1129
      %1246 = vmatpush.bf16.msra.mxu0 %v1127
      %1247 = vmatpush.bf16.msra.mxu0 %v1125
      %1248 = vmatmul.bf16.gmra.mxu0 %v996
      %v1249 = vpop.f32.mrf.mxu0
      %v1250 = vadd.f32 %v1236, %v1249
      %v1251 = vpop.f32.mrf.mxu0
      %v1252 = vadd.f32 %v1238, %v1251
      %1253 = vdwg.mxu0
      %1254 = vmatpush.bf16.msra.mxu0 0
      %1255 = vmatpush.bf16.msra.mxu0 0
      %1256 = vmatpush.bf16.msra.mxu0 0
      %1257 = vmatpush.bf16.msra.mxu0 0
      %1258 = vmatpush.bf16.msra.mxu0 0
      %1259 = vmatpush.bf16.msra.mxu0 0
      %1260 = vmatpush.bf16.msra.mxu0 %v1143
      %1261 = vmatpush.bf16.msra.mxu0 %v1141
      %1262 = vmatmul.bf16.gmra.mxu0 %v1182
      %v1263 = vpop.f32.mrf.mxu0
      %v1264 = vadd.f32 %v1250, %v1263
      %v1265 = vpop.f32.mrf.mxu0
      %v1266 = vadd.f32 %v1252, %v1265
      %1267 = vdwg.mxu0
      %v1268 = vmax.f32 %v1222, 0.0
      %v1269 = vmax.f32 %v1264, 0.0
      %v1270 = vmax.f32 %v1224, 0.0
      %v1271 = vmax.f32 %v1266, 0.0
      %v1272 = vpack.c.bf16 %v1269, %v1268
      %v1273 = vpack.c.bf16 %v1271, %v1270
      %1274 = vst [vmem:[%s170] sm:$0xff] %v1272
      %1275 = vst [vmem:[%s170 + $0x8] sm:$0xff] %v1273
      %p1276 = scmp.lt.s32.totalorder %s14, 1
      %s1277 = scalar_select %p1276, %s14, 1
      %s1278 = smul.addr %s1277, 4
      %s1279 = smul.addr %s1278, 4
      %s1280 = scalar_lea.vmem %s3, %s1279
      // Predicated region
      $region33: #{sipr_forward.10} parent=31 // pred_check
        %p1281 = pneg %p100
      $region34: #{sipr_forward.10} parent=31 // pred_check_branch
        %1283 = sbr.rel (%p1281) target = $region36
      $region35: #{sipr_forward.10} parent=31 // pred_region
        _
      $region36: #{sipr_forward.10} parent=31 // pred_fallthru
        _
    $region32: #{sipr_forward.10} parent=5 // pred_fallthru
      _
    %p1284 = scmp.le.s32.totalorder 2, %s9
    // Predicated region
    $region37: #{sipr_forward.10} parent=5 // pred_check
      %p1285 = pneg %p1284
    $region38: #{sipr_forward.10} parent=5 // pred_check_branch
      %1287 = sbr.rel (%p1285) target = $region40
    $region39: #{sipr_forward.10} parent=5 // pred_region
      %s1288 = ssub.s32 %s9, 2
      // Predicated region
      $region41: #{sipr_forward.10} parent=39 // pred_check
        %p1289 = pneg %p106
      $region42: #{sipr_forward.10} parent=39 // pred_check_branch
        %1291 = sbr.rel (%p1289) target = $region44
      $region43: #{sipr_forward.10} parent=39 // pred_region
        %p1292 = scmp.lt.s32.totalorder %s15, 1
        %s1293 = scalar_select %p1292, %s15, 1
        %s1294 = smul.addr %s1293, 4
        %s1295 = smul.addr %s1294, 4
        %s1296 = scalar_lea.vmem %s3, %s1295
      $region44: #{sipr_forward.10} parent=39 // pred_fallthru
        _
    $region40: #{sipr_forward.10} parent=5 // pred_fallthru
      _
  $region6: #{sipr_forward.10} parent=0 // loop_footer
    %s13 = sadd.s32 1, %s9
  $region7: #{sipr_forward.10} parent=0 // loop_footer_branch
    %8 = sbr.rel target = $region3
  $region8: #{sipr_forward.10} parent=0 // loop_exit
    _

</llo_original>
